<compile_context>
chip_gen: v7x
topology: tpu7x:2x2x1
jax: 0.10.0
libtpu: 0.0.40
codegen_flags: <defaults>
</compile_context>

<pallas_src>
import jax
import jax.numpy as jnp
import numpy as np
from jax.experimental import pallas as pl
from jax.experimental.pallas import tpu as pltpu


def _encoder_block_kernel(x_ref, w1_ref, b1_ref, w2_ref, b2_ref,
                          shift_ref, rowsel_ref, colsel_ref,
                          x_out_ref, p_out_ref):
    """One batch block; every operand is a lane-packed 2-D (or stacked 2-D) tile.

    x_ref      : (BH, W*Cin)                    input rows of this batch block
    w1_ref     : (3, W*Cin,  W*Cout)            band weights of conv1 (per dy tap)
    b1_ref     : (1, W*Cout)                    conv1 bias tiled across W
    w2_ref     : (3, W*Cout, W*Cout)            band weights of conv2
    b2_ref     : (1, W*Cout)
    shift_ref  : (2, BH, BH)                    [0] picks row h-1, [1] picks row h+1
    rowsel_ref : (2, BH//2, BH)                 even / odd row selectors  (pool H)
    colsel_ref : (2, W*Cout, (W//2)*Cout)       even / odd W-group selectors (pool W)
    x_out_ref  : (BH, W*Cout)
    p_out_ref  : (BH//2, (W//2)*Cout)
    """
    f32 = jnp.float32
    hi = jax.lax.Precision.HIGHEST

    def mm(a, b):
        return jnp.dot(a, b, precision=hi, preferred_element_type=f32)

    x = x_ref[...].astype(f32)          # (BH, W*Cin)
    s_dn = shift_ref[0]                 # row h <- row h-1 (zero at top border)
    s_up = shift_ref[1]                 # row h <- row h+1 (zero at bottom border)

    # ---------------- conv1 (3x3, pad=1) + bias + ReLU ----------------
    acc1 = (mm(mm(s_dn, x), w1_ref[0])
            + mm(x, w1_ref[1])
            + mm(mm(s_up, x), w1_ref[2]))
    y1 = jnp.maximum(acc1 + b1_ref[...], 0.0)                  # (BH, W*Cout)

    # ---------------- conv2 (3x3, pad=1) + bias + ReLU ----------------
    acc2 = (mm(mm(s_dn, y1), w2_ref[0])
            + mm(y1, w2_ref[1])
            + mm(mm(s_up, y1), w2_ref[2]))
    y2 = jnp.maximum(acc2 + b2_ref[...], 0.0)                  # (BH, W*Cout)
    x_out_ref[...] = y2.astype(x_out_ref.dtype)                # one lane-dense store

    # ---------------- maxpool 2x2, stride 2 ----------------
    hm = jnp.maximum(mm(rowsel_ref[0], y2), mm(rowsel_ref[1], y2))   # (BH//2, W*Cout)
    p = jnp.maximum(mm(hm, colsel_ref[0]), mm(hm, colsel_ref[1]))    # (BH//2, (W//2)*Cout)
    p_out_ref[...] = p.astype(p_out_ref.dtype)                 # one full-tile store


def _pick_batch_block(B):
    # Largest divisor of B (<=8) that still leaves >= 2 grid steps (v7x has 2 TCs).
    for cand in (8, 4, 2):
        if B % cand == 0 and B // cand >= 2:
            return cand
    return 1


def encoder_block(x_nchw, w1_oihw, b1, w2_oihw, b2):
    """Matches PyTorch EncoderBlock.forward: returns (x, p) in NCHW."""
    B, Cin, H, W = x_nchw.shape
    Cout = w1_oihw.shape[0]
    assert H % 2 == 0 and W % 2 == 0

    bblk = _pick_batch_block(B)
    BH, BH2 = bblk * H, bblk * (H // 2)
    WCi, WCo, W2Co = W * Cin, W * Cout, (W // 2) * Cout
    hi = jax.lax.Precision.HIGHEST

    # Lane-packed input: (B*H, W*Cin); channels fastest on the lane axis.
    x2d = jnp.transpose(x_nchw, (0, 2, 3, 1)).reshape(B * H, WCi)

    # Band ("block tri-diagonal") conv weights: fold the 3 dx taps and the full
    # channel contraction into one (W*Ci, W*Co) matrix per dy tap.  The missing
    # border blocks encode the W-direction zero padding.
    def band(w_oihw):
        ci, co = w_oihw.shape[1], w_oihw.shape[0]
        w_hwio = jnp.transpose(w_oihw, (2, 3, 1, 0))            # (3,3,ci,co)
        dxsel = np.zeros((W, W, 3), np.float32)                 # [w_in, w_out, dx]
        for wo in range(W):
            for dx in range(3):
                wi = wo + dx - 1
                if 0 <= wi < W:
                    dxsel[wi, wo, dx] = 1.0
        big = jnp.einsum('abx,yxio->yaibo', dxsel, w_hwio, precision=hi)
        return big.reshape(3, W * ci, W * co)                   # (3, W*ci, W*co)

    w1big = band(w1_oihw)                                       # (3, W*Cin,  W*Cout)
    w2big = band(w2_oihw)                                       # (3, W*Cout, W*Cout)
    b1row = jnp.tile(b1, W).reshape(1, WCo)
    b2row = jnp.tile(b2, W).reshape(1, WCo)

    # Structural 0/1 matrices (host-built constants).
    shifts = np.zeros((2, BH, BH), np.float32)
    for b in range(bblk):
        for h in range(H):
            g = b * H + h
            if h > 0:
                shifts[0, g, g - 1] = 1.0       # dy=0 tap: row h-1
            if h < H - 1:
                shifts[1, g, g + 1] = 1.0       # dy=2 tap: row h+1
    rowsel = np.zeros((2, BH2, BH), np.float32)
    for i in range(BH2):
        rowsel[0, i, 2 * i] = 1.0
        rowsel[1, i, 2 * i + 1] = 1.0
    colsel = np.zeros((2, WCo, W2Co), np.float32)
    for j in range(W // 2):
        for c in range(Cout):
            colsel[0, (2 * j) * Cout + c, j * Cout + c] = 1.0
            colsel[1, (2 * j + 1) * Cout + c, j * Cout + c] = 1.0

    x_out2d, p_out2d = pl.pallas_call(
        _encoder_block_kernel,
        out_shape=(
            jax.ShapeDtypeStruct((B * H, WCo), x_nchw.dtype),
            jax.ShapeDtypeStruct((B * (H // 2), W2Co), x_nchw.dtype),
        ),
        grid_spec=pltpu.PrefetchScalarGridSpec(
            num_scalar_prefetch=0,
            grid=(B // bblk,),
            in_specs=[
                pl.BlockSpec((BH, WCi), lambda i: (i, 0)),
                pl.BlockSpec((3, WCi, WCo), lambda i: (0, 0, 0)),
                pl.BlockSpec((1, WCo), lambda i: (0, 0)),
                pl.BlockSpec((3, WCo, WCo), lambda i: (0, 0, 0)),
                pl.BlockSpec((1, WCo), lambda i: (0, 0)),
                pl.BlockSpec((2, BH, BH), lambda i: (0, 0, 0)),
                pl.BlockSpec((2, BH2, BH), lambda i: (0, 0, 0)),
                pl.BlockSpec((2, WCo, W2Co), lambda i: (0, 0, 0)),
            ],
            out_specs=[
                pl.BlockSpec((BH, WCo), lambda i: (i, 0)),
                pl.BlockSpec((BH2, W2Co), lambda i: (i, 0)),
            ],
        ),
        compiler_params=pltpu.CompilerParams(
            dimension_semantics=("parallel",)),
    )(x2d, w1big, b1row, w2big, b2row, shifts, rowsel, colsel)

    # Lane-unpack + NCHW to match the PyTorch module's conventions.
    x_out = jnp.transpose(x_out2d.reshape(B, H, W, Cout), (0, 3, 1, 2))
    p_out = jnp.transpose(p_out2d.reshape(B, H // 2, W // 2, Cout), (0, 3, 1, 2))
    return x_out, p_out


if __name__ == "__main__":
    B, Cin, Cout, H, W = 2, 4, 8, 16, 16
    key = jax.random.PRNGKey(0)
    kx, kw1, kb1, kw2, kb2 = jax.random.split(key, 5)

    x = jax.random.normal(kx, (B, Cin, H, W), jnp.float32)

    # Deterministic init mimicking nn.Conv2d defaults (uniform(-1/sqrt(fan_in), ...))
    bound1 = 1.0 / np.sqrt(Cin * 3 * 3)
    w1 = jax.random.uniform(kw1, (Cout, Cin, 3, 3), jnp.float32, -bound1, bound1)
    b1 = jax.random.uniform(kb1, (Cout,), jnp.float32, -bound1, bound1)
    bound2 = 1.0 / np.sqrt(Cout * 3 * 3)
    w2 = jax.random.uniform(kw2, (Cout, Cout, 3, 3), jnp.float32, -bound2, bound2)
    b2 = jax.random.uniform(kb2, (Cout,), jnp.float32, -bound2, bound2)

    fwd = jax.jit(encoder_block)
    x_out, p_out = fwd(x, w1, b1, w2, b2)
    jax.block_until_ready((x_out, p_out))

    # Pure-JAX reference (NCHW) for correctness.
    def conv(inp, w, b):
        y = jax.lax.conv_general_dilated(
            inp, w, window_strides=(1, 1), padding=((1, 1), (1, 1)),
            dimension_numbers=("NCHW", "OIHW", "NCHW"),
            precision=jax.lax.Precision.HIGHEST)
        return y + b[None, :, None, None]

    y_ref = jnp.maximum(conv(x, w1, b1), 0.0)
    y_ref = jnp.maximum(conv(y_ref, w2, b2), 0.0)
    p_ref = jax.lax.reduce_window(y_ref, -jnp.inf, jax.lax.max,
                                  (1, 1, 2, 2), (1, 1, 2, 2), "VALID")

    assert x_out.shape == (B, Cout, H, W)
    assert p_out.shape == (B, Cout, H // 2, W // 2)
    np.testing.assert_allclose(np.asarray(x_out), np.asarray(y_ref), rtol=1e-3, atol=1e-3)
    np.testing.assert_allclose(np.asarray(p_out), np.asarray(p_ref), rtol=1e-3, atol=1e-3)

    print("KERNEL_OK")
</pallas_src>

<mosaic_0001>
module attributes {stable_mosaic.version = 11 : i64} {
  func.func @_encoder_block_kernel(%arg0: i32, %arg1: memref<16x64xf32, #tpu.memory_space<vmem>>, %arg2: memref<3x64x128xf32, #tpu.memory_space<vmem>>, %arg3: memref<1x128xf32, #tpu.memory_space<vmem>>, %arg4: memref<3x128x128xf32, #tpu.memory_space<vmem>>, %arg5: memref<1x128xf32, #tpu.memory_space<vmem>>, %arg6: memref<2x16x16xf32, #tpu.memory_space<vmem>>, %arg7: memref<2x8x16xf32, #tpu.memory_space<vmem>>, %arg8: memref<2x128x64xf32, #tpu.memory_space<vmem>>, %arg9: memref<16x128xf32, #tpu.memory_space<vmem>>, %arg10: memref<8x64xf32, #tpu.memory_space<vmem>>) attributes {dimension_semantics = [#tpu.dimension_semantics<parallel>], iteration_bounds = array<i64: 2>, scalar_prefetch = 0 : i64, scratch_operands = 0 : i64, tpu.core_type = #tpu.core_type<tc>, window_params = [{transform_indices = @transform_0, window_bounds = array<i64: 16, 64>}, {pipeline_mode = #tpu.pipeline_mode<synchronous>, transform_indices = @transform_1, window_bounds = array<i64: 3, 64, 128>}, {pipeline_mode = #tpu.pipeline_mode<synchronous>, transform_indices = @transform_2, window_bounds = array<i64: 1, 128>}, {pipeline_mode = #tpu.pipeline_mode<synchronous>, transform_indices = @transform_3, window_bounds = array<i64: 3, 128, 128>}, {pipeline_mode = #tpu.pipeline_mode<synchronous>, transform_indices = @transform_4, window_bounds = array<i64: 1, 128>}, {pipeline_mode = #tpu.pipeline_mode<synchronous>, transform_indices = @transform_5, window_bounds = array<i64: 2, 16, 16>}, {pipeline_mode = #tpu.pipeline_mode<synchronous>, transform_indices = @transform_6, window_bounds = array<i64: 2, 8, 16>}, {pipeline_mode = #tpu.pipeline_mode<synchronous>, transform_indices = @transform_7, window_bounds = array<i64: 2, 128, 64>}, {transform_indices = @transform_8, window_bounds = array<i64: 16, 128>}, {transform_indices = @transform_9, window_bounds = array<i64: 8, 64>}]} {
    %c0 = arith.constant 0 : index
    %c0_0 = arith.constant 0 : index
    %0 = vector.load %arg1[%c0, %c0_0] : memref<16x64xf32, #tpu.memory_space<vmem>>, vector<16x64xf32>
    %c0_1 = arith.constant 0 : index
    %c0_2 = arith.constant 0 : index
    %c0_3 = arith.constant 0 : index
    %1 = vector.load %arg6[%c0_1, %c0_2, %c0_3] : memref<2x16x16xf32, #tpu.memory_space<vmem>>, vector<1x16x16xf32>
    %2 = vector.shape_cast %1 : vector<1x16x16xf32> to vector<16x16xf32>
    %c1 = arith.constant 1 : index
    %c0_4 = arith.constant 0 : index
    %c0_5 = arith.constant 0 : index
    %3 = vector.load %arg6[%c1, %c0_4, %c0_5] : memref<2x16x16xf32, #tpu.memory_space<vmem>>, vector<1x16x16xf32>
    %4 = vector.shape_cast %3 : vector<1x16x16xf32> to vector<16x16xf32>
    %cst = arith.constant dense<0.000000e+00> : vector<16x64xf32>
    %5 = tpu.matmul %2, %0, %cst {dimension_numbers = #tpu.dot_dimension_numbers<[1], [0], [0], [1], [0, 0, 1, 1], [], []>, precision = #tpu.contract_precision<fp32>} : vector<16x16xf32>, vector<16x64xf32>, vector<16x64xf32> -> vector<16x64xf32>
    %c0_6 = arith.constant 0 : index
    %c0_7 = arith.constant 0 : index
    %c0_8 = arith.constant 0 : index
    %6 = vector.load %arg2[%c0_6, %c0_7, %c0_8] : memref<3x64x128xf32, #tpu.memory_space<vmem>>, vector<1x64x128xf32>
    %7 = vector.shape_cast %6 : vector<1x64x128xf32> to vector<64x128xf32>
    %cst_9 = arith.constant dense<0.000000e+00> : vector<16x128xf32>
    %8 = tpu.matmul %5, %7, %cst_9 {dimension_numbers = #tpu.dot_dimension_numbers<[1], [0], [0], [1], [0, 0, 1, 1], [], []>, precision = #tpu.contract_precision<fp32>} : vector<16x64xf32>, vector<64x128xf32>, vector<16x128xf32> -> vector<16x128xf32>
    %c1_10 = arith.constant 1 : index
    %c0_11 = arith.constant 0 : index
    %c0_12 = arith.constant 0 : index
    %9 = vector.load %arg2[%c1_10, %c0_11, %c0_12] : memref<3x64x128xf32, #tpu.memory_space<vmem>>, vector<1x64x128xf32>
    %10 = vector.shape_cast %9 : vector<1x64x128xf32> to vector<64x128xf32>
    %cst_13 = arith.constant dense<0.000000e+00> : vector<16x128xf32>
    %11 = tpu.matmul %0, %10, %cst_13 {dimension_numbers = #tpu.dot_dimension_numbers<[1], [0], [0], [1], [0, 0, 1, 1], [], []>, precision = #tpu.contract_precision<fp32>} : vector<16x64xf32>, vector<64x128xf32>, vector<16x128xf32> -> vector<16x128xf32>
    %12 = arith.addf %8, %11 : vector<16x128xf32>
    %cst_14 = arith.constant dense<0.000000e+00> : vector<16x64xf32>
    %13 = tpu.matmul %4, %0, %cst_14 {dimension_numbers = #tpu.dot_dimension_numbers<[1], [0], [0], [1], [0, 0, 1, 1], [], []>, precision = #tpu.contract_precision<fp32>} : vector<16x16xf32>, vector<16x64xf32>, vector<16x64xf32> -> vector<16x64xf32>
    %c2 = arith.constant 2 : index
    %c0_15 = arith.constant 0 : index
    %c0_16 = arith.constant 0 : index
    %14 = vector.load %arg2[%c2, %c0_15, %c0_16] : memref<3x64x128xf32, #tpu.memory_space<vmem>>, vector<1x64x128xf32>
    %15 = vector.shape_cast %14 : vector<1x64x128xf32> to vector<64x128xf32>
    %cst_17 = arith.constant dense<0.000000e+00> : vector<16x128xf32>
    %16 = tpu.matmul %13, %15, %cst_17 {dimension_numbers = #tpu.dot_dimension_numbers<[1], [0], [0], [1], [0, 0, 1, 1], [], []>, precision = #tpu.contract_precision<fp32>} : vector<16x64xf32>, vector<64x128xf32>, vector<16x128xf32> -> vector<16x128xf32>
    %17 = arith.addf %12, %16 : vector<16x128xf32>
    %c0_18 = arith.constant 0 : index
    %c0_19 = arith.constant 0 : index
    %18 = vector.load %arg3[%c0_18, %c0_19] : memref<1x128xf32, #tpu.memory_space<vmem>>, vector<1x128xf32>
    %19 = vector.broadcast %18 : vector<1x128xf32> to vector<16x128xf32>
    %20 = arith.addf %17, %19 : vector<16x128xf32>
    %cst_20 = arith.constant 0.000000e+00 : f32
    %21 = vector.broadcast %cst_20 : f32 to vector<16x128xf32>
    %22 = arith.maximumf %20, %21 : vector<16x128xf32>
    %cst_21 = arith.constant dense<0.000000e+00> : vector<16x128xf32>
    %23 = tpu.matmul %2, %22, %cst_21 {dimension_numbers = #tpu.dot_dimension_numbers<[1], [0], [0], [1], [0, 0, 1, 1], [], []>, precision = #tpu.contract_precision<fp32>} : vector<16x16xf32>, vector<16x128xf32>, vector<16x128xf32> -> vector<16x128xf32>
    %c0_22 = arith.constant 0 : index
    %c0_23 = arith.constant 0 : index
    %c0_24 = arith.constant 0 : index
    %24 = vector.load %arg4[%c0_22, %c0_23, %c0_24] : memref<3x128x128xf32, #tpu.memory_space<vmem>>, vector<1x128x128xf32>
    %25 = vector.shape_cast %24 : vector<1x128x128xf32> to vector<128x128xf32>
    %cst_25 = arith.constant dense<0.000000e+00> : vector<16x128xf32>
    %26 = tpu.matmul %23, %25, %cst_25 {dimension_numbers = #tpu.dot_dimension_numbers<[1], [0], [0], [1], [0, 0, 1, 1], [], []>, precision = #tpu.contract_precision<fp32>} : vector<16x128xf32>, vector<128x128xf32>, vector<16x128xf32> -> vector<16x128xf32>
    %c1_26 = arith.constant 1 : index
    %c0_27 = arith.constant 0 : index
    %c0_28 = arith.constant 0 : index
    %27 = vector.load %arg4[%c1_26, %c0_27, %c0_28] : memref<3x128x128xf32, #tpu.memory_space<vmem>>, vector<1x128x128xf32>
    %28 = vector.shape_cast %27 : vector<1x128x128xf32> to vector<128x128xf32>
    %cst_29 = arith.constant dense<0.000000e+00> : vector<16x128xf32>
    %29 = tpu.matmul %22, %28, %cst_29 {dimension_numbers = #tpu.dot_dimension_numbers<[1], [0], [0], [1], [0, 0, 1, 1], [], []>, precision = #tpu.contract_precision<fp32>} : vector<16x128xf32>, vector<128x128xf32>, vector<16x128xf32> -> vector<16x128xf32>
    %30 = arith.addf %26, %29 : vector<16x128xf32>
    %cst_30 = arith.constant dense<0.000000e+00> : vector<16x128xf32>
    %31 = tpu.matmul %4, %22, %cst_30 {dimension_numbers = #tpu.dot_dimension_numbers<[1], [0], [0], [1], [0, 0, 1, 1], [], []>, precision = #tpu.contract_precision<fp32>} : vector<16x16xf32>, vector<16x128xf32>, vector<16x128xf32> -> vector<16x128xf32>
    %c2_31 = arith.constant 2 : index
    %c0_32 = arith.constant 0 : index
    %c0_33 = arith.constant 0 : index
    %32 = vector.load %arg4[%c2_31, %c0_32, %c0_33] : memref<3x128x128xf32, #tpu.memory_space<vmem>>, vector<1x128x128xf32>
    %33 = vector.shape_cast %32 : vector<1x128x128xf32> to vector<128x128xf32>
    %cst_34 = arith.constant dense<0.000000e+00> : vector<16x128xf32>
    %34 = tpu.matmul %31, %33, %cst_34 {dimension_numbers = #tpu.dot_dimension_numbers<[1], [0], [0], [1], [0, 0, 1, 1], [], []>, precision = #tpu.contract_precision<fp32>} : vector<16x128xf32>, vector<128x128xf32>, vector<16x128xf32> -> vector<16x128xf32>
    %35 = arith.addf %30, %34 : vector<16x128xf32>
    %c0_35 = arith.constant 0 : index
    %c0_36 = arith.constant 0 : index
    %36 = vector.load %arg5[%c0_35, %c0_36] : memref<1x128xf32, #tpu.memory_space<vmem>>, vector<1x128xf32>
    %37 = vector.broadcast %36 : vector<1x128xf32> to vector<16x128xf32>
    %38 = arith.addf %35, %37 : vector<16x128xf32>
    %cst_37 = arith.constant 0.000000e+00 : f32
    %39 = vector.broadcast %cst_37 : f32 to vector<16x128xf32>
    %40 = arith.maximumf %38, %39 : vector<16x128xf32>
    %c0_38 = arith.constant 0 : index
    %c0_39 = arith.constant 0 : index
    %41 = vector.load %arg9[%c0_38, %c0_39] : memref<16x128xf32, #tpu.memory_space<vmem>>, vector<16x128xf32>
    tpu.vector_store %arg9[%c0_38, %c0_39], %40 {strides = array<i32>} : memref<16x128xf32, #tpu.memory_space<vmem>>, vector<16x128xf32>,
    %c0_40 = arith.constant 0 : index
    %c0_41 = arith.constant 0 : index
    %c0_42 = arith.constant 0 : index
    %42 = vector.load %arg7[%c0_40, %c0_41, %c0_42] : memref<2x8x16xf32, #tpu.memory_space<vmem>>, vector<1x8x16xf32>
    %43 = vector.shape_cast %42 : vector<1x8x16xf32> to vector<8x16xf32>
    %cst_43 = arith.constant dense<0.000000e+00> : vector<8x128xf32>
    %44 = tpu.matmul %43, %40, %cst_43 {dimension_numbers = #tpu.dot_dimension_numbers<[1], [0], [0], [1], [0, 0, 1, 1], [], []>, precision = #tpu.contract_precision<fp32>} : vector<8x16xf32>, vector<16x128xf32>, vector<8x128xf32> -> vector<8x128xf32>
    %c1_44 = arith.constant 1 : index
    %c0_45 = arith.constant 0 : index
    %c0_46 = arith.constant 0 : index
    %45 = vector.load %arg7[%c1_44, %c0_45, %c0_46] : memref<2x8x16xf32, #tpu.memory_space<vmem>>, vector<1x8x16xf32>
    %46 = vector.shape_cast %45 : vector<1x8x16xf32> to vector<8x16xf32>
    %cst_47 = arith.constant dense<0.000000e+00> : vector<8x128xf32>
    %47 = tpu.matmul %46, %40, %cst_47 {dimension_numbers = #tpu.dot_dimension_numbers<[1], [0], [0], [1], [0, 0, 1, 1], [], []>, precision = #tpu.contract_precision<fp32>} : vector<8x16xf32>, vector<16x128xf32>, vector<8x128xf32> -> vector<8x128xf32>
    %48 = arith.maximumf %44, %47 : vector<8x128xf32>
    %c0_48 = arith.constant 0 : index
    %c0_49 = arith.constant 0 : index
    %c0_50 = arith.constant 0 : index
    %49 = vector.load %arg8[%c0_48, %c0_49, %c0_50] : memref<2x128x64xf32, #tpu.memory_space<vmem>>, vector<1x128x64xf32>
    %50 = vector.shape_cast %49 : vector<1x128x64xf32> to vector<128x64xf32>
    %cst_51 = arith.constant dense<0.000000e+00> : vector<8x64xf32>
    %51 = tpu.matmul %48, %50, %cst_51 {dimension_numbers = #tpu.dot_dimension_numbers<[1], [0], [0], [1], [0, 0, 1, 1], [], []>, precision = #tpu.contract_precision<fp32>} : vector<8x128xf32>, vector<128x64xf32>, vector<8x64xf32> -> vector<8x64xf32>
    %c1_52 = arith.constant 1 : index
    %c0_53 = arith.constant 0 : index
    %c0_54 = arith.constant 0 : index
    %52 = vector.load %arg8[%c1_52, %c0_53, %c0_54] : memref<2x128x64xf32, #tpu.memory_space<vmem>>, vector<1x128x64xf32>
    %53 = vector.shape_cast %52 : vector<1x128x64xf32> to vector<128x64xf32>
    %cst_55 = arith.constant dense<0.000000e+00> : vector<8x64xf32>
    %54 = tpu.matmul %48, %53, %cst_55 {dimension_numbers = #tpu.dot_dimension_numbers<[1], [0], [0], [1], [0, 0, 1, 1], [], []>, precision = #tpu.contract_precision<fp32>} : vector<8x128xf32>, vector<128x64xf32>, vector<8x64xf32> -> vector<8x64xf32>
    %55 = arith.maximumf %51, %54 : vector<8x64xf32>
    %c0_56 = arith.constant 0 : index
    %c0_57 = arith.constant 0 : index
    %56 = vector.load %arg10[%c0_56, %c0_57] : memref<8x64xf32, #tpu.memory_space<vmem>>, vector<8x64xf32>
    tpu.vector_store %arg10[%c0_56, %c0_57], %55 {strides = array<i32>} : memref<8x64xf32, #tpu.memory_space<vmem>>, vector<8x64xf32>,
    return
  }
  func.func @transform_0(%arg0: i32) -> (i32, i32) {
    %c0_i32 = arith.constant 0 : i32
    %c0_i32_0 = arith.constant 0 : i32
    return %arg0, %c0_i32 : i32, i32
  }
  func.func @transform_1(%arg0: i32) -> (i32, i32, i32) {
    %c0_i32 = arith.constant 0 : i32
    %c0_i32_0 = arith.constant 0 : i32
    %c0_i32_1 = arith.constant 0 : i32
    %c0_i32_2 = arith.constant 0 : i32
    return %c0_i32, %c0_i32_0, %c0_i32_1 : i32, i32, i32
  }
  func.func @transform_2(%arg0: i32) -> (i32, i32) {
    %c0_i32 = arith.constant 0 : i32
    %c0_i32_0 = arith.constant 0 : i32
    %c0_i32_1 = arith.constant 0 : i32
    return %c0_i32, %c0_i32_0 : i32, i32
  }
  func.func @transform_3(%arg0: i32) -> (i32, i32, i32) {
    %c0_i32 = arith.constant 0 : i32
    %c0_i32_0 = arith.constant 0 : i32
    %c0_i32_1 = arith.constant 0 : i32
    %c0_i32_2 = arith.constant 0 : i32
    return %c0_i32, %c0_i32_0, %c0_i32_1 : i32, i32, i32
  }
  func.func @transform_4(%arg0: i32) -> (i32, i32) {
    %c0_i32 = arith.constant 0 : i32
    %c0_i32_0 = arith.constant 0 : i32
    %c0_i32_1 = arith.constant 0 : i32
    return %c0_i32, %c0_i32_0 : i32, i32
  }
  func.func @transform_5(%arg0: i32) -> (i32, i32, i32) {
    %c0_i32 = arith.constant 0 : i32
    %c0_i32_0 = arith.constant 0 : i32
    %c0_i32_1 = arith.constant 0 : i32
    %c0_i32_2 = arith.constant 0 : i32
    return %c0_i32, %c0_i32_0, %c0_i32_1 : i32, i32, i32
  }
  func.func @transform_6(%arg0: i32) -> (i32, i32, i32) {
    %c0_i32 = arith.constant 0 : i32
    %c0_i32_0 = arith.constant 0 : i32
    %c0_i32_1 = arith.constant 0 : i32
    %c0_i32_2 = arith.constant 0 : i32
    return %c0_i32, %c0_i32_0, %c0_i32_1 : i32, i32, i32
  }
  func.func @transform_7(%arg0: i32) -> (i32, i32, i32) {
    %c0_i32 = arith.constant 0 : i32
    %c0_i32_0 = arith.constant 0 : i32
    %c0_i32_1 = arith.constant 0 : i32
    %c0_i32_2 = arith.constant 0 : i32
    return %c0_i32, %c0_i32_0, %c0_i32_1 : i32, i32, i32
  }
  func.func @transform_8(%arg0: i32) -> (i32, i32) {
    %c0_i32 = arith.constant 0 : i32
    %c0_i32_0 = arith.constant 0 : i32
    return %arg0, %c0_i32 : i32, i32
  }
  func.func @transform_9(%arg0: i32) -> (i32, i32) {
    %c0_i32 = arith.constant 0 : i32
    %c0_i32_0 = arith.constant 0 : i32
    return %arg0, %c0_i32 : i32, i32
  }
}

</mosaic_0001>

<llo_original>
// kernel: tile.13
$region0: #{tile.13}
  #allocation0 [shape = 's32[1]{0}', space=sflag, size = 0x4, scoped, tag = 'scoped memory for tile.13']
  %s0 = inlined_call_operand.vmem [shape: f32[8], index: 0, kind: input, shape index: {}]
  %s1 = inlined_call_operand.vmem [shape: f32[16,8], index: 1, kind: output, shape index: {}]
  // Predicated region
  $region2: #{tile.13} parent=0 // pred_check
    _
  $region3: #{tile.13} parent=0 // pred_check_branch
    %3 = sbr.rel (0) target = $region5
  $region4: #{tile.13} parent=0 // pred_region
    _
  $region5: #{tile.13} parent=0 // pred_fallthru
    _
  %v4 = vld [vmem:[%s0] ss:$0 sm:$0xff]
  %5 = vst [vmem:[%s1] sm:$0xff] %v4
  %s6 = scalar_lea.vmem %s1, 8
  %7 = vst [vmem:[%s6] sm:$0xff] %v4

// kernel: tile.14
$region0: #{tile.14}
  %s0 = inlined_call_operand.vmem [shape: f32[16,8], index: 0, kind: input, shape index: {}]
  %s1 = inlined_call_operand.vmem [shape: f32[1,128], index: 1, kind: output, shape index: {}]
  $region1: #{tile.14} parent=0
    #allocation0 [shape = 'u8[4096]{0}', space=vmem, size = 0x1000, scoped, tag = 'scoped mem for output reshape']
    %v2 = vld [vmem:[%s0] sm:$0x1]
    %vm3 = vcmask 64512
    %4 = vst.msk [vmem:[#allocation0] sm:$0x1] %vm3, %v2
    %s5 = scalar_lea.vmem %s0, 15
    %v6 = vld [vmem:[%s5] sm:$0x1]
    %7 = vrot.lane.b32.xlu0 %v6, 120
    %v8 = vpop.permute.xlu0 %7
    %vm9 = vcmask 1048512
    %10 = vst.msk [vmem:[#allocation0] sm:$0x1] %vm9, %v8
    %s11 = scalar_lea.vmem %s0, 14
    %v12 = vld [vmem:[%s11] sm:$0x1]
    %13 = vrot.lane.b32.xlu0 %v12, 112
    %v14 = vpop.permute.xlu0 %13
    %vm15 = vcmask 982912
    %16 = vst.msk [vmem:[#allocation0] sm:$0x1] %vm15, %v14
    %s17 = scalar_lea.vmem %s0, 13
    %v18 = vld [vmem:[%s17] sm:$0x1]
    %19 = vrot.lane.b32.xlu0 %v18, 104
    %v20 = vpop.permute.xlu0 %19
    %vm21 = vcmask 917312
    %22 = vst.msk [vmem:[#allocation0] sm:$0x1] %vm21, %v20
    %s23 = scalar_lea.vmem %s0, 12
    %v24 = vld [vmem:[%s23] sm:$0x1]
    %25 = vrot.lane.b32.xlu0 %v24, 96
    %v26 = vpop.permute.xlu0 %25
    %vm27 = vcmask 851712
    %28 = vst.msk [vmem:[#allocation0] sm:$0x1] %vm27, %v26
    %s29 = scalar_lea.vmem %s0, 11
    %v30 = vld [vmem:[%s29] sm:$0x1]
    %31 = vrot.lane.b32.xlu0 %v30, 88
    %v32 = vpop.permute.xlu0 %31
    %vm33 = vcmask 786112
    %34 = vst.msk [vmem:[#allocation0] sm:$0x1] %vm33, %v32
    %s35 = scalar_lea.vmem %s0, 10
    %v36 = vld [vmem:[%s35] sm:$0x1]
    %37 = vrot.lane.b32.xlu0 %v36, 80
    %v38 = vpop.permute.xlu0 %37
    %vm39 = vcmask 720512
    %40 = vst.msk [vmem:[#allocation0] sm:$0x1] %vm39, %v38
    %s41 = scalar_lea.vmem %s0, 9
    %v42 = vld [vmem:[%s41] sm:$0x1]
    %43 = vrot.lane.b32.xlu0 %v42, 72
    %v44 = vpop.permute.xlu0 %43
    %vm45 = vcmask 654912
    %46 = vst.msk [vmem:[#allocation0] sm:$0x1] %vm45, %v44
    %s47 = scalar_lea.vmem %s0, 8
    %v48 = vld [vmem:[%s47] sm:$0x1]
    %49 = vrot.lane.b32.xlu0 %v48, 64
    %v50 = vpop.permute.xlu0 %49
    %vm51 = vcmask 589312
    %52 = vst.msk [vmem:[#allocation0] sm:$0x1] %vm51, %v50
    %s53 = scalar_lea.vmem %s0, 7
    %v54 = vld [vmem:[%s53] sm:$0x1]
    %55 = vrot.lane.b32.xlu0 %v54, 56
    %v56 = vpop.permute.xlu0 %55
    %vm57 = vcmask 523712
    %58 = vst.msk [vmem:[#allocation0] sm:$0x1] %vm57, %v56
    %s59 = scalar_lea.vmem %s0, 6
    %v60 = vld [vmem:[%s59] sm:$0x1]
    %61 = vrot.lane.b32.xlu0 %v60, 48
    %v62 = vpop.permute.xlu0 %61
    %vm63 = vcmask 458112
    %64 = vst.msk [vmem:[#allocation0] sm:$0x1] %vm63, %v62
    %s65 = scalar_lea.vmem %s0, 5
    %v66 = vld [vmem:[%s65] sm:$0x1]
    %67 = vrot.lane.b32.xlu0 %v66, 40
    %v68 = vpop.permute.xlu0 %67
    %vm69 = vcmask 392512
    %70 = vst.msk [vmem:[#allocation0] sm:$0x1] %vm69, %v68
    %s71 = scalar_lea.vmem %s0, 4
    %v72 = vld [vmem:[%s71] sm:$0x1]
    %73 = vrot.lane.b32.xlu0 %v72, 32
    %v74 = vpop.permute.xlu0 %73
    %vm75 = vcmask 326912
    %76 = vst.msk [vmem:[#allocation0] sm:$0x1] %vm75, %v74
    %s77 = scalar_lea.vmem %s0, 3
    %v78 = vld [vmem:[%s77] sm:$0x1]
    %79 = vrot.lane.b32.xlu0 %v78, 24
    %v80 = vpop.permute.xlu0 %79
    %vm81 = vcmask 261312
    %82 = vst.msk [vmem:[#allocation0] sm:$0x1] %vm81, %v80
    %s83 = scalar_lea.vmem %s0, 2
    %v84 = vld [vmem:[%s83] sm:$0x1]
    %85 = vrot.lane.b32.xlu0 %v84, 16
    %v86 = vpop.permute.xlu0 %85
    %vm87 = vcmask 195712
    %88 = vst.msk [vmem:[#allocation0] sm:$0x1] %vm87, %v86
    %s89 = scalar_lea.vmem %s0, 1
    %v90 = vld [vmem:[%s89] sm:$0x1]
    %91 = vrot.lane.b32.xlu0 %v90, 8
    %v92 = vpop.permute.xlu0 %91
    %vm93 = vcmask 130112
    %94 = vst.msk [vmem:[#allocation0] sm:$0x1] %vm93, %v92
    %s96 = sshllo.u32 0, 1
    %v98 = vld [vmem:[#allocation0] sm:%s96]
    %s99 = sshllo.u32 0, 1
    %100 = vst [vmem:[%s1] sm:%s99] %v98

// kernel: encoder_block.1
$region0: #{encoder_block.1}
  #allocation0 [shape = 'u32[]', space=smem, size = 0x4, offset = 0x4, fixed_abs, tag = 'smem constant byte address 0x4 - core index']
  #allocation1 [shape = 'u32[144,128]{1,0:T(1,128)}', space=vmem, size = 0x12000, scoped, tag = 'internal scratch']
  %s0 = inlined_call_operand.vmem [shape: f32[32,64], index: 0, kind: input, shape index: {}]
  %s1 = inlined_call_operand.vmem [shape: f32[3,64,128], index: 1, kind: input, shape index: {}]
  %s2 = inlined_call_operand.vmem [shape: f32[1,128], index: 2, kind: input, shape index: {}]
  %s3 = inlined_call_operand.vmem [shape: f32[3,128,128], index: 3, kind: input, shape index: {}]
  %s4 = inlined_call_operand.vmem [shape: f32[1,128], index: 4, kind: input, shape index: {}]
  %s5 = inlined_call_operand.vmem [shape: f32[2,16,16], index: 5, kind: input, shape index: {}]
  %s6 = inlined_call_operand.vmem [shape: f32[2,8,16], index: 6, kind: input, shape index: {}]
  %s7 = inlined_call_operand.vmem [shape: f32[2,128,64], index: 7, kind: input, shape index: {}]
  %s8 = inlined_call_operand.vmem [shape: f32[32,128], index: 8, kind: output, shape index: {0}]
  %s9 = inlined_call_operand.vmem [shape: f32[16,64], index: 9, kind: output, shape index: {1}]
  %10 = xla_tuple %s8, %s9
  %s11 = sld [smem:[#allocation0]]
  $region73: #{encoder_block.1} parent=0
    _
  %s13 = ssub.s32 1, %s11
  %s14 = scalar_select 0, %s13, %s11
  loop: start=0, step=1, limit=4
  $region2: #{encoder_block.1} parent=0 // loop_pre_header
    _
  $region3: #{encoder_block.1} parent=0 // loop_header
    %s16 = sphi 0, %s20
    %p17 = scmp.ge.s32.totalorder %s16, 4
    %s26 = sphi 0, %s28
    %s29 = sphi 0, %s26
    %s30 = sphi 0, %s29
    %s46 = sphi 0, %s30
    %s50 = sphi 0, %s50
    %s52 = sphi 0, %s50
    %s53 = sphi 0, %s52
    %s67 = sphi 0, %s53
    %s71 = sphi 0, %s71
    %s73 = sphi 0, %s71
    %s74 = sphi 0, %s73
    %s88 = sphi 0, %s74
    %s92 = sphi 0, %s92
    %s94 = sphi 0, %s92
    %s95 = sphi 0, %s94
    %s109 = sphi 0, %s95
    %s113 = sphi 0, %s113
    %s115 = sphi 0, %s113
    %s116 = sphi 0, %s115
    %s130 = sphi 0, %s116
    %s134 = sphi 0, %s134
    %s136 = sphi 0, %s134
    %s137 = sphi 0, %s136
    %s151 = sphi 0, %s137
    %s155 = sphi 0, %s155
    %s157 = sphi 0, %s155
    %s158 = sphi 0, %s157
    %s172 = sphi 0, %s158
    %s176 = sphi 0, %s176
    %s178 = sphi 0, %s176
    %s179 = sphi 0, %s178
    %s193 = sphi 0, %s179
    %s199 = sphi 0, %s201
    %s202 = sphi 0, %s199
    %s203 = sphi 0, %s202
    %s219 = sphi 0, %s203
    %s225 = sphi 0, %s227
    %s228 = sphi 0, %s225
    %s229 = sphi 0, %s228
    %s245 = sphi 0, %s229
  $region4: #{encoder_block.1} parent=0 // loop_header_branch
    %19 = sbr.rel (%p17) target = $region8
  $region5: #{encoder_block.1} parent=0 // loop_body
    %s21 = ssub.s32 %s16, 1
    %s22 = ssub.s32 %s16, 2
    %s23 = sadd.s32 %s16, 1
    %s24 = ssub.s32 %s16, %s23
    %p25 = scmp.eq.s32.totalorder %s24, 0
    %s27 = sadd.s32 %s26, 1
    %s28 = scalar_select %p25, %s26, %s27
    %p31 = pneg %p25
    %p32 = scmp.eq.s32.totalorder %s16, 1
    %p33 = por %p31, %p32
    %p34 = scmp.ne.s32.totalorder %s26, %s29
    %p35 = scmp.eq.s32.totalorder %s16, 0
    %p36 = por %p34, %p35
    %p37 = scmp.ne.s32.totalorder %s26, %s29
    %p38 = scmp.eq.s32.totalorder %s21, 1
    %p39 = por %p37, %p38
    %p40 = scmp.ne.s32.totalorder %s29, %s30
    %p41 = scmp.eq.s32.totalorder %s21, 0
    %p42 = por %p40, %p41
    %p43 = scmp.ne.s32.totalorder %s29, %s30
    %p44 = scmp.eq.s32.totalorder %s22, 1
    %p45 = por %p43, %p44
    %p47 = scmp.ne.s32.totalorder %s30, %s46
    %p48 = scmp.eq.s32.totalorder %s22, 0
    %p49 = por %p47, %p48
    %s51 = sadd.s32 %s50, 1
    %p54 = scmp.eq.s32.totalorder %s16, 1
    %p55 = scmp.ne.s32.totalorder %s50, %s52
    %p56 = scmp.eq.s32.totalorder %s16, 0
    %p57 = por %p55, %p56
    %p58 = scmp.ne.s32.totalorder %s50, %s52
    %p59 = scmp.eq.s32.totalorder %s21, 1
    %p60 = por %p58, %p59
    %p61 = scmp.ne.s32.totalorder %s52, %s53
    %p62 = scmp.eq.s32.totalorder %s21, 0
    %p63 = por %p61, %p62
    %p64 = scmp.ne.s32.totalorder %s52, %s53
    %p65 = scmp.eq.s32.totalorder %s22, 1
    %p66 = por %p64, %p65
    %p68 = scmp.ne.s32.totalorder %s53, %s67
    %p69 = scmp.eq.s32.totalorder %s22, 0
    %p70 = por %p68, %p69
    %s72 = sadd.s32 %s71, 1
    %p75 = scmp.eq.s32.totalorder %s16, 1
    %p76 = scmp.ne.s32.totalorder %s71, %s73
    %p77 = scmp.eq.s32.totalorder %s16, 0
    %p78 = por %p76, %p77
    %p79 = scmp.ne.s32.totalorder %s71, %s73
    %p80 = scmp.eq.s32.totalorder %s21, 1
    %p81 = por %p79, %p80
    %p82 = scmp.ne.s32.totalorder %s73, %s74
    %p83 = scmp.eq.s32.totalorder %s21, 0
    %p84 = por %p82, %p83
    %p85 = scmp.ne.s32.totalorder %s73, %s74
    %p86 = scmp.eq.s32.totalorder %s22, 1
    %p87 = por %p85, %p86
    %p89 = scmp.ne.s32.totalorder %s74, %s88
    %p90 = scmp.eq.s32.totalorder %s22, 0
    %p91 = por %p89, %p90
    %s93 = sadd.s32 %s92, 1
    %p96 = scmp.eq.s32.totalorder %s16, 1
    %p97 = scmp.ne.s32.totalorder %s92, %s94
    %p98 = scmp.eq.s32.totalorder %s16, 0
    %p99 = por %p97, %p98
    %p100 = scmp.ne.s32.totalorder %s92, %s94
    %p101 = scmp.eq.s32.totalorder %s21, 1
    %p102 = por %p100, %p101
    %p103 = scmp.ne.s32.totalorder %s94, %s95
    %p104 = scmp.eq.s32.totalorder %s21, 0
    %p105 = por %p103, %p104
    %p106 = scmp.ne.s32.totalorder %s94, %s95
    %p107 = scmp.eq.s32.totalorder %s22, 1
    %p108 = por %p106, %p107
    %p110 = scmp.ne.s32.totalorder %s95, %s109
    %p111 = scmp.eq.s32.totalorder %s22, 0
    %p112 = por %p110, %p111
    %s114 = sadd.s32 %s113, 1
    %p117 = scmp.eq.s32.totalorder %s16, 1
    %p118 = scmp.ne.s32.totalorder %s113, %s115
    %p119 = scmp.eq.s32.totalorder %s16, 0
    %p120 = por %p118, %p119
    %p121 = scmp.ne.s32.totalorder %s113, %s115
    %p122 = scmp.eq.s32.totalorder %s21, 1
    %p123 = por %p121, %p122
    %p124 = scmp.ne.s32.totalorder %s115, %s116
    %p125 = scmp.eq.s32.totalorder %s21, 0
    %p126 = por %p124, %p125
    %p127 = scmp.ne.s32.totalorder %s115, %s116
    %p128 = scmp.eq.s32.totalorder %s22, 1
    %p129 = por %p127, %p128
    %p131 = scmp.ne.s32.totalorder %s116, %s130
    %p132 = scmp.eq.s32.totalorder %s22, 0
    %p133 = por %p131, %p132
    %s135 = sadd.s32 %s134, 1
    %p138 = scmp.eq.s32.totalorder %s16, 1
    %p139 = scmp.ne.s32.totalorder %s134, %s136
    %p140 = scmp.eq.s32.totalorder %s16, 0
    %p141 = por %p139, %p140
    %p142 = scmp.ne.s32.totalorder %s134, %s136
    %p143 = scmp.eq.s32.totalorder %s21, 1
    %p144 = por %p142, %p143
    %p145 = scmp.ne.s32.totalorder %s136, %s137
    %p146 = scmp.eq.s32.totalorder %s21, 0
    %p147 = por %p145, %p146
    %p148 = scmp.ne.s32.totalorder %s136, %s137
    %p149 = scmp.eq.s32.totalorder %s22, 1
    %p150 = por %p148, %p149
    %p152 = scmp.ne.s32.totalorder %s137, %s151
    %p153 = scmp.eq.s32.totalorder %s22, 0
    %p154 = por %p152, %p153
    %s156 = sadd.s32 %s155, 1
    %p159 = scmp.eq.s32.totalorder %s16, 1
    %p160 = scmp.ne.s32.totalorder %s155, %s157
    %p161 = scmp.eq.s32.totalorder %s16, 0
    %p162 = por %p160, %p161
    %p163 = scmp.ne.s32.totalorder %s155, %s157
    %p164 = scmp.eq.s32.totalorder %s21, 1
    %p165 = por %p163, %p164
    %p166 = scmp.ne.s32.totalorder %s157, %s158
    %p167 = scmp.eq.s32.totalorder %s21, 0
    %p168 = por %p166, %p167
    %p169 = scmp.ne.s32.totalorder %s157, %s158
    %p170 = scmp.eq.s32.totalorder %s22, 1
    %p171 = por %p169, %p170
    %p173 = scmp.ne.s32.totalorder %s158, %s172
    %p174 = scmp.eq.s32.totalorder %s22, 0
    %p175 = por %p173, %p174
    %s177 = sadd.s32 %s176, 1
    %p180 = scmp.eq.s32.totalorder %s16, 1
    %p181 = scmp.ne.s32.totalorder %s176, %s178
    %p182 = scmp.eq.s32.totalorder %s16, 0
    %p183 = por %p181, %p182
    %p184 = scmp.ne.s32.totalorder %s176, %s178
    %p185 = scmp.eq.s32.totalorder %s21, 1
    %p186 = por %p184, %p185
    %p187 = scmp.ne.s32.totalorder %s178, %s179
    %p188 = scmp.eq.s32.totalorder %s21, 0
    %p189 = por %p187, %p188
    %p190 = scmp.ne.s32.totalorder %s178, %s179
    %p191 = scmp.eq.s32.totalorder %s22, 1
    %p192 = por %p190, %p191
    %p194 = scmp.ne.s32.totalorder %s179, %s193
    %p195 = scmp.eq.s32.totalorder %s22, 0
    %p196 = por %p194, %p195
    %s197 = ssub.s32 %s16, %s23
    %p198 = scmp.eq.s32.totalorder %s197, 0
    %s200 = sadd.s32 %s199, 1
    %s201 = scalar_select %p198, %s199, %s200
    %p204 = pneg %p198
    %p205 = scmp.eq.s32.totalorder %s16, 1
    %p206 = por %p204, %p205
    %p207 = scmp.ne.s32.totalorder %s199, %s202
    %p208 = scmp.eq.s32.totalorder %s16, 0
    %p209 = por %p207, %p208
    %p210 = scmp.ne.s32.totalorder %s199, %s202
    %p211 = scmp.eq.s32.totalorder %s21, 1
    %p212 = por %p210, %p211
    %p213 = scmp.ne.s32.totalorder %s202, %s203
    %p214 = scmp.eq.s32.totalorder %s21, 0
    %p215 = por %p213, %p214
    %p216 = scmp.ne.s32.totalorder %s202, %s203
    %p217 = scmp.eq.s32.totalorder %s22, 1
    %p218 = por %p216, %p217
    %p220 = scmp.ne.s32.totalorder %s203, %s219
    %p221 = scmp.eq.s32.totalorder %s22, 0
    %p222 = por %p220, %p221
    %s223 = ssub.s32 %s16, %s23
    %p224 = scmp.eq.s32.totalorder %s223, 0
    %s226 = sadd.s32 %s225, 1
    %s227 = scalar_select %p224, %s225, %s226
    %p230 = pneg %p224
    %p231 = scmp.eq.s32.totalorder %s16, 1
    %p232 = por %p230, %p231
    %p233 = scmp.ne.s32.totalorder %s225, %s228
    %p234 = scmp.eq.s32.totalorder %s16, 0
    %p235 = por %p233, %p234
    %p236 = scmp.ne.s32.totalorder %s225, %s228
    %p237 = scmp.eq.s32.totalorder %s21, 1
    %p238 = por %p236, %p237
    %p239 = scmp.ne.s32.totalorder %s228, %s229
    %p240 = scmp.eq.s32.totalorder %s21, 0
    %p241 = por %p239, %p240
    %p242 = scmp.ne.s32.totalorder %s228, %s229
    %p243 = scmp.eq.s32.totalorder %s22, 1
    %p244 = por %p242, %p243
    %p246 = scmp.ne.s32.totalorder %s229, %s245
    %p247 = scmp.eq.s32.totalorder %s22, 0
    %p248 = por %p246, %p247
    %p249 = scmp.le.s32.totalorder 1, %s16
    %p250 = scmp.lt.s32.totalorder %s16, 3
    %p251 = pnand %p249, %p250
    %p252 = pneg %p251
    // Predicated region
    $region9: #{encoder_block.1} parent=5 // pred_check
      _
    $region10: #{encoder_block.1} parent=5 // pred_check_branch
      %254 = sbr.rel (%p251) target = $region12
    $region11: #{encoder_block.1} parent=5 // pred_region
      %s255 = ssub.s32 %s16, 1
      // Predicated region
      $region13: #{encoder_block.1} parent=11 // pred_check
        %p256 = pneg %p63
      $region14: #{encoder_block.1} parent=11 // pred_check_branch
        %258 = sbr.rel (%p256) target = $region16
      $region15: #{encoder_block.1} parent=11 // pred_region
        _
      $region16: #{encoder_block.1} parent=11 // pred_fallthru
        _
      // Predicated region
      $region17: #{encoder_block.1} parent=11 // pred_check
        %p259 = pneg %p84
      $region18: #{encoder_block.1} parent=11 // pred_check_branch
        %261 = sbr.rel (%p259) target = $region20
      $region19: #{encoder_block.1} parent=11 // pred_region
        _
      $region20: #{encoder_block.1} parent=11 // pred_fallthru
        _
      // Predicated region
      $region21: #{encoder_block.1} parent=11 // pred_check
        %p262 = pneg %p105
      $region22: #{encoder_block.1} parent=11 // pred_check_branch
        %264 = sbr.rel (%p262) target = $region24
      $region23: #{encoder_block.1} parent=11 // pred_region
        _
      $region24: #{encoder_block.1} parent=11 // pred_fallthru
        _
      // Predicated region
      $region25: #{encoder_block.1} parent=11 // pred_check
        %p265 = pneg %p126
      $region26: #{encoder_block.1} parent=11 // pred_check_branch
        %267 = sbr.rel (%p265) target = $region28
      $region27: #{encoder_block.1} parent=11 // pred_region
        _
      $region28: #{encoder_block.1} parent=11 // pred_fallthru
        _
      // Predicated region
      $region29: #{encoder_block.1} parent=11 // pred_check
        %p268 = pneg %p147
      $region30: #{encoder_block.1} parent=11 // pred_check_branch
        %270 = sbr.rel (%p268) target = $region32
      $region31: #{encoder_block.1} parent=11 // pred_region
        _
      $region32: #{encoder_block.1} parent=11 // pred_fallthru
        _
      // Predicated region
      $region33: #{encoder_block.1} parent=11 // pred_check
        %p271 = pneg %p168
      $region34: #{encoder_block.1} parent=11 // pred_check_branch
        %273 = sbr.rel (%p271) target = $region36
      $region35: #{encoder_block.1} parent=11 // pred_region
        _
      $region36: #{encoder_block.1} parent=11 // pred_fallthru
        _
      // Predicated region
      $region37: #{encoder_block.1} parent=11 // pred_check
        %p274 = pneg %p189
      $region38: #{encoder_block.1} parent=11 // pred_check_branch
        %276 = sbr.rel (%p274) target = $region40
      $region39: #{encoder_block.1} parent=11 // pred_region
        _
      $region40: #{encoder_block.1} parent=11 // pred_fallthru
        _
    $region12: #{encoder_block.1} parent=5 // pred_fallthru
      _
    %p277 = scmp.lt.s32.totalorder %s16, 2
    // Predicated region
    $region41: #{encoder_block.1} parent=5 // pred_check
      %p278 = pneg %p277
    $region42: #{encoder_block.1} parent=5 // pred_check_branch
      %280 = sbr.rel (%p278) target = $region44
    $region43: #{encoder_block.1} parent=5 // pred_region
      // Predicated region
      $region45: #{encoder_block.1} parent=43 // pred_check
        %p281 = pneg %p36
      $region46: #{encoder_block.1} parent=43 // pred_check_branch
        %283 = sbr.rel (%p281) target = $region48
      $region47: #{encoder_block.1} parent=43 // pred_region
        %s284 = smul.u32 2, %s16
        %p285 = scmp.lt.s32.totalorder %s284, 3
        %s286 = scalar_select %p285, %s284, 3
        %s287 = smul.addr %s286, 8
        %s288 = scalar_lea.vmem %s0, %s287
        %s289 = smul.u32 2, %s16
      $region48: #{encoder_block.1} parent=43 // pred_fallthru
        _
    $region44: #{encoder_block.1} parent=5 // pred_fallthru
      _
    %p290 = scmp.le.s32.totalorder 1, %s16
    %p291 = scmp.lt.s32.totalorder %s16, 3
    %p292 = pnand %p290, %p291
    %p293 = pneg %p292
    // Predicated region
    $region49: #{encoder_block.1} parent=5 // pred_check
      _
    $region50: #{encoder_block.1} parent=5 // pred_check_branch
      %295 = sbr.rel (%p292) target = $region52
    $region51: #{encoder_block.1} parent=5 // pred_region
      %s296 = ssub.s32 %s16, 1
      %s297 = smul.u32 2, %s21
      %p298 = scmp.lt.s32.totalorder %s297, 3
      %s299 = scalar_select %p298, %s297, 3
      %s300 = smul.addr %s299, 8
      %s301 = scalar_lea.vmem %s0, %s300
      %p302 = pneg %p42
      %p303 = pneg %p39
      %p304 = pneg %p63
      %p305 = pneg %p60
      %p306 = pneg %p84
      %p307 = pneg %p81
      %p308 = pneg %p105
      %p309 = pneg %p102
      %p310 = pneg %p126
      %p311 = pneg %p123
      %p312 = pneg %p147
      %p313 = pneg %p144
      %p314 = pneg %p168
      %p315 = pneg %p165
      %p316 = pneg %p189
      %p317 = pneg %p186
      %p318 = pneg %p215
      %p319 = pneg %p212
      %s320 = smul.u32 2, %s21
      %p321 = scmp.lt.s32.totalorder %s320, 3
      %s322 = scalar_select %p321, %s320, 3
      %s323 = smul.addr %s322, 8
      %s324 = scalar_lea.vmem %s8, %s323
      %p325 = pneg %p241
      %p326 = pneg %p238
      %p327 = scmp.lt.s32.totalorder %s21, 1
      %s328 = scalar_select %p327, %s21, 1
      %s329 = smul.addr %s328, 8
      %s330 = scalar_lea.vmem %s9, %s329
      %s331 = smul.u32 2, %s21
      %p332 = scmp.lt.s32.totalorder %s331, 3
      %s333 = scalar_select %p332, %s331, 3
      %s334 = smul.addr %s333, 8
      %s335 = scalar_lea.vmem %s0, %s334
      %s336 = smul.u32 2, %s21
      %s337 = smul.u32 2, %s21
      %p338 = scmp.lt.s32.totalorder %s337, 3
      %s339 = scalar_select %p338, %s337, 3
      %s340 = smul.addr %s339, 8
      %s341 = scalar_lea.vmem %s8, %s340
      %s342 = smul.u32 2, %s21
      %p343 = scmp.lt.s32.totalorder %s21, 1
      %s344 = scalar_select %p343, %s21, 1
      %s345 = smul.addr %s344, 8
      %s346 = scalar_lea.vmem %s9, %s345
      %v347 = vld [vmem:[%s335] sm:$0xff]
      %v348 = vld [vmem:[%s335 + $0x8] sm:$0xff]
      %v349 = vld [vmem:[%s5] sm:$0xff]
      %v350 = vld [vmem:[%s5 + $0x8] sm:$0xff]
      %s351 = scalar_lea.vmem %s5, 16
      %v352 = vld [vmem:[%s351] sm:$0xff]
      %v353 = vld [vmem:[%s351 + $0x8] sm:$0xff]
      %vm354 = vcmask 130048
      %v356 = vsel %vm354, %v349, 0
      %v359 = vsel %vm354, %v350, 0
      %361 = vmatprep.subr.mxu0 0.0
      %v362 = vand.u32 %v347, 4294901760
      %363 = vmatpush1.msra.mxu0 %v362
      %364 = vmatprep.subr.mxu0 0.0
      %v365 = vand.u32 %v348, 4294901760
      %366 = vmatpush1.msra.mxu0 %v365
      %367 = vmatprep.subr.mxu0 0.0
      %368 = vmatpush1.msra.mxu0 0.0
      %369 = vmatprep.subr.mxu0 0.0
      %370 = vmatpush1.msra.mxu0 0.0
      %371 = vmatprep.subr.mxu0 0.0
      %372 = vmatpush1.msra.mxu0 0.0
      %373 = vmatprep.subr.mxu0 0.0
      %374 = vmatpush1.msra.mxu0 0.0
      %375 = vmatprep.subr.mxu0 0.0
      %376 = vmatpush1.msra.mxu0 0.0
      %377 = vmatprep.subr.mxu0 0.0
      %378 = vmatpush1.msra.mxu0 0.0
      %379 = vmatprep.subr.mxu0 0.0
      %380 = vmatpush1.msra.mxu0 0.0
      %381 = vmatprep.subr.mxu0 0.0
      %382 = vmatpush1.msra.mxu0 0.0
      %383 = vmatprep.subr.mxu0 0.0
      %384 = vmatpush1.msra.mxu0 0.0
      %385 = vmatprep.subr.mxu0 0.0
      %386 = vmatpush1.msra.mxu0 0.0
      %387 = vmatprep.subr.mxu0 0.0
      %388 = vmatpush1.msra.mxu0 0.0
      %389 = vmatprep.subr.mxu0 0.0
      %390 = vmatpush1.msra.mxu0 0.0
      %391 = vmatprep.subr.mxu0 0.0
      %392 = vmatpush1.msra.mxu0 0.0
      %393 = vmatprep.subr.mxu0 0.0
      %394 = vmatpush1.msra.mxu0 0.0
      %395 = vmatprep.subr.mxu0 0.0
      %396 = vmatpush1.msra.mxu0 0.0
      %397 = vmatprep.subr.mxu0 0.0
      %398 = vmatpush1.msra.mxu0 0.0
      %399 = vmatprep.subr.mxu0 0.0
      %400 = vmatpush1.msra.mxu0 0.0
      %401 = vmatprep.subr.mxu0 0.0
      %402 = vmatpush1.msra.mxu0 0.0
      %403 = vmatprep.subr.mxu0 0.0
      %404 = vmatpush1.msra.mxu0 0.0
      %405 = vmatprep.subr.mxu0 0.0
      %406 = vmatpush1.msra.mxu0 0.0
      %407 = vmatprep.subr.mxu0 0.0
      %408 = vmatpush1.msra.mxu0 0.0
      %409 = vmatprep.subr.mxu0 0.0
      %410 = vmatpush1.msra.mxu0 0.0
      %411 = vmatprep.subr.mxu0 0.0
      %412 = vmatpush1.msra.mxu0 0.0
      %413 = vmatprep.subr.mxu0 0.0
      %414 = vmatpush1.msra.mxu0 0.0
      %415 = vmatprep.subr.mxu0 0.0
      %416 = vmatpush1.msra.mxu0 0.0
      %417 = vmatprep.subr.mxu0 0.0
      %418 = vmatpush1.msra.mxu0 0.0
      %419 = vmatprep.subr.mxu0 0.0
      %420 = vmatpush1.msra.mxu0 0.0
      %421 = vmatprep.subr.mxu0 0.0
      %422 = vmatpush1.msra.mxu0 0.0
      %423 = vmatprep.subr.mxu0 0.0
      %424 = vmatpush1.msra.mxu0 0.0
      %425 = vmatprep.subr.mxu0 0.0
      %426 = vmatpush1.msra.mxu0 0.0
      %427 = vmatprep.mubr.f32.mxu0 0.0
      %v428 = vand.u32 %v356, 4294901760
      %v429 = vsub.f32 %v356, %v428
      %v430 = vand.u32 %v429, 4294901760
      %v431 = vsub.f32 %v429, %v430
      %v432 = vand.u32 %v431, 4294901760
      %433 = vmatmul.mubr.f32.gmra.mrb[0].mxu0 %v432
      %v434 = vpop.f32.mrb[0].mxu0
      %v435 = vadd.f32 0.0, %v434
      %v436 = vpop.f32.mrb[0].mxu0
      %437 = vmatprep.mubr.f32.mxu0 0.0
      %v438 = vand.u32 %v359, 4294901760
      %v439 = vsub.f32 %v359, %v438
      %v440 = vand.u32 %v439, 4294901760
      %v441 = vsub.f32 %v439, %v440
      %v442 = vand.u32 %v441, 4294901760
      %443 = vmatmul.mubr.f32.gmra.mrb[0].mxu0 %v442
      %v444 = vpop.f32.mrb[0].mxu0
      %v445 = vadd.f32 0.0, %v444
      %v446 = vpop.f32.mrb[0].mxu0
      %447 = vdwg.mxu0
      %448 = vmatprep.subr.mxu0 0.0
      %v449 = vand.u32 %v347, 4294901760
      %v450 = vsub.f32 %v347, %v449
      %v451 = vand.u32 %v450, 4294901760
      %v452 = vsub.f32 %v450, %v451
      %v453 = vand.u32 %v452, 4294901760
      %454 = vmatpush1.msra.mxu0 %v453
      %455 = vmatprep.subr.mxu0 0.0
      %v456 = vand.u32 %v348, 4294901760
      %v457 = vsub.f32 %v348, %v456
      %v458 = vand.u32 %v457, 4294901760
      %v459 = vsub.f32 %v457, %v458
      %v460 = vand.u32 %v459, 4294901760
      %461 = vmatpush1.msra.mxu0 %v460
      %462 = vmatprep.subr.mxu0 0.0
      %463 = vmatpush1.msra.mxu0 0.0
      %464 = vmatprep.subr.mxu0 0.0
      %465 = vmatpush1.msra.mxu0 0.0
      %466 = vmatprep.subr.mxu0 0.0
      %467 = vmatpush1.msra.mxu0 0.0
      %468 = vmatprep.subr.mxu0 0.0
      %469 = vmatpush1.msra.mxu0 0.0
      %470 = vmatprep.subr.mxu0 0.0
      %471 = vmatpush1.msra.mxu0 0.0
      %472 = vmatprep.subr.mxu0 0.0
      %473 = vmatpush1.msra.mxu0 0.0
      %474 = vmatprep.subr.mxu0 0.0
      %475 = vmatpush1.msra.mxu0 0.0
      %476 = vmatprep.subr.mxu0 0.0
      %477 = vmatpush1.msra.mxu0 0.0
      %478 = vmatprep.subr.mxu0 0.0
      %479 = vmatpush1.msra.mxu0 0.0
      %480 = vmatprep.subr.mxu0 0.0
      %481 = vmatpush1.msra.mxu0 0.0
      %482 = vmatprep.subr.mxu0 0.0
      %483 = vmatpush1.msra.mxu0 0.0
      %484 = vmatprep.subr.mxu0 0.0
      %485 = vmatpush1.msra.mxu0 0.0
      %486 = vmatprep.subr.mxu0 0.0
      %487 = vmatpush1.msra.mxu0 0.0
      %488 = vmatprep.subr.mxu0 0.0
      %489 = vmatpush1.msra.mxu0 0.0
      %490 = vmatprep.subr.mxu0 0.0
      %491 = vmatpush1.msra.mxu0 0.0
      %492 = vmatprep.subr.mxu0 0.0
      %493 = vmatpush1.msra.mxu0 0.0
      %494 = vmatprep.subr.mxu0 0.0
      %495 = vmatpush1.msra.mxu0 0.0
      %496 = vmatprep.subr.mxu0 0.0
      %497 = vmatpush1.msra.mxu0 0.0
      %498 = vmatprep.subr.mxu0 0.0
      %499 = vmatpush1.msra.mxu0 0.0
      %500 = vmatprep.subr.mxu0 0.0
      %501 = vmatpush1.msra.mxu0 0.0
      %502 = vmatprep.subr.mxu0 0.0
      %503 = vmatpush1.msra.mxu0 0.0
      %504 = vmatprep.subr.mxu0 0.0
      %505 = vmatpush1.msra.mxu0 0.0
      %506 = vmatprep.subr.mxu0 0.0
      %507 = vmatpush1.msra.mxu0 0.0
      %508 = vmatprep.subr.mxu0 0.0
      %509 = vmatpush1.msra.mxu0 0.0
      %510 = vmatprep.subr.mxu0 0.0
      %511 = vmatpush1.msra.mxu0 0.0
      %512 = vmatprep.subr.mxu0 0.0
      %513 = vmatpush1.msra.mxu0 0.0
      %514 = vmatprep.subr.mxu0 0.0
      %515 = vmatpush1.msra.mxu0 0.0
      %516 = vmatprep.subr.mxu0 0.0
      %517 = vmatpush1.msra.mxu0 0.0
      %518 = vmatprep.subr.mxu0 0.0
      %519 = vmatpush1.msra.mxu0 0.0
      %520 = vmatprep.subr.mxu0 0.0
      %521 = vmatpush1.msra.mxu0 0.0
      %522 = vmatprep.mubr.f32.mxu0 0.0
      %v523 = vand.u32 %v356, 4294901760
      %524 = vmatmul.mubr.f32.gmra.mrb[0].mxu0 %v523
      %v525 = vpop.f32.mrb[0].mxu0
      %v526 = vadd.f32 %v435, %v525
      %v527 = vpop.f32.mrb[0].mxu0
      %528 = vmatprep.mubr.f32.mxu0 0.0
      %v529 = vand.u32 %v359, 4294901760
      %530 = vmatmul.mubr.f32.gmra.mrb[0].mxu0 %v529
      %v531 = vpop.f32.mrb[0].mxu0
      %v532 = vadd.f32 %v445, %v531
      %v533 = vpop.f32.mrb[0].mxu0
      %534 = vdwg.mxu0
      %535 = vmatprep.subr.mxu0 0.0
      %v536 = vand.u32 %v347, 4294901760
      %v537 = vsub.f32 %v347, %v536
      %538 = vmatpush1.msra.mxu0 %v537
      %539 = vmatprep.subr.mxu0 0.0
      %v540 = vand.u32 %v348, 4294901760
      %v541 = vsub.f32 %v348, %v540
      %542 = vmatpush1.msra.mxu0 %v541
      %543 = vmatprep.subr.mxu0 0.0
      %544 = vmatpush1.msra.mxu0 0.0
      %545 = vmatprep.subr.mxu0 0.0
      %546 = vmatpush1.msra.mxu0 0.0
      %547 = vmatprep.subr.mxu0 0.0
      %548 = vmatpush1.msra.mxu0 0.0
      %549 = vmatprep.subr.mxu0 0.0
      %550 = vmatpush1.msra.mxu0 0.0
      %551 = vmatprep.subr.mxu0 0.0
      %552 = vmatpush1.msra.mxu0 0.0
      %553 = vmatprep.subr.mxu0 0.0
      %554 = vmatpush1.msra.mxu0 0.0
      %555 = vmatprep.subr.mxu0 0.0
      %556 = vmatpush1.msra.mxu0 0.0
      %557 = vmatprep.subr.mxu0 0.0
      %558 = vmatpush1.msra.mxu0 0.0
      %559 = vmatprep.subr.mxu0 0.0
      %560 = vmatpush1.msra.mxu0 0.0
      %561 = vmatprep.subr.mxu0 0.0
      %562 = vmatpush1.msra.mxu0 0.0
      %563 = vmatprep.subr.mxu0 0.0
      %564 = vmatpush1.msra.mxu0 0.0
      %565 = vmatprep.subr.mxu0 0.0
      %566 = vmatpush1.msra.mxu0 0.0
      %567 = vmatprep.subr.mxu0 0.0
      %568 = vmatpush1.msra.mxu0 0.0
      %569 = vmatprep.subr.mxu0 0.0
      %570 = vmatpush1.msra.mxu0 0.0
      %571 = vmatprep.subr.mxu0 0.0
      %572 = vmatpush1.msra.mxu0 0.0
      %573 = vmatprep.subr.mxu0 0.0
      %574 = vmatpush1.msra.mxu0 0.0
      %575 = vmatprep.subr.mxu0 0.0
      %576 = vmatpush1.msra.mxu0 0.0
      %577 = vmatprep.subr.mxu0 0.0
      %578 = vmatpush1.msra.mxu0 0.0
      %579 = vmatprep.subr.mxu0 0.0
      %580 = vmatpush1.msra.mxu0 0.0
      %581 = vmatprep.subr.mxu0 0.0
      %582 = vmatpush1.msra.mxu0 0.0
      %583 = vmatprep.subr.mxu0 0.0
      %584 = vmatpush1.msra.mxu0 0.0
      %585 = vmatprep.subr.mxu0 0.0
      %586 = vmatpush1.msra.mxu0 0.0
      %587 = vmatprep.subr.mxu0 0.0
      %588 = vmatpush1.msra.mxu0 0.0
      %589 = vmatprep.subr.mxu0 0.0
      %590 = vmatpush1.msra.mxu0 0.0
      %591 = vmatprep.subr.mxu0 0.0
      %592 = vmatpush1.msra.mxu0 0.0
      %593 = vmatprep.subr.mxu0 0.0
      %594 = vmatpush1.msra.mxu0 0.0
      %595 = vmatprep.subr.mxu0 0.0
      %596 = vmatpush1.msra.mxu0 0.0
      %597 = vmatprep.subr.mxu0 0.0
      %598 = vmatpush1.msra.mxu0 0.0
      %599 = vmatprep.subr.mxu0 0.0
      %600 = vmatpush1.msra.mxu0 0.0
      %601 = vmatprep.subr.mxu0 0.0
      %602 = vmatpush1.msra.mxu0 0.0
      %603 = vmatprep.mubr.f32.mxu0 0.0
      %v604 = vand.u32 %v356, 4294901760
      %v605 = vsub.f32 %v356, %v604
      %606 = vmatmul.mubr.f32.gmra.mrb[0].mxu0 %v605
      %v607 = vpop.f32.mrb[0].mxu0
      %v608 = vadd.f32 %v526, %v607
      %v609 = vpop.f32.mrb[0].mxu0
      %610 = vmatprep.mubr.f32.mxu0 0.0
      %v611 = vand.u32 %v359, 4294901760
      %v612 = vsub.f32 %v359, %v611
      %613 = vmatmul.mubr.f32.gmra.mrb[0].mxu0 %v612
      %v614 = vpop.f32.mrb[0].mxu0
      %v615 = vadd.f32 %v532, %v614
      %v616 = vpop.f32.mrb[0].mxu0
      %617 = vdwg.mxu0
      %618 = vmatprep.subr.mxu0 0.0
      %v619 = vand.u32 %v347, 4294901760
      %620 = vmatpush1.msra.mxu0 %v619
      %621 = vmatprep.subr.mxu0 0.0
      %v622 = vand.u32 %v348, 4294901760
      %623 = vmatpush1.msra.mxu0 %v622
      %624 = vmatprep.subr.mxu0 0.0
      %625 = vmatpush1.msra.mxu0 0.0
      %626 = vmatprep.subr.mxu0 0.0
      %627 = vmatpush1.msra.mxu0 0.0
      %628 = vmatprep.subr.mxu0 0.0
      %629 = vmatpush1.msra.mxu0 0.0
      %630 = vmatprep.subr.mxu0 0.0
      %631 = vmatpush1.msra.mxu0 0.0
      %632 = vmatprep.subr.mxu0 0.0
      %633 = vmatpush1.msra.mxu0 0.0
      %634 = vmatprep.subr.mxu0 0.0
      %635 = vmatpush1.msra.mxu0 0.0
      %636 = vmatprep.subr.mxu0 0.0
      %637 = vmatpush1.msra.mxu0 0.0
      %638 = vmatprep.subr.mxu0 0.0
      %639 = vmatpush1.msra.mxu0 0.0
      %640 = vmatprep.subr.mxu0 0.0
      %641 = vmatpush1.msra.mxu0 0.0
      %642 = vmatprep.subr.mxu0 0.0
      %643 = vmatpush1.msra.mxu0 0.0
      %644 = vmatprep.subr.mxu0 0.0
      %645 = vmatpush1.msra.mxu0 0.0
      %646 = vmatprep.subr.mxu0 0.0
      %647 = vmatpush1.msra.mxu0 0.0
      %648 = vmatprep.subr.mxu0 0.0
      %649 = vmatpush1.msra.mxu0 0.0
      %650 = vmatprep.subr.mxu0 0.0
      %651 = vmatpush1.msra.mxu0 0.0
      %652 = vmatprep.subr.mxu0 0.0
      %653 = vmatpush1.msra.mxu0 0.0
      %654 = vmatprep.subr.mxu0 0.0
      %655 = vmatpush1.msra.mxu0 0.0
      %656 = vmatprep.subr.mxu0 0.0
      %657 = vmatpush1.msra.mxu0 0.0
      %658 = vmatprep.subr.mxu0 0.0
      %659 = vmatpush1.msra.mxu0 0.0
      %660 = vmatprep.subr.mxu0 0.0
      %661 = vmatpush1.msra.mxu0 0.0
      %662 = vmatprep.subr.mxu0 0.0
      %663 = vmatpush1.msra.mxu0 0.0
      %664 = vmatprep.subr.mxu0 0.0
      %665 = vmatpush1.msra.mxu0 0.0
      %666 = vmatprep.subr.mxu0 0.0
      %667 = vmatpush1.msra.mxu0 0.0
      %668 = vmatprep.subr.mxu0 0.0
      %669 = vmatpush1.msra.mxu0 0.0
      %670 = vmatprep.subr.mxu0 0.0
      %671 = vmatpush1.msra.mxu0 0.0
      %672 = vmatprep.subr.mxu0 0.0
      %673 = vmatpush1.msra.mxu0 0.0
      %674 = vmatprep.subr.mxu0 0.0
      %675 = vmatpush1.msra.mxu0 0.0
      %676 = vmatprep.subr.mxu0 0.0
      %677 = vmatpush1.msra.mxu0 0.0
      %678 = vmatprep.subr.mxu0 0.0
      %679 = vmatpush1.msra.mxu0 0.0
      %680 = vmatprep.subr.mxu0 0.0
      %681 = vmatpush1.msra.mxu0 0.0
      %682 = vmatprep.subr.mxu0 0.0
      %683 = vmatpush1.msra.mxu0 0.0
      %684 = vmatprep.mubr.f32.mxu0 0.0
      %v685 = vand.u32 %v356, 4294901760
      %v686 = vsub.f32 %v356, %v685
      %v687 = vand.u32 %v686, 4294901760
      %688 = vmatmul.mubr.f32.gmra.mrb[0].mxu0 %v687
      %v689 = vpop.f32.mrb[0].mxu0
      %v690 = vadd.f32 %v608, %v689
      %v691 = vpop.f32.mrb[0].mxu0
      %692 = vmatprep.mubr.f32.mxu0 0.0
      %v693 = vand.u32 %v359, 4294901760
      %v694 = vsub.f32 %v359, %v693
      %v695 = vand.u32 %v694, 4294901760
      %696 = vmatmul.mubr.f32.gmra.mrb[0].mxu0 %v695
      %v697 = vpop.f32.mrb[0].mxu0
      %v698 = vadd.f32 %v615, %v697
      %v699 = vpop.f32.mrb[0].mxu0
      %700 = vdwg.mxu0
      %701 = vmatprep.subr.mxu0 0.0
      %v702 = vand.u32 %v347, 4294901760
      %v703 = vsub.f32 %v347, %v702
      %v704 = vand.u32 %v703, 4294901760
      %705 = vmatpush1.msra.mxu0 %v704
      %706 = vmatprep.subr.mxu0 0.0
      %v707 = vand.u32 %v348, 4294901760
      %v708 = vsub.f32 %v348, %v707
      %v709 = vand.u32 %v708, 4294901760
      %710 = vmatpush1.msra.mxu0 %v709
      %711 = vmatprep.subr.mxu0 0.0
      %712 = vmatpush1.msra.mxu0 0.0
      %713 = vmatprep.subr.mxu0 0.0
      %714 = vmatpush1.msra.mxu0 0.0
      %715 = vmatprep.subr.mxu0 0.0
      %716 = vmatpush1.msra.mxu0 0.0
      %717 = vmatprep.subr.mxu0 0.0
      %718 = vmatpush1.msra.mxu0 0.0
      %719 = vmatprep.subr.mxu0 0.0
      %720 = vmatpush1.msra.mxu0 0.0
      %721 = vmatprep.subr.mxu0 0.0
      %722 = vmatpush1.msra.mxu0 0.0
      %723 = vmatprep.subr.mxu0 0.0
      %724 = vmatpush1.msra.mxu0 0.0
      %725 = vmatprep.subr.mxu0 0.0
      %726 = vmatpush1.msra.mxu0 0.0
      %727 = vmatprep.subr.mxu0 0.0
      %728 = vmatpush1.msra.mxu0 0.0
      %729 = vmatprep.subr.mxu0 0.0
      %730 = vmatpush1.msra.mxu0 0.0
      %731 = vmatprep.subr.mxu0 0.0
      %732 = vmatpush1.msra.mxu0 0.0
      %733 = vmatprep.subr.mxu0 0.0
      %734 = vmatpush1.msra.mxu0 0.0
      %735 = vmatprep.subr.mxu0 0.0
      %736 = vmatpush1.msra.mxu0 0.0
      %737 = vmatprep.subr.mxu0 0.0
      %738 = vmatpush1.msra.mxu0 0.0
      %739 = vmatprep.subr.mxu0 0.0
      %740 = vmatpush1.msra.mxu0 0.0
      %741 = vmatprep.subr.mxu0 0.0
      %742 = vmatpush1.msra.mxu0 0.0
      %743 = vmatprep.subr.mxu0 0.0
      %744 = vmatpush1.msra.mxu0 0.0
      %745 = vmatprep.subr.mxu0 0.0
      %746 = vmatpush1.msra.mxu0 0.0
      %747 = vmatprep.subr.mxu0 0.0
      %748 = vmatpush1.msra.mxu0 0.0
      %749 = vmatprep.subr.mxu0 0.0
      %750 = vmatpush1.msra.mxu0 0.0
      %751 = vmatprep.subr.mxu0 0.0
      %752 = vmatpush1.msra.mxu0 0.0
      %753 = vmatprep.subr.mxu0 0.0
      %754 = vmatpush1.msra.mxu0 0.0
      %755 = vmatprep.subr.mxu0 0.0
      %756 = vmatpush1.msra.mxu0 0.0
      %757 = vmatprep.subr.mxu0 0.0
      %758 = vmatpush1.msra.mxu0 0.0
      %759 = vmatprep.subr.mxu0 0.0
      %760 = vmatpush1.msra.mxu0 0.0
      %761 = vmatprep.subr.mxu0 0.0
      %762 = vmatpush1.msra.mxu0 0.0
      %763 = vmatprep.subr.mxu0 0.0
      %764 = vmatpush1.msra.mxu0 0.0
      %765 = vmatprep.subr.mxu0 0.0
      %766 = vmatpush1.msra.mxu0 0.0
      %767 = vmatprep.subr.mxu0 0.0
      %768 = vmatpush1.msra.mxu0 0.0
      %769 = vmatprep.subr.mxu0 0.0
      %770 = vmatpush1.msra.mxu0 0.0
      %771 = vmatprep.mubr.f32.mxu0 0.0
      %v772 = vand.u32 %v356, 4294901760
      %773 = vmatmul.mubr.f32.gmra.mrb[0].mxu0 %v772
      %v774 = vpop.f32.mrb[0].mxu0
      %v775 = vadd.f32 %v690, %v774
      %v776 = vpop.f32.mrb[0].mxu0
      %777 = vmatprep.mubr.f32.mxu0 0.0
      %v778 = vand.u32 %v359, 4294901760
      %779 = vmatmul.mubr.f32.gmra.mrb[0].mxu0 %v778
      %v780 = vpop.f32.mrb[0].mxu0
      %v781 = vadd.f32 %v698, %v780
      %v782 = vpop.f32.mrb[0].mxu0
      %783 = vdwg.mxu0
      %784 = vmatprep.subr.mxu0 0.0
      %v785 = vand.u32 %v347, 4294901760
      %786 = vmatpush1.msra.mxu0 %v785
      %787 = vmatprep.subr.mxu0 0.0
      %v788 = vand.u32 %v348, 4294901760
      %789 = vmatpush1.msra.mxu0 %v788
      %790 = vmatprep.subr.mxu0 0.0
      %791 = vmatpush1.msra.mxu0 0.0
      %792 = vmatprep.subr.mxu0 0.0
      %793 = vmatpush1.msra.mxu0 0.0
      %794 = vmatprep.subr.mxu0 0.0
      %795 = vmatpush1.msra.mxu0 0.0
      %796 = vmatprep.subr.mxu0 0.0
      %797 = vmatpush1.msra.mxu0 0.0
      %798 = vmatprep.subr.mxu0 0.0
      %799 = vmatpush1.msra.mxu0 0.0
      %800 = vmatprep.subr.mxu0 0.0
      %801 = vmatpush1.msra.mxu0 0.0
      %802 = vmatprep.subr.mxu0 0.0
      %803 = vmatpush1.msra.mxu0 0.0
      %804 = vmatprep.subr.mxu0 0.0
      %805 = vmatpush1.msra.mxu0 0.0
      %806 = vmatprep.subr.mxu0 0.0
      %807 = vmatpush1.msra.mxu0 0.0
      %808 = vmatprep.subr.mxu0 0.0
      %809 = vmatpush1.msra.mxu0 0.0
      %810 = vmatprep.subr.mxu0 0.0
      %811 = vmatpush1.msra.mxu0 0.0
      %812 = vmatprep.subr.mxu0 0.0
      %813 = vmatpush1.msra.mxu0 0.0
      %814 = vmatprep.subr.mxu0 0.0
      %815 = vmatpush1.msra.mxu0 0.0
      %816 = vmatprep.subr.mxu0 0.0
      %817 = vmatpush1.msra.mxu0 0.0
      %818 = vmatprep.subr.mxu0 0.0
      %819 = vmatpush1.msra.mxu0 0.0
      %820 = vmatprep.subr.mxu0 0.0
      %821 = vmatpush1.msra.mxu0 0.0
      %822 = vmatprep.subr.mxu0 0.0
      %823 = vmatpush1.msra.mxu0 0.0
      %824 = vmatprep.subr.mxu0 0.0
      %825 = vmatpush1.msra.mxu0 0.0
      %826 = vmatprep.subr.mxu0 0.0
      %827 = vmatpush1.msra.mxu0 0.0
      %828 = vmatprep.subr.mxu0 0.0
      %829 = vmatpush1.msra.mxu0 0.0
      %830 = vmatprep.subr.mxu0 0.0
      %831 = vmatpush1.msra.mxu0 0.0
      %832 = vmatprep.subr.mxu0 0.0
      %833 = vmatpush1.msra.mxu0 0.0
      %834 = vmatprep.subr.mxu0 0.0
      %835 = vmatpush1.msra.mxu0 0.0
      %836 = vmatprep.subr.mxu0 0.0
      %837 = vmatpush1.msra.mxu0 0.0
      %838 = vmatprep.subr.mxu0 0.0
      %839 = vmatpush1.msra.mxu0 0.0
      %840 = vmatprep.subr.mxu0 0.0
      %841 = vmatpush1.msra.mxu0 0.0
      %842 = vmatprep.subr.mxu0 0.0
      %843 = vmatpush1.msra.mxu0 0.0
      %844 = vmatprep.subr.mxu0 0.0
      %845 = vmatpush1.msra.mxu0 0.0
      %846 = vmatprep.subr.mxu0 0.0
      %847 = vmatpush1.msra.mxu0 0.0
      %848 = vmatprep.subr.mxu0 0.0
      %849 = vmatpush1.msra.mxu0 0.0
      %850 = vmatprep.mubr.f32.mxu0 0.0
      %v851 = vand.u32 %v356, 4294901760
      %852 = vmatmul.mubr.f32.gmra.mrb[0].mxu0 %v851
      %v853 = vpop.f32.mrb[0].mxu0
      %v854 = vadd.f32 %v775, %v853
      %v855 = vpop.f32.mrb[0].mxu0
      %856 = vmatprep.mubr.f32.mxu0 0.0
      %v857 = vand.u32 %v359, 4294901760
      %858 = vmatmul.mubr.f32.gmra.mrb[0].mxu0 %v857
      %v859 = vpop.f32.mrb[0].mxu0
      %v860 = vadd.f32 %v781, %v859
      %v861 = vpop.f32.mrb[0].mxu0
      %862 = vdwg.mxu0
      %v863 = vld [vmem:[%s1] sm:$0xff]
      %v864 = vld [vmem:[%s1 + $0x8] sm:$0xff]
      %v865 = vld [vmem:[%s1 + $0x10] sm:$0xff]
      %v866 = vld [vmem:[%s1 + $0x18] sm:$0xff]
      %v867 = vld [vmem:[%s1 + $0x20] sm:$0xff]
      %v868 = vld [vmem:[%s1 + $0x28] sm:$0xff]
      %v869 = vld [vmem:[%s1 + $0x30] sm:$0xff]
      %v870 = vld [vmem:[%s1 + $0x38] sm:$0xff]
      %s871 = scalar_lea.vmem %s1, 64
      %v872 = vld [vmem:[%s871] sm:$0xff]
      %v873 = vld [vmem:[%s871 + $0x8] sm:$0xff]
      %v874 = vld [vmem:[%s871 + $0x10] sm:$0xff]
      %v875 = vld [vmem:[%s871 + $0x18] sm:$0xff]
      %v876 = vld [vmem:[%s871 + $0x20] sm:$0xff]
      %v877 = vld [vmem:[%s871 + $0x28] sm:$0xff]
      %v878 = vld [vmem:[%s871 + $0x30] sm:$0xff]
      %v879 = vld [vmem:[%s871 + $0x38] sm:$0xff]
      %vm880 = vcmask 523264
      %v882 = vsel %vm880, %v347, 0
      %v885 = vsel %vm880, %v348, 0
      %887 = vmatprep.subr.mxu0 0.0
      %v888 = vand.u32 %v872, 4294901760
      %889 = vmatpush1.msra.mxu0 %v888
      %890 = vmatprep.subr.mxu0 0.0
      %v891 = vand.u32 %v873, 4294901760
      %892 = vmatpush1.msra.mxu0 %v891
      %893 = vmatprep.subr.mxu0 0.0
      %v894 = vand.u32 %v874, 4294901760
      %895 = vmatpush1.msra.mxu0 %v894
      %896 = vmatprep.subr.mxu0 0.0
      %v897 = vand.u32 %v875, 4294901760
      %898 = vmatpush1.msra.mxu0 %v897
      %899 = vmatprep.subr.mxu0 0.0
      %v900 = vand.u32 %v876, 4294901760
      %901 = vmatpush1.msra.mxu0 %v900
      %902 = vmatprep.subr.mxu0 0.0
      %v903 = vand.u32 %v877, 4294901760
      %904 = vmatpush1.msra.mxu0 %v903
      %905 = vmatprep.subr.mxu0 0.0
      %v906 = vand.u32 %v878, 4294901760
      %907 = vmatpush1.msra.mxu0 %v906
      %908 = vmatprep.subr.mxu0 0.0
      %v909 = vand.u32 %v879, 4294901760
      %910 = vmatpush1.msra.mxu0 %v909
      %911 = vmatprep.subr.mxu0 0.0
      %912 = vmatpush1.msra.mxu0 0.0
      %913 = vmatprep.subr.mxu0 0.0
      %914 = vmatpush1.msra.mxu0 0.0
      %915 = vmatprep.subr.mxu0 0.0
      %916 = vmatpush1.msra.mxu0 0.0
      %917 = vmatprep.subr.mxu0 0.0
      %918 = vmatpush1.msra.mxu0 0.0
      %919 = vmatprep.subr.mxu0 0.0
      %920 = vmatpush1.msra.mxu0 0.0
      %921 = vmatprep.subr.mxu0 0.0
      %922 = vmatpush1.msra.mxu0 0.0
      %923 = vmatprep.subr.mxu0 0.0
      %924 = vmatpush1.msra.mxu0 0.0
      %925 = vmatprep.subr.mxu0 0.0
      %926 = vmatpush1.msra.mxu0 0.0
      %927 = vmatprep.subr.mxu0 0.0
      %928 = vmatpush1.msra.mxu0 0.0
      %929 = vmatprep.subr.mxu0 0.0
      %930 = vmatpush1.msra.mxu0 0.0
      %931 = vmatprep.subr.mxu0 0.0
      %932 = vmatpush1.msra.mxu0 0.0
      %933 = vmatprep.subr.mxu0 0.0
      %934 = vmatpush1.msra.mxu0 0.0
      %935 = vmatprep.subr.mxu0 0.0
      %936 = vmatpush1.msra.mxu0 0.0
      %937 = vmatprep.subr.mxu0 0.0
      %938 = vmatpush1.msra.mxu0 0.0
      %939 = vmatprep.subr.mxu0 0.0
      %940 = vmatpush1.msra.mxu0 0.0
      %941 = vmatprep.subr.mxu0 0.0
      %942 = vmatpush1.msra.mxu0 0.0
      %943 = vmatprep.subr.mxu0 0.0
      %944 = vmatpush1.msra.mxu0 0.0
      %945 = vmatprep.subr.mxu0 0.0
      %946 = vmatpush1.msra.mxu0 0.0
      %947 = vmatprep.subr.mxu0 0.0
      %948 = vmatpush1.msra.mxu0 0.0
      %949 = vmatprep.subr.mxu0 0.0
      %950 = vmatpush1.msra.mxu0 0.0
      %951 = vmatprep.subr.mxu0 0.0
      %952 = vmatpush1.msra.mxu0 0.0
      %953 = vmatprep.subr.mxu0 0.0
      %954 = vmatpush1.msra.mxu0 0.0
      %955 = vmatprep.subr.mxu0 0.0
      %956 = vmatpush1.msra.mxu0 0.0
      %957 = vmatprep.subr.mxu0 0.0
      %958 = vmatpush1.msra.mxu0 0.0
      %959 = vmatprep.mubr.f32.mxu0 0.0
      %v960 = vand.u32 %v882, 4294901760
      %v961 = vsub.f32 %v882, %v960
      %v962 = vand.u32 %v961, 4294901760
      %v963 = vsub.f32 %v961, %v962
      %v964 = vand.u32 %v963, 4294901760
      %965 = vmatmul.mubr.f32.gmra.mrb[0].mxu0 %v964
      %v966 = vpop.f32.mrb[0].mxu0
      %v967 = vadd.f32 0.0, %v966
      %v968 = vpop.f32.mrb[0].mxu0
      %969 = vmatprep.mubr.f32.mxu0 0.0
      %v970 = vand.u32 %v885, 4294901760
      %v971 = vsub.f32 %v885, %v970
      %v972 = vand.u32 %v971, 4294901760
      %v973 = vsub.f32 %v971, %v972
      %v974 = vand.u32 %v973, 4294901760
      %975 = vmatmul.mubr.f32.gmra.mrb[0].mxu0 %v974
      %v976 = vpop.f32.mrb[0].mxu0
      %v977 = vadd.f32 0.0, %v976
      %v978 = vpop.f32.mrb[0].mxu0
      %979 = vdwg.mxu0
      %980 = vmatprep.subr.mxu0 0.0
      %v981 = vand.u32 %v872, 4294901760
      %v982 = vsub.f32 %v872, %v981
      %v983 = vand.u32 %v982, 4294901760
      %v984 = vsub.f32 %v982, %v983
      %v985 = vand.u32 %v984, 4294901760
      %986 = vmatpush1.msra.mxu0 %v985
      %987 = vmatprep.subr.mxu0 0.0
      %v988 = vand.u32 %v873, 4294901760
      %v989 = vsub.f32 %v873, %v988
      %v990 = vand.u32 %v989, 4294901760
      %v991 = vsub.f32 %v989, %v990
      %v992 = vand.u32 %v991, 4294901760
      %993 = vmatpush1.msra.mxu0 %v992
      %994 = vmatprep.subr.mxu0 0.0
      %v995 = vand.u32 %v874, 4294901760
      %v996 = vsub.f32 %v874, %v995
      %v997 = vand.u32 %v996, 4294901760
      %v998 = vsub.f32 %v996, %v997
      %v999 = vand.u32 %v998, 4294901760
      %1000 = vmatpush1.msra.mxu0 %v999
      %1001 = vmatprep.subr.mxu0 0.0
      %v1002 = vand.u32 %v875, 4294901760
      %v1003 = vsub.f32 %v875, %v1002
      %v1004 = vand.u32 %v1003, 4294901760
      %v1005 = vsub.f32 %v1003, %v1004
      %v1006 = vand.u32 %v1005, 4294901760
      %1007 = vmatpush1.msra.mxu0 %v1006
      %1008 = vmatprep.subr.mxu0 0.0
      %v1009 = vand.u32 %v876, 4294901760
      %v1010 = vsub.f32 %v876, %v1009
      %v1011 = vand.u32 %v1010, 4294901760
      %v1012 = vsub.f32 %v1010, %v1011
      %v1013 = vand.u32 %v1012, 4294901760
      %1014 = vmatpush1.msra.mxu0 %v1013
      %1015 = vmatprep.subr.mxu0 0.0
      %v1016 = vand.u32 %v877, 4294901760
      %v1017 = vsub.f32 %v877, %v1016
      %v1018 = vand.u32 %v1017, 4294901760
      %v1019 = vsub.f32 %v1017, %v1018
      %v1020 = vand.u32 %v1019, 4294901760
      %1021 = vmatpush1.msra.mxu0 %v1020
      %1022 = vmatprep.subr.mxu0 0.0
      %v1023 = vand.u32 %v878, 4294901760
      %v1024 = vsub.f32 %v878, %v1023
      %v1025 = vand.u32 %v1024, 4294901760
      %v1026 = vsub.f32 %v1024, %v1025
      %v1027 = vand.u32 %v1026, 4294901760
      %1028 = vmatpush1.msra.mxu0 %v1027
      %1029 = vmatprep.subr.mxu0 0.0
      %v1030 = vand.u32 %v879, 4294901760
      %v1031 = vsub.f32 %v879, %v1030
      %v1032 = vand.u32 %v1031, 4294901760
      %v1033 = vsub.f32 %v1031, %v1032
      %v1034 = vand.u32 %v1033, 4294901760
      %1035 = vmatpush1.msra.mxu0 %v1034
      %1036 = vmatprep.subr.mxu0 0.0
      %1037 = vmatpush1.msra.mxu0 0.0
      %1038 = vmatprep.subr.mxu0 0.0
      %1039 = vmatpush1.msra.mxu0 0.0
      %1040 = vmatprep.subr.mxu0 0.0
      %1041 = vmatpush1.msra.mxu0 0.0
      %1042 = vmatprep.subr.mxu0 0.0
      %1043 = vmatpush1.msra.mxu0 0.0
      %1044 = vmatprep.subr.mxu0 0.0
      %1045 = vmatpush1.msra.mxu0 0.0
      %1046 = vmatprep.subr.mxu0 0.0
      %1047 = vmatpush1.msra.mxu0 0.0
      %1048 = vmatprep.subr.mxu0 0.0
      %1049 = vmatpush1.msra.mxu0 0.0
      %1050 = vmatprep.subr.mxu0 0.0
      %1051 = vmatpush1.msra.mxu0 0.0
      %1052 = vmatprep.subr.mxu0 0.0
      %1053 = vmatpush1.msra.mxu0 0.0
      %1054 = vmatprep.subr.mxu0 0.0
      %1055 = vmatpush1.msra.mxu0 0.0
      %1056 = vmatprep.subr.mxu0 0.0
      %1057 = vmatpush1.msra.mxu0 0.0
      %1058 = vmatprep.subr.mxu0 0.0
      %1059 = vmatpush1.msra.mxu0 0.0
      %1060 = vmatprep.subr.mxu0 0.0
      %1061 = vmatpush1.msra.mxu0 0.0
      %1062 = vmatprep.subr.mxu0 0.0
      %1063 = vmatpush1.msra.mxu0 0.0
      %1064 = vmatprep.subr.mxu0 0.0
      %1065 = vmatpush1.msra.mxu0 0.0
      %1066 = vmatprep.subr.mxu0 0.0
      %1067 = vmatpush1.msra.mxu0 0.0
      %1068 = vmatprep.subr.mxu0 0.0
      %1069 = vmatpush1.msra.mxu0 0.0
      %1070 = vmatprep.subr.mxu0 0.0
      %1071 = vmatpush1.msra.mxu0 0.0
      %1072 = vmatprep.subr.mxu0 0.0
      %1073 = vmatpush1.msra.mxu0 0.0
      %1074 = vmatprep.subr.mxu0 0.0
      %1075 = vmatpush1.msra.mxu0 0.0
      %1076 = vmatprep.subr.mxu0 0.0
      %1077 = vmatpush1.msra.mxu0 0.0
      %1078 = vmatprep.subr.mxu0 0.0
      %1079 = vmatpush1.msra.mxu0 0.0
      %1080 = vmatprep.subr.mxu0 0.0
      %1081 = vmatpush1.msra.mxu0 0.0
      %1082 = vmatprep.subr.mxu0 0.0
      %1083 = vmatpush1.msra.mxu0 0.0
      %1084 = vmatprep.mubr.f32.mxu0 0.0
      %v1085 = vand.u32 %v882, 4294901760
      %1086 = vmatmul.mubr.f32.gmra.mrb[0].mxu0 %v1085
      %v1087 = vpop.f32.mrb[0].mxu0
      %v1088 = vadd.f32 %v967, %v1087
      %v1089 = vpop.f32.mrb[0].mxu0
      %1090 = vmatprep.mubr.f32.mxu0 0.0
      %v1091 = vand.u32 %v885, 4294901760
      %1092 = vmatmul.mubr.f32.gmra.mrb[0].mxu0 %v1091
      %v1093 = vpop.f32.mrb[0].mxu0
      %v1094 = vadd.f32 %v977, %v1093
      %v1095 = vpop.f32.mrb[0].mxu0
      %1096 = vdwg.mxu0
      %1097 = vmatprep.subr.mxu0 0.0
      %v1098 = vand.u32 %v872, 4294901760
      %v1099 = vsub.f32 %v872, %v1098
      %1100 = vmatpush1.msra.mxu0 %v1099
      %1101 = vmatprep.subr.mxu0 0.0
      %v1102 = vand.u32 %v873, 4294901760
      %v1103 = vsub.f32 %v873, %v1102
      %1104 = vmatpush1.msra.mxu0 %v1103
      %1105 = vmatprep.subr.mxu0 0.0
      %v1106 = vand.u32 %v874, 4294901760
      %v1107 = vsub.f32 %v874, %v1106
      %1108 = vmatpush1.msra.mxu0 %v1107
      %1109 = vmatprep.subr.mxu0 0.0
      %v1110 = vand.u32 %v875, 4294901760
      %v1111 = vsub.f32 %v875, %v1110
      %1112 = vmatpush1.msra.mxu0 %v1111
      %1113 = vmatprep.subr.mxu0 0.0
      %v1114 = vand.u32 %v876, 4294901760
      %v1115 = vsub.f32 %v876, %v1114
      %1116 = vmatpush1.msra.mxu0 %v1115
      %1117 = vmatprep.subr.mxu0 0.0
      %v1118 = vand.u32 %v877, 4294901760
      %v1119 = vsub.f32 %v877, %v1118
      %1120 = vmatpush1.msra.mxu0 %v1119
      %1121 = vmatprep.subr.mxu0 0.0
      %v1122 = vand.u32 %v878, 4294901760
      %v1123 = vsub.f32 %v878, %v1122
      %1124 = vmatpush1.msra.mxu0 %v1123
      %1125 = vmatprep.subr.mxu0 0.0
      %v1126 = vand.u32 %v879, 4294901760
      %v1127 = vsub.f32 %v879, %v1126
      %1128 = vmatpush1.msra.mxu0 %v1127
      %1129 = vmatprep.subr.mxu0 0.0
      %1130 = vmatpush1.msra.mxu0 0.0
      %1131 = vmatprep.subr.mxu0 0.0
      %1132 = vmatpush1.msra.mxu0 0.0
      %1133 = vmatprep.subr.mxu0 0.0
      %1134 = vmatpush1.msra.mxu0 0.0
      %1135 = vmatprep.subr.mxu0 0.0
      %1136 = vmatpush1.msra.mxu0 0.0
      %1137 = vmatprep.subr.mxu0 0.0
      %1138 = vmatpush1.msra.mxu0 0.0
      %1139 = vmatprep.subr.mxu0 0.0
      %1140 = vmatpush1.msra.mxu0 0.0
      %1141 = vmatprep.subr.mxu0 0.0
      %1142 = vmatpush1.msra.mxu0 0.0
      %1143 = vmatprep.subr.mxu0 0.0
      %1144 = vmatpush1.msra.mxu0 0.0
      %1145 = vmatprep.subr.mxu0 0.0
      %1146 = vmatpush1.msra.mxu0 0.0
      %1147 = vmatprep.subr.mxu0 0.0
      %1148 = vmatpush1.msra.mxu0 0.0
      %1149 = vmatprep.subr.mxu0 0.0
      %1150 = vmatpush1.msra.mxu0 0.0
      %1151 = vmatprep.subr.mxu0 0.0
      %1152 = vmatpush1.msra.mxu0 0.0
      %1153 = vmatprep.subr.mxu0 0.0
      %1154 = vmatpush1.msra.mxu0 0.0
      %1155 = vmatprep.subr.mxu0 0.0
      %1156 = vmatpush1.msra.mxu0 0.0
      %1157 = vmatprep.subr.mxu0 0.0
      %1158 = vmatpush1.msra.mxu0 0.0
      %1159 = vmatprep.subr.mxu0 0.0
      %1160 = vmatpush1.msra.mxu0 0.0
      %1161 = vmatprep.subr.mxu0 0.0
      %1162 = vmatpush1.msra.mxu0 0.0
      %1163 = vmatprep.subr.mxu0 0.0
      %1164 = vmatpush1.msra.mxu0 0.0
      %1165 = vmatprep.subr.mxu0 0.0
      %1166 = vmatpush1.msra.mxu0 0.0
      %1167 = vmatprep.subr.mxu0 0.0
      %1168 = vmatpush1.msra.mxu0 0.0
      %1169 = vmatprep.subr.mxu0 0.0
      %1170 = vmatpush1.msra.mxu0 0.0
      %1171 = vmatprep.subr.mxu0 0.0
      %1172 = vmatpush1.msra.mxu0 0.0
      %1173 = vmatprep.subr.mxu0 0.0
      %1174 = vmatpush1.msra.mxu0 0.0
      %1175 = vmatprep.subr.mxu0 0.0
      %1176 = vmatpush1.msra.mxu0 0.0
      %1177 = vmatprep.mubr.f32.mxu0 0.0
      %v1178 = vand.u32 %v882, 4294901760
      %v1179 = vsub.f32 %v882, %v1178
      %1180 = vmatmul.mubr.f32.gmra.mrb[0].mxu0 %v1179
      %v1181 = vpop.f32.mrb[0].mxu0
      %v1182 = vadd.f32 %v1088, %v1181
      %v1183 = vpop.f32.mrb[0].mxu0
      %1184 = vmatprep.mubr.f32.mxu0 0.0
      %v1185 = vand.u32 %v885, 4294901760
      %v1186 = vsub.f32 %v885, %v1185
      %1187 = vmatmul.mubr.f32.gmra.mrb[0].mxu0 %v1186
      %v1188 = vpop.f32.mrb[0].mxu0
      %v1189 = vadd.f32 %v1094, %v1188
      %v1190 = vpop.f32.mrb[0].mxu0
      %1191 = vdwg.mxu0
      %1192 = vmatprep.subr.mxu0 0.0
      %v1193 = vand.u32 %v872, 4294901760
      %1194 = vmatpush1.msra.mxu0 %v1193
      %1195 = vmatprep.subr.mxu0 0.0
      %v1196 = vand.u32 %v873, 4294901760
      %1197 = vmatpush1.msra.mxu0 %v1196
      %1198 = vmatprep.subr.mxu0 0.0
      %v1199 = vand.u32 %v874, 4294901760
      %1200 = vmatpush1.msra.mxu0 %v1199
      %1201 = vmatprep.subr.mxu0 0.0
      %v1202 = vand.u32 %v875, 4294901760
      %1203 = vmatpush1.msra.mxu0 %v1202
      %1204 = vmatprep.subr.mxu0 0.0
      %v1205 = vand.u32 %v876, 4294901760
      %1206 = vmatpush1.msra.mxu0 %v1205
      %1207 = vmatprep.subr.mxu0 0.0
      %v1208 = vand.u32 %v877, 4294901760
      %1209 = vmatpush1.msra.mxu0 %v1208
      %1210 = vmatprep.subr.mxu0 0.0
      %v1211 = vand.u32 %v878, 4294901760
      %1212 = vmatpush1.msra.mxu0 %v1211
      %1213 = vmatprep.subr.mxu0 0.0
      %v1214 = vand.u32 %v879, 4294901760
      %1215 = vmatpush1.msra.mxu0 %v1214
      %1216 = vmatprep.subr.mxu0 0.0
      %1217 = vmatpush1.msra.mxu0 0.0
      %1218 = vmatprep.subr.mxu0 0.0
      %1219 = vmatpush1.msra.mxu0 0.0
      %1220 = vmatprep.subr.mxu0 0.0
      %1221 = vmatpush1.msra.mxu0 0.0
      %1222 = vmatprep.subr.mxu0 0.0
      %1223 = vmatpush1.msra.mxu0 0.0
      %1224 = vmatprep.subr.mxu0 0.0
      %1225 = vmatpush1.msra.mxu0 0.0
      %1226 = vmatprep.subr.mxu0 0.0
      %1227 = vmatpush1.msra.mxu0 0.0
      %1228 = vmatprep.subr.mxu0 0.0
      %1229 = vmatpush1.msra.mxu0 0.0
      %1230 = vmatprep.subr.mxu0 0.0
      %1231 = vmatpush1.msra.mxu0 0.0
      %1232 = vmatprep.subr.mxu0 0.0
      %1233 = vmatpush1.msra.mxu0 0.0
      %1234 = vmatprep.subr.mxu0 0.0
      %1235 = vmatpush1.msra.mxu0 0.0
      %1236 = vmatprep.subr.mxu0 0.0
      %1237 = vmatpush1.msra.mxu0 0.0
      %1238 = vmatprep.subr.mxu0 0.0
      %1239 = vmatpush1.msra.mxu0 0.0
      %1240 = vmatprep.subr.mxu0 0.0
      %1241 = vmatpush1.msra.mxu0 0.0
      %1242 = vmatprep.subr.mxu0 0.0
      %1243 = vmatpush1.msra.mxu0 0.0
      %1244 = vmatprep.subr.mxu0 0.0
      %1245 = vmatpush1.msra.mxu0 0.0
      %1246 = vmatprep.subr.mxu0 0.0
      %1247 = vmatpush1.msra.mxu0 0.0
      %1248 = vmatprep.subr.mxu0 0.0
      %1249 = vmatpush1.msra.mxu0 0.0
      %1250 = vmatprep.subr.mxu0 0.0
      %1251 = vmatpush1.msra.mxu0 0.0
      %1252 = vmatprep.subr.mxu0 0.0
      %1253 = vmatpush1.msra.mxu0 0.0
      %1254 = vmatprep.subr.mxu0 0.0
      %1255 = vmatpush1.msra.mxu0 0.0
      %1256 = vmatprep.subr.mxu0 0.0
      %1257 = vmatpush1.msra.mxu0 0.0
      %1258 = vmatprep.subr.mxu0 0.0
      %1259 = vmatpush1.msra.mxu0 0.0
      %1260 = vmatprep.subr.mxu0 0.0
      %1261 = vmatpush1.msra.mxu0 0.0
      %1262 = vmatprep.subr.mxu0 0.0
      %1263 = vmatpush1.msra.mxu0 0.0
      %1264 = vmatprep.mubr.f32.mxu0 0.0
      %v1265 = vand.u32 %v882, 4294901760
      %v1266 = vsub.f32 %v882, %v1265
      %v1267 = vand.u32 %v1266, 4294901760
      %1268 = vmatmul.mubr.f32.gmra.mrb[0].mxu0 %v1267
      %v1269 = vpop.f32.mrb[0].mxu0
      %v1270 = vadd.f32 %v1182, %v1269
      %v1271 = vpop.f32.mrb[0].mxu0
      %1272 = vmatprep.mubr.f32.mxu0 0.0
      %v1273 = vand.u32 %v885, 4294901760
      %v1274 = vsub.f32 %v885, %v1273
      %v1275 = vand.u32 %v1274, 4294901760
      %1276 = vmatmul.mubr.f32.gmra.mrb[0].mxu0 %v1275
      %v1277 = vpop.f32.mrb[0].mxu0
      %v1278 = vadd.f32 %v1189, %v1277
      %v1279 = vpop.f32.mrb[0].mxu0
      %1280 = vdwg.mxu0
      %1281 = vmatprep.subr.mxu0 0.0
      %v1282 = vand.u32 %v872, 4294901760
      %v1283 = vsub.f32 %v872, %v1282
      %v1284 = vand.u32 %v1283, 4294901760
      %1285 = vmatpush1.msra.mxu0 %v1284
      %1286 = vmatprep.subr.mxu0 0.0
      %v1287 = vand.u32 %v873, 4294901760
      %v1288 = vsub.f32 %v873, %v1287
      %v1289 = vand.u32 %v1288, 4294901760
      %1290 = vmatpush1.msra.mxu0 %v1289
      %1291 = vmatprep.subr.mxu0 0.0
      %v1292 = vand.u32 %v874, 4294901760
      %v1293 = vsub.f32 %v874, %v1292
      %v1294 = vand.u32 %v1293, 4294901760
      %1295 = vmatpush1.msra.mxu0 %v1294
      %1296 = vmatprep.subr.mxu0 0.0
      %v1297 = vand.u32 %v875, 4294901760
      %v1298 = vsub.f32 %v875, %v1297
      %v1299 = vand.u32 %v1298, 4294901760
      %1300 = vmatpush1.msra.mxu0 %v1299
      %1301 = vmatprep.subr.mxu0 0.0
      %v1302 = vand.u32 %v876, 4294901760
      %v1303 = vsub.f32 %v876, %v1302
      %v1304 = vand.u32 %v1303, 4294901760
      %1305 = vmatpush1.msra.mxu0 %v1304
      %1306 = vmatprep.subr.mxu0 0.0
      %v1307 = vand.u32 %v877, 4294901760
      %v1308 = vsub.f32 %v877, %v1307
      %v1309 = vand.u32 %v1308, 4294901760
      %1310 = vmatpush1.msra.mxu0 %v1309
      %1311 = vmatprep.subr.mxu0 0.0
      %v1312 = vand.u32 %v878, 4294901760
      %v1313 = vsub.f32 %v878, %v1312
      %v1314 = vand.u32 %v1313, 4294901760
      %1315 = vmatpush1.msra.mxu0 %v1314
      %1316 = vmatprep.subr.mxu0 0.0
      %v1317 = vand.u32 %v879, 4294901760
      %v1318 = vsub.f32 %v879, %v1317
      %v1319 = vand.u32 %v1318, 4294901760
      %1320 = vmatpush1.msra.mxu0 %v1319
      %1321 = vmatprep.subr.mxu0 0.0
      %1322 = vmatpush1.msra.mxu0 0.0
      %1323 = vmatprep.subr.mxu0 0.0
      %1324 = vmatpush1.msra.mxu0 0.0
      %1325 = vmatprep.subr.mxu0 0.0
      %1326 = vmatpush1.msra.mxu0 0.0
      %1327 = vmatprep.subr.mxu0 0.0
      %1328 = vmatpush1.msra.mxu0 0.0
      %1329 = vmatprep.subr.mxu0 0.0
      %1330 = vmatpush1.msra.mxu0 0.0
      %1331 = vmatprep.subr.mxu0 0.0
      %1332 = vmatpush1.msra.mxu0 0.0
      %1333 = vmatprep.subr.mxu0 0.0
      %1334 = vmatpush1.msra.mxu0 0.0
      %1335 = vmatprep.subr.mxu0 0.0
      %1336 = vmatpush1.msra.mxu0 0.0
      %1337 = vmatprep.subr.mxu0 0.0
      %1338 = vmatpush1.msra.mxu0 0.0
      %1339 = vmatprep.subr.mxu0 0.0
      %1340 = vmatpush1.msra.mxu0 0.0
      %1341 = vmatprep.subr.mxu0 0.0
      %1342 = vmatpush1.msra.mxu0 0.0
      %1343 = vmatprep.subr.mxu0 0.0
      %1344 = vmatpush1.msra.mxu0 0.0
      %1345 = vmatprep.subr.mxu0 0.0
      %1346 = vmatpush1.msra.mxu0 0.0
      %1347 = vmatprep.subr.mxu0 0.0
      %1348 = vmatpush1.msra.mxu0 0.0
      %1349 = vmatprep.subr.mxu0 0.0
      %1350 = vmatpush1.msra.mxu0 0.0
      %1351 = vmatprep.subr.mxu0 0.0
      %1352 = vmatpush1.msra.mxu0 0.0
      %1353 = vmatprep.subr.mxu0 0.0
      %1354 = vmatpush1.msra.mxu0 0.0
      %1355 = vmatprep.subr.mxu0 0.0
      %1356 = vmatpush1.msra.mxu0 0.0
      %1357 = vmatprep.subr.mxu0 0.0
      %1358 = vmatpush1.msra.mxu0 0.0
      %1359 = vmatprep.subr.mxu0 0.0
      %1360 = vmatpush1.msra.mxu0 0.0
      %1361 = vmatprep.subr.mxu0 0.0
      %1362 = vmatpush1.msra.mxu0 0.0
      %1363 = vmatprep.subr.mxu0 0.0
      %1364 = vmatpush1.msra.mxu0 0.0
      %1365 = vmatprep.subr.mxu0 0.0
      %1366 = vmatpush1.msra.mxu0 0.0
      %1367 = vmatprep.subr.mxu0 0.0
      %1368 = vmatpush1.msra.mxu0 0.0
      %1369 = vmatprep.mubr.f32.mxu0 0.0
      %v1370 = vand.u32 %v882, 4294901760
      %1371 = vmatmul.mubr.f32.gmra.mrb[0].mxu0 %v1370
      %v1372 = vpop.f32.mrb[0].mxu0
      %v1373 = vadd.f32 %v1270, %v1372
      %v1374 = vpop.f32.mrb[0].mxu0
      %1375 = vmatprep.mubr.f32.mxu0 0.0
      %v1376 = vand.u32 %v885, 4294901760
      %1377 = vmatmul.mubr.f32.gmra.mrb[0].mxu0 %v1376
      %v1378 = vpop.f32.mrb[0].mxu0
      %v1379 = vadd.f32 %v1278, %v1378
      %v1380 = vpop.f32.mrb[0].mxu0
      %1381 = vdwg.mxu0
      %1382 = vmatprep.subr.mxu0 0.0
      %v1383 = vand.u32 %v872, 4294901760
      %1384 = vmatpush1.msra.mxu0 %v1383
      %1385 = vmatprep.subr.mxu0 0.0
      %v1386 = vand.u32 %v873, 4294901760
      %1387 = vmatpush1.msra.mxu0 %v1386
      %1388 = vmatprep.subr.mxu0 0.0
      %v1389 = vand.u32 %v874, 4294901760
      %1390 = vmatpush1.msra.mxu0 %v1389
      %1391 = vmatprep.subr.mxu0 0.0
      %v1392 = vand.u32 %v875, 4294901760
      %1393 = vmatpush1.msra.mxu0 %v1392
      %1394 = vmatprep.subr.mxu0 0.0
      %v1395 = vand.u32 %v876, 4294901760
      %1396 = vmatpush1.msra.mxu0 %v1395
      %1397 = vmatprep.subr.mxu0 0.0
      %v1398 = vand.u32 %v877, 4294901760
      %1399 = vmatpush1.msra.mxu0 %v1398
      %1400 = vmatprep.subr.mxu0 0.0
      %v1401 = vand.u32 %v878, 4294901760
      %1402 = vmatpush1.msra.mxu0 %v1401
      %1403 = vmatprep.subr.mxu0 0.0
      %v1404 = vand.u32 %v879, 4294901760
      %1405 = vmatpush1.msra.mxu0 %v1404
      %1406 = vmatprep.subr.mxu0 0.0
      %1407 = vmatpush1.msra.mxu0 0.0
      %1408 = vmatprep.subr.mxu0 0.0
      %1409 = vmatpush1.msra.mxu0 0.0
      %1410 = vmatprep.subr.mxu0 0.0
      %1411 = vmatpush1.msra.mxu0 0.0
      %1412 = vmatprep.subr.mxu0 0.0
      %1413 = vmatpush1.msra.mxu0 0.0
      %1414 = vmatprep.subr.mxu0 0.0
      %1415 = vmatpush1.msra.mxu0 0.0
      %1416 = vmatprep.subr.mxu0 0.0
      %1417 = vmatpush1.msra.mxu0 0.0
      %1418 = vmatprep.subr.mxu0 0.0
      %1419 = vmatpush1.msra.mxu0 0.0
      %1420 = vmatprep.subr.mxu0 0.0
      %1421 = vmatpush1.msra.mxu0 0.0
      %1422 = vmatprep.subr.mxu0 0.0
      %1423 = vmatpush1.msra.mxu0 0.0
      %1424 = vmatprep.subr.mxu0 0.0
      %1425 = vmatpush1.msra.mxu0 0.0
      %1426 = vmatprep.subr.mxu0 0.0
      %1427 = vmatpush1.msra.mxu0 0.0
      %1428 = vmatprep.subr.mxu0 0.0
      %1429 = vmatpush1.msra.mxu0 0.0
      %1430 = vmatprep.subr.mxu0 0.0
      %1431 = vmatpush1.msra.mxu0 0.0
      %1432 = vmatprep.subr.mxu0 0.0
      %1433 = vmatpush1.msra.mxu0 0.0
      %1434 = vmatprep.subr.mxu0 0.0
      %1435 = vmatpush1.msra.mxu0 0.0
      %1436 = vmatprep.subr.mxu0 0.0
      %1437 = vmatpush1.msra.mxu0 0.0
      %1438 = vmatprep.subr.mxu0 0.0
      %1439 = vmatpush1.msra.mxu0 0.0
      %1440 = vmatprep.subr.mxu0 0.0
      %1441 = vmatpush1.msra.mxu0 0.0
      %1442 = vmatprep.subr.mxu0 0.0
      %1443 = vmatpush1.msra.mxu0 0.0
      %1444 = vmatprep.subr.mxu0 0.0
      %1445 = vmatpush1.msra.mxu0 0.0
      %1446 = vmatprep.subr.mxu0 0.0
      %1447 = vmatpush1.msra.mxu0 0.0
      %1448 = vmatprep.subr.mxu0 0.0
      %1449 = vmatpush1.msra.mxu0 0.0
      %1450 = vmatprep.subr.mxu0 0.0
      %1451 = vmatpush1.msra.mxu0 0.0
      %1452 = vmatprep.subr.mxu0 0.0
      %1453 = vmatpush1.msra.mxu0 0.0
      %1454 = vmatprep.mubr.f32.mxu0 0.0
      %v1455 = vand.u32 %v882, 4294901760
      %1456 = vmatmul.mubr.f32.gmra.mrb[0].mxu0 %v1455
      %v1457 = vpop.f32.mrb[0].mxu0
      %v1458 = vadd.f32 %v1373, %v1457
      %v1459 = vpop.f32.mrb[0].mxu0
      %1460 = vmatprep.mubr.f32.mxu0 0.0
      %v1461 = vand.u32 %v885, 4294901760
      %1462 = vmatmul.mubr.f32.gmra.mrb[0].mxu0 %v1461
      %v1463 = vpop.f32.mrb[0].mxu0
      %v1464 = vadd.f32 %v1379, %v1463
      %v1465 = vpop.f32.mrb[0].mxu0
      %1466 = vdwg.mxu0
      %v1468 = vsel %vm880, %v854, 0
      %v1471 = vsel %vm880, %v860, 0
      %1473 = vmatprep.subr.mxu0 0.0
      %v1474 = vand.u32 %v863, 4294901760
      %1475 = vmatpush1.msra.mxu0 %v1474
      %1476 = vmatprep.subr.mxu0 0.0
      %v1477 = vand.u32 %v864, 4294901760
      %1478 = vmatpush1.msra.mxu0 %v1477
      %1479 = vmatprep.subr.mxu0 0.0
      %v1480 = vand.u32 %v865, 4294901760
      %1481 = vmatpush1.msra.mxu0 %v1480
      %1482 = vmatprep.subr.mxu0 0.0
      %v1483 = vand.u32 %v866, 4294901760
      %1484 = vmatpush1.msra.mxu0 %v1483
      %1485 = vmatprep.subr.mxu0 0.0
      %v1486 = vand.u32 %v867, 4294901760
      %1487 = vmatpush1.msra.mxu0 %v1486
      %1488 = vmatprep.subr.mxu0 0.0
      %v1489 = vand.u32 %v868, 4294901760
      %1490 = vmatpush1.msra.mxu0 %v1489
      %1491 = vmatprep.subr.mxu0 0.0
      %v1492 = vand.u32 %v869, 4294901760
      %1493 = vmatpush1.msra.mxu0 %v1492
      %1494 = vmatprep.subr.mxu0 0.0
      %v1495 = vand.u32 %v870, 4294901760
      %1496 = vmatpush1.msra.mxu0 %v1495
      %1497 = vmatprep.subr.mxu0 0.0
      %1498 = vmatpush1.msra.mxu0 0.0
      %1499 = vmatprep.subr.mxu0 0.0
      %1500 = vmatpush1.msra.mxu0 0.0
      %1501 = vmatprep.subr.mxu0 0.0
      %1502 = vmatpush1.msra.mxu0 0.0
      %1503 = vmatprep.subr.mxu0 0.0
      %1504 = vmatpush1.msra.mxu0 0.0
      %1505 = vmatprep.subr.mxu0 0.0
      %1506 = vmatpush1.msra.mxu0 0.0
      %1507 = vmatprep.subr.mxu0 0.0
      %1508 = vmatpush1.msra.mxu0 0.0
      %1509 = vmatprep.subr.mxu0 0.0
      %1510 = vmatpush1.msra.mxu0 0.0
      %1511 = vmatprep.subr.mxu0 0.0
      %1512 = vmatpush1.msra.mxu0 0.0
      %1513 = vmatprep.subr.mxu0 0.0
      %1514 = vmatpush1.msra.mxu0 0.0
      %1515 = vmatprep.subr.mxu0 0.0
      %1516 = vmatpush1.msra.mxu0 0.0
      %1517 = vmatprep.subr.mxu0 0.0
      %1518 = vmatpush1.msra.mxu0 0.0
      %1519 = vmatprep.subr.mxu0 0.0
      %1520 = vmatpush1.msra.mxu0 0.0
      %1521 = vmatprep.subr.mxu0 0.0
      %1522 = vmatpush1.msra.mxu0 0.0
      %1523 = vmatprep.subr.mxu0 0.0
      %1524 = vmatpush1.msra.mxu0 0.0
      %1525 = vmatprep.subr.mxu0 0.0
      %1526 = vmatpush1.msra.mxu0 0.0
      %1527 = vmatprep.subr.mxu0 0.0
      %1528 = vmatpush1.msra.mxu0 0.0
      %1529 = vmatprep.subr.mxu0 0.0
      %1530 = vmatpush1.msra.mxu0 0.0
      %1531 = vmatprep.subr.mxu0 0.0
      %1532 = vmatpush1.msra.mxu0 0.0
      %1533 = vmatprep.subr.mxu0 0.0
      %1534 = vmatpush1.msra.mxu0 0.0
      %1535 = vmatprep.subr.mxu0 0.0
      %1536 = vmatpush1.msra.mxu0 0.0
      %1537 = vmatprep.subr.mxu0 0.0
      %1538 = vmatpush1.msra.mxu0 0.0
      %1539 = vmatprep.subr.mxu0 0.0
      %1540 = vmatpush1.msra.mxu0 0.0
      %1541 = vmatprep.subr.mxu0 0.0
      %1542 = vmatpush1.msra.mxu0 0.0
      %1543 = vmatprep.subr.mxu0 0.0
      %1544 = vmatpush1.msra.mxu0 0.0
      %1545 = vmatprep.mubr.f32.mxu0 0.0
      %v1546 = vand.u32 %v1468, 4294901760
      %v1547 = vsub.f32 %v1468, %v1546
      %v1548 = vand.u32 %v1547, 4294901760
      %v1549 = vsub.f32 %v1547, %v1548
      %v1550 = vand.u32 %v1549, 4294901760
      %1551 = vmatmul.mubr.f32.gmra.mrb[0].mxu0 %v1550
      %v1552 = vpop.f32.mrb[0].mxu0
      %v1553 = vadd.f32 %v1458, %v1552
      %v1554 = vpop.f32.mrb[0].mxu0
      %1555 = vmatprep.mubr.f32.mxu0 0.0
      %v1556 = vand.u32 %v1471, 4294901760
      %v1557 = vsub.f32 %v1471, %v1556
      %v1558 = vand.u32 %v1557, 4294901760
      %v1559 = vsub.f32 %v1557, %v1558
      %v1560 = vand.u32 %v1559, 4294901760
      %1561 = vmatmul.mubr.f32.gmra.mrb[0].mxu0 %v1560
      %v1562 = vpop.f32.mrb[0].mxu0
      %v1563 = vadd.f32 %v1464, %v1562
      %v1564 = vpop.f32.mrb[0].mxu0
      %1565 = vdwg.mxu0
      %1566 = vmatprep.subr.mxu0 0.0
      %v1567 = vand.u32 %v863, 4294901760
      %v1568 = vsub.f32 %v863, %v1567
      %v1569 = vand.u32 %v1568, 4294901760
      %v1570 = vsub.f32 %v1568, %v1569
      %v1571 = vand.u32 %v1570, 4294901760
      %1572 = vmatpush1.msra.mxu0 %v1571
      %1573 = vmatprep.subr.mxu0 0.0
      %v1574 = vand.u32 %v864, 4294901760
      %v1575 = vsub.f32 %v864, %v1574
      %v1576 = vand.u32 %v1575, 4294901760
      %v1577 = vsub.f32 %v1575, %v1576
      %v1578 = vand.u32 %v1577, 4294901760
      %1579 = vmatpush1.msra.mxu0 %v1578
      %1580 = vmatprep.subr.mxu0 0.0
      %v1581 = vand.u32 %v865, 4294901760
      %v1582 = vsub.f32 %v865, %v1581
      %v1583 = vand.u32 %v1582, 4294901760
      %v1584 = vsub.f32 %v1582, %v1583
      %v1585 = vand.u32 %v1584, 4294901760
      %1586 = vmatpush1.msra.mxu0 %v1585
      %1587 = vmatprep.subr.mxu0 0.0
      %v1588 = vand.u32 %v866, 4294901760
      %v1589 = vsub.f32 %v866, %v1588
      %v1590 = vand.u32 %v1589, 4294901760
      %v1591 = vsub.f32 %v1589, %v1590
      %v1592 = vand.u32 %v1591, 4294901760
      %1593 = vmatpush1.msra.mxu0 %v1592
      %1594 = vmatprep.subr.mxu0 0.0
      %v1595 = vand.u32 %v867, 4294901760
      %v1596 = vsub.f32 %v867, %v1595
      %v1597 = vand.u32 %v1596, 4294901760
      %v1598 = vsub.f32 %v1596, %v1597
      %v1599 = vand.u32 %v1598, 4294901760
      %1600 = vmatpush1.msra.mxu0 %v1599
      %1601 = vmatprep.subr.mxu0 0.0
      %v1602 = vand.u32 %v868, 4294901760
      %v1603 = vsub.f32 %v868, %v1602
      %v1604 = vand.u32 %v1603, 4294901760
      %v1605 = vsub.f32 %v1603, %v1604
      %v1606 = vand.u32 %v1605, 4294901760
      %1607 = vmatpush1.msra.mxu0 %v1606
      %1608 = vmatprep.subr.mxu0 0.0
      %v1609 = vand.u32 %v869, 4294901760
      %v1610 = vsub.f32 %v869, %v1609
      %v1611 = vand.u32 %v1610, 4294901760
      %v1612 = vsub.f32 %v1610, %v1611
      %v1613 = vand.u32 %v1612, 4294901760
      %1614 = vmatpush1.msra.mxu0 %v1613
      %1615 = vmatprep.subr.mxu0 0.0
      %v1616 = vand.u32 %v870, 4294901760
      %v1617 = vsub.f32 %v870, %v1616
      %v1618 = vand.u32 %v1617, 4294901760
      %v1619 = vsub.f32 %v1617, %v1618
      %v1620 = vand.u32 %v1619, 4294901760
      %1621 = vmatpush1.msra.mxu0 %v1620
      %1622 = vmatprep.subr.mxu0 0.0
      %1623 = vmatpush1.msra.mxu0 0.0
      %1624 = vmatprep.subr.mxu0 0.0
      %1625 = vmatpush1.msra.mxu0 0.0
      %1626 = vmatprep.subr.mxu0 0.0
      %1627 = vmatpush1.msra.mxu0 0.0
      %1628 = vmatprep.subr.mxu0 0.0
      %1629 = vmatpush1.msra.mxu0 0.0
      %1630 = vmatprep.subr.mxu0 0.0
      %1631 = vmatpush1.msra.mxu0 0.0
      %1632 = vmatprep.subr.mxu0 0.0
      %1633 = vmatpush1.msra.mxu0 0.0
      %1634 = vmatprep.subr.mxu0 0.0
      %1635 = vmatpush1.msra.mxu0 0.0
      %1636 = vmatprep.subr.mxu0 0.0
      %1637 = vmatpush1.msra.mxu0 0.0
      %1638 = vmatprep.subr.mxu0 0.0
      %1639 = vmatpush1.msra.mxu0 0.0
      %1640 = vmatprep.subr.mxu0 0.0
      %1641 = vmatpush1.msra.mxu0 0.0
      %1642 = vmatprep.subr.mxu0 0.0
      %1643 = vmatpush1.msra.mxu0 0.0
      %1644 = vmatprep.subr.mxu0 0.0
      %1645 = vmatpush1.msra.mxu0 0.0
      %1646 = vmatprep.subr.mxu0 0.0
      %1647 = vmatpush1.msra.mxu0 0.0
      %1648 = vmatprep.subr.mxu0 0.0
      %1649 = vmatpush1.msra.mxu0 0.0
      %1650 = vmatprep.subr.mxu0 0.0
      %1651 = vmatpush1.msra.mxu0 0.0
      %1652 = vmatprep.subr.mxu0 0.0
      %1653 = vmatpush1.msra.mxu0 0.0
      %1654 = vmatprep.subr.mxu0 0.0
      %1655 = vmatpush1.msra.mxu0 0.0
      %1656 = vmatprep.subr.mxu0 0.0
      %1657 = vmatpush1.msra.mxu0 0.0
      %1658 = vmatprep.subr.mxu0 0.0
      %1659 = vmatpush1.msra.mxu0 0.0
      %1660 = vmatprep.subr.mxu0 0.0
      %1661 = vmatpush1.msra.mxu0 0.0
      %1662 = vmatprep.subr.mxu0 0.0
      %1663 = vmatpush1.msra.mxu0 0.0
      %1664 = vmatprep.subr.mxu0 0.0
      %1665 = vmatpush1.msra.mxu0 0.0
      %1666 = vmatprep.subr.mxu0 0.0
      %1667 = vmatpush1.msra.mxu0 0.0
      %1668 = vmatprep.subr.mxu0 0.0
      %1669 = vmatpush1.msra.mxu0 0.0
      %1670 = vmatprep.mubr.f32.mxu0 0.0
      %v1671 = vand.u32 %v1468, 4294901760
      %1672 = vmatmul.mubr.f32.gmra.mrb[0].mxu0 %v1671
      %v1673 = vpop.f32.mrb[0].mxu0
      %v1674 = vadd.f32 %v1553, %v1673
      %v1675 = vpop.f32.mrb[0].mxu0
      %1676 = vmatprep.mubr.f32.mxu0 0.0
      %v1677 = vand.u32 %v1471, 4294901760
      %1678 = vmatmul.mubr.f32.gmra.mrb[0].mxu0 %v1677
      %v1679 = vpop.f32.mrb[0].mxu0
      %v1680 = vadd.f32 %v1563, %v1679
      %v1681 = vpop.f32.mrb[0].mxu0
      %1682 = vdwg.mxu0
      %1683 = vmatprep.subr.mxu0 0.0
      %v1684 = vand.u32 %v863, 4294901760
      %v1685 = vsub.f32 %v863, %v1684
      %1686 = vmatpush1.msra.mxu0 %v1685
      %1687 = vmatprep.subr.mxu0 0.0
      %v1688 = vand.u32 %v864, 4294901760
      %v1689 = vsub.f32 %v864, %v1688
      %1690 = vmatpush1.msra.mxu0 %v1689
      %1691 = vmatprep.subr.mxu0 0.0
      %v1692 = vand.u32 %v865, 4294901760
      %v1693 = vsub.f32 %v865, %v1692
      %1694 = vmatpush1.msra.mxu0 %v1693
      %1695 = vmatprep.subr.mxu0 0.0
      %v1696 = vand.u32 %v866, 4294901760
      %v1697 = vsub.f32 %v866, %v1696
      %1698 = vmatpush1.msra.mxu0 %v1697
      %1699 = vmatprep.subr.mxu0 0.0
      %v1700 = vand.u32 %v867, 4294901760
      %v1701 = vsub.f32 %v867, %v1700
      %1702 = vmatpush1.msra.mxu0 %v1701
      %1703 = vmatprep.subr.mxu0 0.0
      %v1704 = vand.u32 %v868, 4294901760
      %v1705 = vsub.f32 %v868, %v1704
      %1706 = vmatpush1.msra.mxu0 %v1705
      %1707 = vmatprep.subr.mxu0 0.0
      %v1708 = vand.u32 %v869, 4294901760
      %v1709 = vsub.f32 %v869, %v1708
      %1710 = vmatpush1.msra.mxu0 %v1709
      %1711 = vmatprep.subr.mxu0 0.0
      %v1712 = vand.u32 %v870, 4294901760
      %v1713 = vsub.f32 %v870, %v1712
      %1714 = vmatpush1.msra.mxu0 %v1713
      %1715 = vmatprep.subr.mxu0 0.0
      %1716 = vmatpush1.msra.mxu0 0.0
      %1717 = vmatprep.subr.mxu0 0.0
      %1718 = vmatpush1.msra.mxu0 0.0
      %1719 = vmatprep.subr.mxu0 0.0
      %1720 = vmatpush1.msra.mxu0 0.0
      %1721 = vmatprep.subr.mxu0 0.0
      %1722 = vmatpush1.msra.mxu0 0.0
      %1723 = vmatprep.subr.mxu0 0.0
      %1724 = vmatpush1.msra.mxu0 0.0
      %1725 = vmatprep.subr.mxu0 0.0
      %1726 = vmatpush1.msra.mxu0 0.0
      %1727 = vmatprep.subr.mxu0 0.0
      %1728 = vmatpush1.msra.mxu0 0.0
      %1729 = vmatprep.subr.mxu0 0.0
      %1730 = vmatpush1.msra.mxu0 0.0
      %1731 = vmatprep.subr.mxu0 0.0
      %1732 = vmatpush1.msra.mxu0 0.0
      %1733 = vmatprep.subr.mxu0 0.0
      %1734 = vmatpush1.msra.mxu0 0.0
      %1735 = vmatprep.subr.mxu0 0.0
      %1736 = vmatpush1.msra.mxu0 0.0
      %1737 = vmatprep.subr.mxu0 0.0
      %1738 = vmatpush1.msra.mxu0 0.0
      %1739 = vmatprep.subr.mxu0 0.0
      %1740 = vmatpush1.msra.mxu0 0.0
      %1741 = vmatprep.subr.mxu0 0.0
      %1742 = vmatpush1.msra.mxu0 0.0
      %1743 = vmatprep.subr.mxu0 0.0
      %1744 = vmatpush1.msra.mxu0 0.0
      %1745 = vmatprep.subr.mxu0 0.0
      %1746 = vmatpush1.msra.mxu0 0.0
      %1747 = vmatprep.subr.mxu0 0.0
      %1748 = vmatpush1.msra.mxu0 0.0
      %1749 = vmatprep.subr.mxu0 0.0
      %1750 = vmatpush1.msra.mxu0 0.0
      %1751 = vmatprep.subr.mxu0 0.0
      %1752 = vmatpush1.msra.mxu0 0.0
      %1753 = vmatprep.subr.mxu0 0.0
      %1754 = vmatpush1.msra.mxu0 0.0
      %1755 = vmatprep.subr.mxu0 0.0
      %1756 = vmatpush1.msra.mxu0 0.0
      %1757 = vmatprep.subr.mxu0 0.0
      %1758 = vmatpush1.msra.mxu0 0.0
      %1759 = vmatprep.subr.mxu0 0.0
      %1760 = vmatpush1.msra.mxu0 0.0
      %1761 = vmatprep.subr.mxu0 0.0
      %1762 = vmatpush1.msra.mxu0 0.0
      %1763 = vmatprep.mubr.f32.mxu0 0.0
      %v1764 = vand.u32 %v1468, 4294901760
      %v1765 = vsub.f32 %v1468, %v1764
      %1766 = vmatmul.mubr.f32.gmra.mrb[0].mxu0 %v1765
      %v1767 = vpop.f32.mrb[0].mxu0
      %v1768 = vadd.f32 %v1674, %v1767
      %v1769 = vpop.f32.mrb[0].mxu0
      %1770 = vmatprep.mubr.f32.mxu0 0.0
      %v1771 = vand.u32 %v1471, 4294901760
      %v1772 = vsub.f32 %v1471, %v1771
      %1773 = vmatmul.mubr.f32.gmra.mrb[0].mxu0 %v1772
      %v1774 = vpop.f32.mrb[0].mxu0
      %v1775 = vadd.f32 %v1680, %v1774
      %v1776 = vpop.f32.mrb[0].mxu0
      %1777 = vdwg.mxu0
      %1778 = vmatprep.subr.mxu0 0.0
      %v1779 = vand.u32 %v863, 4294901760
      %1780 = vmatpush1.msra.mxu0 %v1779
      %1781 = vmatprep.subr.mxu0 0.0
      %v1782 = vand.u32 %v864, 4294901760
      %1783 = vmatpush1.msra.mxu0 %v1782
      %1784 = vmatprep.subr.mxu0 0.0
      %v1785 = vand.u32 %v865, 4294901760
      %1786 = vmatpush1.msra.mxu0 %v1785
      %1787 = vmatprep.subr.mxu0 0.0
      %v1788 = vand.u32 %v866, 4294901760
      %1789 = vmatpush1.msra.mxu0 %v1788
      %1790 = vmatprep.subr.mxu0 0.0
      %v1791 = vand.u32 %v867, 4294901760
      %1792 = vmatpush1.msra.mxu0 %v1791
      %1793 = vmatprep.subr.mxu0 0.0
      %v1794 = vand.u32 %v868, 4294901760
      %1795 = vmatpush1.msra.mxu0 %v1794
      %1796 = vmatprep.subr.mxu0 0.0
      %v1797 = vand.u32 %v869, 4294901760
      %1798 = vmatpush1.msra.mxu0 %v1797
      %1799 = vmatprep.subr.mxu0 0.0
      %v1800 = vand.u32 %v870, 4294901760
      %1801 = vmatpush1.msra.mxu0 %v1800
      %1802 = vmatprep.subr.mxu0 0.0
      %1803 = vmatpush1.msra.mxu0 0.0
      %1804 = vmatprep.subr.mxu0 0.0
      %1805 = vmatpush1.msra.mxu0 0.0
      %1806 = vmatprep.subr.mxu0 0.0
      %1807 = vmatpush1.msra.mxu0 0.0
      %1808 = vmatprep.subr.mxu0 0.0
      %1809 = vmatpush1.msra.mxu0 0.0
      %1810 = vmatprep.subr.mxu0 0.0
      %1811 = vmatpush1.msra.mxu0 0.0
      %1812 = vmatprep.subr.mxu0 0.0
      %1813 = vmatpush1.msra.mxu0 0.0
      %1814 = vmatprep.subr.mxu0 0.0
      %1815 = vmatpush1.msra.mxu0 0.0
      %1816 = vmatprep.subr.mxu0 0.0
      %1817 = vmatpush1.msra.mxu0 0.0
      %1818 = vmatprep.subr.mxu0 0.0
      %1819 = vmatpush1.msra.mxu0 0.0
      %1820 = vmatprep.subr.mxu0 0.0
      %1821 = vmatpush1.msra.mxu0 0.0
      %1822 = vmatprep.subr.mxu0 0.0
      %1823 = vmatpush1.msra.mxu0 0.0
      %1824 = vmatprep.subr.mxu0 0.0
      %1825 = vmatpush1.msra.mxu0 0.0
      %1826 = vmatprep.subr.mxu0 0.0
      %1827 = vmatpush1.msra.mxu0 0.0
      %1828 = vmatprep.subr.mxu0 0.0
      %1829 = vmatpush1.msra.mxu0 0.0
      %1830 = vmatprep.subr.mxu0 0.0
      %1831 = vmatpush1.msra.mxu0 0.0
      %1832 = vmatprep.subr.mxu0 0.0
      %1833 = vmatpush1.msra.mxu0 0.0
      %1834 = vmatprep.subr.mxu0 0.0
      %1835 = vmatpush1.msra.mxu0 0.0
      %1836 = vmatprep.subr.mxu0 0.0
      %1837 = vmatpush1.msra.mxu0 0.0
      %1838 = vmatprep.subr.mxu0 0.0
      %1839 = vmatpush1.msra.mxu0 0.0
      %1840 = vmatprep.subr.mxu0 0.0
      %1841 = vmatpush1.msra.mxu0 0.0
      %1842 = vmatprep.subr.mxu0 0.0
      %1843 = vmatpush1.msra.mxu0 0.0
      %1844 = vmatprep.subr.mxu0 0.0
      %1845 = vmatpush1.msra.mxu0 0.0
      %1846 = vmatprep.subr.mxu0 0.0
      %1847 = vmatpush1.msra.mxu0 0.0
      %1848 = vmatprep.subr.mxu0 0.0
      %1849 = vmatpush1.msra.mxu0 0.0
      %1850 = vmatprep.mubr.f32.mxu0 0.0
      %v1851 = vand.u32 %v1468, 4294901760
      %v1852 = vsub.f32 %v1468, %v1851
      %v1853 = vand.u32 %v1852, 4294901760
      %1854 = vmatmul.mubr.f32.gmra.mrb[0].mxu0 %v1853
      %v1855 = vpop.f32.mrb[0].mxu0
      %v1856 = vadd.f32 %v1768, %v1855
      %v1857 = vpop.f32.mrb[0].mxu0
      %1858 = vmatprep.mubr.f32.mxu0 0.0
      %v1859 = vand.u32 %v1471, 4294901760
      %v1860 = vsub.f32 %v1471, %v1859
      %v1861 = vand.u32 %v1860, 4294901760
      %1862 = vmatmul.mubr.f32.gmra.mrb[0].mxu0 %v1861
      %v1863 = vpop.f32.mrb[0].mxu0
      %v1864 = vadd.f32 %v1775, %v1863
      %v1865 = vpop.f32.mrb[0].mxu0
      %1866 = vdwg.mxu0
      %1867 = vmatprep.subr.mxu0 0.0
      %v1868 = vand.u32 %v863, 4294901760
      %v1869 = vsub.f32 %v863, %v1868
      %v1870 = vand.u32 %v1869, 4294901760
      %1871 = vmatpush1.msra.mxu0 %v1870
      %1872 = vmatprep.subr.mxu0 0.0
      %v1873 = vand.u32 %v864, 4294901760
      %v1874 = vsub.f32 %v864, %v1873
      %v1875 = vand.u32 %v1874, 4294901760
      %1876 = vmatpush1.msra.mxu0 %v1875
      %1877 = vmatprep.subr.mxu0 0.0
      %v1878 = vand.u32 %v865, 4294901760
      %v1879 = vsub.f32 %v865, %v1878
      %v1880 = vand.u32 %v1879, 4294901760
      %1881 = vmatpush1.msra.mxu0 %v1880
      %1882 = vmatprep.subr.mxu0 0.0
      %v1883 = vand.u32 %v866, 4294901760
      %v1884 = vsub.f32 %v866, %v1883
      %v1885 = vand.u32 %v1884, 4294901760
      %1886 = vmatpush1.msra.mxu0 %v1885
      %1887 = vmatprep.subr.mxu0 0.0
      %v1888 = vand.u32 %v867, 4294901760
      %v1889 = vsub.f32 %v867, %v1888
      %v1890 = vand.u32 %v1889, 4294901760
      %1891 = vmatpush1.msra.mxu0 %v1890
      %1892 = vmatprep.subr.mxu0 0.0
      %v1893 = vand.u32 %v868, 4294901760
      %v1894 = vsub.f32 %v868, %v1893
      %v1895 = vand.u32 %v1894, 4294901760
      %1896 = vmatpush1.msra.mxu0 %v1895
      %1897 = vmatprep.subr.mxu0 0.0
      %v1898 = vand.u32 %v869, 4294901760
      %v1899 = vsub.f32 %v869, %v1898
      %v1900 = vand.u32 %v1899, 4294901760
      %1901 = vmatpush1.msra.mxu0 %v1900
      %1902 = vmatprep.subr.mxu0 0.0
      %v1903 = vand.u32 %v870, 4294901760
      %v1904 = vsub.f32 %v870, %v1903
      %v1905 = vand.u32 %v1904, 4294901760
      %1906 = vmatpush1.msra.mxu0 %v1905
      %1907 = vmatprep.subr.mxu0 0.0
      %1908 = vmatpush1.msra.mxu0 0.0
      %1909 = vmatprep.subr.mxu0 0.0
      %1910 = vmatpush1.msra.mxu0 0.0
      %1911 = vmatprep.subr.mxu0 0.0
      %1912 = vmatpush1.msra.mxu0 0.0
      %1913 = vmatprep.subr.mxu0 0.0
      %1914 = vmatpush1.msra.mxu0 0.0
      %1915 = vmatprep.subr.mxu0 0.0
      %1916 = vmatpush1.msra.mxu0 0.0
      %1917 = vmatprep.subr.mxu0 0.0
      %1918 = vmatpush1.msra.mxu0 0.0
      %1919 = vmatprep.subr.mxu0 0.0
      %1920 = vmatpush1.msra.mxu0 0.0
      %1921 = vmatprep.subr.mxu0 0.0
      %1922 = vmatpush1.msra.mxu0 0.0
      %1923 = vmatprep.subr.mxu0 0.0
      %1924 = vmatpush1.msra.mxu0 0.0
      %1925 = vmatprep.subr.mxu0 0.0
      %1926 = vmatpush1.msra.mxu0 0.0
      %1927 = vmatprep.subr.mxu0 0.0
      %1928 = vmatpush1.msra.mxu0 0.0
      %1929 = vmatprep.subr.mxu0 0.0
      %1930 = vmatpush1.msra.mxu0 0.0
      %1931 = vmatprep.subr.mxu0 0.0
      %1932 = vmatpush1.msra.mxu0 0.0
      %1933 = vmatprep.subr.mxu0 0.0
      %1934 = vmatpush1.msra.mxu0 0.0
      %1935 = vmatprep.subr.mxu0 0.0
      %1936 = vmatpush1.msra.mxu0 0.0
      %1937 = vmatprep.subr.mxu0 0.0
      %1938 = vmatpush1.msra.mxu0 0.0
      %1939 = vmatprep.subr.mxu0 0.0
      %1940 = vmatpush1.msra.mxu0 0.0
      %1941 = vmatprep.subr.mxu0 0.0
      %1942 = vmatpush1.msra.mxu0 0.0
      %1943 = vmatprep.subr.mxu0 0.0
      %1944 = vmatpush1.msra.mxu0 0.0
      %1945 = vmatprep.subr.mxu0 0.0
      %1946 = vmatpush1.msra.mxu0 0.0
      %1947 = vmatprep.subr.mxu0 0.0
      %1948 = vmatpush1.msra.mxu0 0.0
      %1949 = vmatprep.subr.mxu0 0.0
      %1950 = vmatpush1.msra.mxu0 0.0
      %1951 = vmatprep.subr.mxu0 0.0
      %1952 = vmatpush1.msra.mxu0 0.0
      %1953 = vmatprep.subr.mxu0 0.0
      %1954 = vmatpush1.msra.mxu0 0.0
      %1955 = vmatprep.mubr.f32.mxu0 0.0
      %v1956 = vand.u32 %v1468, 4294901760
      %1957 = vmatmul.mubr.f32.gmra.mrb[0].mxu0 %v1956
      %v1958 = vpop.f32.mrb[0].mxu0
      %v1959 = vadd.f32 %v1856, %v1958
      %v1960 = vpop.f32.mrb[0].mxu0
      %1961 = vmatprep.mubr.f32.mxu0 0.0
      %v1962 = vand.u32 %v1471, 4294901760
      %1963 = vmatmul.mubr.f32.gmra.mrb[0].mxu0 %v1962
      %v1964 = vpop.f32.mrb[0].mxu0
      %v1965 = vadd.f32 %v1864, %v1964
      %v1966 = vpop.f32.mrb[0].mxu0
      %1967 = vdwg.mxu0
      %1968 = vmatprep.subr.mxu0 0.0
      %v1969 = vand.u32 %v863, 4294901760
      %1970 = vmatpush1.msra.mxu0 %v1969
      %1971 = vmatprep.subr.mxu0 0.0
      %v1972 = vand.u32 %v864, 4294901760
      %1973 = vmatpush1.msra.mxu0 %v1972
      %1974 = vmatprep.subr.mxu0 0.0
      %v1975 = vand.u32 %v865, 4294901760
      %1976 = vmatpush1.msra.mxu0 %v1975
      %1977 = vmatprep.subr.mxu0 0.0
      %v1978 = vand.u32 %v866, 4294901760
      %1979 = vmatpush1.msra.mxu0 %v1978
      %1980 = vmatprep.subr.mxu0 0.0
      %v1981 = vand.u32 %v867, 4294901760
      %1982 = vmatpush1.msra.mxu0 %v1981
      %1983 = vmatprep.subr.mxu0 0.0
      %v1984 = vand.u32 %v868, 4294901760
      %1985 = vmatpush1.msra.mxu0 %v1984
      %1986 = vmatprep.subr.mxu0 0.0
      %v1987 = vand.u32 %v869, 4294901760
      %1988 = vmatpush1.msra.mxu0 %v1987
      %1989 = vmatprep.subr.mxu0 0.0
      %v1990 = vand.u32 %v870, 4294901760
      %1991 = vmatpush1.msra.mxu0 %v1990
      %1992 = vmatprep.subr.mxu0 0.0
      %1993 = vmatpush1.msra.mxu0 0.0
      %1994 = vmatprep.subr.mxu0 0.0
      %1995 = vmatpush1.msra.mxu0 0.0
      %1996 = vmatprep.subr.mxu0 0.0
      %1997 = vmatpush1.msra.mxu0 0.0
      %1998 = vmatprep.subr.mxu0 0.0
      %1999 = vmatpush1.msra.mxu0 0.0
      %2000 = vmatprep.subr.mxu0 0.0
      %2001 = vmatpush1.msra.mxu0 0.0
      %2002 = vmatprep.subr.mxu0 0.0
      %2003 = vmatpush1.msra.mxu0 0.0
      %2004 = vmatprep.subr.mxu0 0.0
      %2005 = vmatpush1.msra.mxu0 0.0
      %2006 = vmatprep.subr.mxu0 0.0
      %2007 = vmatpush1.msra.mxu0 0.0
      %2008 = vmatprep.subr.mxu0 0.0
      %2009 = vmatpush1.msra.mxu0 0.0
      %2010 = vmatprep.subr.mxu0 0.0
      %2011 = vmatpush1.msra.mxu0 0.0
      %2012 = vmatprep.subr.mxu0 0.0
      %2013 = vmatpush1.msra.mxu0 0.0
      %2014 = vmatprep.subr.mxu0 0.0
      %2015 = vmatpush1.msra.mxu0 0.0
      %2016 = vmatprep.subr.mxu0 0.0
      %2017 = vmatpush1.msra.mxu0 0.0
      %2018 = vmatprep.subr.mxu0 0.0
      %2019 = vmatpush1.msra.mxu0 0.0
      %2020 = vmatprep.subr.mxu0 0.0
      %2021 = vmatpush1.msra.mxu0 0.0
      %2022 = vmatprep.subr.mxu0 0.0
      %2023 = vmatpush1.msra.mxu0 0.0
      %2024 = vmatprep.subr.mxu0 0.0
      %2025 = vmatpush1.msra.mxu0 0.0
      %2026 = vmatprep.subr.mxu0 0.0
      %2027 = vmatpush1.msra.mxu0 0.0
      %2028 = vmatprep.subr.mxu0 0.0
      %2029 = vmatpush1.msra.mxu0 0.0
      %2030 = vmatprep.subr.mxu0 0.0
      %2031 = vmatpush1.msra.mxu0 0.0
      %2032 = vmatprep.subr.mxu0 0.0
      %2033 = vmatpush1.msra.mxu0 0.0
      %2034 = vmatprep.subr.mxu0 0.0
      %2035 = vmatpush1.msra.mxu0 0.0
      %2036 = vmatprep.subr.mxu0 0.0
      %2037 = vmatpush1.msra.mxu0 0.0
      %2038 = vmatprep.subr.mxu0 0.0
      %2039 = vmatpush1.msra.mxu0 0.0
      %2040 = vmatprep.mubr.f32.mxu0 0.0
      %v2041 = vand.u32 %v1468, 4294901760
      %2042 = vmatmul.mubr.f32.gmra.mrb[0].mxu0 %v2041
      %v2043 = vpop.f32.mrb[0].mxu0
      %v2044 = vadd.f32 %v1959, %v2043
      %v2045 = vpop.f32.mrb[0].mxu0
      %2046 = vmatprep.mubr.f32.mxu0 0.0
      %v2047 = vand.u32 %v1471, 4294901760
      %2048 = vmatmul.mubr.f32.gmra.mrb[0].mxu0 %v2047
      %v2049 = vpop.f32.mrb[0].mxu0
      %v2050 = vadd.f32 %v1965, %v2049
      %v2051 = vpop.f32.mrb[0].mxu0
      %2052 = vdwg.mxu0
      %v2054 = vsel %vm354, %v352, 0
      %v2057 = vsel %vm354, %v353, 0
      %2059 = vmatprep.subr.mxu0 0.0
      %v2060 = vand.u32 %v347, 4294901760
      %2061 = vmatpush1.msra.mxu0 %v2060
      %2062 = vmatprep.subr.mxu0 0.0
      %v2063 = vand.u32 %v348, 4294901760
      %2064 = vmatpush1.msra.mxu0 %v2063
      %2065 = vmatprep.subr.mxu0 0.0
      %2066 = vmatpush1.msra.mxu0 0.0
      %2067 = vmatprep.subr.mxu0 0.0
      %2068 = vmatpush1.msra.mxu0 0.0
      %2069 = vmatprep.subr.mxu0 0.0
      %2070 = vmatpush1.msra.mxu0 0.0
      %2071 = vmatprep.subr.mxu0 0.0
      %2072 = vmatpush1.msra.mxu0 0.0
      %2073 = vmatprep.subr.mxu0 0.0
      %2074 = vmatpush1.msra.mxu0 0.0
      %2075 = vmatprep.subr.mxu0 0.0
      %2076 = vmatpush1.msra.mxu0 0.0
      %2077 = vmatprep.subr.mxu0 0.0
      %2078 = vmatpush1.msra.mxu0 0.0
      %2079 = vmatprep.subr.mxu0 0.0
      %2080 = vmatpush1.msra.mxu0 0.0
      %2081 = vmatprep.subr.mxu0 0.0
      %2082 = vmatpush1.msra.mxu0 0.0
      %2083 = vmatprep.subr.mxu0 0.0
      %2084 = vmatpush1.msra.mxu0 0.0
      %2085 = vmatprep.subr.mxu0 0.0
      %2086 = vmatpush1.msra.mxu0 0.0
      %2087 = vmatprep.subr.mxu0 0.0
      %2088 = vmatpush1.msra.mxu0 0.0
      %2089 = vmatprep.subr.mxu0 0.0
      %2090 = vmatpush1.msra.mxu0 0.0
      %2091 = vmatprep.subr.mxu0 0.0
      %2092 = vmatpush1.msra.mxu0 0.0
      %2093 = vmatprep.subr.mxu0 0.0
      %2094 = vmatpush1.msra.mxu0 0.0
      %2095 = vmatprep.subr.mxu0 0.0
      %2096 = vmatpush1.msra.mxu0 0.0
      %2097 = vmatprep.subr.mxu0 0.0
      %2098 = vmatpush1.msra.mxu0 0.0
      %2099 = vmatprep.subr.mxu0 0.0
      %2100 = vmatpush1.msra.mxu0 0.0
      %2101 = vmatprep.subr.mxu0 0.0
      %2102 = vmatpush1.msra.mxu0 0.0
      %2103 = vmatprep.subr.mxu0 0.0
      %2104 = vmatpush1.msra.mxu0 0.0
      %2105 = vmatprep.subr.mxu0 0.0
      %2106 = vmatpush1.msra.mxu0 0.0
      %2107 = vmatprep.subr.mxu0 0.0
      %2108 = vmatpush1.msra.mxu0 0.0
      %2109 = vmatprep.subr.mxu0 0.0
      %2110 = vmatpush1.msra.mxu0 0.0
      %2111 = vmatprep.subr.mxu0 0.0
      %2112 = vmatpush1.msra.mxu0 0.0
      %2113 = vmatprep.subr.mxu0 0.0
      %2114 = vmatpush1.msra.mxu0 0.0
      %2115 = vmatprep.subr.mxu0 0.0
      %2116 = vmatpush1.msra.mxu0 0.0
      %2117 = vmatprep.subr.mxu0 0.0
      %2118 = vmatpush1.msra.mxu0 0.0
      %2119 = vmatprep.subr.mxu0 0.0
      %2120 = vmatpush1.msra.mxu0 0.0
      %2121 = vmatprep.subr.mxu0 0.0
      %2122 = vmatpush1.msra.mxu0 0.0
      %2123 = vmatprep.subr.mxu0 0.0
      %2124 = vmatpush1.msra.mxu0 0.0
      %2125 = vmatprep.mubr.f32.mxu0 0.0
      %v2126 = vand.u32 %v2054, 4294901760
      %v2127 = vsub.f32 %v2054, %v2126
      %v2128 = vand.u32 %v2127, 4294901760
      %v2129 = vsub.f32 %v2127, %v2128
      %v2130 = vand.u32 %v2129, 4294901760
      %2131 = vmatmul.mubr.f32.gmra.mrb[0].mxu0 %v2130
      %v2132 = vpop.f32.mrb[0].mxu0
      %v2133 = vadd.f32 0.0, %v2132
      %v2134 = vpop.f32.mrb[0].mxu0
      %2135 = vmatprep.mubr.f32.mxu0 0.0
      %v2136 = vand.u32 %v2057, 4294901760
      %v2137 = vsub.f32 %v2057, %v2136
      %v2138 = vand.u32 %v2137, 4294901760
      %v2139 = vsub.f32 %v2137, %v2138
      %v2140 = vand.u32 %v2139, 4294901760
      %2141 = vmatmul.mubr.f32.gmra.mrb[0].mxu0 %v2140
      %v2142 = vpop.f32.mrb[0].mxu0
      %v2143 = vadd.f32 0.0, %v2142
      %v2144 = vpop.f32.mrb[0].mxu0
      %2145 = vdwg.mxu0
      %2146 = vmatprep.subr.mxu0 0.0
      %v2147 = vand.u32 %v347, 4294901760
      %v2148 = vsub.f32 %v347, %v2147
      %v2149 = vand.u32 %v2148, 4294901760
      %v2150 = vsub.f32 %v2148, %v2149
      %v2151 = vand.u32 %v2150, 4294901760
      %2152 = vmatpush1.msra.mxu0 %v2151
      %2153 = vmatprep.subr.mxu0 0.0
      %v2154 = vand.u32 %v348, 4294901760
      %v2155 = vsub.f32 %v348, %v2154
      %v2156 = vand.u32 %v2155, 4294901760
      %v2157 = vsub.f32 %v2155, %v2156
      %v2158 = vand.u32 %v2157, 4294901760
      %2159 = vmatpush1.msra.mxu0 %v2158
      %2160 = vmatprep.subr.mxu0 0.0
      %2161 = vmatpush1.msra.mxu0 0.0
      %2162 = vmatprep.subr.mxu0 0.0
      %2163 = vmatpush1.msra.mxu0 0.0
      %2164 = vmatprep.subr.mxu0 0.0
      %2165 = vmatpush1.msra.mxu0 0.0
      %2166 = vmatprep.subr.mxu0 0.0
      %2167 = vmatpush1.msra.mxu0 0.0
      %2168 = vmatprep.subr.mxu0 0.0
      %2169 = vmatpush1.msra.mxu0 0.0
      %2170 = vmatprep.subr.mxu0 0.0
      %2171 = vmatpush1.msra.mxu0 0.0
      %2172 = vmatprep.subr.mxu0 0.0
      %2173 = vmatpush1.msra.mxu0 0.0
      %2174 = vmatprep.subr.mxu0 0.0
      %2175 = vmatpush1.msra.mxu0 0.0
      %2176 = vmatprep.subr.mxu0 0.0
      %2177 = vmatpush1.msra.mxu0 0.0
      %2178 = vmatprep.subr.mxu0 0.0
      %2179 = vmatpush1.msra.mxu0 0.0
      %2180 = vmatprep.subr.mxu0 0.0
      %2181 = vmatpush1.msra.mxu0 0.0
      %2182 = vmatprep.subr.mxu0 0.0
      %2183 = vmatpush1.msra.mxu0 0.0
      %2184 = vmatprep.subr.mxu0 0.0
      %2185 = vmatpush1.msra.mxu0 0.0
      %2186 = vmatprep.subr.mxu0 0.0
      %2187 = vmatpush1.msra.mxu0 0.0
      %2188 = vmatprep.subr.mxu0 0.0
      %2189 = vmatpush1.msra.mxu0 0.0
      %2190 = vmatprep.subr.mxu0 0.0
      %2191 = vmatpush1.msra.mxu0 0.0
      %2192 = vmatprep.subr.mxu0 0.0
      %2193 = vmatpush1.msra.mxu0 0.0
      %2194 = vmatprep.subr.mxu0 0.0
      %2195 = vmatpush1.msra.mxu0 0.0
      %2196 = vmatprep.subr.mxu0 0.0
      %2197 = vmatpush1.msra.mxu0 0.0
      %2198 = vmatprep.subr.mxu0 0.0
      %2199 = vmatpush1.msra.mxu0 0.0
      %2200 = vmatprep.subr.mxu0 0.0
      %2201 = vmatpush1.msra.mxu0 0.0
      %2202 = vmatprep.subr.mxu0 0.0
      %2203 = vmatpush1.msra.mxu0 0.0
      %2204 = vmatprep.subr.mxu0 0.0
      %2205 = vmatpush1.msra.mxu0 0.0
      %2206 = vmatprep.subr.mxu0 0.0
      %2207 = vmatpush1.msra.mxu0 0.0
      %2208 = vmatprep.subr.mxu0 0.0
      %2209 = vmatpush1.msra.mxu0 0.0
      %2210 = vmatprep.subr.mxu0 0.0
      %2211 = vmatpush1.msra.mxu0 0.0
      %2212 = vmatprep.subr.mxu0 0.0
      %2213 = vmatpush1.msra.mxu0 0.0
      %2214 = vmatprep.subr.mxu0 0.0
      %2215 = vmatpush1.msra.mxu0 0.0
      %2216 = vmatprep.subr.mxu0 0.0
      %2217 = vmatpush1.msra.mxu0 0.0
      %2218 = vmatprep.subr.mxu0 0.0
      %2219 = vmatpush1.msra.mxu0 0.0
      %2220 = vmatprep.mubr.f32.mxu0 0.0
      %v2221 = vand.u32 %v2054, 4294901760
      %2222 = vmatmul.mubr.f32.gmra.mrb[0].mxu0 %v2221
      %v2223 = vpop.f32.mrb[0].mxu0
      %v2224 = vadd.f32 %v2133, %v2223
      %v2225 = vpop.f32.mrb[0].mxu0
      %2226 = vmatprep.mubr.f32.mxu0 0.0
      %v2227 = vand.u32 %v2057, 4294901760
      %2228 = vmatmul.mubr.f32.gmra.mrb[0].mxu0 %v2227
      %v2229 = vpop.f32.mrb[0].mxu0
      %v2230 = vadd.f32 %v2143, %v2229
      %v2231 = vpop.f32.mrb[0].mxu0
      %2232 = vdwg.mxu0
      %2233 = vmatprep.subr.mxu0 0.0
      %v2234 = vand.u32 %v347, 4294901760
      %v2235 = vsub.f32 %v347, %v2234
      %2236 = vmatpush1.msra.mxu0 %v2235
      %2237 = vmatprep.subr.mxu0 0.0
      %v2238 = vand.u32 %v348, 4294901760
      %v2239 = vsub.f32 %v348, %v2238
      %2240 = vmatpush1.msra.mxu0 %v2239
      %2241 = vmatprep.subr.mxu0 0.0
      %2242 = vmatpush1.msra.mxu0 0.0
      %2243 = vmatprep.subr.mxu0 0.0
      %2244 = vmatpush1.msra.mxu0 0.0
      %2245 = vmatprep.subr.mxu0 0.0
      %2246 = vmatpush1.msra.mxu0 0.0
      %2247 = vmatprep.subr.mxu0 0.0
      %2248 = vmatpush1.msra.mxu0 0.0
      %2249 = vmatprep.subr.mxu0 0.0
      %2250 = vmatpush1.msra.mxu0 0.0
      %2251 = vmatprep.subr.mxu0 0.0
      %2252 = vmatpush1.msra.mxu0 0.0
      %2253 = vmatprep.subr.mxu0 0.0
      %2254 = vmatpush1.msra.mxu0 0.0
      %2255 = vmatprep.subr.mxu0 0.0
      %2256 = vmatpush1.msra.mxu0 0.0
      %2257 = vmatprep.subr.mxu0 0.0
      %2258 = vmatpush1.msra.mxu0 0.0
      %2259 = vmatprep.subr.mxu0 0.0
      %2260 = vmatpush1.msra.mxu0 0.0
      %2261 = vmatprep.subr.mxu0 0.0
      %2262 = vmatpush1.msra.mxu0 0.0
      %2263 = vmatprep.subr.mxu0 0.0
      %2264 = vmatpush1.msra.mxu0 0.0
      %2265 = vmatprep.subr.mxu0 0.0
      %2266 = vmatpush1.msra.mxu0 0.0
      %2267 = vmatprep.subr.mxu0 0.0
      %2268 = vmatpush1.msra.mxu0 0.0
      %2269 = vmatprep.subr.mxu0 0.0
      %2270 = vmatpush1.msra.mxu0 0.0
      %2271 = vmatprep.subr.mxu0 0.0
      %2272 = vmatpush1.msra.mxu0 0.0
      %2273 = vmatprep.subr.mxu0 0.0
      %2274 = vmatpush1.msra.mxu0 0.0
      %2275 = vmatprep.subr.mxu0 0.0
      %2276 = vmatpush1.msra.mxu0 0.0
      %2277 = vmatprep.subr.mxu0 0.0
      %2278 = vmatpush1.msra.mxu0 0.0
      %2279 = vmatprep.subr.mxu0 0.0
      %2280 = vmatpush1.msra.mxu0 0.0
      %2281 = vmatprep.subr.mxu0 0.0
      %2282 = vmatpush1.msra.mxu0 0.0
      %2283 = vmatprep.subr.mxu0 0.0
      %2284 = vmatpush1.msra.mxu0 0.0
      %2285 = vmatprep.subr.mxu0 0.0
      %2286 = vmatpush1.msra.mxu0 0.0
      %2287 = vmatprep.subr.mxu0 0.0
      %2288 = vmatpush1.msra.mxu0 0.0
      %2289 = vmatprep.subr.mxu0 0.0
      %2290 = vmatpush1.msra.mxu0 0.0
      %2291 = vmatprep.subr.mxu0 0.0
      %2292 = vmatpush1.msra.mxu0 0.0
      %2293 = vmatprep.subr.mxu0 0.0
      %2294 = vmatpush1.msra.mxu0 0.0
      %2295 = vmatprep.subr.mxu0 0.0
      %2296 = vmatpush1.msra.mxu0 0.0
      %2297 = vmatprep.subr.mxu0 0.0
      %2298 = vmatpush1.msra.mxu0 0.0
      %2299 = vmatprep.subr.mxu0 0.0
      %2300 = vmatpush1.msra.mxu0 0.0
      %2301 = vmatprep.mubr.f32.mxu0 0.0
      %v2302 = vand.u32 %v2054, 4294901760
      %v2303 = vsub.f32 %v2054, %v2302
      %2304 = vmatmul.mubr.f32.gmra.mrb[0].mxu0 %v2303
      %v2305 = vpop.f32.mrb[0].mxu0
      %v2306 = vadd.f32 %v2224, %v2305
      %v2307 = vpop.f32.mrb[0].mxu0
      %2308 = vmatprep.mubr.f32.mxu0 0.0
      %v2309 = vand.u32 %v2057, 4294901760
      %v2310 = vsub.f32 %v2057, %v2309
      %2311 = vmatmul.mubr.f32.gmra.mrb[0].mxu0 %v2310
      %v2312 = vpop.f32.mrb[0].mxu0
      %v2313 = vadd.f32 %v2230, %v2312
      %v2314 = vpop.f32.mrb[0].mxu0
      %2315 = vdwg.mxu0
      %2316 = vmatprep.subr.mxu0 0.0
      %v2317 = vand.u32 %v347, 4294901760
      %2318 = vmatpush1.msra.mxu0 %v2317
      %2319 = vmatprep.subr.mxu0 0.0
      %v2320 = vand.u32 %v348, 4294901760
      %2321 = vmatpush1.msra.mxu0 %v2320
      %2322 = vmatprep.subr.mxu0 0.0
      %2323 = vmatpush1.msra.mxu0 0.0
      %2324 = vmatprep.subr.mxu0 0.0
      %2325 = vmatpush1.msra.mxu0 0.0
      %2326 = vmatprep.subr.mxu0 0.0
      %2327 = vmatpush1.msra.mxu0 0.0
      %2328 = vmatprep.subr.mxu0 0.0
      %2329 = vmatpush1.msra.mxu0 0.0
      %2330 = vmatprep.subr.mxu0 0.0
      %2331 = vmatpush1.msra.mxu0 0.0
      %2332 = vmatprep.subr.mxu0 0.0
      %2333 = vmatpush1.msra.mxu0 0.0
      %2334 = vmatprep.subr.mxu0 0.0
      %2335 = vmatpush1.msra.mxu0 0.0
      %2336 = vmatprep.subr.mxu0 0.0
      %2337 = vmatpush1.msra.mxu0 0.0
      %2338 = vmatprep.subr.mxu0 0.0
      %2339 = vmatpush1.msra.mxu0 0.0
      %2340 = vmatprep.subr.mxu0 0.0
      %2341 = vmatpush1.msra.mxu0 0.0
      %2342 = vmatprep.subr.mxu0 0.0
      %2343 = vmatpush1.msra.mxu0 0.0
      %2344 = vmatprep.subr.mxu0 0.0
      %2345 = vmatpush1.msra.mxu0 0.0
      %2346 = vmatprep.subr.mxu0 0.0
      %2347 = vmatpush1.msra.mxu0 0.0
      %2348 = vmatprep.subr.mxu0 0.0
      %2349 = vmatpush1.msra.mxu0 0.0
      %2350 = vmatprep.subr.mxu0 0.0
      %2351 = vmatpush1.msra.mxu0 0.0
      %2352 = vmatprep.subr.mxu0 0.0
      %2353 = vmatpush1.msra.mxu0 0.0
      %2354 = vmatprep.subr.mxu0 0.0
      %2355 = vmatpush1.msra.mxu0 0.0
      %2356 = vmatprep.subr.mxu0 0.0
      %2357 = vmatpush1.msra.mxu0 0.0
      %2358 = vmatprep.subr.mxu0 0.0
      %2359 = vmatpush1.msra.mxu0 0.0
      %2360 = vmatprep.subr.mxu0 0.0
      %2361 = vmatpush1.msra.mxu0 0.0
      %2362 = vmatprep.subr.mxu0 0.0
      %2363 = vmatpush1.msra.mxu0 0.0
      %2364 = vmatprep.subr.mxu0 0.0
      %2365 = vmatpush1.msra.mxu0 0.0
      %2366 = vmatprep.subr.mxu0 0.0
      %2367 = vmatpush1.msra.mxu0 0.0
      %2368 = vmatprep.subr.mxu0 0.0
      %2369 = vmatpush1.msra.mxu0 0.0
      %2370 = vmatprep.subr.mxu0 0.0
      %2371 = vmatpush1.msra.mxu0 0.0
      %2372 = vmatprep.subr.mxu0 0.0
      %2373 = vmatpush1.msra.mxu0 0.0
      %2374 = vmatprep.subr.mxu0 0.0
      %2375 = vmatpush1.msra.mxu0 0.0
      %2376 = vmatprep.subr.mxu0 0.0
      %2377 = vmatpush1.msra.mxu0 0.0
      %2378 = vmatprep.subr.mxu0 0.0
      %2379 = vmatpush1.msra.mxu0 0.0
      %2380 = vmatprep.subr.mxu0 0.0
      %2381 = vmatpush1.msra.mxu0 0.0
      %2382 = vmatprep.mubr.f32.mxu0 0.0
      %v2383 = vand.u32 %v2054, 4294901760
      %v2384 = vsub.f32 %v2054, %v2383
      %v2385 = vand.u32 %v2384, 4294901760
      %2386 = vmatmul.mubr.f32.gmra.mrb[0].mxu0 %v2385
      %v2387 = vpop.f32.mrb[0].mxu0
      %v2388 = vadd.f32 %v2306, %v2387
      %v2389 = vpop.f32.mrb[0].mxu0
      %2390 = vmatprep.mubr.f32.mxu0 0.0
      %v2391 = vand.u32 %v2057, 4294901760
      %v2392 = vsub.f32 %v2057, %v2391
      %v2393 = vand.u32 %v2392, 4294901760
      %2394 = vmatmul.mubr.f32.gmra.mrb[0].mxu0 %v2393
      %v2395 = vpop.f32.mrb[0].mxu0
      %v2396 = vadd.f32 %v2313, %v2395
      %v2397 = vpop.f32.mrb[0].mxu0
      %2398 = vdwg.mxu0
      %2399 = vmatprep.subr.mxu0 0.0
      %v2400 = vand.u32 %v347, 4294901760
      %v2401 = vsub.f32 %v347, %v2400
      %v2402 = vand.u32 %v2401, 4294901760
      %2403 = vmatpush1.msra.mxu0 %v2402
      %2404 = vmatprep.subr.mxu0 0.0
      %v2405 = vand.u32 %v348, 4294901760
      %v2406 = vsub.f32 %v348, %v2405
      %v2407 = vand.u32 %v2406, 4294901760
      %2408 = vmatpush1.msra.mxu0 %v2407
      %2409 = vmatprep.subr.mxu0 0.0
      %2410 = vmatpush1.msra.mxu0 0.0
      %2411 = vmatprep.subr.mxu0 0.0
      %2412 = vmatpush1.msra.mxu0 0.0
      %2413 = vmatprep.subr.mxu0 0.0
      %2414 = vmatpush1.msra.mxu0 0.0
      %2415 = vmatprep.subr.mxu0 0.0
      %2416 = vmatpush1.msra.mxu0 0.0
      %2417 = vmatprep.subr.mxu0 0.0
      %2418 = vmatpush1.msra.mxu0 0.0
      %2419 = vmatprep.subr.mxu0 0.0
      %2420 = vmatpush1.msra.mxu0 0.0
      %2421 = vmatprep.subr.mxu0 0.0
      %2422 = vmatpush1.msra.mxu0 0.0
      %2423 = vmatprep.subr.mxu0 0.0
      %2424 = vmatpush1.msra.mxu0 0.0
      %2425 = vmatprep.subr.mxu0 0.0
      %2426 = vmatpush1.msra.mxu0 0.0
      %2427 = vmatprep.subr.mxu0 0.0
      %2428 = vmatpush1.msra.mxu0 0.0
      %2429 = vmatprep.subr.mxu0 0.0
      %2430 = vmatpush1.msra.mxu0 0.0
      %2431 = vmatprep.subr.mxu0 0.0
      %2432 = vmatpush1.msra.mxu0 0.0
      %2433 = vmatprep.subr.mxu0 0.0
      %2434 = vmatpush1.msra.mxu0 0.0
      %2435 = vmatprep.subr.mxu0 0.0
      %2436 = vmatpush1.msra.mxu0 0.0
      %2437 = vmatprep.subr.mxu0 0.0
      %2438 = vmatpush1.msra.mxu0 0.0
      %2439 = vmatprep.subr.mxu0 0.0
      %2440 = vmatpush1.msra.mxu0 0.0
      %2441 = vmatprep.subr.mxu0 0.0
      %2442 = vmatpush1.msra.mxu0 0.0
      %2443 = vmatprep.subr.mxu0 0.0
      %2444 = vmatpush1.msra.mxu0 0.0
      %2445 = vmatprep.subr.mxu0 0.0
      %2446 = vmatpush1.msra.mxu0 0.0
      %2447 = vmatprep.subr.mxu0 0.0
      %2448 = vmatpush1.msra.mxu0 0.0
      %2449 = vmatprep.subr.mxu0 0.0
      %2450 = vmatpush1.msra.mxu0 0.0
      %2451 = vmatprep.subr.mxu0 0.0
      %2452 = vmatpush1.msra.mxu0 0.0
      %2453 = vmatprep.subr.mxu0 0.0
      %2454 = vmatpush1.msra.mxu0 0.0
      %2455 = vmatprep.subr.mxu0 0.0
      %2456 = vmatpush1.msra.mxu0 0.0
      %2457 = vmatprep.subr.mxu0 0.0
      %2458 = vmatpush1.msra.mxu0 0.0
      %2459 = vmatprep.subr.mxu0 0.0
      %2460 = vmatpush1.msra.mxu0 0.0
      %2461 = vmatprep.subr.mxu0 0.0
      %2462 = vmatpush1.msra.mxu0 0.0
      %2463 = vmatprep.subr.mxu0 0.0
      %2464 = vmatpush1.msra.mxu0 0.0
      %2465 = vmatprep.subr.mxu0 0.0
      %2466 = vmatpush1.msra.mxu0 0.0
      %2467 = vmatprep.subr.mxu0 0.0
      %2468 = vmatpush1.msra.mxu0 0.0
      %2469 = vmatprep.mubr.f32.mxu0 0.0
      %v2470 = vand.u32 %v2054, 4294901760
      %2471 = vmatmul.mubr.f32.gmra.mrb[0].mxu0 %v2470
      %v2472 = vpop.f32.mrb[0].mxu0
      %v2473 = vadd.f32 %v2388, %v2472
      %v2474 = vpop.f32.mrb[0].mxu0
      %2475 = vmatprep.mubr.f32.mxu0 0.0
      %v2476 = vand.u32 %v2057, 4294901760
      %2477 = vmatmul.mubr.f32.gmra.mrb[0].mxu0 %v2476
      %v2478 = vpop.f32.mrb[0].mxu0
      %v2479 = vadd.f32 %v2396, %v2478
      %v2480 = vpop.f32.mrb[0].mxu0
      %2481 = vdwg.mxu0
      %2482 = vmatprep.subr.mxu0 0.0
      %v2483 = vand.u32 %v347, 4294901760
      %2484 = vmatpush1.msra.mxu0 %v2483
      %2485 = vmatprep.subr.mxu0 0.0
      %v2486 = vand.u32 %v348, 4294901760
      %2487 = vmatpush1.msra.mxu0 %v2486
      %2488 = vmatprep.subr.mxu0 0.0
      %2489 = vmatpush1.msra.mxu0 0.0
      %2490 = vmatprep.subr.mxu0 0.0
      %2491 = vmatpush1.msra.mxu0 0.0
      %2492 = vmatprep.subr.mxu0 0.0
      %2493 = vmatpush1.msra.mxu0 0.0
      %2494 = vmatprep.subr.mxu0 0.0
      %2495 = vmatpush1.msra.mxu0 0.0
      %2496 = vmatprep.subr.mxu0 0.0
      %2497 = vmatpush1.msra.mxu0 0.0
      %2498 = vmatprep.subr.mxu0 0.0
      %2499 = vmatpush1.msra.mxu0 0.0
      %2500 = vmatprep.subr.mxu0 0.0
      %2501 = vmatpush1.msra.mxu0 0.0
      %2502 = vmatprep.subr.mxu0 0.0
      %2503 = vmatpush1.msra.mxu0 0.0
      %2504 = vmatprep.subr.mxu0 0.0
      %2505 = vmatpush1.msra.mxu0 0.0
      %2506 = vmatprep.subr.mxu0 0.0
      %2507 = vmatpush1.msra.mxu0 0.0
      %2508 = vmatprep.subr.mxu0 0.0
      %2509 = vmatpush1.msra.mxu0 0.0
      %2510 = vmatprep.subr.mxu0 0.0
      %2511 = vmatpush1.msra.mxu0 0.0
      %2512 = vmatprep.subr.mxu0 0.0
      %2513 = vmatpush1.msra.mxu0 0.0
      %2514 = vmatprep.subr.mxu0 0.0
      %2515 = vmatpush1.msra.mxu0 0.0
      %2516 = vmatprep.subr.mxu0 0.0
      %2517 = vmatpush1.msra.mxu0 0.0
      %2518 = vmatprep.subr.mxu0 0.0
      %2519 = vmatpush1.msra.mxu0 0.0
      %2520 = vmatprep.subr.mxu0 0.0
      %2521 = vmatpush1.msra.mxu0 0.0
      %2522 = vmatprep.subr.mxu0 0.0
      %2523 = vmatpush1.msra.mxu0 0.0
      %2524 = vmatprep.subr.mxu0 0.0
      %2525 = vmatpush1.msra.mxu0 0.0
      %2526 = vmatprep.subr.mxu0 0.0
      %2527 = vmatpush1.msra.mxu0 0.0
      %2528 = vmatprep.subr.mxu0 0.0
      %2529 = vmatpush1.msra.mxu0 0.0
      %2530 = vmatprep.subr.mxu0 0.0
      %2531 = vmatpush1.msra.mxu0 0.0
      %2532 = vmatprep.subr.mxu0 0.0
      %2533 = vmatpush1.msra.mxu0 0.0
      %2534 = vmatprep.subr.mxu0 0.0
      %2535 = vmatpush1.msra.mxu0 0.0
      %2536 = vmatprep.subr.mxu0 0.0
      %2537 = vmatpush1.msra.mxu0 0.0
      %2538 = vmatprep.subr.mxu0 0.0
      %2539 = vmatpush1.msra.mxu0 0.0
      %2540 = vmatprep.subr.mxu0 0.0
      %2541 = vmatpush1.msra.mxu0 0.0
      %2542 = vmatprep.subr.mxu0 0.0
      %2543 = vmatpush1.msra.mxu0 0.0
      %2544 = vmatprep.subr.mxu0 0.0
      %2545 = vmatpush1.msra.mxu0 0.0
      %2546 = vmatprep.subr.mxu0 0.0
      %2547 = vmatpush1.msra.mxu0 0.0
      %2548 = vmatprep.mubr.f32.mxu0 0.0
      %v2549 = vand.u32 %v2054, 4294901760
      %2550 = vmatmul.mubr.f32.gmra.mrb[0].mxu0 %v2549
      %v2551 = vpop.f32.mrb[0].mxu0
      %v2552 = vadd.f32 %v2473, %v2551
      %v2553 = vpop.f32.mrb[0].mxu0
      %2554 = vmatprep.mubr.f32.mxu0 0.0
      %v2555 = vand.u32 %v2057, 4294901760
      %2556 = vmatmul.mubr.f32.gmra.mrb[0].mxu0 %v2555
      %v2557 = vpop.f32.mrb[0].mxu0
      %v2558 = vadd.f32 %v2479, %v2557
      %v2559 = vpop.f32.mrb[0].mxu0
      %2560 = vdwg.mxu0
      %s2561 = scalar_lea.vmem %s1, 128
      %v2562 = vld [vmem:[%s2561] sm:$0xff]
      %v2563 = vld [vmem:[%s2561 + $0x8] sm:$0xff]
      %v2564 = vld [vmem:[%s2561 + $0x10] sm:$0xff]
      %v2565 = vld [vmem:[%s2561 + $0x18] sm:$0xff]
      %v2566 = vld [vmem:[%s2561 + $0x20] sm:$0xff]
      %v2567 = vld [vmem:[%s2561 + $0x28] sm:$0xff]
      %v2568 = vld [vmem:[%s2561 + $0x30] sm:$0xff]
      %v2569 = vld [vmem:[%s2561 + $0x38] sm:$0xff]
      %v2571 = vsel %vm880, %v2552, 0
      %v2574 = vsel %vm880, %v2558, 0
      %2576 = vmatprep.subr.mxu0 0.0
      %v2577 = vand.u32 %v2562, 4294901760
      %2578 = vmatpush1.msra.mxu0 %v2577
      %2579 = vmatprep.subr.mxu0 0.0
      %v2580 = vand.u32 %v2563, 4294901760
      %2581 = vmatpush1.msra.mxu0 %v2580
      %2582 = vmatprep.subr.mxu0 0.0
      %v2583 = vand.u32 %v2564, 4294901760
      %2584 = vmatpush1.msra.mxu0 %v2583
      %2585 = vmatprep.subr.mxu0 0.0
      %v2586 = vand.u32 %v2565, 4294901760
      %2587 = vmatpush1.msra.mxu0 %v2586
      %2588 = vmatprep.subr.mxu0 0.0
      %v2589 = vand.u32 %v2566, 4294901760
      %2590 = vmatpush1.msra.mxu0 %v2589
      %2591 = vmatprep.subr.mxu0 0.0
      %v2592 = vand.u32 %v2567, 4294901760
      %2593 = vmatpush1.msra.mxu0 %v2592
      %2594 = vmatprep.subr.mxu0 0.0
      %v2595 = vand.u32 %v2568, 4294901760
      %2596 = vmatpush1.msra.mxu0 %v2595
      %2597 = vmatprep.subr.mxu0 0.0
      %v2598 = vand.u32 %v2569, 4294901760
      %2599 = vmatpush1.msra.mxu0 %v2598
      %2600 = vmatprep.subr.mxu0 0.0
      %2601 = vmatpush1.msra.mxu0 0.0
      %2602 = vmatprep.subr.mxu0 0.0
      %2603 = vmatpush1.msra.mxu0 0.0
      %2604 = vmatprep.subr.mxu0 0.0
      %2605 = vmatpush1.msra.mxu0 0.0
      %2606 = vmatprep.subr.mxu0 0.0
      %2607 = vmatpush1.msra.mxu0 0.0
      %2608 = vmatprep.subr.mxu0 0.0
      %2609 = vmatpush1.msra.mxu0 0.0
      %2610 = vmatprep.subr.mxu0 0.0
      %2611 = vmatpush1.msra.mxu0 0.0
      %2612 = vmatprep.subr.mxu0 0.0
      %2613 = vmatpush1.msra.mxu0 0.0
      %2614 = vmatprep.subr.mxu0 0.0
      %2615 = vmatpush1.msra.mxu0 0.0
      %2616 = vmatprep.subr.mxu0 0.0
      %2617 = vmatpush1.msra.mxu0 0.0
      %2618 = vmatprep.subr.mxu0 0.0
      %2619 = vmatpush1.msra.mxu0 0.0
      %2620 = vmatprep.subr.mxu0 0.0
      %2621 = vmatpush1.msra.mxu0 0.0
      %2622 = vmatprep.subr.mxu0 0.0
      %2623 = vmatpush1.msra.mxu0 0.0
      %2624 = vmatprep.subr.mxu0 0.0
      %2625 = vmatpush1.msra.mxu0 0.0
      %2626 = vmatprep.subr.mxu0 0.0
      %2627 = vmatpush1.msra.mxu0 0.0
      %2628 = vmatprep.subr.mxu0 0.0
      %2629 = vmatpush1.msra.mxu0 0.0
      %2630 = vmatprep.subr.mxu0 0.0
      %2631 = vmatpush1.msra.mxu0 0.0
      %2632 = vmatprep.subr.mxu0 0.0
      %2633 = vmatpush1.msra.mxu0 0.0
      %2634 = vmatprep.subr.mxu0 0.0
      %2635 = vmatpush1.msra.mxu0 0.0
      %2636 = vmatprep.subr.mxu0 0.0
      %2637 = vmatpush1.msra.mxu0 0.0
      %2638 = vmatprep.subr.mxu0 0.0
      %2639 = vmatpush1.msra.mxu0 0.0
      %2640 = vmatprep.subr.mxu0 0.0
      %2641 = vmatpush1.msra.mxu0 0.0
      %2642 = vmatprep.subr.mxu0 0.0
      %2643 = vmatpush1.msra.mxu0 0.0
      %2644 = vmatprep.subr.mxu0 0.0
      %2645 = vmatpush1.msra.mxu0 0.0
      %2646 = vmatprep.subr.mxu0 0.0
      %2647 = vmatpush1.msra.mxu0 0.0
      %2648 = vmatprep.mubr.f32.mxu0 0.0
      %v2649 = vand.u32 %v2571, 4294901760
      %v2650 = vsub.f32 %v2571, %v2649
      %v2651 = vand.u32 %v2650, 4294901760
      %v2652 = vsub.f32 %v2650, %v2651
      %v2653 = vand.u32 %v2652, 4294901760
      %2654 = vmatmul.mubr.f32.gmra.mrb[0].mxu0 %v2653
      %v2655 = vpop.f32.mrb[0].mxu0
      %v2656 = vadd.f32 0.0, %v2655
      %v2657 = vpop.f32.mrb[0].mxu0
      %2658 = vmatprep.mubr.f32.mxu0 0.0
      %v2659 = vand.u32 %v2574, 4294901760
      %v2660 = vsub.f32 %v2574, %v2659
      %v2661 = vand.u32 %v2660, 4294901760
      %v2662 = vsub.f32 %v2660, %v2661
      %v2663 = vand.u32 %v2662, 4294901760
      %2664 = vmatmul.mubr.f32.gmra.mrb[0].mxu0 %v2663
      %v2665 = vpop.f32.mrb[0].mxu0
      %v2666 = vadd.f32 0.0, %v2665
      %v2667 = vpop.f32.mrb[0].mxu0
      %2668 = vdwg.mxu0
      %2669 = vmatprep.subr.mxu0 0.0
      %v2670 = vand.u32 %v2562, 4294901760
      %v2671 = vsub.f32 %v2562, %v2670
      %v2672 = vand.u32 %v2671, 4294901760
      %v2673 = vsub.f32 %v2671, %v2672
      %v2674 = vand.u32 %v2673, 4294901760
      %2675 = vmatpush1.msra.mxu0 %v2674
      %2676 = vmatprep.subr.mxu0 0.0
      %v2677 = vand.u32 %v2563, 4294901760
      %v2678 = vsub.f32 %v2563, %v2677
      %v2679 = vand.u32 %v2678, 4294901760
      %v2680 = vsub.f32 %v2678, %v2679
      %v2681 = vand.u32 %v2680, 4294901760
      %2682 = vmatpush1.msra.mxu0 %v2681
      %2683 = vmatprep.subr.mxu0 0.0
      %v2684 = vand.u32 %v2564, 4294901760
      %v2685 = vsub.f32 %v2564, %v2684
      %v2686 = vand.u32 %v2685, 4294901760
      %v2687 = vsub.f32 %v2685, %v2686
      %v2688 = vand.u32 %v2687, 4294901760
      %2689 = vmatpush1.msra.mxu0 %v2688
      %2690 = vmatprep.subr.mxu0 0.0
      %v2691 = vand.u32 %v2565, 4294901760
      %v2692 = vsub.f32 %v2565, %v2691
      %v2693 = vand.u32 %v2692, 4294901760
      %v2694 = vsub.f32 %v2692, %v2693
      %v2695 = vand.u32 %v2694, 4294901760
      %2696 = vmatpush1.msra.mxu0 %v2695
      %2697 = vmatprep.subr.mxu0 0.0
      %v2698 = vand.u32 %v2566, 4294901760
      %v2699 = vsub.f32 %v2566, %v2698
      %v2700 = vand.u32 %v2699, 4294901760
      %v2701 = vsub.f32 %v2699, %v2700
      %v2702 = vand.u32 %v2701, 4294901760
      %2703 = vmatpush1.msra.mxu0 %v2702
      %2704 = vmatprep.subr.mxu0 0.0
      %v2705 = vand.u32 %v2567, 4294901760
      %v2706 = vsub.f32 %v2567, %v2705
      %v2707 = vand.u32 %v2706, 4294901760
      %v2708 = vsub.f32 %v2706, %v2707
      %v2709 = vand.u32 %v2708, 4294901760
      %2710 = vmatpush1.msra.mxu0 %v2709
      %2711 = vmatprep.subr.mxu0 0.0
      %v2712 = vand.u32 %v2568, 4294901760
      %v2713 = vsub.f32 %v2568, %v2712
      %v2714 = vand.u32 %v2713, 4294901760
      %v2715 = vsub.f32 %v2713, %v2714
      %v2716 = vand.u32 %v2715, 4294901760
      %2717 = vmatpush1.msra.mxu0 %v2716
      %2718 = vmatprep.subr.mxu0 0.0
      %v2719 = vand.u32 %v2569, 4294901760
      %v2720 = vsub.f32 %v2569, %v2719
      %v2721 = vand.u32 %v2720, 4294901760
      %v2722 = vsub.f32 %v2720, %v2721
      %v2723 = vand.u32 %v2722, 4294901760
      %2724 = vmatpush1.msra.mxu0 %v2723
      %2725 = vmatprep.subr.mxu0 0.0
      %2726 = vmatpush1.msra.mxu0 0.0
      %2727 = vmatprep.subr.mxu0 0.0
      %2728 = vmatpush1.msra.mxu0 0.0
      %2729 = vmatprep.subr.mxu0 0.0
      %2730 = vmatpush1.msra.mxu0 0.0
      %2731 = vmatprep.subr.mxu0 0.0
      %2732 = vmatpush1.msra.mxu0 0.0
      %2733 = vmatprep.subr.mxu0 0.0
      %2734 = vmatpush1.msra.mxu0 0.0
      %2735 = vmatprep.subr.mxu0 0.0
      %2736 = vmatpush1.msra.mxu0 0.0
      %2737 = vmatprep.subr.mxu0 0.0
      %2738 = vmatpush1.msra.mxu0 0.0
      %2739 = vmatprep.subr.mxu0 0.0
      %2740 = vmatpush1.msra.mxu0 0.0
      %2741 = vmatprep.subr.mxu0 0.0
      %2742 = vmatpush1.msra.mxu0 0.0
      %2743 = vmatprep.subr.mxu0 0.0
      %2744 = vmatpush1.msra.mxu0 0.0
      %2745 = vmatprep.subr.mxu0 0.0
      %2746 = vmatpush1.msra.mxu0 0.0
      %2747 = vmatprep.subr.mxu0 0.0
      %2748 = vmatpush1.msra.mxu0 0.0
      %2749 = vmatprep.subr.mxu0 0.0
      %2750 = vmatpush1.msra.mxu0 0.0
      %2751 = vmatprep.subr.mxu0 0.0
      %2752 = vmatpush1.msra.mxu0 0.0
      %2753 = vmatprep.subr.mxu0 0.0
      %2754 = vmatpush1.msra.mxu0 0.0
      %2755 = vmatprep.subr.mxu0 0.0
      %2756 = vmatpush1.msra.mxu0 0.0
      %2757 = vmatprep.subr.mxu0 0.0
      %2758 = vmatpush1.msra.mxu0 0.0
      %2759 = vmatprep.subr.mxu0 0.0
      %2760 = vmatpush1.msra.mxu0 0.0
      %2761 = vmatprep.subr.mxu0 0.0
      %2762 = vmatpush1.msra.mxu0 0.0
      %2763 = vmatprep.subr.mxu0 0.0
      %2764 = vmatpush1.msra.mxu0 0.0
      %2765 = vmatprep.subr.mxu0 0.0
      %2766 = vmatpush1.msra.mxu0 0.0
      %2767 = vmatprep.subr.mxu0 0.0
      %2768 = vmatpush1.msra.mxu0 0.0
      %2769 = vmatprep.subr.mxu0 0.0
      %2770 = vmatpush1.msra.mxu0 0.0
      %2771 = vmatprep.subr.mxu0 0.0
      %2772 = vmatpush1.msra.mxu0 0.0
      %2773 = vmatprep.mubr.f32.mxu0 0.0
      %v2774 = vand.u32 %v2571, 4294901760
      %2775 = vmatmul.mubr.f32.gmra.mrb[0].mxu0 %v2774
      %v2776 = vpop.f32.mrb[0].mxu0
      %v2777 = vadd.f32 %v2656, %v2776
      %v2778 = vpop.f32.mrb[0].mxu0
      %2779 = vmatprep.mubr.f32.mxu0 0.0
      %v2780 = vand.u32 %v2574, 4294901760
      %2781 = vmatmul.mubr.f32.gmra.mrb[0].mxu0 %v2780
      %v2782 = vpop.f32.mrb[0].mxu0
      %v2783 = vadd.f32 %v2666, %v2782
      %v2784 = vpop.f32.mrb[0].mxu0
      %2785 = vdwg.mxu0
      %2786 = vmatprep.subr.mxu0 0.0
      %v2787 = vand.u32 %v2562, 4294901760
      %v2788 = vsub.f32 %v2562, %v2787
      %2789 = vmatpush1.msra.mxu0 %v2788
      %2790 = vmatprep.subr.mxu0 0.0
      %v2791 = vand.u32 %v2563, 4294901760
      %v2792 = vsub.f32 %v2563, %v2791
      %2793 = vmatpush1.msra.mxu0 %v2792
      %2794 = vmatprep.subr.mxu0 0.0
      %v2795 = vand.u32 %v2564, 4294901760
      %v2796 = vsub.f32 %v2564, %v2795
      %2797 = vmatpush1.msra.mxu0 %v2796
      %2798 = vmatprep.subr.mxu0 0.0
      %v2799 = vand.u32 %v2565, 4294901760
      %v2800 = vsub.f32 %v2565, %v2799
      %2801 = vmatpush1.msra.mxu0 %v2800
      %2802 = vmatprep.subr.mxu0 0.0
      %v2803 = vand.u32 %v2566, 4294901760
      %v2804 = vsub.f32 %v2566, %v2803
      %2805 = vmatpush1.msra.mxu0 %v2804
      %2806 = vmatprep.subr.mxu0 0.0
      %v2807 = vand.u32 %v2567, 4294901760
      %v2808 = vsub.f32 %v2567, %v2807
      %2809 = vmatpush1.msra.mxu0 %v2808
      %2810 = vmatprep.subr.mxu0 0.0
      %v2811 = vand.u32 %v2568, 4294901760
      %v2812 = vsub.f32 %v2568, %v2811
      %2813 = vmatpush1.msra.mxu0 %v2812
      %2814 = vmatprep.subr.mxu0 0.0
      %v2815 = vand.u32 %v2569, 4294901760
      %v2816 = vsub.f32 %v2569, %v2815
      %2817 = vmatpush1.msra.mxu0 %v2816
      %2818 = vmatprep.subr.mxu0 0.0
      %2819 = vmatpush1.msra.mxu0 0.0
      %2820 = vmatprep.subr.mxu0 0.0
      %2821 = vmatpush1.msra.mxu0 0.0
      %2822 = vmatprep.subr.mxu0 0.0
      %2823 = vmatpush1.msra.mxu0 0.0
      %2824 = vmatprep.subr.mxu0 0.0
      %2825 = vmatpush1.msra.mxu0 0.0
      %2826 = vmatprep.subr.mxu0 0.0
      %2827 = vmatpush1.msra.mxu0 0.0
      %2828 = vmatprep.subr.mxu0 0.0
      %2829 = vmatpush1.msra.mxu0 0.0
      %2830 = vmatprep.subr.mxu0 0.0
      %2831 = vmatpush1.msra.mxu0 0.0
      %2832 = vmatprep.subr.mxu0 0.0
      %2833 = vmatpush1.msra.mxu0 0.0
      %2834 = vmatprep.subr.mxu0 0.0
      %2835 = vmatpush1.msra.mxu0 0.0
      %2836 = vmatprep.subr.mxu0 0.0
      %2837 = vmatpush1.msra.mxu0 0.0
      %2838 = vmatprep.subr.mxu0 0.0
      %2839 = vmatpush1.msra.mxu0 0.0
      %2840 = vmatprep.subr.mxu0 0.0
      %2841 = vmatpush1.msra.mxu0 0.0
      %2842 = vmatprep.subr.mxu0 0.0
      %2843 = vmatpush1.msra.mxu0 0.0
      %2844 = vmatprep.subr.mxu0 0.0
      %2845 = vmatpush1.msra.mxu0 0.0
      %2846 = vmatprep.subr.mxu0 0.0
      %2847 = vmatpush1.msra.mxu0 0.0
      %2848 = vmatprep.subr.mxu0 0.0
      %2849 = vmatpush1.msra.mxu0 0.0
      %2850 = vmatprep.subr.mxu0 0.0
      %2851 = vmatpush1.msra.mxu0 0.0
      %2852 = vmatprep.subr.mxu0 0.0
      %2853 = vmatpush1.msra.mxu0 0.0
      %2854 = vmatprep.subr.mxu0 0.0
      %2855 = vmatpush1.msra.mxu0 0.0
      %2856 = vmatprep.subr.mxu0 0.0
      %2857 = vmatpush1.msra.mxu0 0.0
      %2858 = vmatprep.subr.mxu0 0.0
      %2859 = vmatpush1.msra.mxu0 0.0
      %2860 = vmatprep.subr.mxu0 0.0
      %2861 = vmatpush1.msra.mxu0 0.0
      %2862 = vmatprep.subr.mxu0 0.0
      %2863 = vmatpush1.msra.mxu0 0.0
      %2864 = vmatprep.subr.mxu0 0.0
      %2865 = vmatpush1.msra.mxu0 0.0
      %2866 = vmatprep.mubr.f32.mxu0 0.0
      %v2867 = vand.u32 %v2571, 4294901760
      %v2868 = vsub.f32 %v2571, %v2867
      %2869 = vmatmul.mubr.f32.gmra.mrb[0].mxu0 %v2868
      %v2870 = vpop.f32.mrb[0].mxu0
      %v2871 = vadd.f32 %v2777, %v2870
      %v2872 = vpop.f32.mrb[0].mxu0
      %2873 = vmatprep.mubr.f32.mxu0 0.0
      %v2874 = vand.u32 %v2574, 4294901760
      %v2875 = vsub.f32 %v2574, %v2874
      %2876 = vmatmul.mubr.f32.gmra.mrb[0].mxu0 %v2875
      %v2877 = vpop.f32.mrb[0].mxu0
      %v2878 = vadd.f32 %v2783, %v2877
      %v2879 = vpop.f32.mrb[0].mxu0
      %2880 = vdwg.mxu0
      %2881 = vmatprep.subr.mxu0 0.0
      %v2882 = vand.u32 %v2562, 4294901760
      %2883 = vmatpush1.msra.mxu0 %v2882
      %2884 = vmatprep.subr.mxu0 0.0
      %v2885 = vand.u32 %v2563, 4294901760
      %2886 = vmatpush1.msra.mxu0 %v2885
      %2887 = vmatprep.subr.mxu0 0.0
      %v2888 = vand.u32 %v2564, 4294901760
      %2889 = vmatpush1.msra.mxu0 %v2888
      %2890 = vmatprep.subr.mxu0 0.0
      %v2891 = vand.u32 %v2565, 4294901760
      %2892 = vmatpush1.msra.mxu0 %v2891
      %2893 = vmatprep.subr.mxu0 0.0
      %v2894 = vand.u32 %v2566, 4294901760
      %2895 = vmatpush1.msra.mxu0 %v2894
      %2896 = vmatprep.subr.mxu0 0.0
      %v2897 = vand.u32 %v2567, 4294901760
      %2898 = vmatpush1.msra.mxu0 %v2897
      %2899 = vmatprep.subr.mxu0 0.0
      %v2900 = vand.u32 %v2568, 4294901760
      %2901 = vmatpush1.msra.mxu0 %v2900
      %2902 = vmatprep.subr.mxu0 0.0
      %v2903 = vand.u32 %v2569, 4294901760
      %2904 = vmatpush1.msra.mxu0 %v2903
      %2905 = vmatprep.subr.mxu0 0.0
      %2906 = vmatpush1.msra.mxu0 0.0
      %2907 = vmatprep.subr.mxu0 0.0
      %2908 = vmatpush1.msra.mxu0 0.0
      %2909 = vmatprep.subr.mxu0 0.0
      %2910 = vmatpush1.msra.mxu0 0.0
      %2911 = vmatprep.subr.mxu0 0.0
      %2912 = vmatpush1.msra.mxu0 0.0
      %2913 = vmatprep.subr.mxu0 0.0
      %2914 = vmatpush1.msra.mxu0 0.0
      %2915 = vmatprep.subr.mxu0 0.0
      %2916 = vmatpush1.msra.mxu0 0.0
      %2917 = vmatprep.subr.mxu0 0.0
      %2918 = vmatpush1.msra.mxu0 0.0
      %2919 = vmatprep.subr.mxu0 0.0
      %2920 = vmatpush1.msra.mxu0 0.0
      %2921 = vmatprep.subr.mxu0 0.0
      %2922 = vmatpush1.msra.mxu0 0.0
      %2923 = vmatprep.subr.mxu0 0.0
      %2924 = vmatpush1.msra.mxu0 0.0
      %2925 = vmatprep.subr.mxu0 0.0
      %2926 = vmatpush1.msra.mxu0 0.0
      %2927 = vmatprep.subr.mxu0 0.0
      %2928 = vmatpush1.msra.mxu0 0.0
      %2929 = vmatprep.subr.mxu0 0.0
      %2930 = vmatpush1.msra.mxu0 0.0
      %2931 = vmatprep.subr.mxu0 0.0
      %2932 = vmatpush1.msra.mxu0 0.0
      %2933 = vmatprep.subr.mxu0 0.0
      %2934 = vmatpush1.msra.mxu0 0.0
      %2935 = vmatprep.subr.mxu0 0.0
      %2936 = vmatpush1.msra.mxu0 0.0
      %2937 = vmatprep.subr.mxu0 0.0
      %2938 = vmatpush1.msra.mxu0 0.0
      %2939 = vmatprep.subr.mxu0 0.0
      %2940 = vmatpush1.msra.mxu0 0.0
      %2941 = vmatprep.subr.mxu0 0.0
      %2942 = vmatpush1.msra.mxu0 0.0
      %2943 = vmatprep.subr.mxu0 0.0
      %2944 = vmatpush1.msra.mxu0 0.0
      %2945 = vmatprep.subr.mxu0 0.0
      %2946 = vmatpush1.msra.mxu0 0.0
      %2947 = vmatprep.subr.mxu0 0.0
      %2948 = vmatpush1.msra.mxu0 0.0
      %2949 = vmatprep.subr.mxu0 0.0
      %2950 = vmatpush1.msra.mxu0 0.0
      %2951 = vmatprep.subr.mxu0 0.0
      %2952 = vmatpush1.msra.mxu0 0.0
      %2953 = vmatprep.mubr.f32.mxu0 0.0
      %v2954 = vand.u32 %v2571, 4294901760
      %v2955 = vsub.f32 %v2571, %v2954
      %v2956 = vand.u32 %v2955, 4294901760
      %2957 = vmatmul.mubr.f32.gmra.mrb[0].mxu0 %v2956
      %v2958 = vpop.f32.mrb[0].mxu0
      %v2959 = vadd.f32 %v2871, %v2958
      %v2960 = vpop.f32.mrb[0].mxu0
      %2961 = vmatprep.mubr.f32.mxu0 0.0
      %v2962 = vand.u32 %v2574, 4294901760
      %v2963 = vsub.f32 %v2574, %v2962
      %v2964 = vand.u32 %v2963, 4294901760
      %2965 = vmatmul.mubr.f32.gmra.mrb[0].mxu0 %v2964
      %v2966 = vpop.f32.mrb[0].mxu0
      %v2967 = vadd.f32 %v2878, %v2966
      %v2968 = vpop.f32.mrb[0].mxu0
      %2969 = vdwg.mxu0
      %2970 = vmatprep.subr.mxu0 0.0
      %v2971 = vand.u32 %v2562, 4294901760
      %v2972 = vsub.f32 %v2562, %v2971
      %v2973 = vand.u32 %v2972, 4294901760
      %2974 = vmatpush1.msra.mxu0 %v2973
      %2975 = vmatprep.subr.mxu0 0.0
      %v2976 = vand.u32 %v2563, 4294901760
      %v2977 = vsub.f32 %v2563, %v2976
      %v2978 = vand.u32 %v2977, 4294901760
      %2979 = vmatpush1.msra.mxu0 %v2978
      %2980 = vmatprep.subr.mxu0 0.0
      %v2981 = vand.u32 %v2564, 4294901760
      %v2982 = vsub.f32 %v2564, %v2981
      %v2983 = vand.u32 %v2982, 4294901760
      %2984 = vmatpush1.msra.mxu0 %v2983
      %2985 = vmatprep.subr.mxu0 0.0
      %v2986 = vand.u32 %v2565, 4294901760
      %v2987 = vsub.f32 %v2565, %v2986
      %v2988 = vand.u32 %v2987, 4294901760
      %2989 = vmatpush1.msra.mxu0 %v2988
      %2990 = vmatprep.subr.mxu0 0.0
      %v2991 = vand.u32 %v2566, 4294901760
      %v2992 = vsub.f32 %v2566, %v2991
      %v2993 = vand.u32 %v2992, 4294901760
      %2994 = vmatpush1.msra.mxu0 %v2993
      %2995 = vmatprep.subr.mxu0 0.0
      %v2996 = vand.u32 %v2567, 4294901760
      %v2997 = vsub.f32 %v2567, %v2996
      %v2998 = vand.u32 %v2997, 4294901760
      %2999 = vmatpush1.msra.mxu0 %v2998
      %3000 = vmatprep.subr.mxu0 0.0
      %v3001 = vand.u32 %v2568, 4294901760
      %v3002 = vsub.f32 %v2568, %v3001
      %v3003 = vand.u32 %v3002, 4294901760
      %3004 = vmatpush1.msra.mxu0 %v3003
      %3005 = vmatprep.subr.mxu0 0.0
      %v3006 = vand.u32 %v2569, 4294901760
      %v3007 = vsub.f32 %v2569, %v3006
      %v3008 = vand.u32 %v3007, 4294901760
      %3009 = vmatpush1.msra.mxu0 %v3008
      %3010 = vmatprep.subr.mxu0 0.0
      %3011 = vmatpush1.msra.mxu0 0.0
      %3012 = vmatprep.subr.mxu0 0.0
      %3013 = vmatpush1.msra.mxu0 0.0
      %3014 = vmatprep.subr.mxu0 0.0
      %3015 = vmatpush1.msra.mxu0 0.0
      %3016 = vmatprep.subr.mxu0 0.0
      %3017 = vmatpush1.msra.mxu0 0.0
      %3018 = vmatprep.subr.mxu0 0.0
      %3019 = vmatpush1.msra.mxu0 0.0
      %3020 = vmatprep.subr.mxu0 0.0
      %3021 = vmatpush1.msra.mxu0 0.0
      %3022 = vmatprep.subr.mxu0 0.0
      %3023 = vmatpush1.msra.mxu0 0.0
      %3024 = vmatprep.subr.mxu0 0.0
      %3025 = vmatpush1.msra.mxu0 0.0
      %3026 = vmatprep.subr.mxu0 0.0
      %3027 = vmatpush1.msra.mxu0 0.0
      %3028 = vmatprep.subr.mxu0 0.0
      %3029 = vmatpush1.msra.mxu0 0.0
      %3030 = vmatprep.subr.mxu0 0.0
      %3031 = vmatpush1.msra.mxu0 0.0
      %3032 = vmatprep.subr.mxu0 0.0
      %3033 = vmatpush1.msra.mxu0 0.0
      %3034 = vmatprep.subr.mxu0 0.0
      %3035 = vmatpush1.msra.mxu0 0.0
      %3036 = vmatprep.subr.mxu0 0.0
      %3037 = vmatpush1.msra.mxu0 0.0
      %3038 = vmatprep.subr.mxu0 0.0
      %3039 = vmatpush1.msra.mxu0 0.0
      %3040 = vmatprep.subr.mxu0 0.0
      %3041 = vmatpush1.msra.mxu0 0.0
      %3042 = vmatprep.subr.mxu0 0.0
      %3043 = vmatpush1.msra.mxu0 0.0
      %3044 = vmatprep.subr.mxu0 0.0
      %3045 = vmatpush1.msra.mxu0 0.0
      %3046 = vmatprep.subr.mxu0 0.0
      %3047 = vmatpush1.msra.mxu0 0.0
      %3048 = vmatprep.subr.mxu0 0.0
      %3049 = vmatpush1.msra.mxu0 0.0
      %3050 = vmatprep.subr.mxu0 0.0
      %3051 = vmatpush1.msra.mxu0 0.0
      %3052 = vmatprep.subr.mxu0 0.0
      %3053 = vmatpush1.msra.mxu0 0.0
      %3054 = vmatprep.subr.mxu0 0.0
      %3055 = vmatpush1.msra.mxu0 0.0
      %3056 = vmatprep.subr.mxu0 0.0
      %3057 = vmatpush1.msra.mxu0 0.0
      %3058 = vmatprep.mubr.f32.mxu0 0.0
      %v3059 = vand.u32 %v2571, 4294901760
      %3060 = vmatmul.mubr.f32.gmra.mrb[0].mxu0 %v3059
      %v3061 = vpop.f32.mrb[0].mxu0
      %v3062 = vadd.f32 %v2959, %v3061
      %v3063 = vpop.f32.mrb[0].mxu0
      %3064 = vmatprep.mubr.f32.mxu0 0.0
      %v3065 = vand.u32 %v2574, 4294901760
      %3066 = vmatmul.mubr.f32.gmra.mrb[0].mxu0 %v3065
      %v3067 = vpop.f32.mrb[0].mxu0
      %v3068 = vadd.f32 %v2967, %v3067
      %v3069 = vpop.f32.mrb[0].mxu0
      %3070 = vdwg.mxu0
      %3071 = vmatprep.subr.mxu0 0.0
      %v3072 = vand.u32 %v2562, 4294901760
      %3073 = vmatpush1.msra.mxu0 %v3072
      %3074 = vmatprep.subr.mxu0 0.0
      %v3075 = vand.u32 %v2563, 4294901760
      %3076 = vmatpush1.msra.mxu0 %v3075
      %3077 = vmatprep.subr.mxu0 0.0
      %v3078 = vand.u32 %v2564, 4294901760
      %3079 = vmatpush1.msra.mxu0 %v3078
      %3080 = vmatprep.subr.mxu0 0.0
      %v3081 = vand.u32 %v2565, 4294901760
      %3082 = vmatpush1.msra.mxu0 %v3081
      %3083 = vmatprep.subr.mxu0 0.0
      %v3084 = vand.u32 %v2566, 4294901760
      %3085 = vmatpush1.msra.mxu0 %v3084
      %3086 = vmatprep.subr.mxu0 0.0
      %v3087 = vand.u32 %v2567, 4294901760
      %3088 = vmatpush1.msra.mxu0 %v3087
      %3089 = vmatprep.subr.mxu0 0.0
      %v3090 = vand.u32 %v2568, 4294901760
      %3091 = vmatpush1.msra.mxu0 %v3090
      %3092 = vmatprep.subr.mxu0 0.0
      %v3093 = vand.u32 %v2569, 4294901760
      %3094 = vmatpush1.msra.mxu0 %v3093
      %3095 = vmatprep.subr.mxu0 0.0
      %3096 = vmatpush1.msra.mxu0 0.0
      %3097 = vmatprep.subr.mxu0 0.0
      %3098 = vmatpush1.msra.mxu0 0.0
      %3099 = vmatprep.subr.mxu0 0.0
      %3100 = vmatpush1.msra.mxu0 0.0
      %3101 = vmatprep.subr.mxu0 0.0
      %3102 = vmatpush1.msra.mxu0 0.0
      %3103 = vmatprep.subr.mxu0 0.0
      %3104 = vmatpush1.msra.mxu0 0.0
      %3105 = vmatprep.subr.mxu0 0.0
      %3106 = vmatpush1.msra.mxu0 0.0
      %3107 = vmatprep.subr.mxu0 0.0
      %3108 = vmatpush1.msra.mxu0 0.0
      %3109 = vmatprep.subr.mxu0 0.0
      %3110 = vmatpush1.msra.mxu0 0.0
      %3111 = vmatprep.subr.mxu0 0.0
      %3112 = vmatpush1.msra.mxu0 0.0
      %3113 = vmatprep.subr.mxu0 0.0
      %3114 = vmatpush1.msra.mxu0 0.0
      %3115 = vmatprep.subr.mxu0 0.0
      %3116 = vmatpush1.msra.mxu0 0.0
      %3117 = vmatprep.subr.mxu0 0.0
      %3118 = vmatpush1.msra.mxu0 0.0
      %3119 = vmatprep.subr.mxu0 0.0
      %3120 = vmatpush1.msra.mxu0 0.0
      %3121 = vmatprep.subr.mxu0 0.0
      %3122 = vmatpush1.msra.mxu0 0.0
      %3123 = vmatprep.subr.mxu0 0.0
      %3124 = vmatpush1.msra.mxu0 0.0
      %3125 = vmatprep.subr.mxu0 0.0
      %3126 = vmatpush1.msra.mxu0 0.0
      %3127 = vmatprep.subr.mxu0 0.0
      %3128 = vmatpush1.msra.mxu0 0.0
      %3129 = vmatprep.subr.mxu0 0.0
      %3130 = vmatpush1.msra.mxu0 0.0
      %3131 = vmatprep.subr.mxu0 0.0
      %3132 = vmatpush1.msra.mxu0 0.0
      %3133 = vmatprep.subr.mxu0 0.0
      %3134 = vmatpush1.msra.mxu0 0.0
      %3135 = vmatprep.subr.mxu0 0.0
      %3136 = vmatpush1.msra.mxu0 0.0
      %3137 = vmatprep.subr.mxu0 0.0
      %3138 = vmatpush1.msra.mxu0 0.0
      %3139 = vmatprep.subr.mxu0 0.0
      %3140 = vmatpush1.msra.mxu0 0.0
      %3141 = vmatprep.subr.mxu0 0.0
      %3142 = vmatpush1.msra.mxu0 0.0
      %3143 = vmatprep.mubr.f32.mxu0 0.0
      %v3144 = vand.u32 %v2571, 4294901760
      %3145 = vmatmul.mubr.f32.gmra.mrb[0].mxu0 %v3144
      %v3146 = vpop.f32.mrb[0].mxu0
      %v3147 = vadd.f32 %v3062, %v3146
      %v3148 = vpop.f32.mrb[0].mxu0
      %3149 = vmatprep.mubr.f32.mxu0 0.0
      %v3150 = vand.u32 %v2574, 4294901760
      %3151 = vmatmul.mubr.f32.gmra.mrb[0].mxu0 %v3150
      %v3152 = vpop.f32.mrb[0].mxu0
      %v3153 = vadd.f32 %v3068, %v3152
      %v3154 = vpop.f32.mrb[0].mxu0
      %3155 = vdwg.mxu0
      %v3156 = vadd.f32 %v2044, %v3147
      %v3157 = vadd.f32 %v2050, %v3153
      %v3158 = vld [vmem:[%s2] sm:$0x1]
      %v3160 = vlaneseq
      %v3161 = vshrl.u32 %v3160, 7
      %v3162 = vsub.s32 0, %v3161
      %v3163 = vrot.slane %v3158, %v3162
      %v3165 = vadd.f32 %v3156, %v3163
      %v3166 = vadd.f32 %v3157, %v3163
      %v3167 = vmax.f32 %v3165, 0.0
      %v3168 = vmax.f32 %v3166, 0.0
      %3169 = vmatprep.subr.mxu0 0.0
      %v3170 = vand.u32 %v3167, 4294901760
      %3171 = vmatpush1.msra.mxu0 %v3170
      %3172 = vmatprep.subr.mxu0 0.0
      %v3173 = vand.u32 %v3168, 4294901760
      %3174 = vmatpush1.msra.mxu0 %v3173
      %3175 = vmatprep.subr.mxu0 0.0
      %3176 = vmatpush1.msra.mxu0 0.0
      %3177 = vmatprep.subr.mxu0 0.0
      %3178 = vmatpush1.msra.mxu0 0.0
      %3179 = vmatprep.subr.mxu0 0.0
      %3180 = vmatpush1.msra.mxu0 0.0
      %3181 = vmatprep.subr.mxu0 0.0
      %3182 = vmatpush1.msra.mxu0 0.0
      %3183 = vmatprep.subr.mxu0 0.0
      %3184 = vmatpush1.msra.mxu0 0.0
      %3185 = vmatprep.subr.mxu0 0.0
      %3186 = vmatpush1.msra.mxu0 0.0
      %3187 = vmatprep.subr.mxu0 0.0
      %3188 = vmatpush1.msra.mxu0 0.0
      %3189 = vmatprep.subr.mxu0 0.0
      %3190 = vmatpush1.msra.mxu0 0.0
      %3191 = vmatprep.subr.mxu0 0.0
      %3192 = vmatpush1.msra.mxu0 0.0
      %3193 = vmatprep.subr.mxu0 0.0
      %3194 = vmatpush1.msra.mxu0 0.0
      %3195 = vmatprep.subr.mxu0 0.0
      %3196 = vmatpush1.msra.mxu0 0.0
      %3197 = vmatprep.subr.mxu0 0.0
      %3198 = vmatpush1.msra.mxu0 0.0
      %3199 = vmatprep.subr.mxu0 0.0
      %3200 = vmatpush1.msra.mxu0 0.0
      %3201 = vmatprep.subr.mxu0 0.0
      %3202 = vmatpush1.msra.mxu0 0.0
      %3203 = vmatprep.subr.mxu0 0.0
      %3204 = vmatpush1.msra.mxu0 0.0
      %3205 = vmatprep.subr.mxu0 0.0
      %3206 = vmatpush1.msra.mxu0 0.0
      %3207 = vmatprep.subr.mxu0 0.0
      %3208 = vmatpush1.msra.mxu0 0.0
      %3209 = vmatprep.subr.mxu0 0.0
      %3210 = vmatpush1.msra.mxu0 0.0
      %3211 = vmatprep.subr.mxu0 0.0
      %3212 = vmatpush1.msra.mxu0 0.0
      %3213 = vmatprep.subr.mxu0 0.0
      %3214 = vmatpush1.msra.mxu0 0.0
      %3215 = vmatprep.subr.mxu0 0.0
      %3216 = vmatpush1.msra.mxu0 0.0
      %3217 = vmatprep.subr.mxu0 0.0
      %3218 = vmatpush1.msra.mxu0 0.0
      %3219 = vmatprep.subr.mxu0 0.0
      %3220 = vmatpush1.msra.mxu0 0.0
      %3221 = vmatprep.subr.mxu0 0.0
      %3222 = vmatpush1.msra.mxu0 0.0
      %3223 = vmatprep.subr.mxu0 0.0
      %3224 = vmatpush1.msra.mxu0 0.0
      %3225 = vmatprep.subr.mxu0 0.0
      %3226 = vmatpush1.msra.mxu0 0.0
      %3227 = vmatprep.subr.mxu0 0.0
      %3228 = vmatpush1.msra.mxu0 0.0
      %3229 = vmatprep.subr.mxu0 0.0
      %3230 = vmatpush1.msra.mxu0 0.0
      %3231 = vmatprep.subr.mxu0 0.0
      %3232 = vmatpush1.msra.mxu0 0.0
      %3233 = vmatprep.subr.mxu0 0.0
      %3234 = vmatpush1.msra.mxu0 0.0
      %3235 = vmatprep.mubr.f32.mxu0 0.0
      %v3236 = vand.u32 %v356, 4294901760
      %v3237 = vsub.f32 %v356, %v3236
      %v3238 = vand.u32 %v3237, 4294901760
      %v3239 = vsub.f32 %v3237, %v3238
      %v3240 = vand.u32 %v3239, 4294901760
      %3241 = vmatmul.mubr.f32.gmra.mrb[0].mxu0 %v3240
      %v3242 = vpop.f32.mrb[0].mxu0
      %v3243 = vadd.f32 0.0, %v3242
      %v3244 = vpop.f32.mrb[0].mxu0
      %3245 = vmatprep.mubr.f32.mxu0 0.0
      %v3246 = vand.u32 %v359, 4294901760
      %v3247 = vsub.f32 %v359, %v3246
      %v3248 = vand.u32 %v3247, 4294901760
      %v3249 = vsub.f32 %v3247, %v3248
      %v3250 = vand.u32 %v3249, 4294901760
      %3251 = vmatmul.mubr.f32.gmra.mrb[0].mxu0 %v3250
      %v3252 = vpop.f32.mrb[0].mxu0
      %v3253 = vadd.f32 0.0, %v3252
      %v3254 = vpop.f32.mrb[0].mxu0
      %3255 = vdwg.mxu0
      %3256 = vmatprep.subr.mxu0 0.0
      %v3257 = vand.u32 %v3167, 4294901760
      %v3258 = vsub.f32 %v3167, %v3257
      %v3259 = vand.u32 %v3258, 4294901760
      %v3260 = vsub.f32 %v3258, %v3259
      %v3261 = vand.u32 %v3260, 4294901760
      %3262 = vmatpush1.msra.mxu0 %v3261
      %3263 = vmatprep.subr.mxu0 0.0
      %v3264 = vand.u32 %v3168, 4294901760
      %v3265 = vsub.f32 %v3168, %v3264
      %v3266 = vand.u32 %v3265, 4294901760
      %v3267 = vsub.f32 %v3265, %v3266
      %v3268 = vand.u32 %v3267, 4294901760
      %3269 = vmatpush1.msra.mxu0 %v3268
      %3270 = vmatprep.subr.mxu0 0.0
      %3271 = vmatpush1.msra.mxu0 0.0
      %3272 = vmatprep.subr.mxu0 0.0
      %3273 = vmatpush1.msra.mxu0 0.0
      %3274 = vmatprep.subr.mxu0 0.0
      %3275 = vmatpush1.msra.mxu0 0.0
      %3276 = vmatprep.subr.mxu0 0.0
      %3277 = vmatpush1.msra.mxu0 0.0
      %3278 = vmatprep.subr.mxu0 0.0
      %3279 = vmatpush1.msra.mxu0 0.0
      %3280 = vmatprep.subr.mxu0 0.0
      %3281 = vmatpush1.msra.mxu0 0.0
      %3282 = vmatprep.subr.mxu0 0.0
      %3283 = vmatpush1.msra.mxu0 0.0
      %3284 = vmatprep.subr.mxu0 0.0
      %3285 = vmatpush1.msra.mxu0 0.0
      %3286 = vmatprep.subr.mxu0 0.0
      %3287 = vmatpush1.msra.mxu0 0.0
      %3288 = vmatprep.subr.mxu0 0.0
      %3289 = vmatpush1.msra.mxu0 0.0
      %3290 = vmatprep.subr.mxu0 0.0
      %3291 = vmatpush1.msra.mxu0 0.0
      %3292 = vmatprep.subr.mxu0 0.0
      %3293 = vmatpush1.msra.mxu0 0.0
      %3294 = vmatprep.subr.mxu0 0.0
      %3295 = vmatpush1.msra.mxu0 0.0
      %3296 = vmatprep.subr.mxu0 0.0
      %3297 = vmatpush1.msra.mxu0 0.0
      %3298 = vmatprep.subr.mxu0 0.0
      %3299 = vmatpush1.msra.mxu0 0.0
      %3300 = vmatprep.subr.mxu0 0.0
      %3301 = vmatpush1.msra.mxu0 0.0
      %3302 = vmatprep.subr.mxu0 0.0
      %3303 = vmatpush1.msra.mxu0 0.0
      %3304 = vmatprep.subr.mxu0 0.0
      %3305 = vmatpush1.msra.mxu0 0.0
      %3306 = vmatprep.subr.mxu0 0.0
      %3307 = vmatpush1.msra.mxu0 0.0
      %3308 = vmatprep.subr.mxu0 0.0
      %3309 = vmatpush1.msra.mxu0 0.0
      %3310 = vmatprep.subr.mxu0 0.0
      %3311 = vmatpush1.msra.mxu0 0.0
      %3312 = vmatprep.subr.mxu0 0.0
      %3313 = vmatpush1.msra.mxu0 0.0
      %3314 = vmatprep.subr.mxu0 0.0
      %3315 = vmatpush1.msra.mxu0 0.0
      %3316 = vmatprep.subr.mxu0 0.0
      %3317 = vmatpush1.msra.mxu0 0.0
      %3318 = vmatprep.subr.mxu0 0.0
      %3319 = vmatpush1.msra.mxu0 0.0
      %3320 = vmatprep.subr.mxu0 0.0
      %3321 = vmatpush1.msra.mxu0 0.0
      %3322 = vmatprep.subr.mxu0 0.0
      %3323 = vmatpush1.msra.mxu0 0.0
      %3324 = vmatprep.subr.mxu0 0.0
      %3325 = vmatpush1.msra.mxu0 0.0
      %3326 = vmatprep.subr.mxu0 0.0
      %3327 = vmatpush1.msra.mxu0 0.0
      %3328 = vmatprep.subr.mxu0 0.0
      %3329 = vmatpush1.msra.mxu0 0.0
      %3330 = vmatprep.mubr.f32.mxu0 0.0
      %v3331 = vand.u32 %v356, 4294901760
      %3332 = vmatmul.mubr.f32.gmra.mrb[0].mxu0 %v3331
      %v3333 = vpop.f32.mrb[0].mxu0
      %v3334 = vadd.f32 %v3243, %v3333
      %v3335 = vpop.f32.mrb[0].mxu0
      %3336 = vmatprep.mubr.f32.mxu0 0.0
      %v3337 = vand.u32 %v359, 4294901760
      %3338 = vmatmul.mubr.f32.gmra.mrb[0].mxu0 %v3337
      %v3339 = vpop.f32.mrb[0].mxu0
      %v3340 = vadd.f32 %v3253, %v3339
      %v3341 = vpop.f32.mrb[0].mxu0
      %3342 = vdwg.mxu0
      %3343 = vmatprep.subr.mxu0 0.0
      %v3344 = vand.u32 %v3167, 4294901760
      %v3345 = vsub.f32 %v3167, %v3344
      %3346 = vmatpush1.msra.mxu0 %v3345
      %3347 = vmatprep.subr.mxu0 0.0
      %v3348 = vand.u32 %v3168, 4294901760
      %v3349 = vsub.f32 %v3168, %v3348
      %3350 = vmatpush1.msra.mxu0 %v3349
      %3351 = vmatprep.subr.mxu0 0.0
      %3352 = vmatpush1.msra.mxu0 0.0
      %3353 = vmatprep.subr.mxu0 0.0
      %3354 = vmatpush1.msra.mxu0 0.0
      %3355 = vmatprep.subr.mxu0 0.0
      %3356 = vmatpush1.msra.mxu0 0.0
      %3357 = vmatprep.subr.mxu0 0.0
      %3358 = vmatpush1.msra.mxu0 0.0
      %3359 = vmatprep.subr.mxu0 0.0
      %3360 = vmatpush1.msra.mxu0 0.0
      %3361 = vmatprep.subr.mxu0 0.0
      %3362 = vmatpush1.msra.mxu0 0.0
      %3363 = vmatprep.subr.mxu0 0.0
      %3364 = vmatpush1.msra.mxu0 0.0
      %3365 = vmatprep.subr.mxu0 0.0
      %3366 = vmatpush1.msra.mxu0 0.0
      %3367 = vmatprep.subr.mxu0 0.0
      %3368 = vmatpush1.msra.mxu0 0.0
      %3369 = vmatprep.subr.mxu0 0.0
      %3370 = vmatpush1.msra.mxu0 0.0
      %3371 = vmatprep.subr.mxu0 0.0
      %3372 = vmatpush1.msra.mxu0 0.0
      %3373 = vmatprep.subr.mxu0 0.0
      %3374 = vmatpush1.msra.mxu0 0.0
      %3375 = vmatprep.subr.mxu0 0.0
      %3376 = vmatpush1.msra.mxu0 0.0
      %3377 = vmatprep.subr.mxu0 0.0
      %3378 = vmatpush1.msra.mxu0 0.0
      %3379 = vmatprep.subr.mxu0 0.0
      %3380 = vmatpush1.msra.mxu0 0.0
      %3381 = vmatprep.subr.mxu0 0.0
      %3382 = vmatpush1.msra.mxu0 0.0
      %3383 = vmatprep.subr.mxu0 0.0
      %3384 = vmatpush1.msra.mxu0 0.0
      %3385 = vmatprep.subr.mxu0 0.0
      %3386 = vmatpush1.msra.mxu0 0.0
      %3387 = vmatprep.subr.mxu0 0.0
      %3388 = vmatpush1.msra.mxu0 0.0
      %3389 = vmatprep.subr.mxu0 0.0
      %3390 = vmatpush1.msra.mxu0 0.0
      %3391 = vmatprep.subr.mxu0 0.0
      %3392 = vmatpush1.msra.mxu0 0.0
      %3393 = vmatprep.subr.mxu0 0.0
      %3394 = vmatpush1.msra.mxu0 0.0
      %3395 = vmatprep.subr.mxu0 0.0
      %3396 = vmatpush1.msra.mxu0 0.0
      %3397 = vmatprep.subr.mxu0 0.0
      %3398 = vmatpush1.msra.mxu0 0.0
      %3399 = vmatprep.subr.mxu0 0.0
      %3400 = vmatpush1.msra.mxu0 0.0
      %3401 = vmatprep.subr.mxu0 0.0
      %3402 = vmatpush1.msra.mxu0 0.0
      %3403 = vmatprep.subr.mxu0 0.0
      %3404 = vmatpush1.msra.mxu0 0.0
      %3405 = vmatprep.subr.mxu0 0.0
      %3406 = vmatpush1.msra.mxu0 0.0
      %3407 = vmatprep.subr.mxu0 0.0
      %3408 = vmatpush1.msra.mxu0 0.0
      %3409 = vmatprep.subr.mxu0 0.0
      %3410 = vmatpush1.msra.mxu0 0.0
      %3411 = vmatprep.mubr.f32.mxu0 0.0
      %v3412 = vand.u32 %v356, 4294901760
      %v3413 = vsub.f32 %v356, %v3412
      %3414 = vmatmul.mubr.f32.gmra.mrb[0].mxu0 %v3413
      %v3415 = vpop.f32.mrb[0].mxu0
      %v3416 = vadd.f32 %v3334, %v3415
      %v3417 = vpop.f32.mrb[0].mxu0
      %3418 = vmatprep.mubr.f32.mxu0 0.0
      %v3419 = vand.u32 %v359, 4294901760
      %v3420 = vsub.f32 %v359, %v3419
      %3421 = vmatmul.mubr.f32.gmra.mrb[0].mxu0 %v3420
      %v3422 = vpop.f32.mrb[0].mxu0
      %v3423 = vadd.f32 %v3340, %v3422
      %v3424 = vpop.f32.mrb[0].mxu0
      %3425 = vdwg.mxu0
      %3426 = vmatprep.subr.mxu0 0.0
      %v3427 = vand.u32 %v3167, 4294901760
      %3428 = vmatpush1.msra.mxu0 %v3427
      %3429 = vmatprep.subr.mxu0 0.0
      %v3430 = vand.u32 %v3168, 4294901760
      %3431 = vmatpush1.msra.mxu0 %v3430
      %3432 = vmatprep.subr.mxu0 0.0
      %3433 = vmatpush1.msra.mxu0 0.0
      %3434 = vmatprep.subr.mxu0 0.0
      %3435 = vmatpush1.msra.mxu0 0.0
      %3436 = vmatprep.subr.mxu0 0.0
      %3437 = vmatpush1.msra.mxu0 0.0
      %3438 = vmatprep.subr.mxu0 0.0
      %3439 = vmatpush1.msra.mxu0 0.0
      %3440 = vmatprep.subr.mxu0 0.0
      %3441 = vmatpush1.msra.mxu0 0.0
      %3442 = vmatprep.subr.mxu0 0.0
      %3443 = vmatpush1.msra.mxu0 0.0
      %3444 = vmatprep.subr.mxu0 0.0
      %3445 = vmatpush1.msra.mxu0 0.0
      %3446 = vmatprep.subr.mxu0 0.0
      %3447 = vmatpush1.msra.mxu0 0.0
      %3448 = vmatprep.subr.mxu0 0.0
      %3449 = vmatpush1.msra.mxu0 0.0
      %3450 = vmatprep.subr.mxu0 0.0
      %3451 = vmatpush1.msra.mxu0 0.0
      %3452 = vmatprep.subr.mxu0 0.0
      %3453 = vmatpush1.msra.mxu0 0.0
      %3454 = vmatprep.subr.mxu0 0.0
      %3455 = vmatpush1.msra.mxu0 0.0
      %3456 = vmatprep.subr.mxu0 0.0
      %3457 = vmatpush1.msra.mxu0 0.0
      %3458 = vmatprep.subr.mxu0 0.0
      %3459 = vmatpush1.msra.mxu0 0.0
      %3460 = vmatprep.subr.mxu0 0.0
      %3461 = vmatpush1.msra.mxu0 0.0
      %3462 = vmatprep.subr.mxu0 0.0
      %3463 = vmatpush1.msra.mxu0 0.0
      %3464 = vmatprep.subr.mxu0 0.0
      %3465 = vmatpush1.msra.mxu0 0.0
      %3466 = vmatprep.subr.mxu0 0.0
      %3467 = vmatpush1.msra.mxu0 0.0
      %3468 = vmatprep.subr.mxu0 0.0
      %3469 = vmatpush1.msra.mxu0 0.0
      %3470 = vmatprep.subr.mxu0 0.0
      %3471 = vmatpush1.msra.mxu0 0.0
      %3472 = vmatprep.subr.mxu0 0.0
      %3473 = vmatpush1.msra.mxu0 0.0
      %3474 = vmatprep.subr.mxu0 0.0
      %3475 = vmatpush1.msra.mxu0 0.0
      %3476 = vmatprep.subr.mxu0 0.0
      %3477 = vmatpush1.msra.mxu0 0.0
      %3478 = vmatprep.subr.mxu0 0.0
      %3479 = vmatpush1.msra.mxu0 0.0
      %3480 = vmatprep.subr.mxu0 0.0
      %3481 = vmatpush1.msra.mxu0 0.0
      %3482 = vmatprep.subr.mxu0 0.0
      %3483 = vmatpush1.msra.mxu0 0.0
      %3484 = vmatprep.subr.mxu0 0.0
      %3485 = vmatpush1.msra.mxu0 0.0
      %3486 = vmatprep.subr.mxu0 0.0
      %3487 = vmatpush1.msra.mxu0 0.0
      %3488 = vmatprep.subr.mxu0 0.0
      %3489 = vmatpush1.msra.mxu0 0.0
      %3490 = vmatprep.subr.mxu0 0.0
      %3491 = vmatpush1.msra.mxu0 0.0
      %3492 = vmatprep.mubr.f32.mxu0 0.0
      %v3493 = vand.u32 %v356, 4294901760
      %v3494 = vsub.f32 %v356, %v3493
      %v3495 = vand.u32 %v3494, 4294901760
      %3496 = vmatmul.mubr.f32.gmra.mrb[0].mxu0 %v3495
      %v3497 = vpop.f32.mrb[0].mxu0
      %v3498 = vadd.f32 %v3416, %v3497
      %v3499 = vpop.f32.mrb[0].mxu0
      %3500 = vmatprep.mubr.f32.mxu0 0.0
      %v3501 = vand.u32 %v359, 4294901760
      %v3502 = vsub.f32 %v359, %v3501
      %v3503 = vand.u32 %v3502, 4294901760
      %3504 = vmatmul.mubr.f32.gmra.mrb[0].mxu0 %v3503
      %v3505 = vpop.f32.mrb[0].mxu0
      %v3506 = vadd.f32 %v3423, %v3505
      %v3507 = vpop.f32.mrb[0].mxu0
      %3508 = vdwg.mxu0
      %3509 = vmatprep.subr.mxu0 0.0
      %v3510 = vand.u32 %v3167, 4294901760
      %v3511 = vsub.f32 %v3167, %v3510
      %v3512 = vand.u32 %v3511, 4294901760
      %3513 = vmatpush1.msra.mxu0 %v3512
      %3514 = vmatprep.subr.mxu0 0.0
      %v3515 = vand.u32 %v3168, 4294901760
      %v3516 = vsub.f32 %v3168, %v3515
      %v3517 = vand.u32 %v3516, 4294901760
      %3518 = vmatpush1.msra.mxu0 %v3517
      %3519 = vmatprep.subr.mxu0 0.0
      %3520 = vmatpush1.msra.mxu0 0.0
      %3521 = vmatprep.subr.mxu0 0.0
      %3522 = vmatpush1.msra.mxu0 0.0
      %3523 = vmatprep.subr.mxu0 0.0
      %3524 = vmatpush1.msra.mxu0 0.0
      %3525 = vmatprep.subr.mxu0 0.0
      %3526 = vmatpush1.msra.mxu0 0.0
      %3527 = vmatprep.subr.mxu0 0.0
      %3528 = vmatpush1.msra.mxu0 0.0
      %3529 = vmatprep.subr.mxu0 0.0
      %3530 = vmatpush1.msra.mxu0 0.0
      %3531 = vmatprep.subr.mxu0 0.0
      %3532 = vmatpush1.msra.mxu0 0.0
      %3533 = vmatprep.subr.mxu0 0.0
      %3534 = vmatpush1.msra.mxu0 0.0
      %3535 = vmatprep.subr.mxu0 0.0
      %3536 = vmatpush1.msra.mxu0 0.0
      %3537 = vmatprep.subr.mxu0 0.0
      %3538 = vmatpush1.msra.mxu0 0.0
      %3539 = vmatprep.subr.mxu0 0.0
      %3540 = vmatpush1.msra.mxu0 0.0
      %3541 = vmatprep.subr.mxu0 0.0
      %3542 = vmatpush1.msra.mxu0 0.0
      %3543 = vmatprep.subr.mxu0 0.0
      %3544 = vmatpush1.msra.mxu0 0.0
      %3545 = vmatprep.subr.mxu0 0.0
      %3546 = vmatpush1.msra.mxu0 0.0
      %3547 = vmatprep.subr.mxu0 0.0
      %3548 = vmatpush1.msra.mxu0 0.0
      %3549 = vmatprep.subr.mxu0 0.0
      %3550 = vmatpush1.msra.mxu0 0.0
      %3551 = vmatprep.subr.mxu0 0.0
      %3552 = vmatpush1.msra.mxu0 0.0
      %3553 = vmatprep.subr.mxu0 0.0
      %3554 = vmatpush1.msra.mxu0 0.0
      %3555 = vmatprep.subr.mxu0 0.0
      %3556 = vmatpush1.msra.mxu0 0.0
      %3557 = vmatprep.subr.mxu0 0.0
      %3558 = vmatpush1.msra.mxu0 0.0
      %3559 = vmatprep.subr.mxu0 0.0
      %3560 = vmatpush1.msra.mxu0 0.0
      %3561 = vmatprep.subr.mxu0 0.0
      %3562 = vmatpush1.msra.mxu0 0.0
      %3563 = vmatprep.subr.mxu0 0.0
      %3564 = vmatpush1.msra.mxu0 0.0
      %3565 = vmatprep.subr.mxu0 0.0
      %3566 = vmatpush1.msra.mxu0 0.0
      %3567 = vmatprep.subr.mxu0 0.0
      %3568 = vmatpush1.msra.mxu0 0.0
      %3569 = vmatprep.subr.mxu0 0.0
      %3570 = vmatpush1.msra.mxu0 0.0
      %3571 = vmatprep.subr.mxu0 0.0
      %3572 = vmatpush1.msra.mxu0 0.0
      %3573 = vmatprep.subr.mxu0 0.0
      %3574 = vmatpush1.msra.mxu0 0.0
      %3575 = vmatprep.subr.mxu0 0.0
      %3576 = vmatpush1.msra.mxu0 0.0
      %3577 = vmatprep.subr.mxu0 0.0
      %3578 = vmatpush1.msra.mxu0 0.0
      %3579 = vmatprep.mubr.f32.mxu0 0.0
      %v3580 = vand.u32 %v356, 4294901760
      %3581 = vmatmul.mubr.f32.gmra.mrb[0].mxu0 %v3580
      %v3582 = vpop.f32.mrb[0].mxu0
      %v3583 = vadd.f32 %v3498, %v3582
      %v3584 = vpop.f32.mrb[0].mxu0
      %3585 = vmatprep.mubr.f32.mxu0 0.0
      %v3586 = vand.u32 %v359, 4294901760
      %3587 = vmatmul.mubr.f32.gmra.mrb[0].mxu0 %v3586
      %v3588 = vpop.f32.mrb[0].mxu0
      %v3589 = vadd.f32 %v3506, %v3588
      %v3590 = vpop.f32.mrb[0].mxu0
      %3591 = vdwg.mxu0
      %3592 = vmatprep.subr.mxu0 0.0
      %v3593 = vand.u32 %v3167, 4294901760
      %3594 = vmatpush1.msra.mxu0 %v3593
      %3595 = vmatprep.subr.mxu0 0.0
      %v3596 = vand.u32 %v3168, 4294901760
      %3597 = vmatpush1.msra.mxu0 %v3596
      %3598 = vmatprep.subr.mxu0 0.0
      %3599 = vmatpush1.msra.mxu0 0.0
      %3600 = vmatprep.subr.mxu0 0.0
      %3601 = vmatpush1.msra.mxu0 0.0
      %3602 = vmatprep.subr.mxu0 0.0
      %3603 = vmatpush1.msra.mxu0 0.0
      %3604 = vmatprep.subr.mxu0 0.0
      %3605 = vmatpush1.msra.mxu0 0.0
      %3606 = vmatprep.subr.mxu0 0.0
      %3607 = vmatpush1.msra.mxu0 0.0
      %3608 = vmatprep.subr.mxu0 0.0
      %3609 = vmatpush1.msra.mxu0 0.0
      %3610 = vmatprep.subr.mxu0 0.0
      %3611 = vmatpush1.msra.mxu0 0.0
      %3612 = vmatprep.subr.mxu0 0.0
      %3613 = vmatpush1.msra.mxu0 0.0
      %3614 = vmatprep.subr.mxu0 0.0
      %3615 = vmatpush1.msra.mxu0 0.0
      %3616 = vmatprep.subr.mxu0 0.0
      %3617 = vmatpush1.msra.mxu0 0.0
      %3618 = vmatprep.subr.mxu0 0.0
      %3619 = vmatpush1.msra.mxu0 0.0
      %3620 = vmatprep.subr.mxu0 0.0
      %3621 = vmatpush1.msra.mxu0 0.0
      %3622 = vmatprep.subr.mxu0 0.0
      %3623 = vmatpush1.msra.mxu0 0.0
      %3624 = vmatprep.subr.mxu0 0.0
      %3625 = vmatpush1.msra.mxu0 0.0
      %3626 = vmatprep.subr.mxu0 0.0
      %3627 = vmatpush1.msra.mxu0 0.0
      %3628 = vmatprep.subr.mxu0 0.0
      %3629 = vmatpush1.msra.mxu0 0.0
      %3630 = vmatprep.subr.mxu0 0.0
      %3631 = vmatpush1.msra.mxu0 0.0
      %3632 = vmatprep.subr.mxu0 0.0
      %3633 = vmatpush1.msra.mxu0 0.0
      %3634 = vmatprep.subr.mxu0 0.0
      %3635 = vmatpush1.msra.mxu0 0.0
      %3636 = vmatprep.subr.mxu0 0.0
      %3637 = vmatpush1.msra.mxu0 0.0
      %3638 = vmatprep.subr.mxu0 0.0
      %3639 = vmatpush1.msra.mxu0 0.0
      %3640 = vmatprep.subr.mxu0 0.0
      %3641 = vmatpush1.msra.mxu0 0.0
      %3642 = vmatprep.subr.mxu0 0.0
      %3643 = vmatpush1.msra.mxu0 0.0
      %3644 = vmatprep.subr.mxu0 0.0
      %3645 = vmatpush1.msra.mxu0 0.0
      %3646 = vmatprep.subr.mxu0 0.0
      %3647 = vmatpush1.msra.mxu0 0.0
      %3648 = vmatprep.subr.mxu0 0.0
      %3649 = vmatpush1.msra.mxu0 0.0
      %3650 = vmatprep.subr.mxu0 0.0
      %3651 = vmatpush1.msra.mxu0 0.0
      %3652 = vmatprep.subr.mxu0 0.0
      %3653 = vmatpush1.msra.mxu0 0.0
      %3654 = vmatprep.subr.mxu0 0.0
      %3655 = vmatpush1.msra.mxu0 0.0
      %3656 = vmatprep.subr.mxu0 0.0
      %3657 = vmatpush1.msra.mxu0 0.0
      %3658 = vmatprep.mubr.f32.mxu0 0.0
      %v3659 = vand.u32 %v356, 4294901760
      %3660 = vmatmul.mubr.f32.gmra.mrb[0].mxu0 %v3659
      %v3661 = vpop.f32.mrb[0].mxu0
      %v3662 = vadd.f32 %v3583, %v3661
      %v3663 = vpop.f32.mrb[0].mxu0
      %3664 = vmatprep.mubr.f32.mxu0 0.0
      %v3665 = vand.u32 %v359, 4294901760
      %3666 = vmatmul.mubr.f32.gmra.mrb[0].mxu0 %v3665
      %v3667 = vpop.f32.mrb[0].mxu0
      %v3668 = vadd.f32 %v3589, %v3667
      %v3669 = vpop.f32.mrb[0].mxu0
      %3670 = vdwg.mxu0
      %v3671 = vld [vmem:[%s3] sm:$0xff]
      %v3672 = vld [vmem:[%s3 + $0x8] sm:$0xff]
      %v3673 = vld [vmem:[%s3 + $0x10] sm:$0xff]
      %v3674 = vld [vmem:[%s3 + $0x18] sm:$0xff]
      %v3675 = vld [vmem:[%s3 + $0x20] sm:$0xff]
      %v3676 = vld [vmem:[%s3 + $0x28] sm:$0xff]
      %v3677 = vld [vmem:[%s3 + $0x30] sm:$0xff]
      %v3678 = vld [vmem:[%s3 + $0x38] sm:$0xff]
      %v3679 = vld [vmem:[%s3 + $0x40] sm:$0xff]
      %v3680 = vld [vmem:[%s3 + $0x48] sm:$0xff]
      %v3681 = vld [vmem:[%s3 + $0x50] sm:$0xff]
      %v3682 = vld [vmem:[%s3 + $0x58] sm:$0xff]
      %v3683 = vld [vmem:[%s3 + $0x60] sm:$0xff]
      %v3684 = vld [vmem:[%s3 + $0x68] sm:$0xff]
      %v3685 = vld [vmem:[%s3 + $0x70] sm:$0xff]
      %v3686 = vld [vmem:[%s3 + $0x78] sm:$0xff]
      %s3687 = scalar_lea.vmem %s3, 128
      %v3688 = vld [vmem:[%s3687] sm:$0xff]
      %v3689 = vld [vmem:[%s3687 + $0x8] sm:$0xff]
      %v3690 = vld [vmem:[%s3687 + $0x10] sm:$0xff]
      %v3691 = vld [vmem:[%s3687 + $0x18] sm:$0xff]
      %v3692 = vld [vmem:[%s3687 + $0x20] sm:$0xff]
      %v3693 = vld [vmem:[%s3687 + $0x28] sm:$0xff]
      %v3694 = vld [vmem:[%s3687 + $0x30] sm:$0xff]
      %v3695 = vld [vmem:[%s3687 + $0x38] sm:$0xff]
      %v3696 = vld [vmem:[%s3687 + $0x40] sm:$0xff]
      %v3697 = vld [vmem:[%s3687 + $0x48] sm:$0xff]
      %v3698 = vld [vmem:[%s3687 + $0x50] sm:$0xff]
      %v3699 = vld [vmem:[%s3687 + $0x58] sm:$0xff]
      %v3700 = vld [vmem:[%s3687 + $0x60] sm:$0xff]
      %v3701 = vld [vmem:[%s3687 + $0x68] sm:$0xff]
      %v3702 = vld [vmem:[%s3687 + $0x70] sm:$0xff]
      %v3703 = vld [vmem:[%s3687 + $0x78] sm:$0xff]
      %3704 = vmatprep.subr.mxu0 0.0
      %v3705 = vand.u32 %v3688, 4294901760
      %3706 = vmatpush1.msra.mxu0 %v3705
      %3707 = vmatprep.subr.mxu0 0.0
      %v3708 = vand.u32 %v3689, 4294901760
      %3709 = vmatpush1.msra.mxu0 %v3708
      %3710 = vmatprep.subr.mxu0 0.0
      %v3711 = vand.u32 %v3690, 4294901760
      %3712 = vmatpush1.msra.mxu0 %v3711
      %3713 = vmatprep.subr.mxu0 0.0
      %v3714 = vand.u32 %v3691, 4294901760
      %3715 = vmatpush1.msra.mxu0 %v3714
      %3716 = vmatprep.subr.mxu0 0.0
      %v3717 = vand.u32 %v3692, 4294901760
      %3718 = vmatpush1.msra.mxu0 %v3717
      %3719 = vmatprep.subr.mxu0 0.0
      %v3720 = vand.u32 %v3693, 4294901760
      %3721 = vmatpush1.msra.mxu0 %v3720
      %3722 = vmatprep.subr.mxu0 0.0
      %v3723 = vand.u32 %v3694, 4294901760
      %3724 = vmatpush1.msra.mxu0 %v3723
      %3725 = vmatprep.subr.mxu0 0.0
      %v3726 = vand.u32 %v3695, 4294901760
      %3727 = vmatpush1.msra.mxu0 %v3726
      %3728 = vmatprep.subr.mxu0 0.0
      %v3729 = vand.u32 %v3696, 4294901760
      %3730 = vmatpush1.msra.mxu0 %v3729
      %3731 = vmatprep.subr.mxu0 0.0
      %v3732 = vand.u32 %v3697, 4294901760
      %3733 = vmatpush1.msra.mxu0 %v3732
      %3734 = vmatprep.subr.mxu0 0.0
      %v3735 = vand.u32 %v3698, 4294901760
      %3736 = vmatpush1.msra.mxu0 %v3735
      %3737 = vmatprep.subr.mxu0 0.0
      %v3738 = vand.u32 %v3699, 4294901760
      %3739 = vmatpush1.msra.mxu0 %v3738
      %3740 = vmatprep.subr.mxu0 0.0
      %v3741 = vand.u32 %v3700, 4294901760
      %3742 = vmatpush1.msra.mxu0 %v3741
      %3743 = vmatprep.subr.mxu0 0.0
      %v3744 = vand.u32 %v3701, 4294901760
      %3745 = vmatpush1.msra.mxu0 %v3744
      %3746 = vmatprep.subr.mxu0 0.0
      %v3747 = vand.u32 %v3702, 4294901760
      %3748 = vmatpush1.msra.mxu0 %v3747
      %3749 = vmatprep.subr.mxu0 0.0
      %v3750 = vand.u32 %v3703, 4294901760
      %3751 = vmatpush1.msra.mxu0 %v3750
      %3752 = vmatprep.subr.mxu0 0.0
      %3753 = vmatpush1.msra.mxu0 0.0
      %3754 = vmatprep.subr.mxu0 0.0
      %3755 = vmatpush1.msra.mxu0 0.0
      %3756 = vmatprep.subr.mxu0 0.0
      %3757 = vmatpush1.msra.mxu0 0.0
      %3758 = vmatprep.subr.mxu0 0.0
      %3759 = vmatpush1.msra.mxu0 0.0
      %3760 = vmatprep.subr.mxu0 0.0
      %3761 = vmatpush1.msra.mxu0 0.0
      %3762 = vmatprep.subr.mxu0 0.0
      %3763 = vmatpush1.msra.mxu0 0.0
      %3764 = vmatprep.subr.mxu0 0.0
      %3765 = vmatpush1.msra.mxu0 0.0
      %3766 = vmatprep.subr.mxu0 0.0
      %3767 = vmatpush1.msra.mxu0 0.0
      %3768 = vmatprep.subr.mxu0 0.0
      %3769 = vmatpush1.msra.mxu0 0.0
      %3770 = vmatprep.subr.mxu0 0.0
      %3771 = vmatpush1.msra.mxu0 0.0
      %3772 = vmatprep.subr.mxu0 0.0
      %3773 = vmatpush1.msra.mxu0 0.0
      %3774 = vmatprep.subr.mxu0 0.0
      %3775 = vmatpush1.msra.mxu0 0.0
      %3776 = vmatprep.subr.mxu0 0.0
      %3777 = vmatpush1.msra.mxu0 0.0
      %3778 = vmatprep.subr.mxu0 0.0
      %3779 = vmatpush1.msra.mxu0 0.0
      %3780 = vmatprep.subr.mxu0 0.0
      %3781 = vmatpush1.msra.mxu0 0.0
      %3782 = vmatprep.subr.mxu0 0.0
      %3783 = vmatpush1.msra.mxu0 0.0
      %3784 = vmatprep.mubr.f32.mxu0 0.0
      %v3785 = vand.u32 %v3167, 4294901760
      %v3786 = vsub.f32 %v3167, %v3785
      %v3787 = vand.u32 %v3786, 4294901760
      %v3788 = vsub.f32 %v3786, %v3787
      %v3789 = vand.u32 %v3788, 4294901760
      %3790 = vmatmul.mubr.f32.gmra.mrb[0].mxu0 %v3789
      %v3791 = vpop.f32.mrb[0].mxu0
      %v3792 = vadd.f32 0.0, %v3791
      %v3793 = vpop.f32.mrb[0].mxu0
      %3794 = vmatprep.mubr.f32.mxu0 0.0
      %v3795 = vand.u32 %v3168, 4294901760
      %v3796 = vsub.f32 %v3168, %v3795
      %v3797 = vand.u32 %v3796, 4294901760
      %v3798 = vsub.f32 %v3796, %v3797
      %v3799 = vand.u32 %v3798, 4294901760
      %3800 = vmatmul.mubr.f32.gmra.mrb[0].mxu0 %v3799
      %v3801 = vpop.f32.mrb[0].mxu0
      %v3802 = vadd.f32 0.0, %v3801
      %v3803 = vpop.f32.mrb[0].mxu0
      %3804 = vdwg.mxu0
      %3805 = vmatprep.subr.mxu0 0.0
      %v3806 = vand.u32 %v3688, 4294901760
      %v3807 = vsub.f32 %v3688, %v3806
      %v3808 = vand.u32 %v3807, 4294901760
      %v3809 = vsub.f32 %v3807, %v3808
      %v3810 = vand.u32 %v3809, 4294901760
      %3811 = vmatpush1.msra.mxu0 %v3810
      %3812 = vmatprep.subr.mxu0 0.0
      %v3813 = vand.u32 %v3689, 4294901760
      %v3814 = vsub.f32 %v3689, %v3813
      %v3815 = vand.u32 %v3814, 4294901760
      %v3816 = vsub.f32 %v3814, %v3815
      %v3817 = vand.u32 %v3816, 4294901760
      %3818 = vmatpush1.msra.mxu0 %v3817
      %3819 = vmatprep.subr.mxu0 0.0
      %v3820 = vand.u32 %v3690, 4294901760
      %v3821 = vsub.f32 %v3690, %v3820
      %v3822 = vand.u32 %v3821, 4294901760
      %v3823 = vsub.f32 %v3821, %v3822
      %v3824 = vand.u32 %v3823, 4294901760
      %3825 = vmatpush1.msra.mxu0 %v3824
      %3826 = vmatprep.subr.mxu0 0.0
      %v3827 = vand.u32 %v3691, 4294901760
      %v3828 = vsub.f32 %v3691, %v3827
      %v3829 = vand.u32 %v3828, 4294901760
      %v3830 = vsub.f32 %v3828, %v3829
      %v3831 = vand.u32 %v3830, 4294901760
      %3832 = vmatpush1.msra.mxu0 %v3831
      %3833 = vmatprep.subr.mxu0 0.0
      %v3834 = vand.u32 %v3692, 4294901760
      %v3835 = vsub.f32 %v3692, %v3834
      %v3836 = vand.u32 %v3835, 4294901760
      %v3837 = vsub.f32 %v3835, %v3836
      %v3838 = vand.u32 %v3837, 4294901760
      %3839 = vmatpush1.msra.mxu0 %v3838
      %3840 = vmatprep.subr.mxu0 0.0
      %v3841 = vand.u32 %v3693, 4294901760
      %v3842 = vsub.f32 %v3693, %v3841
      %v3843 = vand.u32 %v3842, 4294901760
      %v3844 = vsub.f32 %v3842, %v3843
      %v3845 = vand.u32 %v3844, 4294901760
      %3846 = vmatpush1.msra.mxu0 %v3845
      %3847 = vmatprep.subr.mxu0 0.0
      %v3848 = vand.u32 %v3694, 4294901760
      %v3849 = vsub.f32 %v3694, %v3848
      %v3850 = vand.u32 %v3849, 4294901760
      %v3851 = vsub.f32 %v3849, %v3850
      %v3852 = vand.u32 %v3851, 4294901760
      %3853 = vmatpush1.msra.mxu0 %v3852
      %3854 = vmatprep.subr.mxu0 0.0
      %v3855 = vand.u32 %v3695, 4294901760
      %v3856 = vsub.f32 %v3695, %v3855
      %v3857 = vand.u32 %v3856, 4294901760
      %v3858 = vsub.f32 %v3856, %v3857
      %v3859 = vand.u32 %v3858, 4294901760
      %3860 = vmatpush1.msra.mxu0 %v3859
      %3861 = vmatprep.subr.mxu0 0.0
      %v3862 = vand.u32 %v3696, 4294901760
      %v3863 = vsub.f32 %v3696, %v3862
      %v3864 = vand.u32 %v3863, 4294901760
      %v3865 = vsub.f32 %v3863, %v3864
      %v3866 = vand.u32 %v3865, 4294901760
      %3867 = vmatpush1.msra.mxu0 %v3866
      %3868 = vmatprep.subr.mxu0 0.0
      %v3869 = vand.u32 %v3697, 4294901760
      %v3870 = vsub.f32 %v3697, %v3869
      %v3871 = vand.u32 %v3870, 4294901760
      %v3872 = vsub.f32 %v3870, %v3871
      %v3873 = vand.u32 %v3872, 4294901760
      %3874 = vmatpush1.msra.mxu0 %v3873
      %3875 = vmatprep.subr.mxu0 0.0
      %v3876 = vand.u32 %v3698, 4294901760
      %v3877 = vsub.f32 %v3698, %v3876
      %v3878 = vand.u32 %v3877, 4294901760
      %v3879 = vsub.f32 %v3877, %v3878
      %v3880 = vand.u32 %v3879, 4294901760
      %3881 = vmatpush1.msra.mxu0 %v3880
      %3882 = vmatprep.subr.mxu0 0.0
      %v3883 = vand.u32 %v3699, 4294901760
      %v3884 = vsub.f32 %v3699, %v3883
      %v3885 = vand.u32 %v3884, 4294901760
      %v3886 = vsub.f32 %v3884, %v3885
      %v3887 = vand.u32 %v3886, 4294901760
      %3888 = vmatpush1.msra.mxu0 %v3887
      %3889 = vmatprep.subr.mxu0 0.0
      %v3890 = vand.u32 %v3700, 4294901760
      %v3891 = vsub.f32 %v3700, %v3890
      %v3892 = vand.u32 %v3891, 4294901760
      %v3893 = vsub.f32 %v3891, %v3892
      %v3894 = vand.u32 %v3893, 4294901760
      %3895 = vmatpush1.msra.mxu0 %v3894
      %3896 = vmatprep.subr.mxu0 0.0
      %v3897 = vand.u32 %v3701, 4294901760
      %v3898 = vsub.f32 %v3701, %v3897
      %v3899 = vand.u32 %v3898, 4294901760
      %v3900 = vsub.f32 %v3898, %v3899
      %v3901 = vand.u32 %v3900, 4294901760
      %3902 = vmatpush1.msra.mxu0 %v3901
      %3903 = vmatprep.subr.mxu0 0.0
      %v3904 = vand.u32 %v3702, 4294901760
      %v3905 = vsub.f32 %v3702, %v3904
      %v3906 = vand.u32 %v3905, 4294901760
      %v3907 = vsub.f32 %v3905, %v3906
      %v3908 = vand.u32 %v3907, 4294901760
      %3909 = vmatpush1.msra.mxu0 %v3908
      %3910 = vmatprep.subr.mxu0 0.0
      %v3911 = vand.u32 %v3703, 4294901760
      %v3912 = vsub.f32 %v3703, %v3911
      %v3913 = vand.u32 %v3912, 4294901760
      %v3914 = vsub.f32 %v3912, %v3913
      %v3915 = vand.u32 %v3914, 4294901760
      %3916 = vmatpush1.msra.mxu0 %v3915
      %3917 = vmatprep.subr.mxu0 0.0
      %3918 = vmatpush1.msra.mxu0 0.0
      %3919 = vmatprep.subr.mxu0 0.0
      %3920 = vmatpush1.msra.mxu0 0.0
      %3921 = vmatprep.subr.mxu0 0.0
      %3922 = vmatpush1.msra.mxu0 0.0
      %3923 = vmatprep.subr.mxu0 0.0
      %3924 = vmatpush1.msra.mxu0 0.0
      %3925 = vmatprep.subr.mxu0 0.0
      %3926 = vmatpush1.msra.mxu0 0.0
      %3927 = vmatprep.subr.mxu0 0.0
      %3928 = vmatpush1.msra.mxu0 0.0
      %3929 = vmatprep.subr.mxu0 0.0
      %3930 = vmatpush1.msra.mxu0 0.0
      %3931 = vmatprep.subr.mxu0 0.0
      %3932 = vmatpush1.msra.mxu0 0.0
      %3933 = vmatprep.subr.mxu0 0.0
      %3934 = vmatpush1.msra.mxu0 0.0
      %3935 = vmatprep.subr.mxu0 0.0
      %3936 = vmatpush1.msra.mxu0 0.0
      %3937 = vmatprep.subr.mxu0 0.0
      %3938 = vmatpush1.msra.mxu0 0.0
      %3939 = vmatprep.subr.mxu0 0.0
      %3940 = vmatpush1.msra.mxu0 0.0
      %3941 = vmatprep.subr.mxu0 0.0
      %3942 = vmatpush1.msra.mxu0 0.0
      %3943 = vmatprep.subr.mxu0 0.0
      %3944 = vmatpush1.msra.mxu0 0.0
      %3945 = vmatprep.subr.mxu0 0.0
      %3946 = vmatpush1.msra.mxu0 0.0
      %3947 = vmatprep.subr.mxu0 0.0
      %3948 = vmatpush1.msra.mxu0 0.0
      %3949 = vmatprep.mubr.f32.mxu0 0.0
      %v3950 = vand.u32 %v3167, 4294901760
      %3951 = vmatmul.mubr.f32.gmra.mrb[0].mxu0 %v3950
      %v3952 = vpop.f32.mrb[0].mxu0
      %v3953 = vadd.f32 %v3792, %v3952
      %v3954 = vpop.f32.mrb[0].mxu0
      %3955 = vmatprep.mubr.f32.mxu0 0.0
      %v3956 = vand.u32 %v3168, 4294901760
      %3957 = vmatmul.mubr.f32.gmra.mrb[0].mxu0 %v3956
      %v3958 = vpop.f32.mrb[0].mxu0
      %v3959 = vadd.f32 %v3802, %v3958
      %v3960 = vpop.f32.mrb[0].mxu0
      %3961 = vdwg.mxu0
      %3962 = vmatprep.subr.mxu0 0.0
      %v3963 = vand.u32 %v3688, 4294901760
      %v3964 = vsub.f32 %v3688, %v3963
      %3965 = vmatpush1.msra.mxu0 %v3964
      %3966 = vmatprep.subr.mxu0 0.0
      %v3967 = vand.u32 %v3689, 4294901760
      %v3968 = vsub.f32 %v3689, %v3967
      %3969 = vmatpush1.msra.mxu0 %v3968
      %3970 = vmatprep.subr.mxu0 0.0
      %v3971 = vand.u32 %v3690, 4294901760
      %v3972 = vsub.f32 %v3690, %v3971
      %3973 = vmatpush1.msra.mxu0 %v3972
      %3974 = vmatprep.subr.mxu0 0.0
      %v3975 = vand.u32 %v3691, 4294901760
      %v3976 = vsub.f32 %v3691, %v3975
      %3977 = vmatpush1.msra.mxu0 %v3976
      %3978 = vmatprep.subr.mxu0 0.0
      %v3979 = vand.u32 %v3692, 4294901760
      %v3980 = vsub.f32 %v3692, %v3979
      %3981 = vmatpush1.msra.mxu0 %v3980
      %3982 = vmatprep.subr.mxu0 0.0
      %v3983 = vand.u32 %v3693, 4294901760
      %v3984 = vsub.f32 %v3693, %v3983
      %3985 = vmatpush1.msra.mxu0 %v3984
      %3986 = vmatprep.subr.mxu0 0.0
      %v3987 = vand.u32 %v3694, 4294901760
      %v3988 = vsub.f32 %v3694, %v3987
      %3989 = vmatpush1.msra.mxu0 %v3988
      %3990 = vmatprep.subr.mxu0 0.0
      %v3991 = vand.u32 %v3695, 4294901760
      %v3992 = vsub.f32 %v3695, %v3991
      %3993 = vmatpush1.msra.mxu0 %v3992
      %3994 = vmatprep.subr.mxu0 0.0
      %v3995 = vand.u32 %v3696, 4294901760
      %v3996 = vsub.f32 %v3696, %v3995
      %3997 = vmatpush1.msra.mxu0 %v3996
      %3998 = vmatprep.subr.mxu0 0.0
      %v3999 = vand.u32 %v3697, 4294901760
      %v4000 = vsub.f32 %v3697, %v3999
      %4001 = vmatpush1.msra.mxu0 %v4000
      %4002 = vmatprep.subr.mxu0 0.0
      %v4003 = vand.u32 %v3698, 4294901760
      %v4004 = vsub.f32 %v3698, %v4003
      %4005 = vmatpush1.msra.mxu0 %v4004
      %4006 = vmatprep.subr.mxu0 0.0
      %v4007 = vand.u32 %v3699, 4294901760
      %v4008 = vsub.f32 %v3699, %v4007
      %4009 = vmatpush1.msra.mxu0 %v4008
      %4010 = vmatprep.subr.mxu0 0.0
      %v4011 = vand.u32 %v3700, 4294901760
      %v4012 = vsub.f32 %v3700, %v4011
      %4013 = vmatpush1.msra.mxu0 %v4012
      %4014 = vmatprep.subr.mxu0 0.0
      %v4015 = vand.u32 %v3701, 4294901760
      %v4016 = vsub.f32 %v3701, %v4015
      %4017 = vmatpush1.msra.mxu0 %v4016
      %4018 = vmatprep.subr.mxu0 0.0
      %v4019 = vand.u32 %v3702, 4294901760
      %v4020 = vsub.f32 %v3702, %v4019
      %4021 = vmatpush1.msra.mxu0 %v4020
      %4022 = vmatprep.subr.mxu0 0.0
      %v4023 = vand.u32 %v3703, 4294901760
      %v4024 = vsub.f32 %v3703, %v4023
      %4025 = vmatpush1.msra.mxu0 %v4024
      %4026 = vmatprep.subr.mxu0 0.0
      %4027 = vmatpush1.msra.mxu0 0.0
      %4028 = vmatprep.subr.mxu0 0.0
      %4029 = vmatpush1.msra.mxu0 0.0
      %4030 = vmatprep.subr.mxu0 0.0
      %4031 = vmatpush1.msra.mxu0 0.0
      %4032 = vmatprep.subr.mxu0 0.0
      %4033 = vmatpush1.msra.mxu0 0.0
      %4034 = vmatprep.subr.mxu0 0.0
      %4035 = vmatpush1.msra.mxu0 0.0
      %4036 = vmatprep.subr.mxu0 0.0
      %4037 = vmatpush1.msra.mxu0 0.0
      %4038 = vmatprep.subr.mxu0 0.0
      %4039 = vmatpush1.msra.mxu0 0.0
      %4040 = vmatprep.subr.mxu0 0.0
      %4041 = vmatpush1.msra.mxu0 0.0
      %4042 = vmatprep.subr.mxu0 0.0
      %4043 = vmatpush1.msra.mxu0 0.0
      %4044 = vmatprep.subr.mxu0 0.0
      %4045 = vmatpush1.msra.mxu0 0.0
      %4046 = vmatprep.subr.mxu0 0.0
      %4047 = vmatpush1.msra.mxu0 0.0
      %4048 = vmatprep.subr.mxu0 0.0
      %4049 = vmatpush1.msra.mxu0 0.0
      %4050 = vmatprep.subr.mxu0 0.0
      %4051 = vmatpush1.msra.mxu0 0.0
      %4052 = vmatprep.subr.mxu0 0.0
      %4053 = vmatpush1.msra.mxu0 0.0
      %4054 = vmatprep.subr.mxu0 0.0
      %4055 = vmatpush1.msra.mxu0 0.0
      %4056 = vmatprep.subr.mxu0 0.0
      %4057 = vmatpush1.msra.mxu0 0.0
      %4058 = vmatprep.mubr.f32.mxu0 0.0
      %v4059 = vand.u32 %v3167, 4294901760
      %v4060 = vsub.f32 %v3167, %v4059
      %4061 = vmatmul.mubr.f32.gmra.mrb[0].mxu0 %v4060
      %v4062 = vpop.f32.mrb[0].mxu0
      %v4063 = vadd.f32 %v3953, %v4062
      %v4064 = vpop.f32.mrb[0].mxu0
      %4065 = vmatprep.mubr.f32.mxu0 0.0
      %v4066 = vand.u32 %v3168, 4294901760
      %v4067 = vsub.f32 %v3168, %v4066
      %4068 = vmatmul.mubr.f32.gmra.mrb[0].mxu0 %v4067
      %v4069 = vpop.f32.mrb[0].mxu0
      %v4070 = vadd.f32 %v3959, %v4069
      %v4071 = vpop.f32.mrb[0].mxu0
      %4072 = vdwg.mxu0
      %4073 = vmatprep.subr.mxu0 0.0
      %v4074 = vand.u32 %v3688, 4294901760
      %4075 = vmatpush1.msra.mxu0 %v4074
      %4076 = vmatprep.subr.mxu0 0.0
      %v4077 = vand.u32 %v3689, 4294901760
      %4078 = vmatpush1.msra.mxu0 %v4077
      %4079 = vmatprep.subr.mxu0 0.0
      %v4080 = vand.u32 %v3690, 4294901760
      %4081 = vmatpush1.msra.mxu0 %v4080
      %4082 = vmatprep.subr.mxu0 0.0
      %v4083 = vand.u32 %v3691, 4294901760
      %4084 = vmatpush1.msra.mxu0 %v4083
      %4085 = vmatprep.subr.mxu0 0.0
      %v4086 = vand.u32 %v3692, 4294901760
      %4087 = vmatpush1.msra.mxu0 %v4086
      %4088 = vmatprep.subr.mxu0 0.0
      %v4089 = vand.u32 %v3693, 4294901760
      %4090 = vmatpush1.msra.mxu0 %v4089
      %4091 = vmatprep.subr.mxu0 0.0
      %v4092 = vand.u32 %v3694, 4294901760
      %4093 = vmatpush1.msra.mxu0 %v4092
      %4094 = vmatprep.subr.mxu0 0.0
      %v4095 = vand.u32 %v3695, 4294901760
      %4096 = vmatpush1.msra.mxu0 %v4095
      %4097 = vmatprep.subr.mxu0 0.0
      %v4098 = vand.u32 %v3696, 4294901760
      %4099 = vmatpush1.msra.mxu0 %v4098
      %4100 = vmatprep.subr.mxu0 0.0
      %v4101 = vand.u32 %v3697, 4294901760
      %4102 = vmatpush1.msra.mxu0 %v4101
      %4103 = vmatprep.subr.mxu0 0.0
      %v4104 = vand.u32 %v3698, 4294901760
      %4105 = vmatpush1.msra.mxu0 %v4104
      %4106 = vmatprep.subr.mxu0 0.0
      %v4107 = vand.u32 %v3699, 4294901760
      %4108 = vmatpush1.msra.mxu0 %v4107
      %4109 = vmatprep.subr.mxu0 0.0
      %v4110 = vand.u32 %v3700, 4294901760
      %4111 = vmatpush1.msra.mxu0 %v4110
      %4112 = vmatprep.subr.mxu0 0.0
      %v4113 = vand.u32 %v3701, 4294901760
      %4114 = vmatpush1.msra.mxu0 %v4113
      %4115 = vmatprep.subr.mxu0 0.0
      %v4116 = vand.u32 %v3702, 4294901760
      %4117 = vmatpush1.msra.mxu0 %v4116
      %4118 = vmatprep.subr.mxu0 0.0
      %v4119 = vand.u32 %v3703, 4294901760
      %4120 = vmatpush1.msra.mxu0 %v4119
      %4121 = vmatprep.subr.mxu0 0.0
      %4122 = vmatpush1.msra.mxu0 0.0
      %4123 = vmatprep.subr.mxu0 0.0
      %4124 = vmatpush1.msra.mxu0 0.0
      %4125 = vmatprep.subr.mxu0 0.0
      %4126 = vmatpush1.msra.mxu0 0.0
      %4127 = vmatprep.subr.mxu0 0.0
      %4128 = vmatpush1.msra.mxu0 0.0
      %4129 = vmatprep.subr.mxu0 0.0
      %4130 = vmatpush1.msra.mxu0 0.0
      %4131 = vmatprep.subr.mxu0 0.0
      %4132 = vmatpush1.msra.mxu0 0.0
      %4133 = vmatprep.subr.mxu0 0.0
      %4134 = vmatpush1.msra.mxu0 0.0
      %4135 = vmatprep.subr.mxu0 0.0
      %4136 = vmatpush1.msra.mxu0 0.0
      %4137 = vmatprep.subr.mxu0 0.0
      %4138 = vmatpush1.msra.mxu0 0.0
      %4139 = vmatprep.subr.mxu0 0.0
      %4140 = vmatpush1.msra.mxu0 0.0
      %4141 = vmatprep.subr.mxu0 0.0
      %4142 = vmatpush1.msra.mxu0 0.0
      %4143 = vmatprep.subr.mxu0 0.0
      %4144 = vmatpush1.msra.mxu0 0.0
      %4145 = vmatprep.subr.mxu0 0.0
      %4146 = vmatpush1.msra.mxu0 0.0
      %4147 = vmatprep.subr.mxu0 0.0
      %4148 = vmatpush1.msra.mxu0 0.0
      %4149 = vmatprep.subr.mxu0 0.0
      %4150 = vmatpush1.msra.mxu0 0.0
      %4151 = vmatprep.subr.mxu0 0.0
      %4152 = vmatpush1.msra.mxu0 0.0
      %4153 = vmatprep.mubr.f32.mxu0 0.0
      %v4154 = vand.u32 %v3167, 4294901760
      %v4155 = vsub.f32 %v3167, %v4154
      %v4156 = vand.u32 %v4155, 4294901760
      %4157 = vmatmul.mubr.f32.gmra.mrb[0].mxu0 %v4156
      %v4158 = vpop.f32.mrb[0].mxu0
      %v4159 = vadd.f32 %v4063, %v4158
      %v4160 = vpop.f32.mrb[0].mxu0
      %4161 = vmatprep.mubr.f32.mxu0 0.0
      %v4162 = vand.u32 %v3168, 4294901760
      %v4163 = vsub.f32 %v3168, %v4162
      %v4164 = vand.u32 %v4163, 4294901760
      %4165 = vmatmul.mubr.f32.gmra.mrb[0].mxu0 %v4164
      %v4166 = vpop.f32.mrb[0].mxu0
      %v4167 = vadd.f32 %v4070, %v4166
      %v4168 = vpop.f32.mrb[0].mxu0
      %4169 = vdwg.mxu0
      %4170 = vmatprep.subr.mxu0 0.0
      %v4171 = vand.u32 %v3688, 4294901760
      %v4172 = vsub.f32 %v3688, %v4171
      %v4173 = vand.u32 %v4172, 4294901760
      %4174 = vmatpush1.msra.mxu0 %v4173
      %4175 = vmatprep.subr.mxu0 0.0
      %v4176 = vand.u32 %v3689, 4294901760
      %v4177 = vsub.f32 %v3689, %v4176
      %v4178 = vand.u32 %v4177, 4294901760
      %4179 = vmatpush1.msra.mxu0 %v4178
      %4180 = vmatprep.subr.mxu0 0.0
      %v4181 = vand.u32 %v3690, 4294901760
      %v4182 = vsub.f32 %v3690, %v4181
      %v4183 = vand.u32 %v4182, 4294901760
      %4184 = vmatpush1.msra.mxu0 %v4183
      %4185 = vmatprep.subr.mxu0 0.0
      %v4186 = vand.u32 %v3691, 4294901760
      %v4187 = vsub.f32 %v3691, %v4186
      %v4188 = vand.u32 %v4187, 4294901760
      %4189 = vmatpush1.msra.mxu0 %v4188
      %4190 = vmatprep.subr.mxu0 0.0
      %v4191 = vand.u32 %v3692, 4294901760
      %v4192 = vsub.f32 %v3692, %v4191
      %v4193 = vand.u32 %v4192, 4294901760
      %4194 = vmatpush1.msra.mxu0 %v4193
      %4195 = vmatprep.subr.mxu0 0.0
      %v4196 = vand.u32 %v3693, 4294901760
      %v4197 = vsub.f32 %v3693, %v4196
      %v4198 = vand.u32 %v4197, 4294901760
      %4199 = vmatpush1.msra.mxu0 %v4198
      %4200 = vmatprep.subr.mxu0 0.0
      %v4201 = vand.u32 %v3694, 4294901760
      %v4202 = vsub.f32 %v3694, %v4201
      %v4203 = vand.u32 %v4202, 4294901760
      %4204 = vmatpush1.msra.mxu0 %v4203
      %4205 = vmatprep.subr.mxu0 0.0
      %v4206 = vand.u32 %v3695, 4294901760
      %v4207 = vsub.f32 %v3695, %v4206
      %v4208 = vand.u32 %v4207, 4294901760
      %4209 = vmatpush1.msra.mxu0 %v4208
      %4210 = vmatprep.subr.mxu0 0.0
      %v4211 = vand.u32 %v3696, 4294901760
      %v4212 = vsub.f32 %v3696, %v4211
      %v4213 = vand.u32 %v4212, 4294901760
      %4214 = vmatpush1.msra.mxu0 %v4213
      %4215 = vmatprep.subr.mxu0 0.0
      %v4216 = vand.u32 %v3697, 4294901760
      %v4217 = vsub.f32 %v3697, %v4216
      %v4218 = vand.u32 %v4217, 4294901760
      %4219 = vmatpush1.msra.mxu0 %v4218
      %4220 = vmatprep.subr.mxu0 0.0
      %v4221 = vand.u32 %v3698, 4294901760
      %v4222 = vsub.f32 %v3698, %v4221
      %v4223 = vand.u32 %v4222, 4294901760
      %4224 = vmatpush1.msra.mxu0 %v4223
      %4225 = vmatprep.subr.mxu0 0.0
      %v4226 = vand.u32 %v3699, 4294901760
      %v4227 = vsub.f32 %v3699, %v4226
      %v4228 = vand.u32 %v4227, 4294901760
      %4229 = vmatpush1.msra.mxu0 %v4228
      %4230 = vmatprep.subr.mxu0 0.0
      %v4231 = vand.u32 %v3700, 4294901760
      %v4232 = vsub.f32 %v3700, %v4231
      %v4233 = vand.u32 %v4232, 4294901760
      %4234 = vmatpush1.msra.mxu0 %v4233
      %4235 = vmatprep.subr.mxu0 0.0
      %v4236 = vand.u32 %v3701, 4294901760
      %v4237 = vsub.f32 %v3701, %v4236
      %v4238 = vand.u32 %v4237, 4294901760
      %4239 = vmatpush1.msra.mxu0 %v4238
      %4240 = vmatprep.subr.mxu0 0.0
      %v4241 = vand.u32 %v3702, 4294901760
      %v4242 = vsub.f32 %v3702, %v4241
      %v4243 = vand.u32 %v4242, 4294901760
      %4244 = vmatpush1.msra.mxu0 %v4243
      %4245 = vmatprep.subr.mxu0 0.0
      %v4246 = vand.u32 %v3703, 4294901760
      %v4247 = vsub.f32 %v3703, %v4246
      %v4248 = vand.u32 %v4247, 4294901760
      %4249 = vmatpush1.msra.mxu0 %v4248
      %4250 = vmatprep.subr.mxu0 0.0
      %4251 = vmatpush1.msra.mxu0 0.0
      %4252 = vmatprep.subr.mxu0 0.0
      %4253 = vmatpush1.msra.mxu0 0.0
      %4254 = vmatprep.subr.mxu0 0.0
      %4255 = vmatpush1.msra.mxu0 0.0
      %4256 = vmatprep.subr.mxu0 0.0
      %4257 = vmatpush1.msra.mxu0 0.0
      %4258 = vmatprep.subr.mxu0 0.0
      %4259 = vmatpush1.msra.mxu0 0.0
      %4260 = vmatprep.subr.mxu0 0.0
      %4261 = vmatpush1.msra.mxu0 0.0
      %4262 = vmatprep.subr.mxu0 0.0
      %4263 = vmatpush1.msra.mxu0 0.0
      %4264 = vmatprep.subr.mxu0 0.0
      %4265 = vmatpush1.msra.mxu0 0.0
      %4266 = vmatprep.subr.mxu0 0.0
      %4267 = vmatpush1.msra.mxu0 0.0
      %4268 = vmatprep.subr.mxu0 0.0
      %4269 = vmatpush1.msra.mxu0 0.0
      %4270 = vmatprep.subr.mxu0 0.0
      %4271 = vmatpush1.msra.mxu0 0.0
      %4272 = vmatprep.subr.mxu0 0.0
      %4273 = vmatpush1.msra.mxu0 0.0
      %4274 = vmatprep.subr.mxu0 0.0
      %4275 = vmatpush1.msra.mxu0 0.0
      %4276 = vmatprep.subr.mxu0 0.0
      %4277 = vmatpush1.msra.mxu0 0.0
      %4278 = vmatprep.subr.mxu0 0.0
      %4279 = vmatpush1.msra.mxu0 0.0
      %4280 = vmatprep.subr.mxu0 0.0
      %4281 = vmatpush1.msra.mxu0 0.0
      %4282 = vmatprep.mubr.f32.mxu0 0.0
      %v4283 = vand.u32 %v3167, 4294901760
      %4284 = vmatmul.mubr.f32.gmra.mrb[0].mxu0 %v4283
      %v4285 = vpop.f32.mrb[0].mxu0
      %v4286 = vadd.f32 %v4159, %v4285
      %v4287 = vpop.f32.mrb[0].mxu0
      %4288 = vmatprep.mubr.f32.mxu0 0.0
      %v4289 = vand.u32 %v3168, 4294901760
      %4290 = vmatmul.mubr.f32.gmra.mrb[0].mxu0 %v4289
      %v4291 = vpop.f32.mrb[0].mxu0
      %v4292 = vadd.f32 %v4167, %v4291
      %v4293 = vpop.f32.mrb[0].mxu0
      %4294 = vdwg.mxu0
      %4295 = vmatprep.subr.mxu0 0.0
      %v4296 = vand.u32 %v3688, 4294901760
      %4297 = vmatpush1.msra.mxu0 %v4296
      %4298 = vmatprep.subr.mxu0 0.0
      %v4299 = vand.u32 %v3689, 4294901760
      %4300 = vmatpush1.msra.mxu0 %v4299
      %4301 = vmatprep.subr.mxu0 0.0
      %v4302 = vand.u32 %v3690, 4294901760
      %4303 = vmatpush1.msra.mxu0 %v4302
      %4304 = vmatprep.subr.mxu0 0.0
      %v4305 = vand.u32 %v3691, 4294901760
      %4306 = vmatpush1.msra.mxu0 %v4305
      %4307 = vmatprep.subr.mxu0 0.0
      %v4308 = vand.u32 %v3692, 4294901760
      %4309 = vmatpush1.msra.mxu0 %v4308
      %4310 = vmatprep.subr.mxu0 0.0
      %v4311 = vand.u32 %v3693, 4294901760
      %4312 = vmatpush1.msra.mxu0 %v4311
      %4313 = vmatprep.subr.mxu0 0.0
      %v4314 = vand.u32 %v3694, 4294901760
      %4315 = vmatpush1.msra.mxu0 %v4314
      %4316 = vmatprep.subr.mxu0 0.0
      %v4317 = vand.u32 %v3695, 4294901760
      %4318 = vmatpush1.msra.mxu0 %v4317
      %4319 = vmatprep.subr.mxu0 0.0
      %v4320 = vand.u32 %v3696, 4294901760
      %4321 = vmatpush1.msra.mxu0 %v4320
      %4322 = vmatprep.subr.mxu0 0.0
      %v4323 = vand.u32 %v3697, 4294901760
      %4324 = vmatpush1.msra.mxu0 %v4323
      %4325 = vmatprep.subr.mxu0 0.0
      %v4326 = vand.u32 %v3698, 4294901760
      %4327 = vmatpush1.msra.mxu0 %v4326
      %4328 = vmatprep.subr.mxu0 0.0
      %v4329 = vand.u32 %v3699, 4294901760
      %4330 = vmatpush1.msra.mxu0 %v4329
      %4331 = vmatprep.subr.mxu0 0.0
      %v4332 = vand.u32 %v3700, 4294901760
      %4333 = vmatpush1.msra.mxu0 %v4332
      %4334 = vmatprep.subr.mxu0 0.0
      %v4335 = vand.u32 %v3701, 4294901760
      %4336 = vmatpush1.msra.mxu0 %v4335
      %4337 = vmatprep.subr.mxu0 0.0
      %v4338 = vand.u32 %v3702, 4294901760
      %4339 = vmatpush1.msra.mxu0 %v4338
      %4340 = vmatprep.subr.mxu0 0.0
      %v4341 = vand.u32 %v3703, 4294901760
      %4342 = vmatpush1.msra.mxu0 %v4341
      %4343 = vmatprep.subr.mxu0 0.0
      %4344 = vmatpush1.msra.mxu0 0.0
      %4345 = vmatprep.subr.mxu0 0.0
      %4346 = vmatpush1.msra.mxu0 0.0
      %4347 = vmatprep.subr.mxu0 0.0
      %4348 = vmatpush1.msra.mxu0 0.0
      %4349 = vmatprep.subr.mxu0 0.0
      %4350 = vmatpush1.msra.mxu0 0.0
      %4351 = vmatprep.subr.mxu0 0.0
      %4352 = vmatpush1.msra.mxu0 0.0
      %4353 = vmatprep.subr.mxu0 0.0
      %4354 = vmatpush1.msra.mxu0 0.0
      %4355 = vmatprep.subr.mxu0 0.0
      %4356 = vmatpush1.msra.mxu0 0.0
      %4357 = vmatprep.subr.mxu0 0.0
      %4358 = vmatpush1.msra.mxu0 0.0
      %4359 = vmatprep.subr.mxu0 0.0
      %4360 = vmatpush1.msra.mxu0 0.0
      %4361 = vmatprep.subr.mxu0 0.0
      %4362 = vmatpush1.msra.mxu0 0.0
      %4363 = vmatprep.subr.mxu0 0.0
      %4364 = vmatpush1.msra.mxu0 0.0
      %4365 = vmatprep.subr.mxu0 0.0
      %4366 = vmatpush1.msra.mxu0 0.0
      %4367 = vmatprep.subr.mxu0 0.0
      %4368 = vmatpush1.msra.mxu0 0.0
      %4369 = vmatprep.subr.mxu0 0.0
      %4370 = vmatpush1.msra.mxu0 0.0
      %4371 = vmatprep.subr.mxu0 0.0
      %4372 = vmatpush1.msra.mxu0 0.0
      %4373 = vmatprep.subr.mxu0 0.0
      %4374 = vmatpush1.msra.mxu0 0.0
      %4375 = vmatprep.mubr.f32.mxu0 0.0
      %v4376 = vand.u32 %v3167, 4294901760
      %4377 = vmatmul.mubr.f32.gmra.mrb[0].mxu0 %v4376
      %v4378 = vpop.f32.mrb[0].mxu0
      %v4379 = vadd.f32 %v4286, %v4378
      %v4380 = vpop.f32.mrb[0].mxu0
      %4381 = vmatprep.mubr.f32.mxu0 0.0
      %v4382 = vand.u32 %v3168, 4294901760
      %4383 = vmatmul.mubr.f32.gmra.mrb[0].mxu0 %v4382
      %v4384 = vpop.f32.mrb[0].mxu0
      %v4385 = vadd.f32 %v4292, %v4384
      %v4386 = vpop.f32.mrb[0].mxu0
      %4387 = vdwg.mxu0
      %4388 = vmatprep.subr.mxu0 0.0
      %v4389 = vand.u32 %v3671, 4294901760
      %4390 = vmatpush1.msra.mxu0 %v4389
      %4391 = vmatprep.subr.mxu0 0.0
      %v4392 = vand.u32 %v3672, 4294901760
      %4393 = vmatpush1.msra.mxu0 %v4392
      %4394 = vmatprep.subr.mxu0 0.0
      %v4395 = vand.u32 %v3673, 4294901760
      %4396 = vmatpush1.msra.mxu0 %v4395
      %4397 = vmatprep.subr.mxu0 0.0
      %v4398 = vand.u32 %v3674, 4294901760
      %4399 = vmatpush1.msra.mxu0 %v4398
      %4400 = vmatprep.subr.mxu0 0.0
      %v4401 = vand.u32 %v3675, 4294901760
      %4402 = vmatpush1.msra.mxu0 %v4401
      %4403 = vmatprep.subr.mxu0 0.0
      %v4404 = vand.u32 %v3676, 4294901760
      %4405 = vmatpush1.msra.mxu0 %v4404
      %4406 = vmatprep.subr.mxu0 0.0
      %v4407 = vand.u32 %v3677, 4294901760
      %4408 = vmatpush1.msra.mxu0 %v4407
      %4409 = vmatprep.subr.mxu0 0.0
      %v4410 = vand.u32 %v3678, 4294901760
      %4411 = vmatpush1.msra.mxu0 %v4410
      %4412 = vmatprep.subr.mxu0 0.0
      %v4413 = vand.u32 %v3679, 4294901760
      %4414 = vmatpush1.msra.mxu0 %v4413
      %4415 = vmatprep.subr.mxu0 0.0
      %v4416 = vand.u32 %v3680, 4294901760
      %4417 = vmatpush1.msra.mxu0 %v4416
      %4418 = vmatprep.subr.mxu0 0.0
      %v4419 = vand.u32 %v3681, 4294901760
      %4420 = vmatpush1.msra.mxu0 %v4419
      %4421 = vmatprep.subr.mxu0 0.0
      %v4422 = vand.u32 %v3682, 4294901760
      %4423 = vmatpush1.msra.mxu0 %v4422
      %4424 = vmatprep.subr.mxu0 0.0
      %v4425 = vand.u32 %v3683, 4294901760
      %4426 = vmatpush1.msra.mxu0 %v4425
      %4427 = vmatprep.subr.mxu0 0.0
      %v4428 = vand.u32 %v3684, 4294901760
      %4429 = vmatpush1.msra.mxu0 %v4428
      %4430 = vmatprep.subr.mxu0 0.0
      %v4431 = vand.u32 %v3685, 4294901760
      %4432 = vmatpush1.msra.mxu0 %v4431
      %4433 = vmatprep.subr.mxu0 0.0
      %v4434 = vand.u32 %v3686, 4294901760
      %4435 = vmatpush1.msra.mxu0 %v4434
      %4436 = vmatprep.subr.mxu0 0.0
      %4437 = vmatpush1.msra.mxu0 0.0
      %4438 = vmatprep.subr.mxu0 0.0
      %4439 = vmatpush1.msra.mxu0 0.0
      %4440 = vmatprep.subr.mxu0 0.0
      %4441 = vmatpush1.msra.mxu0 0.0
      %4442 = vmatprep.subr.mxu0 0.0
      %4443 = vmatpush1.msra.mxu0 0.0
      %4444 = vmatprep.subr.mxu0 0.0
      %4445 = vmatpush1.msra.mxu0 0.0
      %4446 = vmatprep.subr.mxu0 0.0
      %4447 = vmatpush1.msra.mxu0 0.0
      %4448 = vmatprep.subr.mxu0 0.0
      %4449 = vmatpush1.msra.mxu0 0.0
      %4450 = vmatprep.subr.mxu0 0.0
      %4451 = vmatpush1.msra.mxu0 0.0
      %4452 = vmatprep.subr.mxu0 0.0
      %4453 = vmatpush1.msra.mxu0 0.0
      %4454 = vmatprep.subr.mxu0 0.0
      %4455 = vmatpush1.msra.mxu0 0.0
      %4456 = vmatprep.subr.mxu0 0.0
      %4457 = vmatpush1.msra.mxu0 0.0
      %4458 = vmatprep.subr.mxu0 0.0
      %4459 = vmatpush1.msra.mxu0 0.0
      %4460 = vmatprep.subr.mxu0 0.0
      %4461 = vmatpush1.msra.mxu0 0.0
      %4462 = vmatprep.subr.mxu0 0.0
      %4463 = vmatpush1.msra.mxu0 0.0
      %4464 = vmatprep.subr.mxu0 0.0
      %4465 = vmatpush1.msra.mxu0 0.0
      %4466 = vmatprep.subr.mxu0 0.0
      %4467 = vmatpush1.msra.mxu0 0.0
      %4468 = vmatprep.mubr.f32.mxu0 0.0
      %v4469 = vand.u32 %v3662, 4294901760
      %v4470 = vsub.f32 %v3662, %v4469
      %v4471 = vand.u32 %v4470, 4294901760
      %v4472 = vsub.f32 %v4470, %v4471
      %v4473 = vand.u32 %v4472, 4294901760
      %4474 = vmatmul.mubr.f32.gmra.mrb[0].mxu0 %v4473
      %v4475 = vpop.f32.mrb[0].mxu0
      %v4476 = vadd.f32 %v4379, %v4475
      %v4477 = vpop.f32.mrb[0].mxu0
      %4478 = vmatprep.mubr.f32.mxu0 0.0
      %v4479 = vand.u32 %v3668, 4294901760
      %v4480 = vsub.f32 %v3668, %v4479
      %v4481 = vand.u32 %v4480, 4294901760
      %v4482 = vsub.f32 %v4480, %v4481
      %v4483 = vand.u32 %v4482, 4294901760
      %4484 = vmatmul.mubr.f32.gmra.mrb[0].mxu0 %v4483
      %v4485 = vpop.f32.mrb[0].mxu0
      %v4486 = vadd.f32 %v4385, %v4485
      %v4487 = vpop.f32.mrb[0].mxu0
      %4488 = vdwg.mxu0
      %4489 = vmatprep.subr.mxu0 0.0
      %v4490 = vand.u32 %v3671, 4294901760
      %v4491 = vsub.f32 %v3671, %v4490
      %v4492 = vand.u32 %v4491, 4294901760
      %v4493 = vsub.f32 %v4491, %v4492
      %v4494 = vand.u32 %v4493, 4294901760
      %4495 = vmatpush1.msra.mxu0 %v4494
      %4496 = vmatprep.subr.mxu0 0.0
      %v4497 = vand.u32 %v3672, 4294901760
      %v4498 = vsub.f32 %v3672, %v4497
      %v4499 = vand.u32 %v4498, 4294901760
      %v4500 = vsub.f32 %v4498, %v4499
      %v4501 = vand.u32 %v4500, 4294901760
      %4502 = vmatpush1.msra.mxu0 %v4501
      %4503 = vmatprep.subr.mxu0 0.0
      %v4504 = vand.u32 %v3673, 4294901760
      %v4505 = vsub.f32 %v3673, %v4504
      %v4506 = vand.u32 %v4505, 4294901760
      %v4507 = vsub.f32 %v4505, %v4506
      %v4508 = vand.u32 %v4507, 4294901760
      %4509 = vmatpush1.msra.mxu0 %v4508
      %4510 = vmatprep.subr.mxu0 0.0
      %v4511 = vand.u32 %v3674, 4294901760
      %v4512 = vsub.f32 %v3674, %v4511
      %v4513 = vand.u32 %v4512, 4294901760
      %v4514 = vsub.f32 %v4512, %v4513
      %v4515 = vand.u32 %v4514, 4294901760
      %4516 = vmatpush1.msra.mxu0 %v4515
      %4517 = vmatprep.subr.mxu0 0.0
      %v4518 = vand.u32 %v3675, 4294901760
      %v4519 = vsub.f32 %v3675, %v4518
      %v4520 = vand.u32 %v4519, 4294901760
      %v4521 = vsub.f32 %v4519, %v4520
      %v4522 = vand.u32 %v4521, 4294901760
      %4523 = vmatpush1.msra.mxu0 %v4522
      %4524 = vmatprep.subr.mxu0 0.0
      %v4525 = vand.u32 %v3676, 4294901760
      %v4526 = vsub.f32 %v3676, %v4525
      %v4527 = vand.u32 %v4526, 4294901760
      %v4528 = vsub.f32 %v4526, %v4527
      %v4529 = vand.u32 %v4528, 4294901760
      %4530 = vmatpush1.msra.mxu0 %v4529
      %4531 = vmatprep.subr.mxu0 0.0
      %v4532 = vand.u32 %v3677, 4294901760
      %v4533 = vsub.f32 %v3677, %v4532
      %v4534 = vand.u32 %v4533, 4294901760
      %v4535 = vsub.f32 %v4533, %v4534
      %v4536 = vand.u32 %v4535, 4294901760
      %4537 = vmatpush1.msra.mxu0 %v4536
      %4538 = vmatprep.subr.mxu0 0.0
      %v4539 = vand.u32 %v3678, 4294901760
      %v4540 = vsub.f32 %v3678, %v4539
      %v4541 = vand.u32 %v4540, 4294901760
      %v4542 = vsub.f32 %v4540, %v4541
      %v4543 = vand.u32 %v4542, 4294901760
      %4544 = vmatpush1.msra.mxu0 %v4543
      %4545 = vmatprep.subr.mxu0 0.0
      %v4546 = vand.u32 %v3679, 4294901760
      %v4547 = vsub.f32 %v3679, %v4546
      %v4548 = vand.u32 %v4547, 4294901760
      %v4549 = vsub.f32 %v4547, %v4548
      %v4550 = vand.u32 %v4549, 4294901760
      %4551 = vmatpush1.msra.mxu0 %v4550
      %4552 = vmatprep.subr.mxu0 0.0
      %v4553 = vand.u32 %v3680, 4294901760
      %v4554 = vsub.f32 %v3680, %v4553
      %v4555 = vand.u32 %v4554, 4294901760
      %v4556 = vsub.f32 %v4554, %v4555
      %v4557 = vand.u32 %v4556, 4294901760
      %4558 = vmatpush1.msra.mxu0 %v4557
      %4559 = vmatprep.subr.mxu0 0.0
      %v4560 = vand.u32 %v3681, 4294901760
      %v4561 = vsub.f32 %v3681, %v4560
      %v4562 = vand.u32 %v4561, 4294901760
      %v4563 = vsub.f32 %v4561, %v4562
      %v4564 = vand.u32 %v4563, 4294901760
      %4565 = vmatpush1.msra.mxu0 %v4564
      %4566 = vmatprep.subr.mxu0 0.0
      %v4567 = vand.u32 %v3682, 4294901760
      %v4568 = vsub.f32 %v3682, %v4567
      %v4569 = vand.u32 %v4568, 4294901760
      %v4570 = vsub.f32 %v4568, %v4569
      %v4571 = vand.u32 %v4570, 4294901760
      %4572 = vmatpush1.msra.mxu0 %v4571
      %4573 = vmatprep.subr.mxu0 0.0
      %v4574 = vand.u32 %v3683, 4294901760
      %v4575 = vsub.f32 %v3683, %v4574
      %v4576 = vand.u32 %v4575, 4294901760
      %v4577 = vsub.f32 %v4575, %v4576
      %v4578 = vand.u32 %v4577, 4294901760
      %4579 = vmatpush1.msra.mxu0 %v4578
      %4580 = vmatprep.subr.mxu0 0.0
      %v4581 = vand.u32 %v3684, 4294901760
      %v4582 = vsub.f32 %v3684, %v4581
      %v4583 = vand.u32 %v4582, 4294901760
      %v4584 = vsub.f32 %v4582, %v4583
      %v4585 = vand.u32 %v4584, 4294901760
      %4586 = vmatpush1.msra.mxu0 %v4585
      %4587 = vmatprep.subr.mxu0 0.0
      %v4588 = vand.u32 %v3685, 4294901760
      %v4589 = vsub.f32 %v3685, %v4588
      %v4590 = vand.u32 %v4589, 4294901760
      %v4591 = vsub.f32 %v4589, %v4590
      %v4592 = vand.u32 %v4591, 4294901760
      %4593 = vmatpush1.msra.mxu0 %v4592
      %4594 = vmatprep.subr.mxu0 0.0
      %v4595 = vand.u32 %v3686, 4294901760
      %v4596 = vsub.f32 %v3686, %v4595
      %v4597 = vand.u32 %v4596, 4294901760
      %v4598 = vsub.f32 %v4596, %v4597
      %v4599 = vand.u32 %v4598, 4294901760
      %4600 = vmatpush1.msra.mxu0 %v4599
      %4601 = vmatprep.subr.mxu0 0.0
      %4602 = vmatpush1.msra.mxu0 0.0
      %4603 = vmatprep.subr.mxu0 0.0
      %4604 = vmatpush1.msra.mxu0 0.0
      %4605 = vmatprep.subr.mxu0 0.0
      %4606 = vmatpush1.msra.mxu0 0.0
      %4607 = vmatprep.subr.mxu0 0.0
      %4608 = vmatpush1.msra.mxu0 0.0
      %4609 = vmatprep.subr.mxu0 0.0
      %4610 = vmatpush1.msra.mxu0 0.0
      %4611 = vmatprep.subr.mxu0 0.0
      %4612 = vmatpush1.msra.mxu0 0.0
      %4613 = vmatprep.subr.mxu0 0.0
      %4614 = vmatpush1.msra.mxu0 0.0
      %4615 = vmatprep.subr.mxu0 0.0
      %4616 = vmatpush1.msra.mxu0 0.0
      %4617 = vmatprep.subr.mxu0 0.0
      %4618 = vmatpush1.msra.mxu0 0.0
      %4619 = vmatprep.subr.mxu0 0.0
      %4620 = vmatpush1.msra.mxu0 0.0
      %4621 = vmatprep.subr.mxu0 0.0
      %4622 = vmatpush1.msra.mxu0 0.0
      %4623 = vmatprep.subr.mxu0 0.0
      %4624 = vmatpush1.msra.mxu0 0.0
      %4625 = vmatprep.subr.mxu0 0.0
      %4626 = vmatpush1.msra.mxu0 0.0
      %4627 = vmatprep.subr.mxu0 0.0
      %4628 = vmatpush1.msra.mxu0 0.0
      %4629 = vmatprep.subr.mxu0 0.0
      %4630 = vmatpush1.msra.mxu0 0.0
      %4631 = vmatprep.subr.mxu0 0.0
      %4632 = vmatpush1.msra.mxu0 0.0
      %4633 = vmatprep.mubr.f32.mxu0 0.0
      %v4634 = vand.u32 %v3662, 4294901760
      %4635 = vmatmul.mubr.f32.gmra.mrb[0].mxu0 %v4634
      %v4636 = vpop.f32.mrb[0].mxu0
      %v4637 = vadd.f32 %v4476, %v4636
      %v4638 = vpop.f32.mrb[0].mxu0
      %4639 = vmatprep.mubr.f32.mxu0 0.0
      %v4640 = vand.u32 %v3668, 4294901760
      %4641 = vmatmul.mubr.f32.gmra.mrb[0].mxu0 %v4640
      %v4642 = vpop.f32.mrb[0].mxu0
      %v4643 = vadd.f32 %v4486, %v4642
      %v4644 = vpop.f32.mrb[0].mxu0
      %4645 = vdwg.mxu0
      %4646 = vmatprep.subr.mxu0 0.0
      %v4647 = vand.u32 %v3671, 4294901760
      %v4648 = vsub.f32 %v3671, %v4647
      %4649 = vmatpush1.msra.mxu0 %v4648
      %4650 = vmatprep.subr.mxu0 0.0
      %v4651 = vand.u32 %v3672, 4294901760
      %v4652 = vsub.f32 %v3672, %v4651
      %4653 = vmatpush1.msra.mxu0 %v4652
      %4654 = vmatprep.subr.mxu0 0.0
      %v4655 = vand.u32 %v3673, 4294901760
      %v4656 = vsub.f32 %v3673, %v4655
      %4657 = vmatpush1.msra.mxu0 %v4656
      %4658 = vmatprep.subr.mxu0 0.0
      %v4659 = vand.u32 %v3674, 4294901760
      %v4660 = vsub.f32 %v3674, %v4659
      %4661 = vmatpush1.msra.mxu0 %v4660
      %4662 = vmatprep.subr.mxu0 0.0
      %v4663 = vand.u32 %v3675, 4294901760
      %v4664 = vsub.f32 %v3675, %v4663
      %4665 = vmatpush1.msra.mxu0 %v4664
      %4666 = vmatprep.subr.mxu0 0.0
      %v4667 = vand.u32 %v3676, 4294901760
      %v4668 = vsub.f32 %v3676, %v4667
      %4669 = vmatpush1.msra.mxu0 %v4668
      %4670 = vmatprep.subr.mxu0 0.0
      %v4671 = vand.u32 %v3677, 4294901760
      %v4672 = vsub.f32 %v3677, %v4671
      %4673 = vmatpush1.msra.mxu0 %v4672
      %4674 = vmatprep.subr.mxu0 0.0
      %v4675 = vand.u32 %v3678, 4294901760
      %v4676 = vsub.f32 %v3678, %v4675
      %4677 = vmatpush1.msra.mxu0 %v4676
      %4678 = vmatprep.subr.mxu0 0.0
      %v4679 = vand.u32 %v3679, 4294901760
      %v4680 = vsub.f32 %v3679, %v4679
      %4681 = vmatpush1.msra.mxu0 %v4680
      %4682 = vmatprep.subr.mxu0 0.0
      %v4683 = vand.u32 %v3680, 4294901760
      %v4684 = vsub.f32 %v3680, %v4683
      %4685 = vmatpush1.msra.mxu0 %v4684
      %4686 = vmatprep.subr.mxu0 0.0
      %v4687 = vand.u32 %v3681, 4294901760
      %v4688 = vsub.f32 %v3681, %v4687
      %4689 = vmatpush1.msra.mxu0 %v4688
      %4690 = vmatprep.subr.mxu0 0.0
      %v4691 = vand.u32 %v3682, 4294901760
      %v4692 = vsub.f32 %v3682, %v4691
      %4693 = vmatpush1.msra.mxu0 %v4692
      %4694 = vmatprep.subr.mxu0 0.0
      %v4695 = vand.u32 %v3683, 4294901760
      %v4696 = vsub.f32 %v3683, %v4695
      %4697 = vmatpush1.msra.mxu0 %v4696
      %4698 = vmatprep.subr.mxu0 0.0
      %v4699 = vand.u32 %v3684, 4294901760
      %v4700 = vsub.f32 %v3684, %v4699
      %4701 = vmatpush1.msra.mxu0 %v4700
      %4702 = vmatprep.subr.mxu0 0.0
      %v4703 = vand.u32 %v3685, 4294901760
      %v4704 = vsub.f32 %v3685, %v4703
      %4705 = vmatpush1.msra.mxu0 %v4704
      %4706 = vmatprep.subr.mxu0 0.0
      %v4707 = vand.u32 %v3686, 4294901760
      %v4708 = vsub.f32 %v3686, %v4707
      %4709 = vmatpush1.msra.mxu0 %v4708
      %4710 = vmatprep.subr.mxu0 0.0
      %4711 = vmatpush1.msra.mxu0 0.0
      %4712 = vmatprep.subr.mxu0 0.0
      %4713 = vmatpush1.msra.mxu0 0.0
      %4714 = vmatprep.subr.mxu0 0.0
      %4715 = vmatpush1.msra.mxu0 0.0
      %4716 = vmatprep.subr.mxu0 0.0
      %4717 = vmatpush1.msra.mxu0 0.0
      %4718 = vmatprep.subr.mxu0 0.0
      %4719 = vmatpush1.msra.mxu0 0.0
      %4720 = vmatprep.subr.mxu0 0.0
      %4721 = vmatpush1.msra.mxu0 0.0
      %4722 = vmatprep.subr.mxu0 0.0
      %4723 = vmatpush1.msra.mxu0 0.0
      %4724 = vmatprep.subr.mxu0 0.0
      %4725 = vmatpush1.msra.mxu0 0.0
      %4726 = vmatprep.subr.mxu0 0.0
      %4727 = vmatpush1.msra.mxu0 0.0
      %4728 = vmatprep.subr.mxu0 0.0
      %4729 = vmatpush1.msra.mxu0 0.0
      %4730 = vmatprep.subr.mxu0 0.0
      %4731 = vmatpush1.msra.mxu0 0.0
      %4732 = vmatprep.subr.mxu0 0.0
      %4733 = vmatpush1.msra.mxu0 0.0
      %4734 = vmatprep.subr.mxu0 0.0
      %4735 = vmatpush1.msra.mxu0 0.0
      %4736 = vmatprep.subr.mxu0 0.0
      %4737 = vmatpush1.msra.mxu0 0.0
      %4738 = vmatprep.subr.mxu0 0.0
      %4739 = vmatpush1.msra.mxu0 0.0
      %4740 = vmatprep.subr.mxu0 0.0
      %4741 = vmatpush1.msra.mxu0 0.0
      %4742 = vmatprep.mubr.f32.mxu0 0.0
      %v4743 = vand.u32 %v3662, 4294901760
      %v4744 = vsub.f32 %v3662, %v4743
      %4745 = vmatmul.mubr.f32.gmra.mrb[0].mxu0 %v4744
      %v4746 = vpop.f32.mrb[0].mxu0
      %v4747 = vadd.f32 %v4637, %v4746
      %v4748 = vpop.f32.mrb[0].mxu0
      %4749 = vmatprep.mubr.f32.mxu0 0.0
      %v4750 = vand.u32 %v3668, 4294901760
      %v4751 = vsub.f32 %v3668, %v4750
      %4752 = vmatmul.mubr.f32.gmra.mrb[0].mxu0 %v4751
      %v4753 = vpop.f32.mrb[0].mxu0
      %v4754 = vadd.f32 %v4643, %v4753
      %v4755 = vpop.f32.mrb[0].mxu0
      %4756 = vdwg.mxu0
      %4757 = vmatprep.subr.mxu0 0.0
      %v4758 = vand.u32 %v3671, 4294901760
      %4759 = vmatpush1.msra.mxu0 %v4758
      %4760 = vmatprep.subr.mxu0 0.0
      %v4761 = vand.u32 %v3672, 4294901760
      %4762 = vmatpush1.msra.mxu0 %v4761
      %4763 = vmatprep.subr.mxu0 0.0
      %v4764 = vand.u32 %v3673, 4294901760
      %4765 = vmatpush1.msra.mxu0 %v4764
      %4766 = vmatprep.subr.mxu0 0.0
      %v4767 = vand.u32 %v3674, 4294901760
      %4768 = vmatpush1.msra.mxu0 %v4767
      %4769 = vmatprep.subr.mxu0 0.0
      %v4770 = vand.u32 %v3675, 4294901760
      %4771 = vmatpush1.msra.mxu0 %v4770
      %4772 = vmatprep.subr.mxu0 0.0
      %v4773 = vand.u32 %v3676, 4294901760
      %4774 = vmatpush1.msra.mxu0 %v4773
      %4775 = vmatprep.subr.mxu0 0.0
      %v4776 = vand.u32 %v3677, 4294901760
      %4777 = vmatpush1.msra.mxu0 %v4776
      %4778 = vmatprep.subr.mxu0 0.0
      %v4779 = vand.u32 %v3678, 4294901760
      %4780 = vmatpush1.msra.mxu0 %v4779
      %4781 = vmatprep.subr.mxu0 0.0
      %v4782 = vand.u32 %v3679, 4294901760
      %4783 = vmatpush1.msra.mxu0 %v4782
      %4784 = vmatprep.subr.mxu0 0.0
      %v4785 = vand.u32 %v3680, 4294901760
      %4786 = vmatpush1.msra.mxu0 %v4785
      %4787 = vmatprep.subr.mxu0 0.0
      %v4788 = vand.u32 %v3681, 4294901760
      %4789 = vmatpush1.msra.mxu0 %v4788
      %4790 = vmatprep.subr.mxu0 0.0
      %v4791 = vand.u32 %v3682, 4294901760
      %4792 = vmatpush1.msra.mxu0 %v4791
      %4793 = vmatprep.subr.mxu0 0.0
      %v4794 = vand.u32 %v3683, 4294901760
      %4795 = vmatpush1.msra.mxu0 %v4794
      %4796 = vmatprep.subr.mxu0 0.0
      %v4797 = vand.u32 %v3684, 4294901760
      %4798 = vmatpush1.msra.mxu0 %v4797
      %4799 = vmatprep.subr.mxu0 0.0
      %v4800 = vand.u32 %v3685, 4294901760
      %4801 = vmatpush1.msra.mxu0 %v4800
      %4802 = vmatprep.subr.mxu0 0.0
      %v4803 = vand.u32 %v3686, 4294901760
      %4804 = vmatpush1.msra.mxu0 %v4803
      %4805 = vmatprep.subr.mxu0 0.0
      %4806 = vmatpush1.msra.mxu0 0.0
      %4807 = vmatprep.subr.mxu0 0.0
      %4808 = vmatpush1.msra.mxu0 0.0
      %4809 = vmatprep.subr.mxu0 0.0
      %4810 = vmatpush1.msra.mxu0 0.0
      %4811 = vmatprep.subr.mxu0 0.0
      %4812 = vmatpush1.msra.mxu0 0.0
      %4813 = vmatprep.subr.mxu0 0.0
      %4814 = vmatpush1.msra.mxu0 0.0
      %4815 = vmatprep.subr.mxu0 0.0
      %4816 = vmatpush1.msra.mxu0 0.0
      %4817 = vmatprep.subr.mxu0 0.0
      %4818 = vmatpush1.msra.mxu0 0.0
      %4819 = vmatprep.subr.mxu0 0.0
      %4820 = vmatpush1.msra.mxu0 0.0
      %4821 = vmatprep.subr.mxu0 0.0
      %4822 = vmatpush1.msra.mxu0 0.0
      %4823 = vmatprep.subr.mxu0 0.0
      %4824 = vmatpush1.msra.mxu0 0.0
      %4825 = vmatprep.subr.mxu0 0.0
      %4826 = vmatpush1.msra.mxu0 0.0
      %4827 = vmatprep.subr.mxu0 0.0
      %4828 = vmatpush1.msra.mxu0 0.0
      %4829 = vmatprep.subr.mxu0 0.0
      %4830 = vmatpush1.msra.mxu0 0.0
      %4831 = vmatprep.subr.mxu0 0.0
      %4832 = vmatpush1.msra.mxu0 0.0
      %4833 = vmatprep.subr.mxu0 0.0
      %4834 = vmatpush1.msra.mxu0 0.0
      %4835 = vmatprep.subr.mxu0 0.0
      %4836 = vmatpush1.msra.mxu0 0.0
      %4837 = vmatprep.mubr.f32.mxu0 0.0
      %v4838 = vand.u32 %v3662, 4294901760
      %v4839 = vsub.f32 %v3662, %v4838
      %v4840 = vand.u32 %v4839, 4294901760
      %4841 = vmatmul.mubr.f32.gmra.mrb[0].mxu0 %v4840
      %v4842 = vpop.f32.mrb[0].mxu0
      %v4843 = vadd.f32 %v4747, %v4842
      %v4844 = vpop.f32.mrb[0].mxu0
      %4845 = vmatprep.mubr.f32.mxu0 0.0
      %v4846 = vand.u32 %v3668, 4294901760
      %v4847 = vsub.f32 %v3668, %v4846
      %v4848 = vand.u32 %v4847, 4294901760
      %4849 = vmatmul.mubr.f32.gmra.mrb[0].mxu0 %v4848
      %v4850 = vpop.f32.mrb[0].mxu0
      %v4851 = vadd.f32 %v4754, %v4850
      %v4852 = vpop.f32.mrb[0].mxu0
      %4853 = vdwg.mxu0
      %4854 = vmatprep.subr.mxu0 0.0
      %v4855 = vand.u32 %v3671, 4294901760
      %v4856 = vsub.f32 %v3671, %v4855
      %v4857 = vand.u32 %v4856, 4294901760
      %4858 = vmatpush1.msra.mxu0 %v4857
      %4859 = vmatprep.subr.mxu0 0.0
      %v4860 = vand.u32 %v3672, 4294901760
      %v4861 = vsub.f32 %v3672, %v4860
      %v4862 = vand.u32 %v4861, 4294901760
      %4863 = vmatpush1.msra.mxu0 %v4862
      %4864 = vmatprep.subr.mxu0 0.0
      %v4865 = vand.u32 %v3673, 4294901760
      %v4866 = vsub.f32 %v3673, %v4865
      %v4867 = vand.u32 %v4866, 4294901760
      %4868 = vmatpush1.msra.mxu0 %v4867
      %4869 = vmatprep.subr.mxu0 0.0
      %v4870 = vand.u32 %v3674, 4294901760
      %v4871 = vsub.f32 %v3674, %v4870
      %v4872 = vand.u32 %v4871, 4294901760
      %4873 = vmatpush1.msra.mxu0 %v4872
      %4874 = vmatprep.subr.mxu0 0.0
      %v4875 = vand.u32 %v3675, 4294901760
      %v4876 = vsub.f32 %v3675, %v4875
      %v4877 = vand.u32 %v4876, 4294901760
      %4878 = vmatpush1.msra.mxu0 %v4877
      %4879 = vmatprep.subr.mxu0 0.0
      %v4880 = vand.u32 %v3676, 4294901760
      %v4881 = vsub.f32 %v3676, %v4880
      %v4882 = vand.u32 %v4881, 4294901760
      %4883 = vmatpush1.msra.mxu0 %v4882
      %4884 = vmatprep.subr.mxu0 0.0
      %v4885 = vand.u32 %v3677, 4294901760
      %v4886 = vsub.f32 %v3677, %v4885
      %v4887 = vand.u32 %v4886, 4294901760
      %4888 = vmatpush1.msra.mxu0 %v4887
      %4889 = vmatprep.subr.mxu0 0.0
      %v4890 = vand.u32 %v3678, 4294901760
      %v4891 = vsub.f32 %v3678, %v4890
      %v4892 = vand.u32 %v4891, 4294901760
      %4893 = vmatpush1.msra.mxu0 %v4892
      %4894 = vmatprep.subr.mxu0 0.0
      %v4895 = vand.u32 %v3679, 4294901760
      %v4896 = vsub.f32 %v3679, %v4895
      %v4897 = vand.u32 %v4896, 4294901760
      %4898 = vmatpush1.msra.mxu0 %v4897
      %4899 = vmatprep.subr.mxu0 0.0
      %v4900 = vand.u32 %v3680, 4294901760
      %v4901 = vsub.f32 %v3680, %v4900
      %v4902 = vand.u32 %v4901, 4294901760
      %4903 = vmatpush1.msra.mxu0 %v4902
      %4904 = vmatprep.subr.mxu0 0.0
      %v4905 = vand.u32 %v3681, 4294901760
      %v4906 = vsub.f32 %v3681, %v4905
      %v4907 = vand.u32 %v4906, 4294901760
      %4908 = vmatpush1.msra.mxu0 %v4907
      %4909 = vmatprep.subr.mxu0 0.0
      %v4910 = vand.u32 %v3682, 4294901760
      %v4911 = vsub.f32 %v3682, %v4910
      %v4912 = vand.u32 %v4911, 4294901760
      %4913 = vmatpush1.msra.mxu0 %v4912
      %4914 = vmatprep.subr.mxu0 0.0
      %v4915 = vand.u32 %v3683, 4294901760
      %v4916 = vsub.f32 %v3683, %v4915
      %v4917 = vand.u32 %v4916, 4294901760
      %4918 = vmatpush1.msra.mxu0 %v4917
      %4919 = vmatprep.subr.mxu0 0.0
      %v4920 = vand.u32 %v3684, 4294901760
      %v4921 = vsub.f32 %v3684, %v4920
      %v4922 = vand.u32 %v4921, 4294901760
      %4923 = vmatpush1.msra.mxu0 %v4922
      %4924 = vmatprep.subr.mxu0 0.0
      %v4925 = vand.u32 %v3685, 4294901760
      %v4926 = vsub.f32 %v3685, %v4925
      %v4927 = vand.u32 %v4926, 4294901760
      %4928 = vmatpush1.msra.mxu0 %v4927
      %4929 = vmatprep.subr.mxu0 0.0
      %v4930 = vand.u32 %v3686, 4294901760
      %v4931 = vsub.f32 %v3686, %v4930
      %v4932 = vand.u32 %v4931, 4294901760
      %4933 = vmatpush1.msra.mxu0 %v4932
      %4934 = vmatprep.subr.mxu0 0.0
      %4935 = vmatpush1.msra.mxu0 0.0
      %4936 = vmatprep.subr.mxu0 0.0
      %4937 = vmatpush1.msra.mxu0 0.0
      %4938 = vmatprep.subr.mxu0 0.0
      %4939 = vmatpush1.msra.mxu0 0.0
      %4940 = vmatprep.subr.mxu0 0.0
      %4941 = vmatpush1.msra.mxu0 0.0
      %4942 = vmatprep.subr.mxu0 0.0
      %4943 = vmatpush1.msra.mxu0 0.0
      %4944 = vmatprep.subr.mxu0 0.0
      %4945 = vmatpush1.msra.mxu0 0.0
      %4946 = vmatprep.subr.mxu0 0.0
      %4947 = vmatpush1.msra.mxu0 0.0
      %4948 = vmatprep.subr.mxu0 0.0
      %4949 = vmatpush1.msra.mxu0 0.0
      %4950 = vmatprep.subr.mxu0 0.0
      %4951 = vmatpush1.msra.mxu0 0.0
      %4952 = vmatprep.subr.mxu0 0.0
      %4953 = vmatpush1.msra.mxu0 0.0
      %4954 = vmatprep.subr.mxu0 0.0
      %4955 = vmatpush1.msra.mxu0 0.0
      %4956 = vmatprep.subr.mxu0 0.0
      %4957 = vmatpush1.msra.mxu0 0.0
      %4958 = vmatprep.subr.mxu0 0.0
      %4959 = vmatpush1.msra.mxu0 0.0
      %4960 = vmatprep.subr.mxu0 0.0
      %4961 = vmatpush1.msra.mxu0 0.0
      %4962 = vmatprep.subr.mxu0 0.0
      %4963 = vmatpush1.msra.mxu0 0.0
      %4964 = vmatprep.subr.mxu0 0.0
      %4965 = vmatpush1.msra.mxu0 0.0
      %4966 = vmatprep.mubr.f32.mxu0 0.0
      %v4967 = vand.u32 %v3662, 4294901760
      %4968 = vmatmul.mubr.f32.gmra.mrb[0].mxu0 %v4967
      %v4969 = vpop.f32.mrb[0].mxu0
      %v4970 = vadd.f32 %v4843, %v4969
      %v4971 = vpop.f32.mrb[0].mxu0
      %4972 = vmatprep.mubr.f32.mxu0 0.0
      %v4973 = vand.u32 %v3668, 4294901760
      %4974 = vmatmul.mubr.f32.gmra.mrb[0].mxu0 %v4973
      %v4975 = vpop.f32.mrb[0].mxu0
      %v4976 = vadd.f32 %v4851, %v4975
      %v4977 = vpop.f32.mrb[0].mxu0
      %4978 = vdwg.mxu0
      %4979 = vmatprep.subr.mxu0 0.0
      %v4980 = vand.u32 %v3671, 4294901760
      %4981 = vmatpush1.msra.mxu0 %v4980
      %4982 = vmatprep.subr.mxu0 0.0
      %v4983 = vand.u32 %v3672, 4294901760
      %4984 = vmatpush1.msra.mxu0 %v4983
      %4985 = vmatprep.subr.mxu0 0.0
      %v4986 = vand.u32 %v3673, 4294901760
      %4987 = vmatpush1.msra.mxu0 %v4986
      %4988 = vmatprep.subr.mxu0 0.0
      %v4989 = vand.u32 %v3674, 4294901760
      %4990 = vmatpush1.msra.mxu0 %v4989
      %4991 = vmatprep.subr.mxu0 0.0
      %v4992 = vand.u32 %v3675, 4294901760
      %4993 = vmatpush1.msra.mxu0 %v4992
      %4994 = vmatprep.subr.mxu0 0.0
      %v4995 = vand.u32 %v3676, 4294901760
      %4996 = vmatpush1.msra.mxu0 %v4995
      %4997 = vmatprep.subr.mxu0 0.0
      %v4998 = vand.u32 %v3677, 4294901760
      %4999 = vmatpush1.msra.mxu0 %v4998
      %5000 = vmatprep.subr.mxu0 0.0
      %v5001 = vand.u32 %v3678, 4294901760
      %5002 = vmatpush1.msra.mxu0 %v5001
      %5003 = vmatprep.subr.mxu0 0.0
      %v5004 = vand.u32 %v3679, 4294901760
      %5005 = vmatpush1.msra.mxu0 %v5004
      %5006 = vmatprep.subr.mxu0 0.0
      %v5007 = vand.u32 %v3680, 4294901760
      %5008 = vmatpush1.msra.mxu0 %v5007
      %5009 = vmatprep.subr.mxu0 0.0
      %v5010 = vand.u32 %v3681, 4294901760
      %5011 = vmatpush1.msra.mxu0 %v5010
      %5012 = vmatprep.subr.mxu0 0.0
      %v5013 = vand.u32 %v3682, 4294901760
      %5014 = vmatpush1.msra.mxu0 %v5013
      %5015 = vmatprep.subr.mxu0 0.0
      %v5016 = vand.u32 %v3683, 4294901760
      %5017 = vmatpush1.msra.mxu0 %v5016
      %5018 = vmatprep.subr.mxu0 0.0
      %v5019 = vand.u32 %v3684, 4294901760
      %5020 = vmatpush1.msra.mxu0 %v5019
      %5021 = vmatprep.subr.mxu0 0.0
      %v5022 = vand.u32 %v3685, 4294901760
      %5023 = vmatpush1.msra.mxu0 %v5022
      %5024 = vmatprep.subr.mxu0 0.0
      %v5025 = vand.u32 %v3686, 4294901760
      %5026 = vmatpush1.msra.mxu0 %v5025
      %5027 = vmatprep.subr.mxu0 0.0
      %5028 = vmatpush1.msra.mxu0 0.0
      %5029 = vmatprep.subr.mxu0 0.0
      %5030 = vmatpush1.msra.mxu0 0.0
      %5031 = vmatprep.subr.mxu0 0.0
      %5032 = vmatpush1.msra.mxu0 0.0
      %5033 = vmatprep.subr.mxu0 0.0
      %5034 = vmatpush1.msra.mxu0 0.0
      %5035 = vmatprep.subr.mxu0 0.0
      %5036 = vmatpush1.msra.mxu0 0.0
      %5037 = vmatprep.subr.mxu0 0.0
      %5038 = vmatpush1.msra.mxu0 0.0
      %5039 = vmatprep.subr.mxu0 0.0
      %5040 = vmatpush1.msra.mxu0 0.0
      %5041 = vmatprep.subr.mxu0 0.0
      %5042 = vmatpush1.msra.mxu0 0.0
      %5043 = vmatprep.subr.mxu0 0.0
      %5044 = vmatpush1.msra.mxu0 0.0
      %5045 = vmatprep.subr.mxu0 0.0
      %5046 = vmatpush1.msra.mxu0 0.0
      %5047 = vmatprep.subr.mxu0 0.0
      %5048 = vmatpush1.msra.mxu0 0.0
      %5049 = vmatprep.subr.mxu0 0.0
      %5050 = vmatpush1.msra.mxu0 0.0
      %5051 = vmatprep.subr.mxu0 0.0
      %5052 = vmatpush1.msra.mxu0 0.0
      %5053 = vmatprep.subr.mxu0 0.0
      %5054 = vmatpush1.msra.mxu0 0.0
      %5055 = vmatprep.subr.mxu0 0.0
      %5056 = vmatpush1.msra.mxu0 0.0
      %5057 = vmatprep.subr.mxu0 0.0
      %5058 = vmatpush1.msra.mxu0 0.0
      %5059 = vmatprep.mubr.f32.mxu0 0.0
      %v5060 = vand.u32 %v3662, 4294901760
      %5061 = vmatmul.mubr.f32.gmra.mrb[0].mxu0 %v5060
      %v5062 = vpop.f32.mrb[0].mxu0
      %v5063 = vadd.f32 %v4970, %v5062
      %v5064 = vpop.f32.mrb[0].mxu0
      %5065 = vmatprep.mubr.f32.mxu0 0.0
      %v5066 = vand.u32 %v3668, 4294901760
      %5067 = vmatmul.mubr.f32.gmra.mrb[0].mxu0 %v5066
      %v5068 = vpop.f32.mrb[0].mxu0
      %v5069 = vadd.f32 %v4976, %v5068
      %v5070 = vpop.f32.mrb[0].mxu0
      %5071 = vdwg.mxu0
      %5072 = vmatprep.subr.mxu0 0.0
      %v5073 = vand.u32 %v3167, 4294901760
      %5074 = vmatpush1.msra.mxu0 %v5073
      %5075 = vmatprep.subr.mxu0 0.0
      %v5076 = vand.u32 %v3168, 4294901760
      %5077 = vmatpush1.msra.mxu0 %v5076
      %5078 = vmatprep.subr.mxu0 0.0
      %5079 = vmatpush1.msra.mxu0 0.0
      %5080 = vmatprep.subr.mxu0 0.0
      %5081 = vmatpush1.msra.mxu0 0.0
      %5082 = vmatprep.subr.mxu0 0.0
      %5083 = vmatpush1.msra.mxu0 0.0
      %5084 = vmatprep.subr.mxu0 0.0
      %5085 = vmatpush1.msra.mxu0 0.0
      %5086 = vmatprep.subr.mxu0 0.0
      %5087 = vmatpush1.msra.mxu0 0.0
      %5088 = vmatprep.subr.mxu0 0.0
      %5089 = vmatpush1.msra.mxu0 0.0
      %5090 = vmatprep.subr.mxu0 0.0
      %5091 = vmatpush1.msra.mxu0 0.0
      %5092 = vmatprep.subr.mxu0 0.0
      %5093 = vmatpush1.msra.mxu0 0.0
      %5094 = vmatprep.subr.mxu0 0.0
      %5095 = vmatpush1.msra.mxu0 0.0
      %5096 = vmatprep.subr.mxu0 0.0
      %5097 = vmatpush1.msra.mxu0 0.0
      %5098 = vmatprep.subr.mxu0 0.0
      %5099 = vmatpush1.msra.mxu0 0.0
      %5100 = vmatprep.subr.mxu0 0.0
      %5101 = vmatpush1.msra.mxu0 0.0
      %5102 = vmatprep.subr.mxu0 0.0
      %5103 = vmatpush1.msra.mxu0 0.0
      %5104 = vmatprep.subr.mxu0 0.0
      %5105 = vmatpush1.msra.mxu0 0.0
      %5106 = vmatprep.subr.mxu0 0.0
      %5107 = vmatpush1.msra.mxu0 0.0
      %5108 = vmatprep.subr.mxu0 0.0
      %5109 = vmatpush1.msra.mxu0 0.0
      %5110 = vmatprep.subr.mxu0 0.0
      %5111 = vmatpush1.msra.mxu0 0.0
      %5112 = vmatprep.subr.mxu0 0.0
      %5113 = vmatpush1.msra.mxu0 0.0
      %5114 = vmatprep.subr.mxu0 0.0
      %5115 = vmatpush1.msra.mxu0 0.0
      %5116 = vmatprep.subr.mxu0 0.0
      %5117 = vmatpush1.msra.mxu0 0.0
      %5118 = vmatprep.subr.mxu0 0.0
      %5119 = vmatpush1.msra.mxu0 0.0
      %5120 = vmatprep.subr.mxu0 0.0
      %5121 = vmatpush1.msra.mxu0 0.0
      %5122 = vmatprep.subr.mxu0 0.0
      %5123 = vmatpush1.msra.mxu0 0.0
      %5124 = vmatprep.subr.mxu0 0.0
      %5125 = vmatpush1.msra.mxu0 0.0
      %5126 = vmatprep.subr.mxu0 0.0
      %5127 = vmatpush1.msra.mxu0 0.0
      %5128 = vmatprep.subr.mxu0 0.0
      %5129 = vmatpush1.msra.mxu0 0.0
      %5130 = vmatprep.subr.mxu0 0.0
      %5131 = vmatpush1.msra.mxu0 0.0
      %5132 = vmatprep.subr.mxu0 0.0
      %5133 = vmatpush1.msra.mxu0 0.0
      %5134 = vmatprep.subr.mxu0 0.0
      %5135 = vmatpush1.msra.mxu0 0.0
      %5136 = vmatprep.subr.mxu0 0.0
      %5137 = vmatpush1.msra.mxu0 0.0
      %5138 = vmatprep.mubr.f32.mxu0 0.0
      %v5139 = vand.u32 %v2054, 4294901760
      %v5140 = vsub.f32 %v2054, %v5139
      %v5141 = vand.u32 %v5140, 4294901760
      %v5142 = vsub.f32 %v5140, %v5141
      %v5143 = vand.u32 %v5142, 4294901760
      %5144 = vmatmul.mubr.f32.gmra.mrb[0].mxu0 %v5143
      %v5145 = vpop.f32.mrb[0].mxu0
      %v5146 = vadd.f32 0.0, %v5145
      %v5147 = vpop.f32.mrb[0].mxu0
      %5148 = vmatprep.mubr.f32.mxu0 0.0
      %v5149 = vand.u32 %v2057, 4294901760
      %v5150 = vsub.f32 %v2057, %v5149
      %v5151 = vand.u32 %v5150, 4294901760
      %v5152 = vsub.f32 %v5150, %v5151
      %v5153 = vand.u32 %v5152, 4294901760
      %5154 = vmatmul.mubr.f32.gmra.mrb[0].mxu0 %v5153
      %v5155 = vpop.f32.mrb[0].mxu0
      %v5156 = vadd.f32 0.0, %v5155
      %v5157 = vpop.f32.mrb[0].mxu0
      %5158 = vdwg.mxu0
      %5159 = vmatprep.subr.mxu0 0.0
      %v5160 = vand.u32 %v3167, 4294901760
      %v5161 = vsub.f32 %v3167, %v5160
      %v5162 = vand.u32 %v5161, 4294901760
      %v5163 = vsub.f32 %v5161, %v5162
      %v5164 = vand.u32 %v5163, 4294901760
      %5165 = vmatpush1.msra.mxu0 %v5164
      %5166 = vmatprep.subr.mxu0 0.0
      %v5167 = vand.u32 %v3168, 4294901760
      %v5168 = vsub.f32 %v3168, %v5167
      %v5169 = vand.u32 %v5168, 4294901760
      %v5170 = vsub.f32 %v5168, %v5169
      %v5171 = vand.u32 %v5170, 4294901760
      %5172 = vmatpush1.msra.mxu0 %v5171
      %5173 = vmatprep.subr.mxu0 0.0
      %5174 = vmatpush1.msra.mxu0 0.0
      %5175 = vmatprep.subr.mxu0 0.0
      %5176 = vmatpush1.msra.mxu0 0.0
      %5177 = vmatprep.subr.mxu0 0.0
      %5178 = vmatpush1.msra.mxu0 0.0
      %5179 = vmatprep.subr.mxu0 0.0
      %5180 = vmatpush1.msra.mxu0 0.0
      %5181 = vmatprep.subr.mxu0 0.0
      %5182 = vmatpush1.msra.mxu0 0.0
      %5183 = vmatprep.subr.mxu0 0.0
      %5184 = vmatpush1.msra.mxu0 0.0
      %5185 = vmatprep.subr.mxu0 0.0
      %5186 = vmatpush1.msra.mxu0 0.0
      %5187 = vmatprep.subr.mxu0 0.0
      %5188 = vmatpush1.msra.mxu0 0.0
      %5189 = vmatprep.subr.mxu0 0.0
      %5190 = vmatpush1.msra.mxu0 0.0
      %5191 = vmatprep.subr.mxu0 0.0
      %5192 = vmatpush1.msra.mxu0 0.0
      %5193 = vmatprep.subr.mxu0 0.0
      %5194 = vmatpush1.msra.mxu0 0.0
      %5195 = vmatprep.subr.mxu0 0.0
      %5196 = vmatpush1.msra.mxu0 0.0
      %5197 = vmatprep.subr.mxu0 0.0
      %5198 = vmatpush1.msra.mxu0 0.0
      %5199 = vmatprep.subr.mxu0 0.0
      %5200 = vmatpush1.msra.mxu0 0.0
      %5201 = vmatprep.subr.mxu0 0.0
      %5202 = vmatpush1.msra.mxu0 0.0
      %5203 = vmatprep.subr.mxu0 0.0
      %5204 = vmatpush1.msra.mxu0 0.0
      %5205 = vmatprep.subr.mxu0 0.0
      %5206 = vmatpush1.msra.mxu0 0.0
      %5207 = vmatprep.subr.mxu0 0.0
      %5208 = vmatpush1.msra.mxu0 0.0
      %5209 = vmatprep.subr.mxu0 0.0
      %5210 = vmatpush1.msra.mxu0 0.0
      %5211 = vmatprep.subr.mxu0 0.0
      %5212 = vmatpush1.msra.mxu0 0.0
      %5213 = vmatprep.subr.mxu0 0.0
      %5214 = vmatpush1.msra.mxu0 0.0
      %5215 = vmatprep.subr.mxu0 0.0
      %5216 = vmatpush1.msra.mxu0 0.0
      %5217 = vmatprep.subr.mxu0 0.0
      %5218 = vmatpush1.msra.mxu0 0.0
      %5219 = vmatprep.subr.mxu0 0.0
      %5220 = vmatpush1.msra.mxu0 0.0
      %5221 = vmatprep.subr.mxu0 0.0
      %5222 = vmatpush1.msra.mxu0 0.0
      %5223 = vmatprep.subr.mxu0 0.0
      %5224 = vmatpush1.msra.mxu0 0.0
      %5225 = vmatprep.subr.mxu0 0.0
      %5226 = vmatpush1.msra.mxu0 0.0
      %5227 = vmatprep.subr.mxu0 0.0
      %5228 = vmatpush1.msra.mxu0 0.0
      %5229 = vmatprep.subr.mxu0 0.0
      %5230 = vmatpush1.msra.mxu0 0.0
      %5231 = vmatprep.subr.mxu0 0.0
      %5232 = vmatpush1.msra.mxu0 0.0
      %5233 = vmatprep.mubr.f32.mxu0 0.0
      %v5234 = vand.u32 %v2054, 4294901760
      %5235 = vmatmul.mubr.f32.gmra.mrb[0].mxu0 %v5234
      %v5236 = vpop.f32.mrb[0].mxu0
      %v5237 = vadd.f32 %v5146, %v5236
      %v5238 = vpop.f32.mrb[0].mxu0
      %5239 = vmatprep.mubr.f32.mxu0 0.0
      %v5240 = vand.u32 %v2057, 4294901760
      %5241 = vmatmul.mubr.f32.gmra.mrb[0].mxu0 %v5240
      %v5242 = vpop.f32.mrb[0].mxu0
      %v5243 = vadd.f32 %v5156, %v5242
      %v5244 = vpop.f32.mrb[0].mxu0
      %5245 = vdwg.mxu0
      %5246 = vmatprep.subr.mxu0 0.0
      %v5247 = vand.u32 %v3167, 4294901760
      %v5248 = vsub.f32 %v3167, %v5247
      %5249 = vmatpush1.msra.mxu0 %v5248
      %5250 = vmatprep.subr.mxu0 0.0
      %v5251 = vand.u32 %v3168, 4294901760
      %v5252 = vsub.f32 %v3168, %v5251
      %5253 = vmatpush1.msra.mxu0 %v5252
      %5254 = vmatprep.subr.mxu0 0.0
      %5255 = vmatpush1.msra.mxu0 0.0
      %5256 = vmatprep.subr.mxu0 0.0
      %5257 = vmatpush1.msra.mxu0 0.0
      %5258 = vmatprep.subr.mxu0 0.0
      %5259 = vmatpush1.msra.mxu0 0.0
      %5260 = vmatprep.subr.mxu0 0.0
      %5261 = vmatpush1.msra.mxu0 0.0
      %5262 = vmatprep.subr.mxu0 0.0
      %5263 = vmatpush1.msra.mxu0 0.0
      %5264 = vmatprep.subr.mxu0 0.0
      %5265 = vmatpush1.msra.mxu0 0.0
      %5266 = vmatprep.subr.mxu0 0.0
      %5267 = vmatpush1.msra.mxu0 0.0
      %5268 = vmatprep.subr.mxu0 0.0
      %5269 = vmatpush1.msra.mxu0 0.0
      %5270 = vmatprep.subr.mxu0 0.0
      %5271 = vmatpush1.msra.mxu0 0.0
      %5272 = vmatprep.subr.mxu0 0.0
      %5273 = vmatpush1.msra.mxu0 0.0
      %5274 = vmatprep.subr.mxu0 0.0
      %5275 = vmatpush1.msra.mxu0 0.0
      %5276 = vmatprep.subr.mxu0 0.0
      %5277 = vmatpush1.msra.mxu0 0.0
      %5278 = vmatprep.subr.mxu0 0.0
      %5279 = vmatpush1.msra.mxu0 0.0
      %5280 = vmatprep.subr.mxu0 0.0
      %5281 = vmatpush1.msra.mxu0 0.0
      %5282 = vmatprep.subr.mxu0 0.0
      %5283 = vmatpush1.msra.mxu0 0.0
      %5284 = vmatprep.subr.mxu0 0.0
      %5285 = vmatpush1.msra.mxu0 0.0
      %5286 = vmatprep.subr.mxu0 0.0
      %5287 = vmatpush1.msra.mxu0 0.0
      %5288 = vmatprep.subr.mxu0 0.0
      %5289 = vmatpush1.msra.mxu0 0.0
      %5290 = vmatprep.subr.mxu0 0.0
      %5291 = vmatpush1.msra.mxu0 0.0
      %5292 = vmatprep.subr.mxu0 0.0
      %5293 = vmatpush1.msra.mxu0 0.0
      %5294 = vmatprep.subr.mxu0 0.0
      %5295 = vmatpush1.msra.mxu0 0.0
      %5296 = vmatprep.subr.mxu0 0.0
      %5297 = vmatpush1.msra.mxu0 0.0
      %5298 = vmatprep.subr.mxu0 0.0
      %5299 = vmatpush1.msra.mxu0 0.0
      %5300 = vmatprep.subr.mxu0 0.0
      %5301 = vmatpush1.msra.mxu0 0.0
      %5302 = vmatprep.subr.mxu0 0.0
      %5303 = vmatpush1.msra.mxu0 0.0
      %5304 = vmatprep.subr.mxu0 0.0
      %5305 = vmatpush1.msra.mxu0 0.0
      %5306 = vmatprep.subr.mxu0 0.0
      %5307 = vmatpush1.msra.mxu0 0.0
      %5308 = vmatprep.subr.mxu0 0.0
      %5309 = vmatpush1.msra.mxu0 0.0
      %5310 = vmatprep.subr.mxu0 0.0
      %5311 = vmatpush1.msra.mxu0 0.0
      %5312 = vmatprep.subr.mxu0 0.0
      %5313 = vmatpush1.msra.mxu0 0.0
      %5314 = vmatprep.mubr.f32.mxu0 0.0
      %v5315 = vand.u32 %v2054, 4294901760
      %v5316 = vsub.f32 %v2054, %v5315
      %5317 = vmatmul.mubr.f32.gmra.mrb[0].mxu0 %v5316
      %v5318 = vpop.f32.mrb[0].mxu0
      %v5319 = vadd.f32 %v5237, %v5318
      %v5320 = vpop.f32.mrb[0].mxu0
      %5321 = vmatprep.mubr.f32.mxu0 0.0
      %v5322 = vand.u32 %v2057, 4294901760
      %v5323 = vsub.f32 %v2057, %v5322
      %5324 = vmatmul.mubr.f32.gmra.mrb[0].mxu0 %v5323
      %v5325 = vpop.f32.mrb[0].mxu0
      %v5326 = vadd.f32 %v5243, %v5325
      %v5327 = vpop.f32.mrb[0].mxu0
      %5328 = vdwg.mxu0
      %5329 = vmatprep.subr.mxu0 0.0
      %v5330 = vand.u32 %v3167, 4294901760
      %5331 = vmatpush1.msra.mxu0 %v5330
      %5332 = vmatprep.subr.mxu0 0.0
      %v5333 = vand.u32 %v3168, 4294901760
      %5334 = vmatpush1.msra.mxu0 %v5333
      %5335 = vmatprep.subr.mxu0 0.0
      %5336 = vmatpush1.msra.mxu0 0.0
      %5337 = vmatprep.subr.mxu0 0.0
      %5338 = vmatpush1.msra.mxu0 0.0
      %5339 = vmatprep.subr.mxu0 0.0
      %5340 = vmatpush1.msra.mxu0 0.0
      %5341 = vmatprep.subr.mxu0 0.0
      %5342 = vmatpush1.msra.mxu0 0.0
      %5343 = vmatprep.subr.mxu0 0.0
      %5344 = vmatpush1.msra.mxu0 0.0
      %5345 = vmatprep.subr.mxu0 0.0
      %5346 = vmatpush1.msra.mxu0 0.0
      %5347 = vmatprep.subr.mxu0 0.0
      %5348 = vmatpush1.msra.mxu0 0.0
      %5349 = vmatprep.subr.mxu0 0.0
      %5350 = vmatpush1.msra.mxu0 0.0
      %5351 = vmatprep.subr.mxu0 0.0
      %5352 = vmatpush1.msra.mxu0 0.0
      %5353 = vmatprep.subr.mxu0 0.0
      %5354 = vmatpush1.msra.mxu0 0.0
      %5355 = vmatprep.subr.mxu0 0.0
      %5356 = vmatpush1.msra.mxu0 0.0
      %5357 = vmatprep.subr.mxu0 0.0
      %5358 = vmatpush1.msra.mxu0 0.0
      %5359 = vmatprep.subr.mxu0 0.0
      %5360 = vmatpush1.msra.mxu0 0.0
      %5361 = vmatprep.subr.mxu0 0.0
      %5362 = vmatpush1.msra.mxu0 0.0
      %5363 = vmatprep.subr.mxu0 0.0
      %5364 = vmatpush1.msra.mxu0 0.0
      %5365 = vmatprep.subr.mxu0 0.0
      %5366 = vmatpush1.msra.mxu0 0.0
      %5367 = vmatprep.subr.mxu0 0.0
      %5368 = vmatpush1.msra.mxu0 0.0
      %5369 = vmatprep.subr.mxu0 0.0
      %5370 = vmatpush1.msra.mxu0 0.0
      %5371 = vmatprep.subr.mxu0 0.0
      %5372 = vmatpush1.msra.mxu0 0.0
      %5373 = vmatprep.subr.mxu0 0.0
      %5374 = vmatpush1.msra.mxu0 0.0
      %5375 = vmatprep.subr.mxu0 0.0
      %5376 = vmatpush1.msra.mxu0 0.0
      %5377 = vmatprep.subr.mxu0 0.0
      %5378 = vmatpush1.msra.mxu0 0.0
      %5379 = vmatprep.subr.mxu0 0.0
      %5380 = vmatpush1.msra.mxu0 0.0
      %5381 = vmatprep.subr.mxu0 0.0
      %5382 = vmatpush1.msra.mxu0 0.0
      %5383 = vmatprep.subr.mxu0 0.0
      %5384 = vmatpush1.msra.mxu0 0.0
      %5385 = vmatprep.subr.mxu0 0.0
      %5386 = vmatpush1.msra.mxu0 0.0
      %5387 = vmatprep.subr.mxu0 0.0
      %5388 = vmatpush1.msra.mxu0 0.0
      %5389 = vmatprep.subr.mxu0 0.0
      %5390 = vmatpush1.msra.mxu0 0.0
      %5391 = vmatprep.subr.mxu0 0.0
      %5392 = vmatpush1.msra.mxu0 0.0
      %5393 = vmatprep.subr.mxu0 0.0
      %5394 = vmatpush1.msra.mxu0 0.0
      %5395 = vmatprep.mubr.f32.mxu0 0.0
      %v5396 = vand.u32 %v2054, 4294901760
      %v5397 = vsub.f32 %v2054, %v5396
      %v5398 = vand.u32 %v5397, 4294901760
      %5399 = vmatmul.mubr.f32.gmra.mrb[0].mxu0 %v5398
      %v5400 = vpop.f32.mrb[0].mxu0
      %v5401 = vadd.f32 %v5319, %v5400
      %v5402 = vpop.f32.mrb[0].mxu0
      %5403 = vmatprep.mubr.f32.mxu0 0.0
      %v5404 = vand.u32 %v2057, 4294901760
      %v5405 = vsub.f32 %v2057, %v5404
      %v5406 = vand.u32 %v5405, 4294901760
      %5407 = vmatmul.mubr.f32.gmra.mrb[0].mxu0 %v5406
      %v5408 = vpop.f32.mrb[0].mxu0
      %v5409 = vadd.f32 %v5326, %v5408
      %v5410 = vpop.f32.mrb[0].mxu0
      %5411 = vdwg.mxu0
      %5412 = vmatprep.subr.mxu0 0.0
      %v5413 = vand.u32 %v3167, 4294901760
      %v5414 = vsub.f32 %v3167, %v5413
      %v5415 = vand.u32 %v5414, 4294901760
      %5416 = vmatpush1.msra.mxu0 %v5415
      %5417 = vmatprep.subr.mxu0 0.0
      %v5418 = vand.u32 %v3168, 4294901760
      %v5419 = vsub.f32 %v3168, %v5418
      %v5420 = vand.u32 %v5419, 4294901760
      %5421 = vmatpush1.msra.mxu0 %v5420
      %5422 = vmatprep.subr.mxu0 0.0
      %5423 = vmatpush1.msra.mxu0 0.0
      %5424 = vmatprep.subr.mxu0 0.0
      %5425 = vmatpush1.msra.mxu0 0.0
      %5426 = vmatprep.subr.mxu0 0.0
      %5427 = vmatpush1.msra.mxu0 0.0
      %5428 = vmatprep.subr.mxu0 0.0
      %5429 = vmatpush1.msra.mxu0 0.0
      %5430 = vmatprep.subr.mxu0 0.0
      %5431 = vmatpush1.msra.mxu0 0.0
      %5432 = vmatprep.subr.mxu0 0.0
      %5433 = vmatpush1.msra.mxu0 0.0
      %5434 = vmatprep.subr.mxu0 0.0
      %5435 = vmatpush1.msra.mxu0 0.0
      %5436 = vmatprep.subr.mxu0 0.0
      %5437 = vmatpush1.msra.mxu0 0.0
      %5438 = vmatprep.subr.mxu0 0.0
      %5439 = vmatpush1.msra.mxu0 0.0
      %5440 = vmatprep.subr.mxu0 0.0
      %5441 = vmatpush1.msra.mxu0 0.0
      %5442 = vmatprep.subr.mxu0 0.0
      %5443 = vmatpush1.msra.mxu0 0.0
      %5444 = vmatprep.subr.mxu0 0.0
      %5445 = vmatpush1.msra.mxu0 0.0
      %5446 = vmatprep.subr.mxu0 0.0
      %5447 = vmatpush1.msra.mxu0 0.0
      %5448 = vmatprep.subr.mxu0 0.0
      %5449 = vmatpush1.msra.mxu0 0.0
      %5450 = vmatprep.subr.mxu0 0.0
      %5451 = vmatpush1.msra.mxu0 0.0
      %5452 = vmatprep.subr.mxu0 0.0
      %5453 = vmatpush1.msra.mxu0 0.0
      %5454 = vmatprep.subr.mxu0 0.0
      %5455 = vmatpush1.msra.mxu0 0.0
      %5456 = vmatprep.subr.mxu0 0.0
      %5457 = vmatpush1.msra.mxu0 0.0
      %5458 = vmatprep.subr.mxu0 0.0
      %5459 = vmatpush1.msra.mxu0 0.0
      %5460 = vmatprep.subr.mxu0 0.0
      %5461 = vmatpush1.msra.mxu0 0.0
      %5462 = vmatprep.subr.mxu0 0.0
      %5463 = vmatpush1.msra.mxu0 0.0
      %5464 = vmatprep.subr.mxu0 0.0
      %5465 = vmatpush1.msra.mxu0 0.0
      %5466 = vmatprep.subr.mxu0 0.0
      %5467 = vmatpush1.msra.mxu0 0.0
      %5468 = vmatprep.subr.mxu0 0.0
      %5469 = vmatpush1.msra.mxu0 0.0
      %5470 = vmatprep.subr.mxu0 0.0
      %5471 = vmatpush1.msra.mxu0 0.0
      %5472 = vmatprep.subr.mxu0 0.0
      %5473 = vmatpush1.msra.mxu0 0.0
      %5474 = vmatprep.subr.mxu0 0.0
      %5475 = vmatpush1.msra.mxu0 0.0
      %5476 = vmatprep.subr.mxu0 0.0
      %5477 = vmatpush1.msra.mxu0 0.0
      %5478 = vmatprep.subr.mxu0 0.0
      %5479 = vmatpush1.msra.mxu0 0.0
      %5480 = vmatprep.subr.mxu0 0.0
      %5481 = vmatpush1.msra.mxu0 0.0
      %5482 = vmatprep.mubr.f32.mxu0 0.0
      %v5483 = vand.u32 %v2054, 4294901760
      %5484 = vmatmul.mubr.f32.gmra.mrb[0].mxu0 %v5483
      %v5485 = vpop.f32.mrb[0].mxu0
      %v5486 = vadd.f32 %v5401, %v5485
      %v5487 = vpop.f32.mrb[0].mxu0
      %5488 = vmatprep.mubr.f32.mxu0 0.0
      %v5489 = vand.u32 %v2057, 4294901760
      %5490 = vmatmul.mubr.f32.gmra.mrb[0].mxu0 %v5489
      %v5491 = vpop.f32.mrb[0].mxu0
      %v5492 = vadd.f32 %v5409, %v5491
      %v5493 = vpop.f32.mrb[0].mxu0
      %5494 = vdwg.mxu0
      %5495 = vmatprep.subr.mxu0 0.0
      %v5496 = vand.u32 %v3167, 4294901760
      %5497 = vmatpush1.msra.mxu0 %v5496
      %5498 = vmatprep.subr.mxu0 0.0
      %v5499 = vand.u32 %v3168, 4294901760
      %5500 = vmatpush1.msra.mxu0 %v5499
      %5501 = vmatprep.subr.mxu0 0.0
      %5502 = vmatpush1.msra.mxu0 0.0
      %5503 = vmatprep.subr.mxu0 0.0
      %5504 = vmatpush1.msra.mxu0 0.0
      %5505 = vmatprep.subr.mxu0 0.0
      %5506 = vmatpush1.msra.mxu0 0.0
      %5507 = vmatprep.subr.mxu0 0.0
      %5508 = vmatpush1.msra.mxu0 0.0
      %5509 = vmatprep.subr.mxu0 0.0
      %5510 = vmatpush1.msra.mxu0 0.0
      %5511 = vmatprep.subr.mxu0 0.0
      %5512 = vmatpush1.msra.mxu0 0.0
      %5513 = vmatprep.subr.mxu0 0.0
      %5514 = vmatpush1.msra.mxu0 0.0
      %5515 = vmatprep.subr.mxu0 0.0
      %5516 = vmatpush1.msra.mxu0 0.0
      %5517 = vmatprep.subr.mxu0 0.0
      %5518 = vmatpush1.msra.mxu0 0.0
      %5519 = vmatprep.subr.mxu0 0.0
      %5520 = vmatpush1.msra.mxu0 0.0
      %5521 = vmatprep.subr.mxu0 0.0
      %5522 = vmatpush1.msra.mxu0 0.0
      %5523 = vmatprep.subr.mxu0 0.0
      %5524 = vmatpush1.msra.mxu0 0.0
      %5525 = vmatprep.subr.mxu0 0.0
      %5526 = vmatpush1.msra.mxu0 0.0
      %5527 = vmatprep.subr.mxu0 0.0
      %5528 = vmatpush1.msra.mxu0 0.0
      %5529 = vmatprep.subr.mxu0 0.0
      %5530 = vmatpush1.msra.mxu0 0.0
      %5531 = vmatprep.subr.mxu0 0.0
      %5532 = vmatpush1.msra.mxu0 0.0
      %5533 = vmatprep.subr.mxu0 0.0
      %5534 = vmatpush1.msra.mxu0 0.0
      %5535 = vmatprep.subr.mxu0 0.0
      %5536 = vmatpush1.msra.mxu0 0.0
      %5537 = vmatprep.subr.mxu0 0.0
      %5538 = vmatpush1.msra.mxu0 0.0
      %5539 = vmatprep.subr.mxu0 0.0
      %5540 = vmatpush1.msra.mxu0 0.0
      %5541 = vmatprep.subr.mxu0 0.0
      %5542 = vmatpush1.msra.mxu0 0.0
      %5543 = vmatprep.subr.mxu0 0.0
      %5544 = vmatpush1.msra.mxu0 0.0
      %5545 = vmatprep.subr.mxu0 0.0
      %5546 = vmatpush1.msra.mxu0 0.0
      %5547 = vmatprep.subr.mxu0 0.0
      %5548 = vmatpush1.msra.mxu0 0.0
      %5549 = vmatprep.subr.mxu0 0.0
      %5550 = vmatpush1.msra.mxu0 0.0
      %5551 = vmatprep.subr.mxu0 0.0
      %5552 = vmatpush1.msra.mxu0 0.0
      %5553 = vmatprep.subr.mxu0 0.0
      %5554 = vmatpush1.msra.mxu0 0.0
      %5555 = vmatprep.subr.mxu0 0.0
      %5556 = vmatpush1.msra.mxu0 0.0
      %5557 = vmatprep.subr.mxu0 0.0
      %5558 = vmatpush1.msra.mxu0 0.0
      %5559 = vmatprep.subr.mxu0 0.0
      %5560 = vmatpush1.msra.mxu0 0.0
      %5561 = vmatprep.mubr.f32.mxu0 0.0
      %v5562 = vand.u32 %v2054, 4294901760
      %5563 = vmatmul.mubr.f32.gmra.mrb[0].mxu0 %v5562
      %v5564 = vpop.f32.mrb[0].mxu0
      %v5565 = vadd.f32 %v5486, %v5564
      %v5566 = vpop.f32.mrb[0].mxu0
      %5567 = vmatprep.mubr.f32.mxu0 0.0
      %v5568 = vand.u32 %v2057, 4294901760
      %5569 = vmatmul.mubr.f32.gmra.mrb[0].mxu0 %v5568
      %v5570 = vpop.f32.mrb[0].mxu0
      %v5571 = vadd.f32 %v5492, %v5570
      %v5572 = vpop.f32.mrb[0].mxu0
      %5573 = vdwg.mxu0
      %s5574 = scalar_lea.vmem %s3, 256
      %v5575 = vld [vmem:[%s5574] sm:$0xff]
      %v5576 = vld [vmem:[%s5574 + $0x8] sm:$0xff]
      %v5577 = vld [vmem:[%s5574 + $0x10] sm:$0xff]
      %v5578 = vld [vmem:[%s5574 + $0x18] sm:$0xff]
      %v5579 = vld [vmem:[%s5574 + $0x20] sm:$0xff]
      %v5580 = vld [vmem:[%s5574 + $0x28] sm:$0xff]
      %v5581 = vld [vmem:[%s5574 + $0x30] sm:$0xff]
      %v5582 = vld [vmem:[%s5574 + $0x38] sm:$0xff]
      %v5583 = vld [vmem:[%s5574 + $0x40] sm:$0xff]
      %v5584 = vld [vmem:[%s5574 + $0x48] sm:$0xff]
      %v5585 = vld [vmem:[%s5574 + $0x50] sm:$0xff]
      %v5586 = vld [vmem:[%s5574 + $0x58] sm:$0xff]
      %v5587 = vld [vmem:[%s5574 + $0x60] sm:$0xff]
      %v5588 = vld [vmem:[%s5574 + $0x68] sm:$0xff]
      %v5589 = vld [vmem:[%s5574 + $0x70] sm:$0xff]
      %v5590 = vld [vmem:[%s5574 + $0x78] sm:$0xff]
      %5591 = vmatprep.subr.mxu0 0.0
      %v5592 = vand.u32 %v5575, 4294901760
      %5593 = vmatpush1.msra.mxu0 %v5592
      %5594 = vmatprep.subr.mxu0 0.0
      %v5595 = vand.u32 %v5576, 4294901760
      %5596 = vmatpush1.msra.mxu0 %v5595
      %5597 = vmatprep.subr.mxu0 0.0
      %v5598 = vand.u32 %v5577, 4294901760
      %5599 = vmatpush1.msra.mxu0 %v5598
      %5600 = vmatprep.subr.mxu0 0.0
      %v5601 = vand.u32 %v5578, 4294901760
      %5602 = vmatpush1.msra.mxu0 %v5601
      %5603 = vmatprep.subr.mxu0 0.0
      %v5604 = vand.u32 %v5579, 4294901760
      %5605 = vmatpush1.msra.mxu0 %v5604
      %5606 = vmatprep.subr.mxu0 0.0
      %v5607 = vand.u32 %v5580, 4294901760
      %5608 = vmatpush1.msra.mxu0 %v5607
      %5609 = vmatprep.subr.mxu0 0.0
      %v5610 = vand.u32 %v5581, 4294901760
      %5611 = vmatpush1.msra.mxu0 %v5610
      %5612 = vmatprep.subr.mxu0 0.0
      %v5613 = vand.u32 %v5582, 4294901760
      %5614 = vmatpush1.msra.mxu0 %v5613
      %5615 = vmatprep.subr.mxu0 0.0
      %v5616 = vand.u32 %v5583, 4294901760
      %5617 = vmatpush1.msra.mxu0 %v5616
      %5618 = vmatprep.subr.mxu0 0.0
      %v5619 = vand.u32 %v5584, 4294901760
      %5620 = vmatpush1.msra.mxu0 %v5619
      %5621 = vmatprep.subr.mxu0 0.0
      %v5622 = vand.u32 %v5585, 4294901760
      %5623 = vmatpush1.msra.mxu0 %v5622
      %5624 = vmatprep.subr.mxu0 0.0
      %v5625 = vand.u32 %v5586, 4294901760
      %5626 = vmatpush1.msra.mxu0 %v5625
      %5627 = vmatprep.subr.mxu0 0.0
      %v5628 = vand.u32 %v5587, 4294901760
      %5629 = vmatpush1.msra.mxu0 %v5628
      %5630 = vmatprep.subr.mxu0 0.0
      %v5631 = vand.u32 %v5588, 4294901760
      %5632 = vmatpush1.msra.mxu0 %v5631
      %5633 = vmatprep.subr.mxu0 0.0
      %v5634 = vand.u32 %v5589, 4294901760
      %5635 = vmatpush1.msra.mxu0 %v5634
      %5636 = vmatprep.subr.mxu0 0.0
      %v5637 = vand.u32 %v5590, 4294901760
      %5638 = vmatpush1.msra.mxu0 %v5637
      %5639 = vmatprep.subr.mxu0 0.0
      %5640 = vmatpush1.msra.mxu0 0.0
      %5641 = vmatprep.subr.mxu0 0.0
      %5642 = vmatpush1.msra.mxu0 0.0
      %5643 = vmatprep.subr.mxu0 0.0
      %5644 = vmatpush1.msra.mxu0 0.0
      %5645 = vmatprep.subr.mxu0 0.0
      %5646 = vmatpush1.msra.mxu0 0.0
      %5647 = vmatprep.subr.mxu0 0.0
      %5648 = vmatpush1.msra.mxu0 0.0
      %5649 = vmatprep.subr.mxu0 0.0
      %5650 = vmatpush1.msra.mxu0 0.0
      %5651 = vmatprep.subr.mxu0 0.0
      %5652 = vmatpush1.msra.mxu0 0.0
      %5653 = vmatprep.subr.mxu0 0.0
      %5654 = vmatpush1.msra.mxu0 0.0
      %5655 = vmatprep.subr.mxu0 0.0
      %5656 = vmatpush1.msra.mxu0 0.0
      %5657 = vmatprep.subr.mxu0 0.0
      %5658 = vmatpush1.msra.mxu0 0.0
      %5659 = vmatprep.subr.mxu0 0.0
      %5660 = vmatpush1.msra.mxu0 0.0
      %5661 = vmatprep.subr.mxu0 0.0
      %5662 = vmatpush1.msra.mxu0 0.0
      %5663 = vmatprep.subr.mxu0 0.0
      %5664 = vmatpush1.msra.mxu0 0.0
      %5665 = vmatprep.subr.mxu0 0.0
      %5666 = vmatpush1.msra.mxu0 0.0
      %5667 = vmatprep.subr.mxu0 0.0
      %5668 = vmatpush1.msra.mxu0 0.0
      %5669 = vmatprep.subr.mxu0 0.0
      %5670 = vmatpush1.msra.mxu0 0.0
      %5671 = vmatprep.mubr.f32.mxu0 0.0
      %v5672 = vand.u32 %v5565, 4294901760
      %v5673 = vsub.f32 %v5565, %v5672
      %v5674 = vand.u32 %v5673, 4294901760
      %v5675 = vsub.f32 %v5673, %v5674
      %v5676 = vand.u32 %v5675, 4294901760
      %5677 = vmatmul.mubr.f32.gmra.mrb[0].mxu0 %v5676
      %v5678 = vpop.f32.mrb[0].mxu0
      %v5679 = vadd.f32 0.0, %v5678
      %v5680 = vpop.f32.mrb[0].mxu0
      %5681 = vmatprep.mubr.f32.mxu0 0.0
      %v5682 = vand.u32 %v5571, 4294901760
      %v5683 = vsub.f32 %v5571, %v5682
      %v5684 = vand.u32 %v5683, 4294901760
      %v5685 = vsub.f32 %v5683, %v5684
      %v5686 = vand.u32 %v5685, 4294901760
      %5687 = vmatmul.mubr.f32.gmra.mrb[0].mxu0 %v5686
      %v5688 = vpop.f32.mrb[0].mxu0
      %v5689 = vadd.f32 0.0, %v5688
      %v5690 = vpop.f32.mrb[0].mxu0
      %5691 = vdwg.mxu0
      %5692 = vmatprep.subr.mxu0 0.0
      %v5693 = vand.u32 %v5575, 4294901760
      %v5694 = vsub.f32 %v5575, %v5693
      %v5695 = vand.u32 %v5694, 4294901760
      %v5696 = vsub.f32 %v5694, %v5695
      %v5697 = vand.u32 %v5696, 4294901760
      %5698 = vmatpush1.msra.mxu0 %v5697
      %5699 = vmatprep.subr.mxu0 0.0
      %v5700 = vand.u32 %v5576, 4294901760
      %v5701 = vsub.f32 %v5576, %v5700
      %v5702 = vand.u32 %v5701, 4294901760
      %v5703 = vsub.f32 %v5701, %v5702
      %v5704 = vand.u32 %v5703, 4294901760
      %5705 = vmatpush1.msra.mxu0 %v5704
      %5706 = vmatprep.subr.mxu0 0.0
      %v5707 = vand.u32 %v5577, 4294901760
      %v5708 = vsub.f32 %v5577, %v5707
      %v5709 = vand.u32 %v5708, 4294901760
      %v5710 = vsub.f32 %v5708, %v5709
      %v5711 = vand.u32 %v5710, 4294901760
      %5712 = vmatpush1.msra.mxu0 %v5711
      %5713 = vmatprep.subr.mxu0 0.0
      %v5714 = vand.u32 %v5578, 4294901760
      %v5715 = vsub.f32 %v5578, %v5714
      %v5716 = vand.u32 %v5715, 4294901760
      %v5717 = vsub.f32 %v5715, %v5716
      %v5718 = vand.u32 %v5717, 4294901760
      %5719 = vmatpush1.msra.mxu0 %v5718
      %5720 = vmatprep.subr.mxu0 0.0
      %v5721 = vand.u32 %v5579, 4294901760
      %v5722 = vsub.f32 %v5579, %v5721
      %v5723 = vand.u32 %v5722, 4294901760
      %v5724 = vsub.f32 %v5722, %v5723
      %v5725 = vand.u32 %v5724, 4294901760
      %5726 = vmatpush1.msra.mxu0 %v5725
      %5727 = vmatprep.subr.mxu0 0.0
      %v5728 = vand.u32 %v5580, 4294901760
      %v5729 = vsub.f32 %v5580, %v5728
      %v5730 = vand.u32 %v5729, 4294901760
      %v5731 = vsub.f32 %v5729, %v5730
      %v5732 = vand.u32 %v5731, 4294901760
      %5733 = vmatpush1.msra.mxu0 %v5732
      %5734 = vmatprep.subr.mxu0 0.0
      %v5735 = vand.u32 %v5581, 4294901760
      %v5736 = vsub.f32 %v5581, %v5735
      %v5737 = vand.u32 %v5736, 4294901760
      %v5738 = vsub.f32 %v5736, %v5737
      %v5739 = vand.u32 %v5738, 4294901760
      %5740 = vmatpush1.msra.mxu0 %v5739
      %5741 = vmatprep.subr.mxu0 0.0
      %v5742 = vand.u32 %v5582, 4294901760
      %v5743 = vsub.f32 %v5582, %v5742
      %v5744 = vand.u32 %v5743, 4294901760
      %v5745 = vsub.f32 %v5743, %v5744
      %v5746 = vand.u32 %v5745, 4294901760
      %5747 = vmatpush1.msra.mxu0 %v5746
      %5748 = vmatprep.subr.mxu0 0.0
      %v5749 = vand.u32 %v5583, 4294901760
      %v5750 = vsub.f32 %v5583, %v5749
      %v5751 = vand.u32 %v5750, 4294901760
      %v5752 = vsub.f32 %v5750, %v5751
      %v5753 = vand.u32 %v5752, 4294901760
      %5754 = vmatpush1.msra.mxu0 %v5753
      %5755 = vmatprep.subr.mxu0 0.0
      %v5756 = vand.u32 %v5584, 4294901760
      %v5757 = vsub.f32 %v5584, %v5756
      %v5758 = vand.u32 %v5757, 4294901760
      %v5759 = vsub.f32 %v5757, %v5758
      %v5760 = vand.u32 %v5759, 4294901760
      %5761 = vmatpush1.msra.mxu0 %v5760
      %5762 = vmatprep.subr.mxu0 0.0
      %v5763 = vand.u32 %v5585, 4294901760
      %v5764 = vsub.f32 %v5585, %v5763
      %v5765 = vand.u32 %v5764, 4294901760
      %v5766 = vsub.f32 %v5764, %v5765
      %v5767 = vand.u32 %v5766, 4294901760
      %5768 = vmatpush1.msra.mxu0 %v5767
      %5769 = vmatprep.subr.mxu0 0.0
      %v5770 = vand.u32 %v5586, 4294901760
      %v5771 = vsub.f32 %v5586, %v5770
      %v5772 = vand.u32 %v5771, 4294901760
      %v5773 = vsub.f32 %v5771, %v5772
      %v5774 = vand.u32 %v5773, 4294901760
      %5775 = vmatpush1.msra.mxu0 %v5774
      %5776 = vmatprep.subr.mxu0 0.0
      %v5777 = vand.u32 %v5587, 4294901760
      %v5778 = vsub.f32 %v5587, %v5777
      %v5779 = vand.u32 %v5778, 4294901760
      %v5780 = vsub.f32 %v5778, %v5779
      %v5781 = vand.u32 %v5780, 4294901760
      %5782 = vmatpush1.msra.mxu0 %v5781
      %5783 = vmatprep.subr.mxu0 0.0
      %v5784 = vand.u32 %v5588, 4294901760
      %v5785 = vsub.f32 %v5588, %v5784
      %v5786 = vand.u32 %v5785, 4294901760
      %v5787 = vsub.f32 %v5785, %v5786
      %v5788 = vand.u32 %v5787, 4294901760
      %5789 = vmatpush1.msra.mxu0 %v5788
      %5790 = vmatprep.subr.mxu0 0.0
      %v5791 = vand.u32 %v5589, 4294901760
      %v5792 = vsub.f32 %v5589, %v5791
      %v5793 = vand.u32 %v5792, 4294901760
      %v5794 = vsub.f32 %v5792, %v5793
      %v5795 = vand.u32 %v5794, 4294901760
      %5796 = vmatpush1.msra.mxu0 %v5795
      %5797 = vmatprep.subr.mxu0 0.0
      %v5798 = vand.u32 %v5590, 4294901760
      %v5799 = vsub.f32 %v5590, %v5798
      %v5800 = vand.u32 %v5799, 4294901760
      %v5801 = vsub.f32 %v5799, %v5800
      %v5802 = vand.u32 %v5801, 4294901760
      %5803 = vmatpush1.msra.mxu0 %v5802
      %5804 = vmatprep.subr.mxu0 0.0
      %5805 = vmatpush1.msra.mxu0 0.0
      %5806 = vmatprep.subr.mxu0 0.0
      %5807 = vmatpush1.msra.mxu0 0.0
      %5808 = vmatprep.subr.mxu0 0.0
      %5809 = vmatpush1.msra.mxu0 0.0
      %5810 = vmatprep.subr.mxu0 0.0
      %5811 = vmatpush1.msra.mxu0 0.0
      %5812 = vmatprep.subr.mxu0 0.0
      %5813 = vmatpush1.msra.mxu0 0.0
      %5814 = vmatprep.subr.mxu0 0.0
      %5815 = vmatpush1.msra.mxu0 0.0
      %5816 = vmatprep.subr.mxu0 0.0
      %5817 = vmatpush1.msra.mxu0 0.0
      %5818 = vmatprep.subr.mxu0 0.0
      %5819 = vmatpush1.msra.mxu0 0.0
      %5820 = vmatprep.subr.mxu0 0.0
      %5821 = vmatpush1.msra.mxu0 0.0
      %5822 = vmatprep.subr.mxu0 0.0
      %5823 = vmatpush1.msra.mxu0 0.0
      %5824 = vmatprep.subr.mxu0 0.0
      %5825 = vmatpush1.msra.mxu0 0.0
      %5826 = vmatprep.subr.mxu0 0.0
      %5827 = vmatpush1.msra.mxu0 0.0
      %5828 = vmatprep.subr.mxu0 0.0
      %5829 = vmatpush1.msra.mxu0 0.0
      %5830 = vmatprep.subr.mxu0 0.0
      %5831 = vmatpush1.msra.mxu0 0.0
      %5832 = vmatprep.subr.mxu0 0.0
      %5833 = vmatpush1.msra.mxu0 0.0
      %5834 = vmatprep.subr.mxu0 0.0
      %5835 = vmatpush1.msra.mxu0 0.0
      %5836 = vmatprep.mubr.f32.mxu0 0.0
      %v5837 = vand.u32 %v5565, 4294901760
      %5838 = vmatmul.mubr.f32.gmra.mrb[0].mxu0 %v5837
      %v5839 = vpop.f32.mrb[0].mxu0
      %v5840 = vadd.f32 %v5679, %v5839
      %v5841 = vpop.f32.mrb[0].mxu0
      %5842 = vmatprep.mubr.f32.mxu0 0.0
      %v5843 = vand.u32 %v5571, 4294901760
      %5844 = vmatmul.mubr.f32.gmra.mrb[0].mxu0 %v5843
      %v5845 = vpop.f32.mrb[0].mxu0
      %v5846 = vadd.f32 %v5689, %v5845
      %v5847 = vpop.f32.mrb[0].mxu0
      %5848 = vdwg.mxu0
      %5849 = vmatprep.subr.mxu0 0.0
      %v5850 = vand.u32 %v5575, 4294901760
      %v5851 = vsub.f32 %v5575, %v5850
      %5852 = vmatpush1.msra.mxu0 %v5851
      %5853 = vmatprep.subr.mxu0 0.0
      %v5854 = vand.u32 %v5576, 4294901760
      %v5855 = vsub.f32 %v5576, %v5854
      %5856 = vmatpush1.msra.mxu0 %v5855
      %5857 = vmatprep.subr.mxu0 0.0
      %v5858 = vand.u32 %v5577, 4294901760
      %v5859 = vsub.f32 %v5577, %v5858
      %5860 = vmatpush1.msra.mxu0 %v5859
      %5861 = vmatprep.subr.mxu0 0.0
      %v5862 = vand.u32 %v5578, 4294901760
      %v5863 = vsub.f32 %v5578, %v5862
      %5864 = vmatpush1.msra.mxu0 %v5863
      %5865 = vmatprep.subr.mxu0 0.0
      %v5866 = vand.u32 %v5579, 4294901760
      %v5867 = vsub.f32 %v5579, %v5866
      %5868 = vmatpush1.msra.mxu0 %v5867
      %5869 = vmatprep.subr.mxu0 0.0
      %v5870 = vand.u32 %v5580, 4294901760
      %v5871 = vsub.f32 %v5580, %v5870
      %5872 = vmatpush1.msra.mxu0 %v5871
      %5873 = vmatprep.subr.mxu0 0.0
      %v5874 = vand.u32 %v5581, 4294901760
      %v5875 = vsub.f32 %v5581, %v5874
      %5876 = vmatpush1.msra.mxu0 %v5875
      %5877 = vmatprep.subr.mxu0 0.0
      %v5878 = vand.u32 %v5582, 4294901760
      %v5879 = vsub.f32 %v5582, %v5878
      %5880 = vmatpush1.msra.mxu0 %v5879
      %5881 = vmatprep.subr.mxu0 0.0
      %v5882 = vand.u32 %v5583, 4294901760
      %v5883 = vsub.f32 %v5583, %v5882
      %5884 = vmatpush1.msra.mxu0 %v5883
      %5885 = vmatprep.subr.mxu0 0.0
      %v5886 = vand.u32 %v5584, 4294901760
      %v5887 = vsub.f32 %v5584, %v5886
      %5888 = vmatpush1.msra.mxu0 %v5887
      %5889 = vmatprep.subr.mxu0 0.0
      %v5890 = vand.u32 %v5585, 4294901760
      %v5891 = vsub.f32 %v5585, %v5890
      %5892 = vmatpush1.msra.mxu0 %v5891
      %5893 = vmatprep.subr.mxu0 0.0
      %v5894 = vand.u32 %v5586, 4294901760
      %v5895 = vsub.f32 %v5586, %v5894
      %5896 = vmatpush1.msra.mxu0 %v5895
      %5897 = vmatprep.subr.mxu0 0.0
      %v5898 = vand.u32 %v5587, 4294901760
      %v5899 = vsub.f32 %v5587, %v5898
      %5900 = vmatpush1.msra.mxu0 %v5899
      %5901 = vmatprep.subr.mxu0 0.0
      %v5902 = vand.u32 %v5588, 4294901760
      %v5903 = vsub.f32 %v5588, %v5902
      %5904 = vmatpush1.msra.mxu0 %v5903
      %5905 = vmatprep.subr.mxu0 0.0
      %v5906 = vand.u32 %v5589, 4294901760
      %v5907 = vsub.f32 %v5589, %v5906
      %5908 = vmatpush1.msra.mxu0 %v5907
      %5909 = vmatprep.subr.mxu0 0.0
      %v5910 = vand.u32 %v5590, 4294901760
      %v5911 = vsub.f32 %v5590, %v5910
      %5912 = vmatpush1.msra.mxu0 %v5911
      %5913 = vmatprep.subr.mxu0 0.0
      %5914 = vmatpush1.msra.mxu0 0.0
      %5915 = vmatprep.subr.mxu0 0.0
      %5916 = vmatpush1.msra.mxu0 0.0
      %5917 = vmatprep.subr.mxu0 0.0
      %5918 = vmatpush1.msra.mxu0 0.0
      %5919 = vmatprep.subr.mxu0 0.0
      %5920 = vmatpush1.msra.mxu0 0.0
      %5921 = vmatprep.subr.mxu0 0.0
      %5922 = vmatpush1.msra.mxu0 0.0
      %5923 = vmatprep.subr.mxu0 0.0
      %5924 = vmatpush1.msra.mxu0 0.0
      %5925 = vmatprep.subr.mxu0 0.0
      %5926 = vmatpush1.msra.mxu0 0.0
      %5927 = vmatprep.subr.mxu0 0.0
      %5928 = vmatpush1.msra.mxu0 0.0
      %5929 = vmatprep.subr.mxu0 0.0
      %5930 = vmatpush1.msra.mxu0 0.0
      %5931 = vmatprep.subr.mxu0 0.0
      %5932 = vmatpush1.msra.mxu0 0.0
      %5933 = vmatprep.subr.mxu0 0.0
      %5934 = vmatpush1.msra.mxu0 0.0
      %5935 = vmatprep.subr.mxu0 0.0
      %5936 = vmatpush1.msra.mxu0 0.0
      %5937 = vmatprep.subr.mxu0 0.0
      %5938 = vmatpush1.msra.mxu0 0.0
      %5939 = vmatprep.subr.mxu0 0.0
      %5940 = vmatpush1.msra.mxu0 0.0
      %5941 = vmatprep.subr.mxu0 0.0
      %5942 = vmatpush1.msra.mxu0 0.0
      %5943 = vmatprep.subr.mxu0 0.0
      %5944 = vmatpush1.msra.mxu0 0.0
      %5945 = vmatprep.mubr.f32.mxu0 0.0
      %v5946 = vand.u32 %v5565, 4294901760
      %v5947 = vsub.f32 %v5565, %v5946
      %5948 = vmatmul.mubr.f32.gmra.mrb[0].mxu0 %v5947
      %v5949 = vpop.f32.mrb[0].mxu0
      %v5950 = vadd.f32 %v5840, %v5949
      %v5951 = vpop.f32.mrb[0].mxu0
      %5952 = vmatprep.mubr.f32.mxu0 0.0
      %v5953 = vand.u32 %v5571, 4294901760
      %v5954 = vsub.f32 %v5571, %v5953
      %5955 = vmatmul.mubr.f32.gmra.mrb[0].mxu0 %v5954
      %v5956 = vpop.f32.mrb[0].mxu0
      %v5957 = vadd.f32 %v5846, %v5956
      %v5958 = vpop.f32.mrb[0].mxu0
      %5959 = vdwg.mxu0
      %5960 = vmatprep.subr.mxu0 0.0
      %v5961 = vand.u32 %v5575, 4294901760
      %5962 = vmatpush1.msra.mxu0 %v5961
      %5963 = vmatprep.subr.mxu0 0.0
      %v5964 = vand.u32 %v5576, 4294901760
      %5965 = vmatpush1.msra.mxu0 %v5964
      %5966 = vmatprep.subr.mxu0 0.0
      %v5967 = vand.u32 %v5577, 4294901760
      %5968 = vmatpush1.msra.mxu0 %v5967
      %5969 = vmatprep.subr.mxu0 0.0
      %v5970 = vand.u32 %v5578, 4294901760
      %5971 = vmatpush1.msra.mxu0 %v5970
      %5972 = vmatprep.subr.mxu0 0.0
      %v5973 = vand.u32 %v5579, 4294901760
      %5974 = vmatpush1.msra.mxu0 %v5973
      %5975 = vmatprep.subr.mxu0 0.0
      %v5976 = vand.u32 %v5580, 4294901760
      %5977 = vmatpush1.msra.mxu0 %v5976
      %5978 = vmatprep.subr.mxu0 0.0
      %v5979 = vand.u32 %v5581, 4294901760
      %5980 = vmatpush1.msra.mxu0 %v5979
      %5981 = vmatprep.subr.mxu0 0.0
      %v5982 = vand.u32 %v5582, 4294901760
      %5983 = vmatpush1.msra.mxu0 %v5982
      %5984 = vmatprep.subr.mxu0 0.0
      %v5985 = vand.u32 %v5583, 4294901760
      %5986 = vmatpush1.msra.mxu0 %v5985
      %5987 = vmatprep.subr.mxu0 0.0
      %v5988 = vand.u32 %v5584, 4294901760
      %5989 = vmatpush1.msra.mxu0 %v5988
      %5990 = vmatprep.subr.mxu0 0.0
      %v5991 = vand.u32 %v5585, 4294901760
      %5992 = vmatpush1.msra.mxu0 %v5991
      %5993 = vmatprep.subr.mxu0 0.0
      %v5994 = vand.u32 %v5586, 4294901760
      %5995 = vmatpush1.msra.mxu0 %v5994
      %5996 = vmatprep.subr.mxu0 0.0
      %v5997 = vand.u32 %v5587, 4294901760
      %5998 = vmatpush1.msra.mxu0 %v5997
      %5999 = vmatprep.subr.mxu0 0.0
      %v6000 = vand.u32 %v5588, 4294901760
      %6001 = vmatpush1.msra.mxu0 %v6000
      %6002 = vmatprep.subr.mxu0 0.0
      %v6003 = vand.u32 %v5589, 4294901760
      %6004 = vmatpush1.msra.mxu0 %v6003
      %6005 = vmatprep.subr.mxu0 0.0
      %v6006 = vand.u32 %v5590, 4294901760
      %6007 = vmatpush1.msra.mxu0 %v6006
      %6008 = vmatprep.subr.mxu0 0.0
      %6009 = vmatpush1.msra.mxu0 0.0
      %6010 = vmatprep.subr.mxu0 0.0
      %6011 = vmatpush1.msra.mxu0 0.0
      %6012 = vmatprep.subr.mxu0 0.0
      %6013 = vmatpush1.msra.mxu0 0.0
      %6014 = vmatprep.subr.mxu0 0.0
      %6015 = vmatpush1.msra.mxu0 0.0
      %6016 = vmatprep.subr.mxu0 0.0
      %6017 = vmatpush1.msra.mxu0 0.0
      %6018 = vmatprep.subr.mxu0 0.0
      %6019 = vmatpush1.msra.mxu0 0.0
      %6020 = vmatprep.subr.mxu0 0.0
      %6021 = vmatpush1.msra.mxu0 0.0
      %6022 = vmatprep.subr.mxu0 0.0
      %6023 = vmatpush1.msra.mxu0 0.0
      %6024 = vmatprep.subr.mxu0 0.0
      %6025 = vmatpush1.msra.mxu0 0.0
      %6026 = vmatprep.subr.mxu0 0.0
      %6027 = vmatpush1.msra.mxu0 0.0
      %6028 = vmatprep.subr.mxu0 0.0
      %6029 = vmatpush1.msra.mxu0 0.0
      %6030 = vmatprep.subr.mxu0 0.0
      %6031 = vmatpush1.msra.mxu0 0.0
      %6032 = vmatprep.subr.mxu0 0.0
      %6033 = vmatpush1.msra.mxu0 0.0
      %6034 = vmatprep.subr.mxu0 0.0
      %6035 = vmatpush1.msra.mxu0 0.0
      %6036 = vmatprep.subr.mxu0 0.0
      %6037 = vmatpush1.msra.mxu0 0.0
      %6038 = vmatprep.subr.mxu0 0.0
      %6039 = vmatpush1.msra.mxu0 0.0
      %6040 = vmatprep.mubr.f32.mxu0 0.0
      %v6041 = vand.u32 %v5565, 4294901760
      %v6042 = vsub.f32 %v5565, %v6041
      %v6043 = vand.u32 %v6042, 4294901760
      %6044 = vmatmul.mubr.f32.gmra.mrb[0].mxu0 %v6043
      %v6045 = vpop.f32.mrb[0].mxu0
      %v6046 = vadd.f32 %v5950, %v6045
      %v6047 = vpop.f32.mrb[0].mxu0
      %6048 = vmatprep.mubr.f32.mxu0 0.0
      %v6049 = vand.u32 %v5571, 4294901760
      %v6050 = vsub.f32 %v5571, %v6049
      %v6051 = vand.u32 %v6050, 4294901760
      %6052 = vmatmul.mubr.f32.gmra.mrb[0].mxu0 %v6051
      %v6053 = vpop.f32.mrb[0].mxu0
      %v6054 = vadd.f32 %v5957, %v6053
      %v6055 = vpop.f32.mrb[0].mxu0
      %6056 = vdwg.mxu0
      %6057 = vmatprep.subr.mxu0 0.0
      %v6058 = vand.u32 %v5575, 4294901760
      %v6059 = vsub.f32 %v5575, %v6058
      %v6060 = vand.u32 %v6059, 4294901760
      %6061 = vmatpush1.msra.mxu0 %v6060
      %6062 = vmatprep.subr.mxu0 0.0
      %v6063 = vand.u32 %v5576, 4294901760
      %v6064 = vsub.f32 %v5576, %v6063
      %v6065 = vand.u32 %v6064, 4294901760
      %6066 = vmatpush1.msra.mxu0 %v6065
      %6067 = vmatprep.subr.mxu0 0.0
      %v6068 = vand.u32 %v5577, 4294901760
      %v6069 = vsub.f32 %v5577, %v6068
      %v6070 = vand.u32 %v6069, 4294901760
      %6071 = vmatpush1.msra.mxu0 %v6070
      %6072 = vmatprep.subr.mxu0 0.0
      %v6073 = vand.u32 %v5578, 4294901760
      %v6074 = vsub.f32 %v5578, %v6073
      %v6075 = vand.u32 %v6074, 4294901760
      %6076 = vmatpush1.msra.mxu0 %v6075
      %6077 = vmatprep.subr.mxu0 0.0
      %v6078 = vand.u32 %v5579, 4294901760
      %v6079 = vsub.f32 %v5579, %v6078
      %v6080 = vand.u32 %v6079, 4294901760
      %6081 = vmatpush1.msra.mxu0 %v6080
      %6082 = vmatprep.subr.mxu0 0.0
      %v6083 = vand.u32 %v5580, 4294901760
      %v6084 = vsub.f32 %v5580, %v6083
      %v6085 = vand.u32 %v6084, 4294901760
      %6086 = vmatpush1.msra.mxu0 %v6085
      %6087 = vmatprep.subr.mxu0 0.0
      %v6088 = vand.u32 %v5581, 4294901760
      %v6089 = vsub.f32 %v5581, %v6088
      %v6090 = vand.u32 %v6089, 4294901760
      %6091 = vmatpush1.msra.mxu0 %v6090
      %6092 = vmatprep.subr.mxu0 0.0
      %v6093 = vand.u32 %v5582, 4294901760
      %v6094 = vsub.f32 %v5582, %v6093
      %v6095 = vand.u32 %v6094, 4294901760
      %6096 = vmatpush1.msra.mxu0 %v6095
      %6097 = vmatprep.subr.mxu0 0.0
      %v6098 = vand.u32 %v5583, 4294901760
      %v6099 = vsub.f32 %v5583, %v6098
      %v6100 = vand.u32 %v6099, 4294901760
      %6101 = vmatpush1.msra.mxu0 %v6100
      %6102 = vmatprep.subr.mxu0 0.0
      %v6103 = vand.u32 %v5584, 4294901760
      %v6104 = vsub.f32 %v5584, %v6103
      %v6105 = vand.u32 %v6104, 4294901760
      %6106 = vmatpush1.msra.mxu0 %v6105
      %6107 = vmatprep.subr.mxu0 0.0
      %v6108 = vand.u32 %v5585, 4294901760
      %v6109 = vsub.f32 %v5585, %v6108
      %v6110 = vand.u32 %v6109, 4294901760
      %6111 = vmatpush1.msra.mxu0 %v6110
      %6112 = vmatprep.subr.mxu0 0.0
      %v6113 = vand.u32 %v5586, 4294901760
      %v6114 = vsub.f32 %v5586, %v6113
      %v6115 = vand.u32 %v6114, 4294901760
      %6116 = vmatpush1.msra.mxu0 %v6115
      %6117 = vmatprep.subr.mxu0 0.0
      %v6118 = vand.u32 %v5587, 4294901760
      %v6119 = vsub.f32 %v5587, %v6118
      %v6120 = vand.u32 %v6119, 4294901760
      %6121 = vmatpush1.msra.mxu0 %v6120
      %6122 = vmatprep.subr.mxu0 0.0
      %v6123 = vand.u32 %v5588, 4294901760
      %v6124 = vsub.f32 %v5588, %v6123
      %v6125 = vand.u32 %v6124, 4294901760
      %6126 = vmatpush1.msra.mxu0 %v6125
      %6127 = vmatprep.subr.mxu0 0.0
      %v6128 = vand.u32 %v5589, 4294901760
      %v6129 = vsub.f32 %v5589, %v6128
      %v6130 = vand.u32 %v6129, 4294901760
      %6131 = vmatpush1.msra.mxu0 %v6130
      %6132 = vmatprep.subr.mxu0 0.0
      %v6133 = vand.u32 %v5590, 4294901760
      %v6134 = vsub.f32 %v5590, %v6133
      %v6135 = vand.u32 %v6134, 4294901760
      %6136 = vmatpush1.msra.mxu0 %v6135
      %6137 = vmatprep.subr.mxu0 0.0
      %6138 = vmatpush1.msra.mxu0 0.0
      %6139 = vmatprep.subr.mxu0 0.0
      %6140 = vmatpush1.msra.mxu0 0.0
      %6141 = vmatprep.subr.mxu0 0.0
      %6142 = vmatpush1.msra.mxu0 0.0
      %6143 = vmatprep.subr.mxu0 0.0
      %6144 = vmatpush1.msra.mxu0 0.0
      %6145 = vmatprep.subr.mxu0 0.0
      %6146 = vmatpush1.msra.mxu0 0.0
      %6147 = vmatprep.subr.mxu0 0.0
      %6148 = vmatpush1.msra.mxu0 0.0
      %6149 = vmatprep.subr.mxu0 0.0
      %6150 = vmatpush1.msra.mxu0 0.0
      %6151 = vmatprep.subr.mxu0 0.0
      %6152 = vmatpush1.msra.mxu0 0.0
      %6153 = vmatprep.subr.mxu0 0.0
      %6154 = vmatpush1.msra.mxu0 0.0
      %6155 = vmatprep.subr.mxu0 0.0
      %6156 = vmatpush1.msra.mxu0 0.0
      %6157 = vmatprep.subr.mxu0 0.0
      %6158 = vmatpush1.msra.mxu0 0.0
      %6159 = vmatprep.subr.mxu0 0.0
      %6160 = vmatpush1.msra.mxu0 0.0
      %6161 = vmatprep.subr.mxu0 0.0
      %6162 = vmatpush1.msra.mxu0 0.0
      %6163 = vmatprep.subr.mxu0 0.0
      %6164 = vmatpush1.msra.mxu0 0.0
      %6165 = vmatprep.subr.mxu0 0.0
      %6166 = vmatpush1.msra.mxu0 0.0
      %6167 = vmatprep.subr.mxu0 0.0
      %6168 = vmatpush1.msra.mxu0 0.0
      %6169 = vmatprep.mubr.f32.mxu0 0.0
      %v6170 = vand.u32 %v5565, 4294901760
      %6171 = vmatmul.mubr.f32.gmra.mrb[0].mxu0 %v6170
      %v6172 = vpop.f32.mrb[0].mxu0
      %v6173 = vadd.f32 %v6046, %v6172
      %v6174 = vpop.f32.mrb[0].mxu0
      %6175 = vmatprep.mubr.f32.mxu0 0.0
      %v6176 = vand.u32 %v5571, 4294901760
      %6177 = vmatmul.mubr.f32.gmra.mrb[0].mxu0 %v6176
      %v6178 = vpop.f32.mrb[0].mxu0
      %v6179 = vadd.f32 %v6054, %v6178
      %v6180 = vpop.f32.mrb[0].mxu0
      %6181 = vdwg.mxu0
      %6182 = vmatprep.subr.mxu0 0.0
      %v6183 = vand.u32 %v5575, 4294901760
      %6184 = vmatpush1.msra.mxu0 %v6183
      %6185 = vmatprep.subr.mxu0 0.0
      %v6186 = vand.u32 %v5576, 4294901760
      %6187 = vmatpush1.msra.mxu0 %v6186
      %6188 = vmatprep.subr.mxu0 0.0
      %v6189 = vand.u32 %v5577, 4294901760
      %6190 = vmatpush1.msra.mxu0 %v6189
      %6191 = vmatprep.subr.mxu0 0.0
      %v6192 = vand.u32 %v5578, 4294901760
      %6193 = vmatpush1.msra.mxu0 %v6192
      %6194 = vmatprep.subr.mxu0 0.0
      %v6195 = vand.u32 %v5579, 4294901760
      %6196 = vmatpush1.msra.mxu0 %v6195
      %6197 = vmatprep.subr.mxu0 0.0
      %v6198 = vand.u32 %v5580, 4294901760
      %6199 = vmatpush1.msra.mxu0 %v6198
      %6200 = vmatprep.subr.mxu0 0.0
      %v6201 = vand.u32 %v5581, 4294901760
      %6202 = vmatpush1.msra.mxu0 %v6201
      %6203 = vmatprep.subr.mxu0 0.0
      %v6204 = vand.u32 %v5582, 4294901760
      %6205 = vmatpush1.msra.mxu0 %v6204
      %6206 = vmatprep.subr.mxu0 0.0
      %v6207 = vand.u32 %v5583, 4294901760
      %6208 = vmatpush1.msra.mxu0 %v6207
      %6209 = vmatprep.subr.mxu0 0.0
      %v6210 = vand.u32 %v5584, 4294901760
      %6211 = vmatpush1.msra.mxu0 %v6210
      %6212 = vmatprep.subr.mxu0 0.0
      %v6213 = vand.u32 %v5585, 4294901760
      %6214 = vmatpush1.msra.mxu0 %v6213
      %6215 = vmatprep.subr.mxu0 0.0
      %v6216 = vand.u32 %v5586, 4294901760
      %6217 = vmatpush1.msra.mxu0 %v6216
      %6218 = vmatprep.subr.mxu0 0.0
      %v6219 = vand.u32 %v5587, 4294901760
      %6220 = vmatpush1.msra.mxu0 %v6219
      %6221 = vmatprep.subr.mxu0 0.0
      %v6222 = vand.u32 %v5588, 4294901760
      %6223 = vmatpush1.msra.mxu0 %v6222
      %6224 = vmatprep.subr.mxu0 0.0
      %v6225 = vand.u32 %v5589, 4294901760
      %6226 = vmatpush1.msra.mxu0 %v6225
      %6227 = vmatprep.subr.mxu0 0.0
      %v6228 = vand.u32 %v5590, 4294901760
      %6229 = vmatpush1.msra.mxu0 %v6228
      %6230 = vmatprep.subr.mxu0 0.0
      %6231 = vmatpush1.msra.mxu0 0.0
      %6232 = vmatprep.subr.mxu0 0.0
      %6233 = vmatpush1.msra.mxu0 0.0
      %6234 = vmatprep.subr.mxu0 0.0
      %6235 = vmatpush1.msra.mxu0 0.0
      %6236 = vmatprep.subr.mxu0 0.0
      %6237 = vmatpush1.msra.mxu0 0.0
      %6238 = vmatprep.subr.mxu0 0.0
      %6239 = vmatpush1.msra.mxu0 0.0
      %6240 = vmatprep.subr.mxu0 0.0
      %6241 = vmatpush1.msra.mxu0 0.0
      %6242 = vmatprep.subr.mxu0 0.0
      %6243 = vmatpush1.msra.mxu0 0.0
      %6244 = vmatprep.subr.mxu0 0.0
      %6245 = vmatpush1.msra.mxu0 0.0
      %6246 = vmatprep.subr.mxu0 0.0
      %6247 = vmatpush1.msra.mxu0 0.0
      %6248 = vmatprep.subr.mxu0 0.0
      %6249 = vmatpush1.msra.mxu0 0.0
      %6250 = vmatprep.subr.mxu0 0.0
      %6251 = vmatpush1.msra.mxu0 0.0
      %6252 = vmatprep.subr.mxu0 0.0
      %6253 = vmatpush1.msra.mxu0 0.0
      %6254 = vmatprep.subr.mxu0 0.0
      %6255 = vmatpush1.msra.mxu0 0.0
      %6256 = vmatprep.subr.mxu0 0.0
      %6257 = vmatpush1.msra.mxu0 0.0
      %6258 = vmatprep.subr.mxu0 0.0
      %6259 = vmatpush1.msra.mxu0 0.0
      %6260 = vmatprep.subr.mxu0 0.0
      %6261 = vmatpush1.msra.mxu0 0.0
      %6262 = vmatprep.mubr.f32.mxu0 0.0
      %v6263 = vand.u32 %v5565, 4294901760
      %6264 = vmatmul.mubr.f32.gmra.mrb[0].mxu0 %v6263
      %v6265 = vpop.f32.mrb[0].mxu0
      %v6266 = vadd.f32 %v6173, %v6265
      %v6267 = vpop.f32.mrb[0].mxu0
      %6268 = vmatprep.mubr.f32.mxu0 0.0
      %v6269 = vand.u32 %v5571, 4294901760
      %6270 = vmatmul.mubr.f32.gmra.mrb[0].mxu0 %v6269
      %v6271 = vpop.f32.mrb[0].mxu0
      %v6272 = vadd.f32 %v6179, %v6271
      %v6273 = vpop.f32.mrb[0].mxu0
      %6274 = vdwg.mxu0
      %v6275 = vadd.f32 %v5063, %v6266
      %v6276 = vadd.f32 %v5069, %v6272
      %v6277 = vld [vmem:[%s4] sm:$0x1]
      %v6279 = vlaneseq
      %v6280 = vshrl.u32 %v6279, 7
      %v6281 = vsub.s32 0, %v6280
      %v6282 = vrot.slane %v6277, %v6281
      %v6284 = vadd.f32 %v6275, %v6282
      %v6285 = vadd.f32 %v6276, %v6282
      %v6286 = vmax.f32 %v6284, 0.0
      %v6287 = vmax.f32 %v6285, 0.0
      %6288 = vst [vmem:[%s341] sm:$0xff] %v6286
      %6289 = vst [vmem:[%s341 + $0x8] sm:$0xff] %v6287
      %v6290 = vld [vmem:[%s6] sm:$0xff]
      %v6292 = vsel %vm354, %v6290, 0
      %6294 = vmatprep.subr.mxu0 0.0
      %v6295 = vand.u32 %v6286, 4294901760
      %6296 = vmatpush1.msra.mxu0 %v6295
      %6297 = vmatprep.subr.mxu0 0.0
      %v6298 = vand.u32 %v6287, 4294901760
      %6299 = vmatpush1.msra.mxu0 %v6298
      %6300 = vmatprep.subr.mxu0 0.0
      %6301 = vmatpush1.msra.mxu0 0.0
      %6302 = vmatprep.subr.mxu0 0.0
      %6303 = vmatpush1.msra.mxu0 0.0
      %6304 = vmatprep.subr.mxu0 0.0
      %6305 = vmatpush1.msra.mxu0 0.0
      %6306 = vmatprep.subr.mxu0 0.0
      %6307 = vmatpush1.msra.mxu0 0.0
      %6308 = vmatprep.subr.mxu0 0.0
      %6309 = vmatpush1.msra.mxu0 0.0
      %6310 = vmatprep.subr.mxu0 0.0
      %6311 = vmatpush1.msra.mxu0 0.0
      %6312 = vmatprep.subr.mxu0 0.0
      %6313 = vmatpush1.msra.mxu0 0.0
      %6314 = vmatprep.subr.mxu0 0.0
      %6315 = vmatpush1.msra.mxu0 0.0
      %6316 = vmatprep.subr.mxu0 0.0
      %6317 = vmatpush1.msra.mxu0 0.0
      %6318 = vmatprep.subr.mxu0 0.0
      %6319 = vmatpush1.msra.mxu0 0.0
      %6320 = vmatprep.subr.mxu0 0.0
      %6321 = vmatpush1.msra.mxu0 0.0
      %6322 = vmatprep.subr.mxu0 0.0
      %6323 = vmatpush1.msra.mxu0 0.0
      %6324 = vmatprep.subr.mxu0 0.0
      %6325 = vmatpush1.msra.mxu0 0.0
      %6326 = vmatprep.subr.mxu0 0.0
      %6327 = vmatpush1.msra.mxu0 0.0
      %6328 = vmatprep.subr.mxu0 0.0
      %6329 = vmatpush1.msra.mxu0 0.0
      %6330 = vmatprep.subr.mxu0 0.0
      %6331 = vmatpush1.msra.mxu0 0.0
      %6332 = vmatprep.subr.mxu0 0.0
      %6333 = vmatpush1.msra.mxu0 0.0
      %6334 = vmatprep.subr.mxu0 0.0
      %6335 = vmatpush1.msra.mxu0 0.0
      %6336 = vmatprep.subr.mxu0 0.0
      %6337 = vmatpush1.msra.mxu0 0.0
      %6338 = vmatprep.subr.mxu0 0.0
      %6339 = vmatpush1.msra.mxu0 0.0
      %6340 = vmatprep.subr.mxu0 0.0
      %6341 = vmatpush1.msra.mxu0 0.0
      %6342 = vmatprep.subr.mxu0 0.0
      %6343 = vmatpush1.msra.mxu0 0.0
      %6344 = vmatprep.subr.mxu0 0.0
      %6345 = vmatpush1.msra.mxu0 0.0
      %6346 = vmatprep.subr.mxu0 0.0
      %6347 = vmatpush1.msra.mxu0 0.0
      %6348 = vmatprep.subr.mxu0 0.0
      %6349 = vmatpush1.msra.mxu0 0.0
      %6350 = vmatprep.subr.mxu0 0.0
      %6351 = vmatpush1.msra.mxu0 0.0
      %6352 = vmatprep.subr.mxu0 0.0
      %6353 = vmatpush1.msra.mxu0 0.0
      %6354 = vmatprep.subr.mxu0 0.0
      %6355 = vmatpush1.msra.mxu0 0.0
      %6356 = vmatprep.subr.mxu0 0.0
      %6357 = vmatpush1.msra.mxu0 0.0
      %6358 = vmatprep.subr.mxu0 0.0
      %6359 = vmatpush1.msra.mxu0 0.0
      %6360 = vmatprep.mubr.f32.mxu0 0.0
      %v6361 = vand.u32 %v6292, 4294901760
      %v6362 = vsub.f32 %v6292, %v6361
      %v6363 = vand.u32 %v6362, 4294901760
      %v6364 = vsub.f32 %v6362, %v6363
      %v6365 = vand.u32 %v6364, 4294901760
      %6366 = vmatmul.mubr.f32.gmra.mrb[0].mxu0 %v6365
      %v6367 = vpop.f32.mrb[0].mxu0
      %v6368 = vadd.f32 0.0, %v6367
      %v6369 = vpop.f32.mrb[0].mxu0
      %6370 = vdwg.mxu0
      %6371 = vmatprep.subr.mxu0 0.0
      %v6372 = vand.u32 %v6286, 4294901760
      %v6373 = vsub.f32 %v6286, %v6372
      %v6374 = vand.u32 %v6373, 4294901760
      %v6375 = vsub.f32 %v6373, %v6374
      %v6376 = vand.u32 %v6375, 4294901760
      %6377 = vmatpush1.msra.mxu0 %v6376
      %6378 = vmatprep.subr.mxu0 0.0
      %v6379 = vand.u32 %v6287, 4294901760
      %v6380 = vsub.f32 %v6287, %v6379
      %v6381 = vand.u32 %v6380, 4294901760
      %v6382 = vsub.f32 %v6380, %v6381
      %v6383 = vand.u32 %v6382, 4294901760
      %6384 = vmatpush1.msra.mxu0 %v6383
      %6385 = vmatprep.subr.mxu0 0.0
      %6386 = vmatpush1.msra.mxu0 0.0
      %6387 = vmatprep.subr.mxu0 0.0
      %6388 = vmatpush1.msra.mxu0 0.0
      %6389 = vmatprep.subr.mxu0 0.0
      %6390 = vmatpush1.msra.mxu0 0.0
      %6391 = vmatprep.subr.mxu0 0.0
      %6392 = vmatpush1.msra.mxu0 0.0
      %6393 = vmatprep.subr.mxu0 0.0
      %6394 = vmatpush1.msra.mxu0 0.0
      %6395 = vmatprep.subr.mxu0 0.0
      %6396 = vmatpush1.msra.mxu0 0.0
      %6397 = vmatprep.subr.mxu0 0.0
      %6398 = vmatpush1.msra.mxu0 0.0
      %6399 = vmatprep.subr.mxu0 0.0
      %6400 = vmatpush1.msra.mxu0 0.0
      %6401 = vmatprep.subr.mxu0 0.0
      %6402 = vmatpush1.msra.mxu0 0.0
      %6403 = vmatprep.subr.mxu0 0.0
      %6404 = vmatpush1.msra.mxu0 0.0
      %6405 = vmatprep.subr.mxu0 0.0
      %6406 = vmatpush1.msra.mxu0 0.0
      %6407 = vmatprep.subr.mxu0 0.0
      %6408 = vmatpush1.msra.mxu0 0.0
      %6409 = vmatprep.subr.mxu0 0.0
      %6410 = vmatpush1.msra.mxu0 0.0
      %6411 = vmatprep.subr.mxu0 0.0
      %6412 = vmatpush1.msra.mxu0 0.0
      %6413 = vmatprep.subr.mxu0 0.0
      %6414 = vmatpush1.msra.mxu0 0.0
      %6415 = vmatprep.subr.mxu0 0.0
      %6416 = vmatpush1.msra.mxu0 0.0
      %6417 = vmatprep.subr.mxu0 0.0
      %6418 = vmatpush1.msra.mxu0 0.0
      %6419 = vmatprep.subr.mxu0 0.0
      %6420 = vmatpush1.msra.mxu0 0.0
      %6421 = vmatprep.subr.mxu0 0.0
      %6422 = vmatpush1.msra.mxu0 0.0
      %6423 = vmatprep.subr.mxu0 0.0
      %6424 = vmatpush1.msra.mxu0 0.0
      %6425 = vmatprep.subr.mxu0 0.0
      %6426 = vmatpush1.msra.mxu0 0.0
      %6427 = vmatprep.subr.mxu0 0.0
      %6428 = vmatpush1.msra.mxu0 0.0
      %6429 = vmatprep.subr.mxu0 0.0
      %6430 = vmatpush1.msra.mxu0 0.0
      %6431 = vmatprep.subr.mxu0 0.0
      %6432 = vmatpush1.msra.mxu0 0.0
      %6433 = vmatprep.subr.mxu0 0.0
      %6434 = vmatpush1.msra.mxu0 0.0
      %6435 = vmatprep.subr.mxu0 0.0
      %6436 = vmatpush1.msra.mxu0 0.0
      %6437 = vmatprep.subr.mxu0 0.0
      %6438 = vmatpush1.msra.mxu0 0.0
      %6439 = vmatprep.subr.mxu0 0.0
      %6440 = vmatpush1.msra.mxu0 0.0
      %6441 = vmatprep.subr.mxu0 0.0
      %6442 = vmatpush1.msra.mxu0 0.0
      %6443 = vmatprep.subr.mxu0 0.0
      %6444 = vmatpush1.msra.mxu0 0.0
      %6445 = vmatprep.mubr.f32.mxu0 0.0
      %v6446 = vand.u32 %v6292, 4294901760
      %6447 = vmatmul.mubr.f32.gmra.mrb[0].mxu0 %v6446
      %v6448 = vpop.f32.mrb[0].mxu0
      %v6449 = vadd.f32 %v6368, %v6448
      %v6450 = vpop.f32.mrb[0].mxu0
      %6451 = vdwg.mxu0
      %6452 = vmatprep.subr.mxu0 0.0
      %v6453 = vand.u32 %v6286, 4294901760
      %v6454 = vsub.f32 %v6286, %v6453
      %6455 = vmatpush1.msra.mxu0 %v6454
      %6456 = vmatprep.subr.mxu0 0.0
      %v6457 = vand.u32 %v6287, 4294901760
      %v6458 = vsub.f32 %v6287, %v6457
      %6459 = vmatpush1.msra.mxu0 %v6458
      %6460 = vmatprep.subr.mxu0 0.0
      %6461 = vmatpush1.msra.mxu0 0.0
      %6462 = vmatprep.subr.mxu0 0.0
      %6463 = vmatpush1.msra.mxu0 0.0
      %6464 = vmatprep.subr.mxu0 0.0
      %6465 = vmatpush1.msra.mxu0 0.0
      %6466 = vmatprep.subr.mxu0 0.0
      %6467 = vmatpush1.msra.mxu0 0.0
      %6468 = vmatprep.subr.mxu0 0.0
      %6469 = vmatpush1.msra.mxu0 0.0
      %6470 = vmatprep.subr.mxu0 0.0
      %6471 = vmatpush1.msra.mxu0 0.0
      %6472 = vmatprep.subr.mxu0 0.0
      %6473 = vmatpush1.msra.mxu0 0.0
      %6474 = vmatprep.subr.mxu0 0.0
      %6475 = vmatpush1.msra.mxu0 0.0
      %6476 = vmatprep.subr.mxu0 0.0
      %6477 = vmatpush1.msra.mxu0 0.0
      %6478 = vmatprep.subr.mxu0 0.0
      %6479 = vmatpush1.msra.mxu0 0.0
      %6480 = vmatprep.subr.mxu0 0.0
      %6481 = vmatpush1.msra.mxu0 0.0
      %6482 = vmatprep.subr.mxu0 0.0
      %6483 = vmatpush1.msra.mxu0 0.0
      %6484 = vmatprep.subr.mxu0 0.0
      %6485 = vmatpush1.msra.mxu0 0.0
      %6486 = vmatprep.subr.mxu0 0.0
      %6487 = vmatpush1.msra.mxu0 0.0
      %6488 = vmatprep.subr.mxu0 0.0
      %6489 = vmatpush1.msra.mxu0 0.0
      %6490 = vmatprep.subr.mxu0 0.0
      %6491 = vmatpush1.msra.mxu0 0.0
      %6492 = vmatprep.subr.mxu0 0.0
      %6493 = vmatpush1.msra.mxu0 0.0
      %6494 = vmatprep.subr.mxu0 0.0
      %6495 = vmatpush1.msra.mxu0 0.0
      %6496 = vmatprep.subr.mxu0 0.0
      %6497 = vmatpush1.msra.mxu0 0.0
      %6498 = vmatprep.subr.mxu0 0.0
      %6499 = vmatpush1.msra.mxu0 0.0
      %6500 = vmatprep.subr.mxu0 0.0
      %6501 = vmatpush1.msra.mxu0 0.0
      %6502 = vmatprep.subr.mxu0 0.0
      %6503 = vmatpush1.msra.mxu0 0.0
      %6504 = vmatprep.subr.mxu0 0.0
      %6505 = vmatpush1.msra.mxu0 0.0
      %6506 = vmatprep.subr.mxu0 0.0
      %6507 = vmatpush1.msra.mxu0 0.0
      %6508 = vmatprep.subr.mxu0 0.0
      %6509 = vmatpush1.msra.mxu0 0.0
      %6510 = vmatprep.subr.mxu0 0.0
      %6511 = vmatpush1.msra.mxu0 0.0
      %6512 = vmatprep.subr.mxu0 0.0
      %6513 = vmatpush1.msra.mxu0 0.0
      %6514 = vmatprep.subr.mxu0 0.0
      %6515 = vmatpush1.msra.mxu0 0.0
      %6516 = vmatprep.subr.mxu0 0.0
      %6517 = vmatpush1.msra.mxu0 0.0
      %6518 = vmatprep.subr.mxu0 0.0
      %6519 = vmatpush1.msra.mxu0 0.0
      %6520 = vmatprep.mubr.f32.mxu0 0.0
      %v6521 = vand.u32 %v6292, 4294901760
      %v6522 = vsub.f32 %v6292, %v6521
      %6523 = vmatmul.mubr.f32.gmra.mrb[0].mxu0 %v6522
      %v6524 = vpop.f32.mrb[0].mxu0
      %v6525 = vadd.f32 %v6449, %v6524
      %v6526 = vpop.f32.mrb[0].mxu0
      %6527 = vdwg.mxu0
      %6528 = vmatprep.subr.mxu0 0.0
      %v6529 = vand.u32 %v6286, 4294901760
      %6530 = vmatpush1.msra.mxu0 %v6529
      %6531 = vmatprep.subr.mxu0 0.0
      %v6532 = vand.u32 %v6287, 4294901760
      %6533 = vmatpush1.msra.mxu0 %v6532
      %6534 = vmatprep.subr.mxu0 0.0
      %6535 = vmatpush1.msra.mxu0 0.0
      %6536 = vmatprep.subr.mxu0 0.0
      %6537 = vmatpush1.msra.mxu0 0.0
      %6538 = vmatprep.subr.mxu0 0.0
      %6539 = vmatpush1.msra.mxu0 0.0
      %6540 = vmatprep.subr.mxu0 0.0
      %6541 = vmatpush1.msra.mxu0 0.0
      %6542 = vmatprep.subr.mxu0 0.0
      %6543 = vmatpush1.msra.mxu0 0.0
      %6544 = vmatprep.subr.mxu0 0.0
      %6545 = vmatpush1.msra.mxu0 0.0
      %6546 = vmatprep.subr.mxu0 0.0
      %6547 = vmatpush1.msra.mxu0 0.0
      %6548 = vmatprep.subr.mxu0 0.0
      %6549 = vmatpush1.msra.mxu0 0.0
      %6550 = vmatprep.subr.mxu0 0.0
      %6551 = vmatpush1.msra.mxu0 0.0
      %6552 = vmatprep.subr.mxu0 0.0
      %6553 = vmatpush1.msra.mxu0 0.0
      %6554 = vmatprep.subr.mxu0 0.0
      %6555 = vmatpush1.msra.mxu0 0.0
      %6556 = vmatprep.subr.mxu0 0.0
      %6557 = vmatpush1.msra.mxu0 0.0
      %6558 = vmatprep.subr.mxu0 0.0
      %6559 = vmatpush1.msra.mxu0 0.0
      %6560 = vmatprep.subr.mxu0 0.0
      %6561 = vmatpush1.msra.mxu0 0.0
      %6562 = vmatprep.subr.mxu0 0.0
      %6563 = vmatpush1.msra.mxu0 0.0
      %6564 = vmatprep.subr.mxu0 0.0
      %6565 = vmatpush1.msra.mxu0 0.0
      %6566 = vmatprep.subr.mxu0 0.0
      %6567 = vmatpush1.msra.mxu0 0.0
      %6568 = vmatprep.subr.mxu0 0.0
      %6569 = vmatpush1.msra.mxu0 0.0
      %6570 = vmatprep.subr.mxu0 0.0
      %6571 = vmatpush1.msra.mxu0 0.0
      %6572 = vmatprep.subr.mxu0 0.0
      %6573 = vmatpush1.msra.mxu0 0.0
      %6574 = vmatprep.subr.mxu0 0.0
      %6575 = vmatpush1.msra.mxu0 0.0
      %6576 = vmatprep.subr.mxu0 0.0
      %6577 = vmatpush1.msra.mxu0 0.0
      %6578 = vmatprep.subr.mxu0 0.0
      %6579 = vmatpush1.msra.mxu0 0.0
      %6580 = vmatprep.subr.mxu0 0.0
      %6581 = vmatpush1.msra.mxu0 0.0
      %6582 = vmatprep.subr.mxu0 0.0
      %6583 = vmatpush1.msra.mxu0 0.0
      %6584 = vmatprep.subr.mxu0 0.0
      %6585 = vmatpush1.msra.mxu0 0.0
      %6586 = vmatprep.subr.mxu0 0.0
      %6587 = vmatpush1.msra.mxu0 0.0
      %6588 = vmatprep.subr.mxu0 0.0
      %6589 = vmatpush1.msra.mxu0 0.0
      %6590 = vmatprep.subr.mxu0 0.0
      %6591 = vmatpush1.msra.mxu0 0.0
      %6592 = vmatprep.subr.mxu0 0.0
      %6593 = vmatpush1.msra.mxu0 0.0
      %6594 = vmatprep.mubr.f32.mxu0 0.0
      %v6595 = vand.u32 %v6292, 4294901760
      %v6596 = vsub.f32 %v6292, %v6595
      %v6597 = vand.u32 %v6596, 4294901760
      %6598 = vmatmul.mubr.f32.gmra.mrb[0].mxu0 %v6597
      %v6599 = vpop.f32.mrb[0].mxu0
      %v6600 = vadd.f32 %v6525, %v6599
      %v6601 = vpop.f32.mrb[0].mxu0
      %6602 = vdwg.mxu0
      %6603 = vmatprep.subr.mxu0 0.0
      %v6604 = vand.u32 %v6286, 4294901760
      %v6605 = vsub.f32 %v6286, %v6604
      %v6606 = vand.u32 %v6605, 4294901760
      %6607 = vmatpush1.msra.mxu0 %v6606
      %6608 = vmatprep.subr.mxu0 0.0
      %v6609 = vand.u32 %v6287, 4294901760
      %v6610 = vsub.f32 %v6287, %v6609
      %v6611 = vand.u32 %v6610, 4294901760
      %6612 = vmatpush1.msra.mxu0 %v6611
      %6613 = vmatprep.subr.mxu0 0.0
      %6614 = vmatpush1.msra.mxu0 0.0
      %6615 = vmatprep.subr.mxu0 0.0
      %6616 = vmatpush1.msra.mxu0 0.0
      %6617 = vmatprep.subr.mxu0 0.0
      %6618 = vmatpush1.msra.mxu0 0.0
      %6619 = vmatprep.subr.mxu0 0.0
      %6620 = vmatpush1.msra.mxu0 0.0
      %6621 = vmatprep.subr.mxu0 0.0
      %6622 = vmatpush1.msra.mxu0 0.0
      %6623 = vmatprep.subr.mxu0 0.0
      %6624 = vmatpush1.msra.mxu0 0.0
      %6625 = vmatprep.subr.mxu0 0.0
      %6626 = vmatpush1.msra.mxu0 0.0
      %6627 = vmatprep.subr.mxu0 0.0
      %6628 = vmatpush1.msra.mxu0 0.0
      %6629 = vmatprep.subr.mxu0 0.0
      %6630 = vmatpush1.msra.mxu0 0.0
      %6631 = vmatprep.subr.mxu0 0.0
      %6632 = vmatpush1.msra.mxu0 0.0
      %6633 = vmatprep.subr.mxu0 0.0
      %6634 = vmatpush1.msra.mxu0 0.0
      %6635 = vmatprep.subr.mxu0 0.0
      %6636 = vmatpush1.msra.mxu0 0.0
      %6637 = vmatprep.subr.mxu0 0.0
      %6638 = vmatpush1.msra.mxu0 0.0
      %6639 = vmatprep.subr.mxu0 0.0
      %6640 = vmatpush1.msra.mxu0 0.0
      %6641 = vmatprep.subr.mxu0 0.0
      %6642 = vmatpush1.msra.mxu0 0.0
      %6643 = vmatprep.subr.mxu0 0.0
      %6644 = vmatpush1.msra.mxu0 0.0
      %6645 = vmatprep.subr.mxu0 0.0
      %6646 = vmatpush1.msra.mxu0 0.0
      %6647 = vmatprep.subr.mxu0 0.0
      %6648 = vmatpush1.msra.mxu0 0.0
      %6649 = vmatprep.subr.mxu0 0.0
      %6650 = vmatpush1.msra.mxu0 0.0
      %6651 = vmatprep.subr.mxu0 0.0
      %6652 = vmatpush1.msra.mxu0 0.0
      %6653 = vmatprep.subr.mxu0 0.0
      %6654 = vmatpush1.msra.mxu0 0.0
      %6655 = vmatprep.subr.mxu0 0.0
      %6656 = vmatpush1.msra.mxu0 0.0
      %6657 = vmatprep.subr.mxu0 0.0
      %6658 = vmatpush1.msra.mxu0 0.0
      %6659 = vmatprep.subr.mxu0 0.0
      %6660 = vmatpush1.msra.mxu0 0.0
      %6661 = vmatprep.subr.mxu0 0.0
      %6662 = vmatpush1.msra.mxu0 0.0
      %6663 = vmatprep.subr.mxu0 0.0
      %6664 = vmatpush1.msra.mxu0 0.0
      %6665 = vmatprep.subr.mxu0 0.0
      %6666 = vmatpush1.msra.mxu0 0.0
      %6667 = vmatprep.subr.mxu0 0.0
      %6668 = vmatpush1.msra.mxu0 0.0
      %6669 = vmatprep.subr.mxu0 0.0
      %6670 = vmatpush1.msra.mxu0 0.0
      %6671 = vmatprep.subr.mxu0 0.0
      %6672 = vmatpush1.msra.mxu0 0.0
      %6673 = vmatprep.mubr.f32.mxu0 0.0
      %v6674 = vand.u32 %v6292, 4294901760
      %6675 = vmatmul.mubr.f32.gmra.mrb[0].mxu0 %v6674
      %v6676 = vpop.f32.mrb[0].mxu0
      %v6677 = vadd.f32 %v6600, %v6676
      %v6678 = vpop.f32.mrb[0].mxu0
      %6679 = vdwg.mxu0
      %6680 = vmatprep.subr.mxu0 0.0
      %v6681 = vand.u32 %v6286, 4294901760
      %6682 = vmatpush1.msra.mxu0 %v6681
      %6683 = vmatprep.subr.mxu0 0.0
      %v6684 = vand.u32 %v6287, 4294901760
      %6685 = vmatpush1.msra.mxu0 %v6684
      %6686 = vmatprep.subr.mxu0 0.0
      %6687 = vmatpush1.msra.mxu0 0.0
      %6688 = vmatprep.subr.mxu0 0.0
      %6689 = vmatpush1.msra.mxu0 0.0
      %6690 = vmatprep.subr.mxu0 0.0
      %6691 = vmatpush1.msra.mxu0 0.0
      %6692 = vmatprep.subr.mxu0 0.0
      %6693 = vmatpush1.msra.mxu0 0.0
      %6694 = vmatprep.subr.mxu0 0.0
      %6695 = vmatpush1.msra.mxu0 0.0
      %6696 = vmatprep.subr.mxu0 0.0
      %6697 = vmatpush1.msra.mxu0 0.0
      %6698 = vmatprep.subr.mxu0 0.0
      %6699 = vmatpush1.msra.mxu0 0.0
      %6700 = vmatprep.subr.mxu0 0.0
      %6701 = vmatpush1.msra.mxu0 0.0
      %6702 = vmatprep.subr.mxu0 0.0
      %6703 = vmatpush1.msra.mxu0 0.0
      %6704 = vmatprep.subr.mxu0 0.0
      %6705 = vmatpush1.msra.mxu0 0.0
      %6706 = vmatprep.subr.mxu0 0.0
      %6707 = vmatpush1.msra.mxu0 0.0
      %6708 = vmatprep.subr.mxu0 0.0
      %6709 = vmatpush1.msra.mxu0 0.0
      %6710 = vmatprep.subr.mxu0 0.0
      %6711 = vmatpush1.msra.mxu0 0.0
      %6712 = vmatprep.subr.mxu0 0.0
      %6713 = vmatpush1.msra.mxu0 0.0
      %6714 = vmatprep.subr.mxu0 0.0
      %6715 = vmatpush1.msra.mxu0 0.0
      %6716 = vmatprep.subr.mxu0 0.0
      %6717 = vmatpush1.msra.mxu0 0.0
      %6718 = vmatprep.subr.mxu0 0.0
      %6719 = vmatpush1.msra.mxu0 0.0
      %6720 = vmatprep.subr.mxu0 0.0
      %6721 = vmatpush1.msra.mxu0 0.0
      %6722 = vmatprep.subr.mxu0 0.0
      %6723 = vmatpush1.msra.mxu0 0.0
      %6724 = vmatprep.subr.mxu0 0.0
      %6725 = vmatpush1.msra.mxu0 0.0
      %6726 = vmatprep.subr.mxu0 0.0
      %6727 = vmatpush1.msra.mxu0 0.0
      %6728 = vmatprep.subr.mxu0 0.0
      %6729 = vmatpush1.msra.mxu0 0.0
      %6730 = vmatprep.subr.mxu0 0.0
      %6731 = vmatpush1.msra.mxu0 0.0
      %6732 = vmatprep.subr.mxu0 0.0
      %6733 = vmatpush1.msra.mxu0 0.0
      %6734 = vmatprep.subr.mxu0 0.0
      %6735 = vmatpush1.msra.mxu0 0.0
      %6736 = vmatprep.subr.mxu0 0.0
      %6737 = vmatpush1.msra.mxu0 0.0
      %6738 = vmatprep.subr.mxu0 0.0
      %6739 = vmatpush1.msra.mxu0 0.0
      %6740 = vmatprep.subr.mxu0 0.0
      %6741 = vmatpush1.msra.mxu0 0.0
      %6742 = vmatprep.subr.mxu0 0.0
      %6743 = vmatpush1.msra.mxu0 0.0
      %6744 = vmatprep.subr.mxu0 0.0
      %6745 = vmatpush1.msra.mxu0 0.0
      %6746 = vmatprep.mubr.f32.mxu0 0.0
      %v6747 = vand.u32 %v6292, 4294901760
      %6748 = vmatmul.mubr.f32.gmra.mrb[0].mxu0 %v6747
      %v6749 = vpop.f32.mrb[0].mxu0
      %v6750 = vadd.f32 %v6677, %v6749
      %v6751 = vpop.f32.mrb[0].mxu0
      %6752 = vdwg.mxu0
      %s6753 = scalar_lea.vmem %s6, 8
      %v6754 = vld [vmem:[%s6753] sm:$0xff]
      %v6756 = vsel %vm354, %v6754, 0
      %6758 = vmatprep.subr.mxu0 0.0
      %v6759 = vand.u32 %v6286, 4294901760
      %6760 = vmatpush1.msra.mxu0 %v6759
      %6761 = vmatprep.subr.mxu0 0.0
      %v6762 = vand.u32 %v6287, 4294901760
      %6763 = vmatpush1.msra.mxu0 %v6762
      %6764 = vmatprep.subr.mxu0 0.0
      %6765 = vmatpush1.msra.mxu0 0.0
      %6766 = vmatprep.subr.mxu0 0.0
      %6767 = vmatpush1.msra.mxu0 0.0
      %6768 = vmatprep.subr.mxu0 0.0
      %6769 = vmatpush1.msra.mxu0 0.0
      %6770 = vmatprep.subr.mxu0 0.0
      %6771 = vmatpush1.msra.mxu0 0.0
      %6772 = vmatprep.subr.mxu0 0.0
      %6773 = vmatpush1.msra.mxu0 0.0
      %6774 = vmatprep.subr.mxu0 0.0
      %6775 = vmatpush1.msra.mxu0 0.0
      %6776 = vmatprep.subr.mxu0 0.0
      %6777 = vmatpush1.msra.mxu0 0.0
      %6778 = vmatprep.subr.mxu0 0.0
      %6779 = vmatpush1.msra.mxu0 0.0
      %6780 = vmatprep.subr.mxu0 0.0
      %6781 = vmatpush1.msra.mxu0 0.0
      %6782 = vmatprep.subr.mxu0 0.0
      %6783 = vmatpush1.msra.mxu0 0.0
      %6784 = vmatprep.subr.mxu0 0.0
      %6785 = vmatpush1.msra.mxu0 0.0
      %6786 = vmatprep.subr.mxu0 0.0
      %6787 = vmatpush1.msra.mxu0 0.0
      %6788 = vmatprep.subr.mxu0 0.0
      %6789 = vmatpush1.msra.mxu0 0.0
      %6790 = vmatprep.subr.mxu0 0.0
      %6791 = vmatpush1.msra.mxu0 0.0
      %6792 = vmatprep.subr.mxu0 0.0
      %6793 = vmatpush1.msra.mxu0 0.0
      %6794 = vmatprep.subr.mxu0 0.0
      %6795 = vmatpush1.msra.mxu0 0.0
      %6796 = vmatprep.subr.mxu0 0.0
      %6797 = vmatpush1.msra.mxu0 0.0
      %6798 = vmatprep.subr.mxu0 0.0
      %6799 = vmatpush1.msra.mxu0 0.0
      %6800 = vmatprep.subr.mxu0 0.0
      %6801 = vmatpush1.msra.mxu0 0.0
      %6802 = vmatprep.subr.mxu0 0.0
      %6803 = vmatpush1.msra.mxu0 0.0
      %6804 = vmatprep.subr.mxu0 0.0
      %6805 = vmatpush1.msra.mxu0 0.0
      %6806 = vmatprep.subr.mxu0 0.0
      %6807 = vmatpush1.msra.mxu0 0.0
      %6808 = vmatprep.subr.mxu0 0.0
      %6809 = vmatpush1.msra.mxu0 0.0
      %6810 = vmatprep.subr.mxu0 0.0
      %6811 = vmatpush1.msra.mxu0 0.0
      %6812 = vmatprep.subr.mxu0 0.0
      %6813 = vmatpush1.msra.mxu0 0.0
      %6814 = vmatprep.subr.mxu0 0.0
      %6815 = vmatpush1.msra.mxu0 0.0
      %6816 = vmatprep.subr.mxu0 0.0
      %6817 = vmatpush1.msra.mxu0 0.0
      %6818 = vmatprep.subr.mxu0 0.0
      %6819 = vmatpush1.msra.mxu0 0.0
      %6820 = vmatprep.subr.mxu0 0.0
      %6821 = vmatpush1.msra.mxu0 0.0
      %6822 = vmatprep.subr.mxu0 0.0
      %6823 = vmatpush1.msra.mxu0 0.0
      %6824 = vmatprep.mubr.f32.mxu0 0.0
      %v6825 = vand.u32 %v6756, 4294901760
      %v6826 = vsub.f32 %v6756, %v6825
      %v6827 = vand.u32 %v6826, 4294901760
      %v6828 = vsub.f32 %v6826, %v6827
      %v6829 = vand.u32 %v6828, 4294901760
      %6830 = vmatmul.mubr.f32.gmra.mrb[0].mxu0 %v6829
      %v6831 = vpop.f32.mrb[0].mxu0
      %v6832 = vadd.f32 0.0, %v6831
      %v6833 = vpop.f32.mrb[0].mxu0
      %6834 = vdwg.mxu0
      %6835 = vmatprep.subr.mxu0 0.0
      %v6836 = vand.u32 %v6286, 4294901760
      %v6837 = vsub.f32 %v6286, %v6836
      %v6838 = vand.u32 %v6837, 4294901760
      %v6839 = vsub.f32 %v6837, %v6838
      %v6840 = vand.u32 %v6839, 4294901760
      %6841 = vmatpush1.msra.mxu0 %v6840
      %6842 = vmatprep.subr.mxu0 0.0
      %v6843 = vand.u32 %v6287, 4294901760
      %v6844 = vsub.f32 %v6287, %v6843
      %v6845 = vand.u32 %v6844, 4294901760
      %v6846 = vsub.f32 %v6844, %v6845
      %v6847 = vand.u32 %v6846, 4294901760
      %6848 = vmatpush1.msra.mxu0 %v6847
      %6849 = vmatprep.subr.mxu0 0.0
      %6850 = vmatpush1.msra.mxu0 0.0
      %6851 = vmatprep.subr.mxu0 0.0
      %6852 = vmatpush1.msra.mxu0 0.0
      %6853 = vmatprep.subr.mxu0 0.0
      %6854 = vmatpush1.msra.mxu0 0.0
      %6855 = vmatprep.subr.mxu0 0.0
      %6856 = vmatpush1.msra.mxu0 0.0
      %6857 = vmatprep.subr.mxu0 0.0
      %6858 = vmatpush1.msra.mxu0 0.0
      %6859 = vmatprep.subr.mxu0 0.0
      %6860 = vmatpush1.msra.mxu0 0.0
      %6861 = vmatprep.subr.mxu0 0.0
      %6862 = vmatpush1.msra.mxu0 0.0
      %6863 = vmatprep.subr.mxu0 0.0
      %6864 = vmatpush1.msra.mxu0 0.0
      %6865 = vmatprep.subr.mxu0 0.0
      %6866 = vmatpush1.msra.mxu0 0.0
      %6867 = vmatprep.subr.mxu0 0.0
      %6868 = vmatpush1.msra.mxu0 0.0
      %6869 = vmatprep.subr.mxu0 0.0
      %6870 = vmatpush1.msra.mxu0 0.0
      %6871 = vmatprep.subr.mxu0 0.0
      %6872 = vmatpush1.msra.mxu0 0.0
      %6873 = vmatprep.subr.mxu0 0.0
      %6874 = vmatpush1.msra.mxu0 0.0
      %6875 = vmatprep.subr.mxu0 0.0
      %6876 = vmatpush1.msra.mxu0 0.0
      %6877 = vmatprep.subr.mxu0 0.0
      %6878 = vmatpush1.msra.mxu0 0.0
      %6879 = vmatprep.subr.mxu0 0.0
      %6880 = vmatpush1.msra.mxu0 0.0
      %6881 = vmatprep.subr.mxu0 0.0
      %6882 = vmatpush1.msra.mxu0 0.0
      %6883 = vmatprep.subr.mxu0 0.0
      %6884 = vmatpush1.msra.mxu0 0.0
      %6885 = vmatprep.subr.mxu0 0.0
      %6886 = vmatpush1.msra.mxu0 0.0
      %6887 = vmatprep.subr.mxu0 0.0
      %6888 = vmatpush1.msra.mxu0 0.0
      %6889 = vmatprep.subr.mxu0 0.0
      %6890 = vmatpush1.msra.mxu0 0.0
      %6891 = vmatprep.subr.mxu0 0.0
      %6892 = vmatpush1.msra.mxu0 0.0
      %6893 = vmatprep.subr.mxu0 0.0
      %6894 = vmatpush1.msra.mxu0 0.0
      %6895 = vmatprep.subr.mxu0 0.0
      %6896 = vmatpush1.msra.mxu0 0.0
      %6897 = vmatprep.subr.mxu0 0.0
      %6898 = vmatpush1.msra.mxu0 0.0
      %6899 = vmatprep.subr.mxu0 0.0
      %6900 = vmatpush1.msra.mxu0 0.0
      %6901 = vmatprep.subr.mxu0 0.0
      %6902 = vmatpush1.msra.mxu0 0.0
      %6903 = vmatprep.subr.mxu0 0.0
      %6904 = vmatpush1.msra.mxu0 0.0
      %6905 = vmatprep.subr.mxu0 0.0
      %6906 = vmatpush1.msra.mxu0 0.0
      %6907 = vmatprep.subr.mxu0 0.0
      %6908 = vmatpush1.msra.mxu0 0.0
      %6909 = vmatprep.mubr.f32.mxu0 0.0
      %v6910 = vand.u32 %v6756, 4294901760
      %6911 = vmatmul.mubr.f32.gmra.mrb[0].mxu0 %v6910
      %v6912 = vpop.f32.mrb[0].mxu0
      %v6913 = vadd.f32 %v6832, %v6912
      %v6914 = vpop.f32.mrb[0].mxu0
      %6915 = vdwg.mxu0
      %6916 = vmatprep.subr.mxu0 0.0
      %v6917 = vand.u32 %v6286, 4294901760
      %v6918 = vsub.f32 %v6286, %v6917
      %6919 = vmatpush1.msra.mxu0 %v6918
      %6920 = vmatprep.subr.mxu0 0.0
      %v6921 = vand.u32 %v6287, 4294901760
      %v6922 = vsub.f32 %v6287, %v6921
      %6923 = vmatpush1.msra.mxu0 %v6922
      %6924 = vmatprep.subr.mxu0 0.0
      %6925 = vmatpush1.msra.mxu0 0.0
      %6926 = vmatprep.subr.mxu0 0.0
      %6927 = vmatpush1.msra.mxu0 0.0
      %6928 = vmatprep.subr.mxu0 0.0
      %6929 = vmatpush1.msra.mxu0 0.0
      %6930 = vmatprep.subr.mxu0 0.0
      %6931 = vmatpush1.msra.mxu0 0.0
      %6932 = vmatprep.subr.mxu0 0.0
      %6933 = vmatpush1.msra.mxu0 0.0
      %6934 = vmatprep.subr.mxu0 0.0
      %6935 = vmatpush1.msra.mxu0 0.0
      %6936 = vmatprep.subr.mxu0 0.0
      %6937 = vmatpush1.msra.mxu0 0.0
      %6938 = vmatprep.subr.mxu0 0.0
      %6939 = vmatpush1.msra.mxu0 0.0
      %6940 = vmatprep.subr.mxu0 0.0
      %6941 = vmatpush1.msra.mxu0 0.0
      %6942 = vmatprep.subr.mxu0 0.0
      %6943 = vmatpush1.msra.mxu0 0.0
      %6944 = vmatprep.subr.mxu0 0.0
      %6945 = vmatpush1.msra.mxu0 0.0
      %6946 = vmatprep.subr.mxu0 0.0
      %6947 = vmatpush1.msra.mxu0 0.0
      %6948 = vmatprep.subr.mxu0 0.0
      %6949 = vmatpush1.msra.mxu0 0.0
      %6950 = vmatprep.subr.mxu0 0.0
      %6951 = vmatpush1.msra.mxu0 0.0
      %6952 = vmatprep.subr.mxu0 0.0
      %6953 = vmatpush1.msra.mxu0 0.0
      %6954 = vmatprep.subr.mxu0 0.0
      %6955 = vmatpush1.msra.mxu0 0.0
      %6956 = vmatprep.subr.mxu0 0.0
      %6957 = vmatpush1.msra.mxu0 0.0
      %6958 = vmatprep.subr.mxu0 0.0
      %6959 = vmatpush1.msra.mxu0 0.0
      %6960 = vmatprep.subr.mxu0 0.0
      %6961 = vmatpush1.msra.mxu0 0.0
      %6962 = vmatprep.subr.mxu0 0.0
      %6963 = vmatpush1.msra.mxu0 0.0
      %6964 = vmatprep.subr.mxu0 0.0
      %6965 = vmatpush1.msra.mxu0 0.0
      %6966 = vmatprep.subr.mxu0 0.0
      %6967 = vmatpush1.msra.mxu0 0.0
      %6968 = vmatprep.subr.mxu0 0.0
      %6969 = vmatpush1.msra.mxu0 0.0
      %6970 = vmatprep.subr.mxu0 0.0
      %6971 = vmatpush1.msra.mxu0 0.0
      %6972 = vmatprep.subr.mxu0 0.0
      %6973 = vmatpush1.msra.mxu0 0.0
      %6974 = vmatprep.subr.mxu0 0.0
      %6975 = vmatpush1.msra.mxu0 0.0
      %6976 = vmatprep.subr.mxu0 0.0
      %6977 = vmatpush1.msra.mxu0 0.0
      %6978 = vmatprep.subr.mxu0 0.0
      %6979 = vmatpush1.msra.mxu0 0.0
      %6980 = vmatprep.subr.mxu0 0.0
      %6981 = vmatpush1.msra.mxu0 0.0
      %6982 = vmatprep.subr.mxu0 0.0
      %6983 = vmatpush1.msra.mxu0 0.0
      %6984 = vmatprep.mubr.f32.mxu0 0.0
      %v6985 = vand.u32 %v6756, 4294901760
      %v6986 = vsub.f32 %v6756, %v6985
      %6987 = vmatmul.mubr.f32.gmra.mrb[0].mxu0 %v6986
      %v6988 = vpop.f32.mrb[0].mxu0
      %v6989 = vadd.f32 %v6913, %v6988
      %v6990 = vpop.f32.mrb[0].mxu0
      %6991 = vdwg.mxu0
      %6992 = vmatprep.subr.mxu0 0.0
      %v6993 = vand.u32 %v6286, 4294901760
      %6994 = vmatpush1.msra.mxu0 %v6993
      %6995 = vmatprep.subr.mxu0 0.0
      %v6996 = vand.u32 %v6287, 4294901760
      %6997 = vmatpush1.msra.mxu0 %v6996
      %6998 = vmatprep.subr.mxu0 0.0
      %6999 = vmatpush1.msra.mxu0 0.0
      %7000 = vmatprep.subr.mxu0 0.0
      %7001 = vmatpush1.msra.mxu0 0.0
      %7002 = vmatprep.subr.mxu0 0.0
      %7003 = vmatpush1.msra.mxu0 0.0
      %7004 = vmatprep.subr.mxu0 0.0
      %7005 = vmatpush1.msra.mxu0 0.0
      %7006 = vmatprep.subr.mxu0 0.0
      %7007 = vmatpush1.msra.mxu0 0.0
      %7008 = vmatprep.subr.mxu0 0.0
      %7009 = vmatpush1.msra.mxu0 0.0
      %7010 = vmatprep.subr.mxu0 0.0
      %7011 = vmatpush1.msra.mxu0 0.0
      %7012 = vmatprep.subr.mxu0 0.0
      %7013 = vmatpush1.msra.mxu0 0.0
      %7014 = vmatprep.subr.mxu0 0.0
      %7015 = vmatpush1.msra.mxu0 0.0
      %7016 = vmatprep.subr.mxu0 0.0
      %7017 = vmatpush1.msra.mxu0 0.0
      %7018 = vmatprep.subr.mxu0 0.0
      %7019 = vmatpush1.msra.mxu0 0.0
      %7020 = vmatprep.subr.mxu0 0.0
      %7021 = vmatpush1.msra.mxu0 0.0
      %7022 = vmatprep.subr.mxu0 0.0
      %7023 = vmatpush1.msra.mxu0 0.0
      %7024 = vmatprep.subr.mxu0 0.0
      %7025 = vmatpush1.msra.mxu0 0.0
      %7026 = vmatprep.subr.mxu0 0.0
      %7027 = vmatpush1.msra.mxu0 0.0
      %7028 = vmatprep.subr.mxu0 0.0
      %7029 = vmatpush1.msra.mxu0 0.0
      %7030 = vmatprep.subr.mxu0 0.0
      %7031 = vmatpush1.msra.mxu0 0.0
      %7032 = vmatprep.subr.mxu0 0.0
      %7033 = vmatpush1.msra.mxu0 0.0
      %7034 = vmatprep.subr.mxu0 0.0
      %7035 = vmatpush1.msra.mxu0 0.0
      %7036 = vmatprep.subr.mxu0 0.0
      %7037 = vmatpush1.msra.mxu0 0.0
      %7038 = vmatprep.subr.mxu0 0.0
      %7039 = vmatpush1.msra.mxu0 0.0
      %7040 = vmatprep.subr.mxu0 0.0
      %7041 = vmatpush1.msra.mxu0 0.0
      %7042 = vmatprep.subr.mxu0 0.0
      %7043 = vmatpush1.msra.mxu0 0.0
      %7044 = vmatprep.subr.mxu0 0.0
      %7045 = vmatpush1.msra.mxu0 0.0
      %7046 = vmatprep.subr.mxu0 0.0
      %7047 = vmatpush1.msra.mxu0 0.0
      %7048 = vmatprep.subr.mxu0 0.0
      %7049 = vmatpush1.msra.mxu0 0.0
      %7050 = vmatprep.subr.mxu0 0.0
      %7051 = vmatpush1.msra.mxu0 0.0
      %7052 = vmatprep.subr.mxu0 0.0
      %7053 = vmatpush1.msra.mxu0 0.0
      %7054 = vmatprep.subr.mxu0 0.0
      %7055 = vmatpush1.msra.mxu0 0.0
      %7056 = vmatprep.subr.mxu0 0.0
      %7057 = vmatpush1.msra.mxu0 0.0
      %7058 = vmatprep.mubr.f32.mxu0 0.0
      %v7059 = vand.u32 %v6756, 4294901760
      %v7060 = vsub.f32 %v6756, %v7059
      %v7061 = vand.u32 %v7060, 4294901760
      %7062 = vmatmul.mubr.f32.gmra.mrb[0].mxu0 %v7061
      %v7063 = vpop.f32.mrb[0].mxu0
      %v7064 = vadd.f32 %v6989, %v7063
      %v7065 = vpop.f32.mrb[0].mxu0
      %7066 = vdwg.mxu0
      %7067 = vmatprep.subr.mxu0 0.0
      %v7068 = vand.u32 %v6286, 4294901760
      %v7069 = vsub.f32 %v6286, %v7068
      %v7070 = vand.u32 %v7069, 4294901760
      %7071 = vmatpush1.msra.mxu0 %v7070
      %7072 = vmatprep.subr.mxu0 0.0
      %v7073 = vand.u32 %v6287, 4294901760
      %v7074 = vsub.f32 %v6287, %v7073
      %v7075 = vand.u32 %v7074, 4294901760
      %7076 = vmatpush1.msra.mxu0 %v7075
      %7077 = vmatprep.subr.mxu0 0.0
      %7078 = vmatpush1.msra.mxu0 0.0
      %7079 = vmatprep.subr.mxu0 0.0
      %7080 = vmatpush1.msra.mxu0 0.0
      %7081 = vmatprep.subr.mxu0 0.0
      %7082 = vmatpush1.msra.mxu0 0.0
      %7083 = vmatprep.subr.mxu0 0.0
      %7084 = vmatpush1.msra.mxu0 0.0
      %7085 = vmatprep.subr.mxu0 0.0
      %7086 = vmatpush1.msra.mxu0 0.0
      %7087 = vmatprep.subr.mxu0 0.0
      %7088 = vmatpush1.msra.mxu0 0.0
      %7089 = vmatprep.subr.mxu0 0.0
      %7090 = vmatpush1.msra.mxu0 0.0
      %7091 = vmatprep.subr.mxu0 0.0
      %7092 = vmatpush1.msra.mxu0 0.0
      %7093 = vmatprep.subr.mxu0 0.0
      %7094 = vmatpush1.msra.mxu0 0.0
      %7095 = vmatprep.subr.mxu0 0.0
      %7096 = vmatpush1.msra.mxu0 0.0
      %7097 = vmatprep.subr.mxu0 0.0
      %7098 = vmatpush1.msra.mxu0 0.0
      %7099 = vmatprep.subr.mxu0 0.0
      %7100 = vmatpush1.msra.mxu0 0.0
      %7101 = vmatprep.subr.mxu0 0.0
      %7102 = vmatpush1.msra.mxu0 0.0
      %7103 = vmatprep.subr.mxu0 0.0
      %7104 = vmatpush1.msra.mxu0 0.0
      %7105 = vmatprep.subr.mxu0 0.0
      %7106 = vmatpush1.msra.mxu0 0.0
      %7107 = vmatprep.subr.mxu0 0.0
      %7108 = vmatpush1.msra.mxu0 0.0
      %7109 = vmatprep.subr.mxu0 0.0
      %7110 = vmatpush1.msra.mxu0 0.0
      %7111 = vmatprep.subr.mxu0 0.0
      %7112 = vmatpush1.msra.mxu0 0.0
      %7113 = vmatprep.subr.mxu0 0.0
      %7114 = vmatpush1.msra.mxu0 0.0
      %7115 = vmatprep.subr.mxu0 0.0
      %7116 = vmatpush1.msra.mxu0 0.0
      %7117 = vmatprep.subr.mxu0 0.0
      %7118 = vmatpush1.msra.mxu0 0.0
      %7119 = vmatprep.subr.mxu0 0.0
      %7120 = vmatpush1.msra.mxu0 0.0
      %7121 = vmatprep.subr.mxu0 0.0
      %7122 = vmatpush1.msra.mxu0 0.0
      %7123 = vmatprep.subr.mxu0 0.0
      %7124 = vmatpush1.msra.mxu0 0.0
      %7125 = vmatprep.subr.mxu0 0.0
      %7126 = vmatpush1.msra.mxu0 0.0
      %7127 = vmatprep.subr.mxu0 0.0
      %7128 = vmatpush1.msra.mxu0 0.0
      %7129 = vmatprep.subr.mxu0 0.0
      %7130 = vmatpush1.msra.mxu0 0.0
      %7131 = vmatprep.subr.mxu0 0.0
      %7132 = vmatpush1.msra.mxu0 0.0
      %7133 = vmatprep.subr.mxu0 0.0
      %7134 = vmatpush1.msra.mxu0 0.0
      %7135 = vmatprep.subr.mxu0 0.0
      %7136 = vmatpush1.msra.mxu0 0.0
      %7137 = vmatprep.mubr.f32.mxu0 0.0
      %v7138 = vand.u32 %v6756, 4294901760
      %7139 = vmatmul.mubr.f32.gmra.mrb[0].mxu0 %v7138
      %v7140 = vpop.f32.mrb[0].mxu0
      %v7141 = vadd.f32 %v7064, %v7140
      %v7142 = vpop.f32.mrb[0].mxu0
      %7143 = vdwg.mxu0
      %7144 = vmatprep.subr.mxu0 0.0
      %v7145 = vand.u32 %v6286, 4294901760
      %7146 = vmatpush1.msra.mxu0 %v7145
      %7147 = vmatprep.subr.mxu0 0.0
      %v7148 = vand.u32 %v6287, 4294901760
      %7149 = vmatpush1.msra.mxu0 %v7148
      %7150 = vmatprep.subr.mxu0 0.0
      %7151 = vmatpush1.msra.mxu0 0.0
      %7152 = vmatprep.subr.mxu0 0.0
      %7153 = vmatpush1.msra.mxu0 0.0
      %7154 = vmatprep.subr.mxu0 0.0
      %7155 = vmatpush1.msra.mxu0 0.0
      %7156 = vmatprep.subr.mxu0 0.0
      %7157 = vmatpush1.msra.mxu0 0.0
      %7158 = vmatprep.subr.mxu0 0.0
      %7159 = vmatpush1.msra.mxu0 0.0
      %7160 = vmatprep.subr.mxu0 0.0
      %7161 = vmatpush1.msra.mxu0 0.0
      %7162 = vmatprep.subr.mxu0 0.0
      %7163 = vmatpush1.msra.mxu0 0.0
      %7164 = vmatprep.subr.mxu0 0.0
      %7165 = vmatpush1.msra.mxu0 0.0
      %7166 = vmatprep.subr.mxu0 0.0
      %7167 = vmatpush1.msra.mxu0 0.0
      %7168 = vmatprep.subr.mxu0 0.0
      %7169 = vmatpush1.msra.mxu0 0.0
      %7170 = vmatprep.subr.mxu0 0.0
      %7171 = vmatpush1.msra.mxu0 0.0
      %7172 = vmatprep.subr.mxu0 0.0
      %7173 = vmatpush1.msra.mxu0 0.0
      %7174 = vmatprep.subr.mxu0 0.0
      %7175 = vmatpush1.msra.mxu0 0.0
      %7176 = vmatprep.subr.mxu0 0.0
      %7177 = vmatpush1.msra.mxu0 0.0
      %7178 = vmatprep.subr.mxu0 0.0
      %7179 = vmatpush1.msra.mxu0 0.0
      %7180 = vmatprep.subr.mxu0 0.0
      %7181 = vmatpush1.msra.mxu0 0.0
      %7182 = vmatprep.subr.mxu0 0.0
      %7183 = vmatpush1.msra.mxu0 0.0
      %7184 = vmatprep.subr.mxu0 0.0
      %7185 = vmatpush1.msra.mxu0 0.0
      %7186 = vmatprep.subr.mxu0 0.0
      %7187 = vmatpush1.msra.mxu0 0.0
      %7188 = vmatprep.subr.mxu0 0.0
      %7189 = vmatpush1.msra.mxu0 0.0
      %7190 = vmatprep.subr.mxu0 0.0
      %7191 = vmatpush1.msra.mxu0 0.0
      %7192 = vmatprep.subr.mxu0 0.0
      %7193 = vmatpush1.msra.mxu0 0.0
      %7194 = vmatprep.subr.mxu0 0.0
      %7195 = vmatpush1.msra.mxu0 0.0
      %7196 = vmatprep.subr.mxu0 0.0
      %7197 = vmatpush1.msra.mxu0 0.0
      %7198 = vmatprep.subr.mxu0 0.0
      %7199 = vmatpush1.msra.mxu0 0.0
      %7200 = vmatprep.subr.mxu0 0.0
      %7201 = vmatpush1.msra.mxu0 0.0
      %7202 = vmatprep.subr.mxu0 0.0
      %7203 = vmatpush1.msra.mxu0 0.0
      %7204 = vmatprep.subr.mxu0 0.0
      %7205 = vmatpush1.msra.mxu0 0.0
      %7206 = vmatprep.subr.mxu0 0.0
      %7207 = vmatpush1.msra.mxu0 0.0
      %7208 = vmatprep.subr.mxu0 0.0
      %7209 = vmatpush1.msra.mxu0 0.0
      %7210 = vmatprep.mubr.f32.mxu0 0.0
      %v7211 = vand.u32 %v6756, 4294901760
      %7212 = vmatmul.mubr.f32.gmra.mrb[0].mxu0 %v7211
      %v7213 = vpop.f32.mrb[0].mxu0
      %v7214 = vadd.f32 %v7141, %v7213
      %v7215 = vpop.f32.mrb[0].mxu0
      %7216 = vdwg.mxu0
      %v7217 = vmax.f32 %v6750, %v7214
      %v7218 = vld [vmem:[%s7] sm:$0xff]
      %v7219 = vld [vmem:[%s7 + $0x8] sm:$0xff]
      %v7220 = vld [vmem:[%s7 + $0x10] sm:$0xff]
      %v7221 = vld [vmem:[%s7 + $0x18] sm:$0xff]
      %v7222 = vld [vmem:[%s7 + $0x20] sm:$0xff]
      %v7223 = vld [vmem:[%s7 + $0x28] sm:$0xff]
      %v7224 = vld [vmem:[%s7 + $0x30] sm:$0xff]
      %v7225 = vld [vmem:[%s7 + $0x38] sm:$0xff]
      %v7226 = vld [vmem:[%s7 + $0x40] sm:$0xff]
      %v7227 = vld [vmem:[%s7 + $0x48] sm:$0xff]
      %v7228 = vld [vmem:[%s7 + $0x50] sm:$0xff]
      %v7229 = vld [vmem:[%s7 + $0x58] sm:$0xff]
      %v7230 = vld [vmem:[%s7 + $0x60] sm:$0xff]
      %v7231 = vld [vmem:[%s7 + $0x68] sm:$0xff]
      %v7232 = vld [vmem:[%s7 + $0x70] sm:$0xff]
      %v7233 = vld [vmem:[%s7 + $0x78] sm:$0xff]
      %7234 = vmatprep.subr.mxu0 0.0
      %v7235 = vand.u32 %v7218, 4294901760
      %7236 = vmatpush1.msra.mxu0 %v7235
      %7237 = vmatprep.subr.mxu0 0.0
      %v7238 = vand.u32 %v7219, 4294901760
      %7239 = vmatpush1.msra.mxu0 %v7238
      %7240 = vmatprep.subr.mxu0 0.0
      %v7241 = vand.u32 %v7220, 4294901760
      %7242 = vmatpush1.msra.mxu0 %v7241
      %7243 = vmatprep.subr.mxu0 0.0
      %v7244 = vand.u32 %v7221, 4294901760
      %7245 = vmatpush1.msra.mxu0 %v7244
      %7246 = vmatprep.subr.mxu0 0.0
      %v7247 = vand.u32 %v7222, 4294901760
      %7248 = vmatpush1.msra.mxu0 %v7247
      %7249 = vmatprep.subr.mxu0 0.0
      %v7250 = vand.u32 %v7223, 4294901760
      %7251 = vmatpush1.msra.mxu0 %v7250
      %7252 = vmatprep.subr.mxu0 0.0
      %v7253 = vand.u32 %v7224, 4294901760
      %7254 = vmatpush1.msra.mxu0 %v7253
      %7255 = vmatprep.subr.mxu0 0.0
      %v7256 = vand.u32 %v7225, 4294901760
      %7257 = vmatpush1.msra.mxu0 %v7256
      %7258 = vmatprep.subr.mxu0 0.0
      %v7259 = vand.u32 %v7226, 4294901760
      %7260 = vmatpush1.msra.mxu0 %v7259
      %7261 = vmatprep.subr.mxu0 0.0
      %v7262 = vand.u32 %v7227, 4294901760
      %7263 = vmatpush1.msra.mxu0 %v7262
      %7264 = vmatprep.subr.mxu0 0.0
      %v7265 = vand.u32 %v7228, 4294901760
      %7266 = vmatpush1.msra.mxu0 %v7265
      %7267 = vmatprep.subr.mxu0 0.0
      %v7268 = vand.u32 %v7229, 4294901760
      %7269 = vmatpush1.msra.mxu0 %v7268
      %7270 = vmatprep.subr.mxu0 0.0
      %v7271 = vand.u32 %v7230, 4294901760
      %7272 = vmatpush1.msra.mxu0 %v7271
      %7273 = vmatprep.subr.mxu0 0.0
      %v7274 = vand.u32 %v7231, 4294901760
      %7275 = vmatpush1.msra.mxu0 %v7274
      %7276 = vmatprep.subr.mxu0 0.0
      %v7277 = vand.u32 %v7232, 4294901760
      %7278 = vmatpush1.msra.mxu0 %v7277
      %7279 = vmatprep.subr.mxu0 0.0
      %v7280 = vand.u32 %v7233, 4294901760
      %7281 = vmatpush1.msra.mxu0 %v7280
      %7282 = vmatprep.subr.mxu0 0.0
      %7283 = vmatpush1.msra.mxu0 0.0
      %7284 = vmatprep.subr.mxu0 0.0
      %7285 = vmatpush1.msra.mxu0 0.0
      %7286 = vmatprep.subr.mxu0 0.0
      %7287 = vmatpush1.msra.mxu0 0.0
      %7288 = vmatprep.subr.mxu0 0.0
      %7289 = vmatpush1.msra.mxu0 0.0
      %7290 = vmatprep.subr.mxu0 0.0
      %7291 = vmatpush1.msra.mxu0 0.0
      %7292 = vmatprep.subr.mxu0 0.0
      %7293 = vmatpush1.msra.mxu0 0.0
      %7294 = vmatprep.subr.mxu0 0.0
      %7295 = vmatpush1.msra.mxu0 0.0
      %7296 = vmatprep.subr.mxu0 0.0
      %7297 = vmatpush1.msra.mxu0 0.0
      %7298 = vmatprep.subr.mxu0 0.0
      %7299 = vmatpush1.msra.mxu0 0.0
      %7300 = vmatprep.subr.mxu0 0.0
      %7301 = vmatpush1.msra.mxu0 0.0
      %7302 = vmatprep.subr.mxu0 0.0
      %7303 = vmatpush1.msra.mxu0 0.0
      %7304 = vmatprep.subr.mxu0 0.0
      %7305 = vmatpush1.msra.mxu0 0.0
      %7306 = vmatprep.subr.mxu0 0.0
      %7307 = vmatpush1.msra.mxu0 0.0
      %7308 = vmatprep.subr.mxu0 0.0
      %7309 = vmatpush1.msra.mxu0 0.0
      %7310 = vmatprep.subr.mxu0 0.0
      %7311 = vmatpush1.msra.mxu0 0.0
      %7312 = vmatprep.subr.mxu0 0.0
      %7313 = vmatpush1.msra.mxu0 0.0
      %7314 = vmatprep.mubr.f32.mxu0 0.0
      %v7315 = vand.u32 %v7217, 4294901760
      %v7316 = vsub.f32 %v7217, %v7315
      %v7317 = vand.u32 %v7316, 4294901760
      %v7318 = vsub.f32 %v7316, %v7317
      %v7319 = vand.u32 %v7318, 4294901760
      %7320 = vmatmul.mubr.f32.gmra.mrb[0].mxu0 %v7319
      %v7321 = vpop.f32.mrb[0].mxu0
      %v7322 = vadd.f32 0.0, %v7321
      %v7323 = vpop.f32.mrb[0].mxu0
      %7324 = vdwg.mxu0
      %7325 = vmatprep.subr.mxu0 0.0
      %v7326 = vand.u32 %v7218, 4294901760
      %v7327 = vsub.f32 %v7218, %v7326
      %v7328 = vand.u32 %v7327, 4294901760
      %v7329 = vsub.f32 %v7327, %v7328
      %v7330 = vand.u32 %v7329, 4294901760
      %7331 = vmatpush1.msra.mxu0 %v7330
      %7332 = vmatprep.subr.mxu0 0.0
      %v7333 = vand.u32 %v7219, 4294901760
      %v7334 = vsub.f32 %v7219, %v7333
      %v7335 = vand.u32 %v7334, 4294901760
      %v7336 = vsub.f32 %v7334, %v7335
      %v7337 = vand.u32 %v7336, 4294901760
      %7338 = vmatpush1.msra.mxu0 %v7337
      %7339 = vmatprep.subr.mxu0 0.0
      %v7340 = vand.u32 %v7220, 4294901760
      %v7341 = vsub.f32 %v7220, %v7340
      %v7342 = vand.u32 %v7341, 4294901760
      %v7343 = vsub.f32 %v7341, %v7342
      %v7344 = vand.u32 %v7343, 4294901760
      %7345 = vmatpush1.msra.mxu0 %v7344
      %7346 = vmatprep.subr.mxu0 0.0
      %v7347 = vand.u32 %v7221, 4294901760
      %v7348 = vsub.f32 %v7221, %v7347
      %v7349 = vand.u32 %v7348, 4294901760
      %v7350 = vsub.f32 %v7348, %v7349
      %v7351 = vand.u32 %v7350, 4294901760
      %7352 = vmatpush1.msra.mxu0 %v7351
      %7353 = vmatprep.subr.mxu0 0.0
      %v7354 = vand.u32 %v7222, 4294901760
      %v7355 = vsub.f32 %v7222, %v7354
      %v7356 = vand.u32 %v7355, 4294901760
      %v7357 = vsub.f32 %v7355, %v7356
      %v7358 = vand.u32 %v7357, 4294901760
      %7359 = vmatpush1.msra.mxu0 %v7358
      %7360 = vmatprep.subr.mxu0 0.0
      %v7361 = vand.u32 %v7223, 4294901760
      %v7362 = vsub.f32 %v7223, %v7361
      %v7363 = vand.u32 %v7362, 4294901760
      %v7364 = vsub.f32 %v7362, %v7363
      %v7365 = vand.u32 %v7364, 4294901760
      %7366 = vmatpush1.msra.mxu0 %v7365
      %7367 = vmatprep.subr.mxu0 0.0
      %v7368 = vand.u32 %v7224, 4294901760
      %v7369 = vsub.f32 %v7224, %v7368
      %v7370 = vand.u32 %v7369, 4294901760
      %v7371 = vsub.f32 %v7369, %v7370
      %v7372 = vand.u32 %v7371, 4294901760
      %7373 = vmatpush1.msra.mxu0 %v7372
      %7374 = vmatprep.subr.mxu0 0.0
      %v7375 = vand.u32 %v7225, 4294901760
      %v7376 = vsub.f32 %v7225, %v7375
      %v7377 = vand.u32 %v7376, 4294901760
      %v7378 = vsub.f32 %v7376, %v7377
      %v7379 = vand.u32 %v7378, 4294901760
      %7380 = vmatpush1.msra.mxu0 %v7379
      %7381 = vmatprep.subr.mxu0 0.0
      %v7382 = vand.u32 %v7226, 4294901760
      %v7383 = vsub.f32 %v7226, %v7382
      %v7384 = vand.u32 %v7383, 4294901760
      %v7385 = vsub.f32 %v7383, %v7384
      %v7386 = vand.u32 %v7385, 4294901760
      %7387 = vmatpush1.msra.mxu0 %v7386
      %7388 = vmatprep.subr.mxu0 0.0
      %v7389 = vand.u32 %v7227, 4294901760
      %v7390 = vsub.f32 %v7227, %v7389
      %v7391 = vand.u32 %v7390, 4294901760
      %v7392 = vsub.f32 %v7390, %v7391
      %v7393 = vand.u32 %v7392, 4294901760
      %7394 = vmatpush1.msra.mxu0 %v7393
      %7395 = vmatprep.subr.mxu0 0.0
      %v7396 = vand.u32 %v7228, 4294901760
      %v7397 = vsub.f32 %v7228, %v7396
      %v7398 = vand.u32 %v7397, 4294901760
      %v7399 = vsub.f32 %v7397, %v7398
      %v7400 = vand.u32 %v7399, 4294901760
      %7401 = vmatpush1.msra.mxu0 %v7400
      %7402 = vmatprep.subr.mxu0 0.0
      %v7403 = vand.u32 %v7229, 4294901760
      %v7404 = vsub.f32 %v7229, %v7403
      %v7405 = vand.u32 %v7404, 4294901760
      %v7406 = vsub.f32 %v7404, %v7405
      %v7407 = vand.u32 %v7406, 4294901760
      %7408 = vmatpush1.msra.mxu0 %v7407
      %7409 = vmatprep.subr.mxu0 0.0
      %v7410 = vand.u32 %v7230, 4294901760
      %v7411 = vsub.f32 %v7230, %v7410
      %v7412 = vand.u32 %v7411, 4294901760
      %v7413 = vsub.f32 %v7411, %v7412
      %v7414 = vand.u32 %v7413, 4294901760
      %7415 = vmatpush1.msra.mxu0 %v7414
      %7416 = vmatprep.subr.mxu0 0.0
      %v7417 = vand.u32 %v7231, 4294901760
      %v7418 = vsub.f32 %v7231, %v7417
      %v7419 = vand.u32 %v7418, 4294901760
      %v7420 = vsub.f32 %v7418, %v7419
      %v7421 = vand.u32 %v7420, 4294901760
      %7422 = vmatpush1.msra.mxu0 %v7421
      %7423 = vmatprep.subr.mxu0 0.0
      %v7424 = vand.u32 %v7232, 4294901760
      %v7425 = vsub.f32 %v7232, %v7424
      %v7426 = vand.u32 %v7425, 4294901760
      %v7427 = vsub.f32 %v7425, %v7426
      %v7428 = vand.u32 %v7427, 4294901760
      %7429 = vmatpush1.msra.mxu0 %v7428
      %7430 = vmatprep.subr.mxu0 0.0
      %v7431 = vand.u32 %v7233, 4294901760
      %v7432 = vsub.f32 %v7233, %v7431
      %v7433 = vand.u32 %v7432, 4294901760
      %v7434 = vsub.f32 %v7432, %v7433
      %v7435 = vand.u32 %v7434, 4294901760
      %7436 = vmatpush1.msra.mxu0 %v7435
      %7437 = vmatprep.subr.mxu0 0.0
      %7438 = vmatpush1.msra.mxu0 0.0
      %7439 = vmatprep.subr.mxu0 0.0
      %7440 = vmatpush1.msra.mxu0 0.0
      %7441 = vmatprep.subr.mxu0 0.0
      %7442 = vmatpush1.msra.mxu0 0.0
      %7443 = vmatprep.subr.mxu0 0.0
      %7444 = vmatpush1.msra.mxu0 0.0
      %7445 = vmatprep.subr.mxu0 0.0
      %7446 = vmatpush1.msra.mxu0 0.0
      %7447 = vmatprep.subr.mxu0 0.0
      %7448 = vmatpush1.msra.mxu0 0.0
      %7449 = vmatprep.subr.mxu0 0.0
      %7450 = vmatpush1.msra.mxu0 0.0
      %7451 = vmatprep.subr.mxu0 0.0
      %7452 = vmatpush1.msra.mxu0 0.0
      %7453 = vmatprep.subr.mxu0 0.0
      %7454 = vmatpush1.msra.mxu0 0.0
      %7455 = vmatprep.subr.mxu0 0.0
      %7456 = vmatpush1.msra.mxu0 0.0
      %7457 = vmatprep.subr.mxu0 0.0
      %7458 = vmatpush1.msra.mxu0 0.0
      %7459 = vmatprep.subr.mxu0 0.0
      %7460 = vmatpush1.msra.mxu0 0.0
      %7461 = vmatprep.subr.mxu0 0.0
      %7462 = vmatpush1.msra.mxu0 0.0
      %7463 = vmatprep.subr.mxu0 0.0
      %7464 = vmatpush1.msra.mxu0 0.0
      %7465 = vmatprep.subr.mxu0 0.0
      %7466 = vmatpush1.msra.mxu0 0.0
      %7467 = vmatprep.subr.mxu0 0.0
      %7468 = vmatpush1.msra.mxu0 0.0
      %7469 = vmatprep.mubr.f32.mxu0 0.0
      %v7470 = vand.u32 %v7217, 4294901760
      %7471 = vmatmul.mubr.f32.gmra.mrb[0].mxu0 %v7470
      %v7472 = vpop.f32.mrb[0].mxu0
      %v7473 = vadd.f32 %v7322, %v7472
      %v7474 = vpop.f32.mrb[0].mxu0
      %7475 = vdwg.mxu0
      %7476 = vmatprep.subr.mxu0 0.0
      %v7477 = vand.u32 %v7218, 4294901760
      %v7478 = vsub.f32 %v7218, %v7477
      %7479 = vmatpush1.msra.mxu0 %v7478
      %7480 = vmatprep.subr.mxu0 0.0
      %v7481 = vand.u32 %v7219, 4294901760
      %v7482 = vsub.f32 %v7219, %v7481
      %7483 = vmatpush1.msra.mxu0 %v7482
      %7484 = vmatprep.subr.mxu0 0.0
      %v7485 = vand.u32 %v7220, 4294901760
      %v7486 = vsub.f32 %v7220, %v7485
      %7487 = vmatpush1.msra.mxu0 %v7486
      %7488 = vmatprep.subr.mxu0 0.0
      %v7489 = vand.u32 %v7221, 4294901760
      %v7490 = vsub.f32 %v7221, %v7489
      %7491 = vmatpush1.msra.mxu0 %v7490
      %7492 = vmatprep.subr.mxu0 0.0
      %v7493 = vand.u32 %v7222, 4294901760
      %v7494 = vsub.f32 %v7222, %v7493
      %7495 = vmatpush1.msra.mxu0 %v7494
      %7496 = vmatprep.subr.mxu0 0.0
      %v7497 = vand.u32 %v7223, 4294901760
      %v7498 = vsub.f32 %v7223, %v7497
      %7499 = vmatpush1.msra.mxu0 %v7498
      %7500 = vmatprep.subr.mxu0 0.0
      %v7501 = vand.u32 %v7224, 4294901760
      %v7502 = vsub.f32 %v7224, %v7501
      %7503 = vmatpush1.msra.mxu0 %v7502
      %7504 = vmatprep.subr.mxu0 0.0
      %v7505 = vand.u32 %v7225, 4294901760
      %v7506 = vsub.f32 %v7225, %v7505
      %7507 = vmatpush1.msra.mxu0 %v7506
      %7508 = vmatprep.subr.mxu0 0.0
      %v7509 = vand.u32 %v7226, 4294901760
      %v7510 = vsub.f32 %v7226, %v7509
      %7511 = vmatpush1.msra.mxu0 %v7510
      %7512 = vmatprep.subr.mxu0 0.0
      %v7513 = vand.u32 %v7227, 4294901760
      %v7514 = vsub.f32 %v7227, %v7513
      %7515 = vmatpush1.msra.mxu0 %v7514
      %7516 = vmatprep.subr.mxu0 0.0
      %v7517 = vand.u32 %v7228, 4294901760
      %v7518 = vsub.f32 %v7228, %v7517
      %7519 = vmatpush1.msra.mxu0 %v7518
      %7520 = vmatprep.subr.mxu0 0.0
      %v7521 = vand.u32 %v7229, 4294901760
      %v7522 = vsub.f32 %v7229, %v7521
      %7523 = vmatpush1.msra.mxu0 %v7522
      %7524 = vmatprep.subr.mxu0 0.0
      %v7525 = vand.u32 %v7230, 4294901760
      %v7526 = vsub.f32 %v7230, %v7525
      %7527 = vmatpush1.msra.mxu0 %v7526
      %7528 = vmatprep.subr.mxu0 0.0
      %v7529 = vand.u32 %v7231, 4294901760
      %v7530 = vsub.f32 %v7231, %v7529
      %7531 = vmatpush1.msra.mxu0 %v7530
      %7532 = vmatprep.subr.mxu0 0.0
      %v7533 = vand.u32 %v7232, 4294901760
      %v7534 = vsub.f32 %v7232, %v7533
      %7535 = vmatpush1.msra.mxu0 %v7534
      %7536 = vmatprep.subr.mxu0 0.0
      %v7537 = vand.u32 %v7233, 4294901760
      %v7538 = vsub.f32 %v7233, %v7537
      %7539 = vmatpush1.msra.mxu0 %v7538
      %7540 = vmatprep.subr.mxu0 0.0
      %7541 = vmatpush1.msra.mxu0 0.0
      %7542 = vmatprep.subr.mxu0 0.0
      %7543 = vmatpush1.msra.mxu0 0.0
      %7544 = vmatprep.subr.mxu0 0.0
      %7545 = vmatpush1.msra.mxu0 0.0
      %7546 = vmatprep.subr.mxu0 0.0
      %7547 = vmatpush1.msra.mxu0 0.0
      %7548 = vmatprep.subr.mxu0 0.0
      %7549 = vmatpush1.msra.mxu0 0.0
      %7550 = vmatprep.subr.mxu0 0.0
      %7551 = vmatpush1.msra.mxu0 0.0
      %7552 = vmatprep.subr.mxu0 0.0
      %7553 = vmatpush1.msra.mxu0 0.0
      %7554 = vmatprep.subr.mxu0 0.0
      %7555 = vmatpush1.msra.mxu0 0.0
      %7556 = vmatprep.subr.mxu0 0.0
      %7557 = vmatpush1.msra.mxu0 0.0
      %7558 = vmatprep.subr.mxu0 0.0
      %7559 = vmatpush1.msra.mxu0 0.0
      %7560 = vmatprep.subr.mxu0 0.0
      %7561 = vmatpush1.msra.mxu0 0.0
      %7562 = vmatprep.subr.mxu0 0.0
      %7563 = vmatpush1.msra.mxu0 0.0
      %7564 = vmatprep.subr.mxu0 0.0
      %7565 = vmatpush1.msra.mxu0 0.0
      %7566 = vmatprep.subr.mxu0 0.0
      %7567 = vmatpush1.msra.mxu0 0.0
      %7568 = vmatprep.subr.mxu0 0.0
      %7569 = vmatpush1.msra.mxu0 0.0
      %7570 = vmatprep.subr.mxu0 0.0
      %7571 = vmatpush1.msra.mxu0 0.0
      %7572 = vmatprep.mubr.f32.mxu0 0.0
      %v7573 = vand.u32 %v7217, 4294901760
      %v7574 = vsub.f32 %v7217, %v7573
      %7575 = vmatmul.mubr.f32.gmra.mrb[0].mxu0 %v7574
      %v7576 = vpop.f32.mrb[0].mxu0
      %v7577 = vadd.f32 %v7473, %v7576
      %v7578 = vpop.f32.mrb[0].mxu0
      %7579 = vdwg.mxu0
      %7580 = vmatprep.subr.mxu0 0.0
      %v7581 = vand.u32 %v7218, 4294901760
      %7582 = vmatpush1.msra.mxu0 %v7581
      %7583 = vmatprep.subr.mxu0 0.0
      %v7584 = vand.u32 %v7219, 4294901760
      %7585 = vmatpush1.msra.mxu0 %v7584
      %7586 = vmatprep.subr.mxu0 0.0
      %v7587 = vand.u32 %v7220, 4294901760
      %7588 = vmatpush1.msra.mxu0 %v7587
      %7589 = vmatprep.subr.mxu0 0.0
      %v7590 = vand.u32 %v7221, 4294901760
      %7591 = vmatpush1.msra.mxu0 %v7590
      %7592 = vmatprep.subr.mxu0 0.0
      %v7593 = vand.u32 %v7222, 4294901760
      %7594 = vmatpush1.msra.mxu0 %v7593
      %7595 = vmatprep.subr.mxu0 0.0
      %v7596 = vand.u32 %v7223, 4294901760
      %7597 = vmatpush1.msra.mxu0 %v7596
      %7598 = vmatprep.subr.mxu0 0.0
      %v7599 = vand.u32 %v7224, 4294901760
      %7600 = vmatpush1.msra.mxu0 %v7599
      %7601 = vmatprep.subr.mxu0 0.0
      %v7602 = vand.u32 %v7225, 4294901760
      %7603 = vmatpush1.msra.mxu0 %v7602
      %7604 = vmatprep.subr.mxu0 0.0
      %v7605 = vand.u32 %v7226, 4294901760
      %7606 = vmatpush1.msra.mxu0 %v7605
      %7607 = vmatprep.subr.mxu0 0.0
      %v7608 = vand.u32 %v7227, 4294901760
      %7609 = vmatpush1.msra.mxu0 %v7608
      %7610 = vmatprep.subr.mxu0 0.0
      %v7611 = vand.u32 %v7228, 4294901760
      %7612 = vmatpush1.msra.mxu0 %v7611
      %7613 = vmatprep.subr.mxu0 0.0
      %v7614 = vand.u32 %v7229, 4294901760
      %7615 = vmatpush1.msra.mxu0 %v7614
      %7616 = vmatprep.subr.mxu0 0.0
      %v7617 = vand.u32 %v7230, 4294901760
      %7618 = vmatpush1.msra.mxu0 %v7617
      %7619 = vmatprep.subr.mxu0 0.0
      %v7620 = vand.u32 %v7231, 4294901760
      %7621 = vmatpush1.msra.mxu0 %v7620
      %7622 = vmatprep.subr.mxu0 0.0
      %v7623 = vand.u32 %v7232, 4294901760
      %7624 = vmatpush1.msra.mxu0 %v7623
      %7625 = vmatprep.subr.mxu0 0.0
      %v7626 = vand.u32 %v7233, 4294901760
      %7627 = vmatpush1.msra.mxu0 %v7626
      %7628 = vmatprep.subr.mxu0 0.0
      %7629 = vmatpush1.msra.mxu0 0.0
      %7630 = vmatprep.subr.mxu0 0.0
      %7631 = vmatpush1.msra.mxu0 0.0
      %7632 = vmatprep.subr.mxu0 0.0
      %7633 = vmatpush1.msra.mxu0 0.0
      %7634 = vmatprep.subr.mxu0 0.0
      %7635 = vmatpush1.msra.mxu0 0.0
      %7636 = vmatprep.subr.mxu0 0.0
      %7637 = vmatpush1.msra.mxu0 0.0
      %7638 = vmatprep.subr.mxu0 0.0
      %7639 = vmatpush1.msra.mxu0 0.0
      %7640 = vmatprep.subr.mxu0 0.0
      %7641 = vmatpush1.msra.mxu0 0.0
      %7642 = vmatprep.subr.mxu0 0.0
      %7643 = vmatpush1.msra.mxu0 0.0
      %7644 = vmatprep.subr.mxu0 0.0
      %7645 = vmatpush1.msra.mxu0 0.0
      %7646 = vmatprep.subr.mxu0 0.0
      %7647 = vmatpush1.msra.mxu0 0.0
      %7648 = vmatprep.subr.mxu0 0.0
      %7649 = vmatpush1.msra.mxu0 0.0
      %7650 = vmatprep.subr.mxu0 0.0
      %7651 = vmatpush1.msra.mxu0 0.0
      %7652 = vmatprep.subr.mxu0 0.0
      %7653 = vmatpush1.msra.mxu0 0.0
      %7654 = vmatprep.subr.mxu0 0.0
      %7655 = vmatpush1.msra.mxu0 0.0
      %7656 = vmatprep.subr.mxu0 0.0
      %7657 = vmatpush1.msra.mxu0 0.0
      %7658 = vmatprep.subr.mxu0 0.0
      %7659 = vmatpush1.msra.mxu0 0.0
      %7660 = vmatprep.mubr.f32.mxu0 0.0
      %v7661 = vand.u32 %v7217, 4294901760
      %v7662 = vsub.f32 %v7217, %v7661
      %v7663 = vand.u32 %v7662, 4294901760
      %7664 = vmatmul.mubr.f32.gmra.mrb[0].mxu0 %v7663
      %v7665 = vpop.f32.mrb[0].mxu0
      %v7666 = vadd.f32 %v7577, %v7665
      %v7667 = vpop.f32.mrb[0].mxu0
      %7668 = vdwg.mxu0
      %7669 = vmatprep.subr.mxu0 0.0
      %v7670 = vand.u32 %v7218, 4294901760
      %v7671 = vsub.f32 %v7218, %v7670
      %v7672 = vand.u32 %v7671, 4294901760
      %7673 = vmatpush1.msra.mxu0 %v7672
      %7674 = vmatprep.subr.mxu0 0.0
      %v7675 = vand.u32 %v7219, 4294901760
      %v7676 = vsub.f32 %v7219, %v7675
      %v7677 = vand.u32 %v7676, 4294901760
      %7678 = vmatpush1.msra.mxu0 %v7677
      %7679 = vmatprep.subr.mxu0 0.0
      %v7680 = vand.u32 %v7220, 4294901760
      %v7681 = vsub.f32 %v7220, %v7680
      %v7682 = vand.u32 %v7681, 4294901760
      %7683 = vmatpush1.msra.mxu0 %v7682
      %7684 = vmatprep.subr.mxu0 0.0
      %v7685 = vand.u32 %v7221, 4294901760
      %v7686 = vsub.f32 %v7221, %v7685
      %v7687 = vand.u32 %v7686, 4294901760
      %7688 = vmatpush1.msra.mxu0 %v7687
      %7689 = vmatprep.subr.mxu0 0.0
      %v7690 = vand.u32 %v7222, 4294901760
      %v7691 = vsub.f32 %v7222, %v7690
      %v7692 = vand.u32 %v7691, 4294901760
      %7693 = vmatpush1.msra.mxu0 %v7692
      %7694 = vmatprep.subr.mxu0 0.0
      %v7695 = vand.u32 %v7223, 4294901760
      %v7696 = vsub.f32 %v7223, %v7695
      %v7697 = vand.u32 %v7696, 4294901760
      %7698 = vmatpush1.msra.mxu0 %v7697
      %7699 = vmatprep.subr.mxu0 0.0
      %v7700 = vand.u32 %v7224, 4294901760
      %v7701 = vsub.f32 %v7224, %v7700
      %v7702 = vand.u32 %v7701, 4294901760
      %7703 = vmatpush1.msra.mxu0 %v7702
      %7704 = vmatprep.subr.mxu0 0.0
      %v7705 = vand.u32 %v7225, 4294901760
      %v7706 = vsub.f32 %v7225, %v7705
      %v7707 = vand.u32 %v7706, 4294901760
      %7708 = vmatpush1.msra.mxu0 %v7707
      %7709 = vmatprep.subr.mxu0 0.0
      %v7710 = vand.u32 %v7226, 4294901760
      %v7711 = vsub.f32 %v7226, %v7710
      %v7712 = vand.u32 %v7711, 4294901760
      %7713 = vmatpush1.msra.mxu0 %v7712
      %7714 = vmatprep.subr.mxu0 0.0
      %v7715 = vand.u32 %v7227, 4294901760
      %v7716 = vsub.f32 %v7227, %v7715
      %v7717 = vand.u32 %v7716, 4294901760
      %7718 = vmatpush1.msra.mxu0 %v7717
      %7719 = vmatprep.subr.mxu0 0.0
      %v7720 = vand.u32 %v7228, 4294901760
      %v7721 = vsub.f32 %v7228, %v7720
      %v7722 = vand.u32 %v7721, 4294901760
      %7723 = vmatpush1.msra.mxu0 %v7722
      %7724 = vmatprep.subr.mxu0 0.0
      %v7725 = vand.u32 %v7229, 4294901760
      %v7726 = vsub.f32 %v7229, %v7725
      %v7727 = vand.u32 %v7726, 4294901760
      %7728 = vmatpush1.msra.mxu0 %v7727
      %7729 = vmatprep.subr.mxu0 0.0
      %v7730 = vand.u32 %v7230, 4294901760
      %v7731 = vsub.f32 %v7230, %v7730
      %v7732 = vand.u32 %v7731, 4294901760
      %7733 = vmatpush1.msra.mxu0 %v7732
      %7734 = vmatprep.subr.mxu0 0.0
      %v7735 = vand.u32 %v7231, 4294901760
      %v7736 = vsub.f32 %v7231, %v7735
      %v7737 = vand.u32 %v7736, 4294901760
      %7738 = vmatpush1.msra.mxu0 %v7737
      %7739 = vmatprep.subr.mxu0 0.0
      %v7740 = vand.u32 %v7232, 4294901760
      %v7741 = vsub.f32 %v7232, %v7740
      %v7742 = vand.u32 %v7741, 4294901760
      %7743 = vmatpush1.msra.mxu0 %v7742
      %7744 = vmatprep.subr.mxu0 0.0
      %v7745 = vand.u32 %v7233, 4294901760
      %v7746 = vsub.f32 %v7233, %v7745
      %v7747 = vand.u32 %v7746, 4294901760
      %7748 = vmatpush1.msra.mxu0 %v7747
      %7749 = vmatprep.subr.mxu0 0.0
      %7750 = vmatpush1.msra.mxu0 0.0
      %7751 = vmatprep.subr.mxu0 0.0
      %7752 = vmatpush1.msra.mxu0 0.0
      %7753 = vmatprep.subr.mxu0 0.0
      %7754 = vmatpush1.msra.mxu0 0.0
      %7755 = vmatprep.subr.mxu0 0.0
      %7756 = vmatpush1.msra.mxu0 0.0
      %7757 = vmatprep.subr.mxu0 0.0
      %7758 = vmatpush1.msra.mxu0 0.0
      %7759 = vmatprep.subr.mxu0 0.0
      %7760 = vmatpush1.msra.mxu0 0.0
      %7761 = vmatprep.subr.mxu0 0.0
      %7762 = vmatpush1.msra.mxu0 0.0
      %7763 = vmatprep.subr.mxu0 0.0
      %7764 = vmatpush1.msra.mxu0 0.0
      %7765 = vmatprep.subr.mxu0 0.0
      %7766 = vmatpush1.msra.mxu0 0.0
      %7767 = vmatprep.subr.mxu0 0.0
      %7768 = vmatpush1.msra.mxu0 0.0
      %7769 = vmatprep.subr.mxu0 0.0
      %7770 = vmatpush1.msra.mxu0 0.0
      %7771 = vmatprep.subr.mxu0 0.0
      %7772 = vmatpush1.msra.mxu0 0.0
      %7773 = vmatprep.subr.mxu0 0.0
      %7774 = vmatpush1.msra.mxu0 0.0
      %7775 = vmatprep.subr.mxu0 0.0
      %7776 = vmatpush1.msra.mxu0 0.0
      %7777 = vmatprep.subr.mxu0 0.0
      %7778 = vmatpush1.msra.mxu0 0.0
      %7779 = vmatprep.subr.mxu0 0.0
      %7780 = vmatpush1.msra.mxu0 0.0
      %7781 = vmatprep.mubr.f32.mxu0 0.0
      %v7782 = vand.u32 %v7217, 4294901760
      %7783 = vmatmul.mubr.f32.gmra.mrb[0].mxu0 %v7782
      %v7784 = vpop.f32.mrb[0].mxu0
      %v7785 = vadd.f32 %v7666, %v7784
      %v7786 = vpop.f32.mrb[0].mxu0
      %7787 = vdwg.mxu0
      %7788 = vmatprep.subr.mxu0 0.0
      %v7789 = vand.u32 %v7218, 4294901760
      %7790 = vmatpush1.msra.mxu0 %v7789
      %7791 = vmatprep.subr.mxu0 0.0
      %v7792 = vand.u32 %v7219, 4294901760
      %7793 = vmatpush1.msra.mxu0 %v7792
      %7794 = vmatprep.subr.mxu0 0.0
      %v7795 = vand.u32 %v7220, 4294901760
      %7796 = vmatpush1.msra.mxu0 %v7795
      %7797 = vmatprep.subr.mxu0 0.0
      %v7798 = vand.u32 %v7221, 4294901760
      %7799 = vmatpush1.msra.mxu0 %v7798
      %7800 = vmatprep.subr.mxu0 0.0
      %v7801 = vand.u32 %v7222, 4294901760
      %7802 = vmatpush1.msra.mxu0 %v7801
      %7803 = vmatprep.subr.mxu0 0.0
      %v7804 = vand.u32 %v7223, 4294901760
      %7805 = vmatpush1.msra.mxu0 %v7804
      %7806 = vmatprep.subr.mxu0 0.0
      %v7807 = vand.u32 %v7224, 4294901760
      %7808 = vmatpush1.msra.mxu0 %v7807
      %7809 = vmatprep.subr.mxu0 0.0
      %v7810 = vand.u32 %v7225, 4294901760
      %7811 = vmatpush1.msra.mxu0 %v7810
      %7812 = vmatprep.subr.mxu0 0.0
      %v7813 = vand.u32 %v7226, 4294901760
      %7814 = vmatpush1.msra.mxu0 %v7813
      %7815 = vmatprep.subr.mxu0 0.0
      %v7816 = vand.u32 %v7227, 4294901760
      %7817 = vmatpush1.msra.mxu0 %v7816
      %7818 = vmatprep.subr.mxu0 0.0
      %v7819 = vand.u32 %v7228, 4294901760
      %7820 = vmatpush1.msra.mxu0 %v7819
      %7821 = vmatprep.subr.mxu0 0.0
      %v7822 = vand.u32 %v7229, 4294901760
      %7823 = vmatpush1.msra.mxu0 %v7822
      %7824 = vmatprep.subr.mxu0 0.0
      %v7825 = vand.u32 %v7230, 4294901760
      %7826 = vmatpush1.msra.mxu0 %v7825
      %7827 = vmatprep.subr.mxu0 0.0
      %v7828 = vand.u32 %v7231, 4294901760
      %7829 = vmatpush1.msra.mxu0 %v7828
      %7830 = vmatprep.subr.mxu0 0.0
      %v7831 = vand.u32 %v7232, 4294901760
      %7832 = vmatpush1.msra.mxu0 %v7831
      %7833 = vmatprep.subr.mxu0 0.0
      %v7834 = vand.u32 %v7233, 4294901760
      %7835 = vmatpush1.msra.mxu0 %v7834
      %7836 = vmatprep.subr.mxu0 0.0
      %7837 = vmatpush1.msra.mxu0 0.0
      %7838 = vmatprep.subr.mxu0 0.0
      %7839 = vmatpush1.msra.mxu0 0.0
      %7840 = vmatprep.subr.mxu0 0.0
      %7841 = vmatpush1.msra.mxu0 0.0
      %7842 = vmatprep.subr.mxu0 0.0
      %7843 = vmatpush1.msra.mxu0 0.0
      %7844 = vmatprep.subr.mxu0 0.0
      %7845 = vmatpush1.msra.mxu0 0.0
      %7846 = vmatprep.subr.mxu0 0.0
      %7847 = vmatpush1.msra.mxu0 0.0
      %7848 = vmatprep.subr.mxu0 0.0
      %7849 = vmatpush1.msra.mxu0 0.0
      %7850 = vmatprep.subr.mxu0 0.0
      %7851 = vmatpush1.msra.mxu0 0.0
      %7852 = vmatprep.subr.mxu0 0.0
      %7853 = vmatpush1.msra.mxu0 0.0
      %7854 = vmatprep.subr.mxu0 0.0
      %7855 = vmatpush1.msra.mxu0 0.0
      %7856 = vmatprep.subr.mxu0 0.0
      %7857 = vmatpush1.msra.mxu0 0.0
      %7858 = vmatprep.subr.mxu0 0.0
      %7859 = vmatpush1.msra.mxu0 0.0
      %7860 = vmatprep.subr.mxu0 0.0
      %7861 = vmatpush1.msra.mxu0 0.0
      %7862 = vmatprep.subr.mxu0 0.0
      %7863 = vmatpush1.msra.mxu0 0.0
      %7864 = vmatprep.subr.mxu0 0.0
      %7865 = vmatpush1.msra.mxu0 0.0
      %7866 = vmatprep.subr.mxu0 0.0
      %7867 = vmatpush1.msra.mxu0 0.0
      %7868 = vmatprep.mubr.f32.mxu0 0.0
      %v7869 = vand.u32 %v7217, 4294901760
      %7870 = vmatmul.mubr.f32.gmra.mrb[0].mxu0 %v7869
      %v7871 = vpop.f32.mrb[0].mxu0
      %v7872 = vadd.f32 %v7785, %v7871
      %v7873 = vpop.f32.mrb[0].mxu0
      %7874 = vdwg.mxu0
      %s7875 = scalar_lea.vmem %s7, 128
      %v7876 = vld [vmem:[%s7875] sm:$0xff]
      %v7877 = vld [vmem:[%s7875 + $0x8] sm:$0xff]
      %v7878 = vld [vmem:[%s7875 + $0x10] sm:$0xff]
      %v7879 = vld [vmem:[%s7875 + $0x18] sm:$0xff]
      %v7880 = vld [vmem:[%s7875 + $0x20] sm:$0xff]
      %v7881 = vld [vmem:[%s7875 + $0x28] sm:$0xff]
      %v7882 = vld [vmem:[%s7875 + $0x30] sm:$0xff]
      %v7883 = vld [vmem:[%s7875 + $0x38] sm:$0xff]
      %v7884 = vld [vmem:[%s7875 + $0x40] sm:$0xff]
      %v7885 = vld [vmem:[%s7875 + $0x48] sm:$0xff]
      %v7886 = vld [vmem:[%s7875 + $0x50] sm:$0xff]
      %v7887 = vld [vmem:[%s7875 + $0x58] sm:$0xff]
      %v7888 = vld [vmem:[%s7875 + $0x60] sm:$0xff]
      %v7889 = vld [vmem:[%s7875 + $0x68] sm:$0xff]
      %v7890 = vld [vmem:[%s7875 + $0x70] sm:$0xff]
      %v7891 = vld [vmem:[%s7875 + $0x78] sm:$0xff]
      %7892 = vmatprep.subr.mxu0 0.0
      %v7893 = vand.u32 %v7876, 4294901760
      %7894 = vmatpush1.msra.mxu0 %v7893
      %7895 = vmatprep.subr.mxu0 0.0
      %v7896 = vand.u32 %v7877, 4294901760
      %7897 = vmatpush1.msra.mxu0 %v7896
      %7898 = vmatprep.subr.mxu0 0.0
      %v7899 = vand.u32 %v7878, 4294901760
      %7900 = vmatpush1.msra.mxu0 %v7899
      %7901 = vmatprep.subr.mxu0 0.0
      %v7902 = vand.u32 %v7879, 4294901760
      %7903 = vmatpush1.msra.mxu0 %v7902
      %7904 = vmatprep.subr.mxu0 0.0
      %v7905 = vand.u32 %v7880, 4294901760
      %7906 = vmatpush1.msra.mxu0 %v7905
      %7907 = vmatprep.subr.mxu0 0.0
      %v7908 = vand.u32 %v7881, 4294901760
      %7909 = vmatpush1.msra.mxu0 %v7908
      %7910 = vmatprep.subr.mxu0 0.0
      %v7911 = vand.u32 %v7882, 4294901760
      %7912 = vmatpush1.msra.mxu0 %v7911
      %7913 = vmatprep.subr.mxu0 0.0
      %v7914 = vand.u32 %v7883, 4294901760
      %7915 = vmatpush1.msra.mxu0 %v7914
      %7916 = vmatprep.subr.mxu0 0.0
      %v7917 = vand.u32 %v7884, 4294901760
      %7918 = vmatpush1.msra.mxu0 %v7917
      %7919 = vmatprep.subr.mxu0 0.0
      %v7920 = vand.u32 %v7885, 4294901760
      %7921 = vmatpush1.msra.mxu0 %v7920
      %7922 = vmatprep.subr.mxu0 0.0
      %v7923 = vand.u32 %v7886, 4294901760
      %7924 = vmatpush1.msra.mxu0 %v7923
      %7925 = vmatprep.subr.mxu0 0.0
      %v7926 = vand.u32 %v7887, 4294901760
      %7927 = vmatpush1.msra.mxu0 %v7926
      %7928 = vmatprep.subr.mxu0 0.0
      %v7929 = vand.u32 %v7888, 4294901760
      %7930 = vmatpush1.msra.mxu0 %v7929
      %7931 = vmatprep.subr.mxu0 0.0
      %v7932 = vand.u32 %v7889, 4294901760
      %7933 = vmatpush1.msra.mxu0 %v7932
      %7934 = vmatprep.subr.mxu0 0.0
      %v7935 = vand.u32 %v7890, 4294901760
      %7936 = vmatpush1.msra.mxu0 %v7935
      %7937 = vmatprep.subr.mxu0 0.0
      %v7938 = vand.u32 %v7891, 4294901760
      %7939 = vmatpush1.msra.mxu0 %v7938
      %7940 = vmatprep.subr.mxu0 0.0
      %7941 = vmatpush1.msra.mxu0 0.0
      %7942 = vmatprep.subr.mxu0 0.0
      %7943 = vmatpush1.msra.mxu0 0.0
      %7944 = vmatprep.subr.mxu0 0.0
      %7945 = vmatpush1.msra.mxu0 0.0
      %7946 = vmatprep.subr.mxu0 0.0
      %7947 = vmatpush1.msra.mxu0 0.0
      %7948 = vmatprep.subr.mxu0 0.0
      %7949 = vmatpush1.msra.mxu0 0.0
      %7950 = vmatprep.subr.mxu0 0.0
      %7951 = vmatpush1.msra.mxu0 0.0
      %7952 = vmatprep.subr.mxu0 0.0
      %7953 = vmatpush1.msra.mxu0 0.0
      %7954 = vmatprep.subr.mxu0 0.0
      %7955 = vmatpush1.msra.mxu0 0.0
      %7956 = vmatprep.subr.mxu0 0.0
      %7957 = vmatpush1.msra.mxu0 0.0
      %7958 = vmatprep.subr.mxu0 0.0
      %7959 = vmatpush1.msra.mxu0 0.0
      %7960 = vmatprep.subr.mxu0 0.0
      %7961 = vmatpush1.msra.mxu0 0.0
      %7962 = vmatprep.subr.mxu0 0.0
      %7963 = vmatpush1.msra.mxu0 0.0
      %7964 = vmatprep.subr.mxu0 0.0
      %7965 = vmatpush1.msra.mxu0 0.0
      %7966 = vmatprep.subr.mxu0 0.0
      %7967 = vmatpush1.msra.mxu0 0.0
      %7968 = vmatprep.subr.mxu0 0.0
      %7969 = vmatpush1.msra.mxu0 0.0
      %7970 = vmatprep.subr.mxu0 0.0
      %7971 = vmatpush1.msra.mxu0 0.0
      %7972 = vmatprep.mubr.f32.mxu0 0.0
      %v7973 = vand.u32 %v7217, 4294901760
      %v7974 = vsub.f32 %v7217, %v7973
      %v7975 = vand.u32 %v7974, 4294901760
      %v7976 = vsub.f32 %v7974, %v7975
      %v7977 = vand.u32 %v7976, 4294901760
      %7978 = vmatmul.mubr.f32.gmra.mrb[0].mxu0 %v7977
      %v7979 = vpop.f32.mrb[0].mxu0
      %v7980 = vadd.f32 0.0, %v7979
      %v7981 = vpop.f32.mrb[0].mxu0
      %7982 = vdwg.mxu0
      %7983 = vmatprep.subr.mxu0 0.0
      %v7984 = vand.u32 %v7876, 4294901760
      %v7985 = vsub.f32 %v7876, %v7984
      %v7986 = vand.u32 %v7985, 4294901760
      %v7987 = vsub.f32 %v7985, %v7986
      %v7988 = vand.u32 %v7987, 4294901760
      %7989 = vmatpush1.msra.mxu0 %v7988
      %7990 = vmatprep.subr.mxu0 0.0
      %v7991 = vand.u32 %v7877, 4294901760
      %v7992 = vsub.f32 %v7877, %v7991
      %v7993 = vand.u32 %v7992, 4294901760
      %v7994 = vsub.f32 %v7992, %v7993
      %v7995 = vand.u32 %v7994, 4294901760
      %7996 = vmatpush1.msra.mxu0 %v7995
      %7997 = vmatprep.subr.mxu0 0.0
      %v7998 = vand.u32 %v7878, 4294901760
      %v7999 = vsub.f32 %v7878, %v7998
      %v8000 = vand.u32 %v7999, 4294901760
      %v8001 = vsub.f32 %v7999, %v8000
      %v8002 = vand.u32 %v8001, 4294901760
      %8003 = vmatpush1.msra.mxu0 %v8002
      %8004 = vmatprep.subr.mxu0 0.0
      %v8005 = vand.u32 %v7879, 4294901760
      %v8006 = vsub.f32 %v7879, %v8005
      %v8007 = vand.u32 %v8006, 4294901760
      %v8008 = vsub.f32 %v8006, %v8007
      %v8009 = vand.u32 %v8008, 4294901760
      %8010 = vmatpush1.msra.mxu0 %v8009
      %8011 = vmatprep.subr.mxu0 0.0
      %v8012 = vand.u32 %v7880, 4294901760
      %v8013 = vsub.f32 %v7880, %v8012
      %v8014 = vand.u32 %v8013, 4294901760
      %v8015 = vsub.f32 %v8013, %v8014
      %v8016 = vand.u32 %v8015, 4294901760
      %8017 = vmatpush1.msra.mxu0 %v8016
      %8018 = vmatprep.subr.mxu0 0.0
      %v8019 = vand.u32 %v7881, 4294901760
      %v8020 = vsub.f32 %v7881, %v8019
      %v8021 = vand.u32 %v8020, 4294901760
      %v8022 = vsub.f32 %v8020, %v8021
      %v8023 = vand.u32 %v8022, 4294901760
      %8024 = vmatpush1.msra.mxu0 %v8023
      %8025 = vmatprep.subr.mxu0 0.0
      %v8026 = vand.u32 %v7882, 4294901760
      %v8027 = vsub.f32 %v7882, %v8026
      %v8028 = vand.u32 %v8027, 4294901760
      %v8029 = vsub.f32 %v8027, %v8028
      %v8030 = vand.u32 %v8029, 4294901760
      %8031 = vmatpush1.msra.mxu0 %v8030
      %8032 = vmatprep.subr.mxu0 0.0
      %v8033 = vand.u32 %v7883, 4294901760
      %v8034 = vsub.f32 %v7883, %v8033
      %v8035 = vand.u32 %v8034, 4294901760
      %v8036 = vsub.f32 %v8034, %v8035
      %v8037 = vand.u32 %v8036, 4294901760
      %8038 = vmatpush1.msra.mxu0 %v8037
      %8039 = vmatprep.subr.mxu0 0.0
      %v8040 = vand.u32 %v7884, 4294901760
      %v8041 = vsub.f32 %v7884, %v8040
      %v8042 = vand.u32 %v8041, 4294901760
      %v8043 = vsub.f32 %v8041, %v8042
      %v8044 = vand.u32 %v8043, 4294901760
      %8045 = vmatpush1.msra.mxu0 %v8044
      %8046 = vmatprep.subr.mxu0 0.0
      %v8047 = vand.u32 %v7885, 4294901760
      %v8048 = vsub.f32 %v7885, %v8047
      %v8049 = vand.u32 %v8048, 4294901760
      %v8050 = vsub.f32 %v8048, %v8049
      %v8051 = vand.u32 %v8050, 4294901760
      %8052 = vmatpush1.msra.mxu0 %v8051
      %8053 = vmatprep.subr.mxu0 0.0
      %v8054 = vand.u32 %v7886, 4294901760
      %v8055 = vsub.f32 %v7886, %v8054
      %v8056 = vand.u32 %v8055, 4294901760
      %v8057 = vsub.f32 %v8055, %v8056
      %v8058 = vand.u32 %v8057, 4294901760
      %8059 = vmatpush1.msra.mxu0 %v8058
      %8060 = vmatprep.subr.mxu0 0.0
      %v8061 = vand.u32 %v7887, 4294901760
      %v8062 = vsub.f32 %v7887, %v8061
      %v8063 = vand.u32 %v8062, 4294901760
      %v8064 = vsub.f32 %v8062, %v8063
      %v8065 = vand.u32 %v8064, 4294901760
      %8066 = vmatpush1.msra.mxu0 %v8065
      %8067 = vmatprep.subr.mxu0 0.0
      %v8068 = vand.u32 %v7888, 4294901760
      %v8069 = vsub.f32 %v7888, %v8068
      %v8070 = vand.u32 %v8069, 4294901760
      %v8071 = vsub.f32 %v8069, %v8070
      %v8072 = vand.u32 %v8071, 4294901760
      %8073 = vmatpush1.msra.mxu0 %v8072
      %8074 = vmatprep.subr.mxu0 0.0
      %v8075 = vand.u32 %v7889, 4294901760
      %v8076 = vsub.f32 %v7889, %v8075
      %v8077 = vand.u32 %v8076, 4294901760
      %v8078 = vsub.f32 %v8076, %v8077
      %v8079 = vand.u32 %v8078, 4294901760
      %8080 = vmatpush1.msra.mxu0 %v8079
      %8081 = vmatprep.subr.mxu0 0.0
      %v8082 = vand.u32 %v7890, 4294901760
      %v8083 = vsub.f32 %v7890, %v8082
      %v8084 = vand.u32 %v8083, 4294901760
      %v8085 = vsub.f32 %v8083, %v8084
      %v8086 = vand.u32 %v8085, 4294901760
      %8087 = vmatpush1.msra.mxu0 %v8086
      %8088 = vmatprep.subr.mxu0 0.0
      %v8089 = vand.u32 %v7891, 4294901760
      %v8090 = vsub.f32 %v7891, %v8089
      %v8091 = vand.u32 %v8090, 4294901760
      %v8092 = vsub.f32 %v8090, %v8091
      %v8093 = vand.u32 %v8092, 4294901760
      %8094 = vmatpush1.msra.mxu0 %v8093
      %8095 = vmatprep.subr.mxu0 0.0
      %8096 = vmatpush1.msra.mxu0 0.0
      %8097 = vmatprep.subr.mxu0 0.0
      %8098 = vmatpush1.msra.mxu0 0.0
      %8099 = vmatprep.subr.mxu0 0.0
      %8100 = vmatpush1.msra.mxu0 0.0
      %8101 = vmatprep.subr.mxu0 0.0
      %8102 = vmatpush1.msra.mxu0 0.0
      %8103 = vmatprep.subr.mxu0 0.0
      %8104 = vmatpush1.msra.mxu0 0.0
      %8105 = vmatprep.subr.mxu0 0.0
      %8106 = vmatpush1.msra.mxu0 0.0
      %8107 = vmatprep.subr.mxu0 0.0
      %8108 = vmatpush1.msra.mxu0 0.0
      %8109 = vmatprep.subr.mxu0 0.0
      %8110 = vmatpush1.msra.mxu0 0.0
      %8111 = vmatprep.subr.mxu0 0.0
      %8112 = vmatpush1.msra.mxu0 0.0
      %8113 = vmatprep.subr.mxu0 0.0
      %8114 = vmatpush1.msra.mxu0 0.0
      %8115 = vmatprep.subr.mxu0 0.0
      %8116 = vmatpush1.msra.mxu0 0.0
      %8117 = vmatprep.subr.mxu0 0.0
      %8118 = vmatpush1.msra.mxu0 0.0
      %8119 = vmatprep.subr.mxu0 0.0
      %8120 = vmatpush1.msra.mxu0 0.0
      %8121 = vmatprep.subr.mxu0 0.0
      %8122 = vmatpush1.msra.mxu0 0.0
      %8123 = vmatprep.subr.mxu0 0.0
      %8124 = vmatpush1.msra.mxu0 0.0
      %8125 = vmatprep.subr.mxu0 0.0
      %8126 = vmatpush1.msra.mxu0 0.0
      %8127 = vmatprep.mubr.f32.mxu0 0.0
      %v8128 = vand.u32 %v7217, 4294901760
      %8129 = vmatmul.mubr.f32.gmra.mrb[0].mxu0 %v8128
      %v8130 = vpop.f32.mrb[0].mxu0
      %v8131 = vadd.f32 %v7980, %v8130
      %v8132 = vpop.f32.mrb[0].mxu0
      %8133 = vdwg.mxu0
      %8134 = vmatprep.subr.mxu0 0.0
      %v8135 = vand.u32 %v7876, 4294901760
      %v8136 = vsub.f32 %v7876, %v8135
      %8137 = vmatpush1.msra.mxu0 %v8136
      %8138 = vmatprep.subr.mxu0 0.0
      %v8139 = vand.u32 %v7877, 4294901760
      %v8140 = vsub.f32 %v7877, %v8139
      %8141 = vmatpush1.msra.mxu0 %v8140
      %8142 = vmatprep.subr.mxu0 0.0
      %v8143 = vand.u32 %v7878, 4294901760
      %v8144 = vsub.f32 %v7878, %v8143
      %8145 = vmatpush1.msra.mxu0 %v8144
      %8146 = vmatprep.subr.mxu0 0.0
      %v8147 = vand.u32 %v7879, 4294901760
      %v8148 = vsub.f32 %v7879, %v8147
      %8149 = vmatpush1.msra.mxu0 %v8148
      %8150 = vmatprep.subr.mxu0 0.0
      %v8151 = vand.u32 %v7880, 4294901760
      %v8152 = vsub.f32 %v7880, %v8151
      %8153 = vmatpush1.msra.mxu0 %v8152
      %8154 = vmatprep.subr.mxu0 0.0
      %v8155 = vand.u32 %v7881, 4294901760
      %v8156 = vsub.f32 %v7881, %v8155
      %8157 = vmatpush1.msra.mxu0 %v8156
      %8158 = vmatprep.subr.mxu0 0.0
      %v8159 = vand.u32 %v7882, 4294901760
      %v8160 = vsub.f32 %v7882, %v8159
      %8161 = vmatpush1.msra.mxu0 %v8160
      %8162 = vmatprep.subr.mxu0 0.0
      %v8163 = vand.u32 %v7883, 4294901760
      %v8164 = vsub.f32 %v7883, %v8163
      %8165 = vmatpush1.msra.mxu0 %v8164
      %8166 = vmatprep.subr.mxu0 0.0
      %v8167 = vand.u32 %v7884, 4294901760
      %v8168 = vsub.f32 %v7884, %v8167
      %8169 = vmatpush1.msra.mxu0 %v8168
      %8170 = vmatprep.subr.mxu0 0.0
      %v8171 = vand.u32 %v7885, 4294901760
      %v8172 = vsub.f32 %v7885, %v8171
      %8173 = vmatpush1.msra.mxu0 %v8172
      %8174 = vmatprep.subr.mxu0 0.0
      %v8175 = vand.u32 %v7886, 4294901760
      %v8176 = vsub.f32 %v7886, %v8175
      %8177 = vmatpush1.msra.mxu0 %v8176
      %8178 = vmatprep.subr.mxu0 0.0
      %v8179 = vand.u32 %v7887, 4294901760
      %v8180 = vsub.f32 %v7887, %v8179
      %8181 = vmatpush1.msra.mxu0 %v8180
      %8182 = vmatprep.subr.mxu0 0.0
      %v8183 = vand.u32 %v7888, 4294901760
      %v8184 = vsub.f32 %v7888, %v8183
      %8185 = vmatpush1.msra.mxu0 %v8184
      %8186 = vmatprep.subr.mxu0 0.0
      %v8187 = vand.u32 %v7889, 4294901760
      %v8188 = vsub.f32 %v7889, %v8187
      %8189 = vmatpush1.msra.mxu0 %v8188
      %8190 = vmatprep.subr.mxu0 0.0
      %v8191 = vand.u32 %v7890, 4294901760
      %v8192 = vsub.f32 %v7890, %v8191
      %8193 = vmatpush1.msra.mxu0 %v8192
      %8194 = vmatprep.subr.mxu0 0.0
      %v8195 = vand.u32 %v7891, 4294901760
      %v8196 = vsub.f32 %v7891, %v8195
      %8197 = vmatpush1.msra.mxu0 %v8196
      %8198 = vmatprep.subr.mxu0 0.0
      %8199 = vmatpush1.msra.mxu0 0.0
      %8200 = vmatprep.subr.mxu0 0.0
      %8201 = vmatpush1.msra.mxu0 0.0
      %8202 = vmatprep.subr.mxu0 0.0
      %8203 = vmatpush1.msra.mxu0 0.0
      %8204 = vmatprep.subr.mxu0 0.0
      %8205 = vmatpush1.msra.mxu0 0.0
      %8206 = vmatprep.subr.mxu0 0.0
      %8207 = vmatpush1.msra.mxu0 0.0
      %8208 = vmatprep.subr.mxu0 0.0
      %8209 = vmatpush1.msra.mxu0 0.0
      %8210 = vmatprep.subr.mxu0 0.0
      %8211 = vmatpush1.msra.mxu0 0.0
      %8212 = vmatprep.subr.mxu0 0.0
      %8213 = vmatpush1.msra.mxu0 0.0
      %8214 = vmatprep.subr.mxu0 0.0
      %8215 = vmatpush1.msra.mxu0 0.0
      %8216 = vmatprep.subr.mxu0 0.0
      %8217 = vmatpush1.msra.mxu0 0.0
      %8218 = vmatprep.subr.mxu0 0.0
      %8219 = vmatpush1.msra.mxu0 0.0
      %8220 = vmatprep.subr.mxu0 0.0
      %8221 = vmatpush1.msra.mxu0 0.0
      %8222 = vmatprep.subr.mxu0 0.0
      %8223 = vmatpush1.msra.mxu0 0.0
      %8224 = vmatprep.subr.mxu0 0.0
      %8225 = vmatpush1.msra.mxu0 0.0
      %8226 = vmatprep.subr.mxu0 0.0
      %8227 = vmatpush1.msra.mxu0 0.0
      %8228 = vmatprep.subr.mxu0 0.0
      %8229 = vmatpush1.msra.mxu0 0.0
      %8230 = vmatprep.mubr.f32.mxu0 0.0
      %v8231 = vand.u32 %v7217, 4294901760
      %v8232 = vsub.f32 %v7217, %v8231
      %8233 = vmatmul.mubr.f32.gmra.mrb[0].mxu0 %v8232
      %v8234 = vpop.f32.mrb[0].mxu0
      %v8235 = vadd.f32 %v8131, %v8234
      %v8236 = vpop.f32.mrb[0].mxu0
      %8237 = vdwg.mxu0
      %8238 = vmatprep.subr.mxu0 0.0
      %v8239 = vand.u32 %v7876, 4294901760
      %8240 = vmatpush1.msra.mxu0 %v8239
      %8241 = vmatprep.subr.mxu0 0.0
      %v8242 = vand.u32 %v7877, 4294901760
      %8243 = vmatpush1.msra.mxu0 %v8242
      %8244 = vmatprep.subr.mxu0 0.0
      %v8245 = vand.u32 %v7878, 4294901760
      %8246 = vmatpush1.msra.mxu0 %v8245
      %8247 = vmatprep.subr.mxu0 0.0
      %v8248 = vand.u32 %v7879, 4294901760
      %8249 = vmatpush1.msra.mxu0 %v8248
      %8250 = vmatprep.subr.mxu0 0.0
      %v8251 = vand.u32 %v7880, 4294901760
      %8252 = vmatpush1.msra.mxu0 %v8251
      %8253 = vmatprep.subr.mxu0 0.0
      %v8254 = vand.u32 %v7881, 4294901760
      %8255 = vmatpush1.msra.mxu0 %v8254
      %8256 = vmatprep.subr.mxu0 0.0
      %v8257 = vand.u32 %v7882, 4294901760
      %8258 = vmatpush1.msra.mxu0 %v8257
      %8259 = vmatprep.subr.mxu0 0.0
      %v8260 = vand.u32 %v7883, 4294901760
      %8261 = vmatpush1.msra.mxu0 %v8260
      %8262 = vmatprep.subr.mxu0 0.0
      %v8263 = vand.u32 %v7884, 4294901760
      %8264 = vmatpush1.msra.mxu0 %v8263
      %8265 = vmatprep.subr.mxu0 0.0
      %v8266 = vand.u32 %v7885, 4294901760
      %8267 = vmatpush1.msra.mxu0 %v8266
      %8268 = vmatprep.subr.mxu0 0.0
      %v8269 = vand.u32 %v7886, 4294901760
      %8270 = vmatpush1.msra.mxu0 %v8269
      %8271 = vmatprep.subr.mxu0 0.0
      %v8272 = vand.u32 %v7887, 4294901760
      %8273 = vmatpush1.msra.mxu0 %v8272
      %8274 = vmatprep.subr.mxu0 0.0
      %v8275 = vand.u32 %v7888, 4294901760
      %8276 = vmatpush1.msra.mxu0 %v8275
      %8277 = vmatprep.subr.mxu0 0.0
      %v8278 = vand.u32 %v7889, 4294901760
      %8279 = vmatpush1.msra.mxu0 %v8278
      %8280 = vmatprep.subr.mxu0 0.0
      %v8281 = vand.u32 %v7890, 4294901760
      %8282 = vmatpush1.msra.mxu0 %v8281
      %8283 = vmatprep.subr.mxu0 0.0
      %v8284 = vand.u32 %v7891, 4294901760
      %8285 = vmatpush1.msra.mxu0 %v8284
      %8286 = vmatprep.subr.mxu0 0.0
      %8287 = vmatpush1.msra.mxu0 0.0
      %8288 = vmatprep.subr.mxu0 0.0
      %8289 = vmatpush1.msra.mxu0 0.0
      %8290 = vmatprep.subr.mxu0 0.0
      %8291 = vmatpush1.msra.mxu0 0.0
      %8292 = vmatprep.subr.mxu0 0.0
      %8293 = vmatpush1.msra.mxu0 0.0
      %8294 = vmatprep.subr.mxu0 0.0
      %8295 = vmatpush1.msra.mxu0 0.0
      %8296 = vmatprep.subr.mxu0 0.0
      %8297 = vmatpush1.msra.mxu0 0.0
      %8298 = vmatprep.subr.mxu0 0.0
      %8299 = vmatpush1.msra.mxu0 0.0
      %8300 = vmatprep.subr.mxu0 0.0
      %8301 = vmatpush1.msra.mxu0 0.0
      %8302 = vmatprep.subr.mxu0 0.0
      %8303 = vmatpush1.msra.mxu0 0.0
      %8304 = vmatprep.subr.mxu0 0.0
      %8305 = vmatpush1.msra.mxu0 0.0
      %8306 = vmatprep.subr.mxu0 0.0
      %8307 = vmatpush1.msra.mxu0 0.0
      %8308 = vmatprep.subr.mxu0 0.0
      %8309 = vmatpush1.msra.mxu0 0.0
      %8310 = vmatprep.subr.mxu0 0.0
      %8311 = vmatpush1.msra.mxu0 0.0
      %8312 = vmatprep.subr.mxu0 0.0
      %8313 = vmatpush1.msra.mxu0 0.0
      %8314 = vmatprep.subr.mxu0 0.0
      %8315 = vmatpush1.msra.mxu0 0.0
      %8316 = vmatprep.subr.mxu0 0.0
      %8317 = vmatpush1.msra.mxu0 0.0
      %8318 = vmatprep.mubr.f32.mxu0 0.0
      %v8319 = vand.u32 %v7217, 4294901760
      %v8320 = vsub.f32 %v7217, %v8319
      %v8321 = vand.u32 %v8320, 4294901760
      %8322 = vmatmul.mubr.f32.gmra.mrb[0].mxu0 %v8321
      %v8323 = vpop.f32.mrb[0].mxu0
      %v8324 = vadd.f32 %v8235, %v8323
      %v8325 = vpop.f32.mrb[0].mxu0
      %8326 = vdwg.mxu0
      %8327 = vmatprep.subr.mxu0 0.0
      %v8328 = vand.u32 %v7876, 4294901760
      %v8329 = vsub.f32 %v7876, %v8328
      %v8330 = vand.u32 %v8329, 4294901760
      %8331 = vmatpush1.msra.mxu0 %v8330
      %8332 = vmatprep.subr.mxu0 0.0
      %v8333 = vand.u32 %v7877, 4294901760
      %v8334 = vsub.f32 %v7877, %v8333
      %v8335 = vand.u32 %v8334, 4294901760
      %8336 = vmatpush1.msra.mxu0 %v8335
      %8337 = vmatprep.subr.mxu0 0.0
      %v8338 = vand.u32 %v7878, 4294901760
      %v8339 = vsub.f32 %v7878, %v8338
      %v8340 = vand.u32 %v8339, 4294901760
      %8341 = vmatpush1.msra.mxu0 %v8340
      %8342 = vmatprep.subr.mxu0 0.0
      %v8343 = vand.u32 %v7879, 4294901760
      %v8344 = vsub.f32 %v7879, %v8343
      %v8345 = vand.u32 %v8344, 4294901760
      %8346 = vmatpush1.msra.mxu0 %v8345
      %8347 = vmatprep.subr.mxu0 0.0
      %v8348 = vand.u32 %v7880, 4294901760
      %v8349 = vsub.f32 %v7880, %v8348
      %v8350 = vand.u32 %v8349, 4294901760
      %8351 = vmatpush1.msra.mxu0 %v8350
      %8352 = vmatprep.subr.mxu0 0.0
      %v8353 = vand.u32 %v7881, 4294901760
      %v8354 = vsub.f32 %v7881, %v8353
      %v8355 = vand.u32 %v8354, 4294901760
      %8356 = vmatpush1.msra.mxu0 %v8355
      %8357 = vmatprep.subr.mxu0 0.0
      %v8358 = vand.u32 %v7882, 4294901760
      %v8359 = vsub.f32 %v7882, %v8358
      %v8360 = vand.u32 %v8359, 4294901760
      %8361 = vmatpush1.msra.mxu0 %v8360
      %8362 = vmatprep.subr.mxu0 0.0
      %v8363 = vand.u32 %v7883, 4294901760
      %v8364 = vsub.f32 %v7883, %v8363
      %v8365 = vand.u32 %v8364, 4294901760
      %8366 = vmatpush1.msra.mxu0 %v8365
      %8367 = vmatprep.subr.mxu0 0.0
      %v8368 = vand.u32 %v7884, 4294901760
      %v8369 = vsub.f32 %v7884, %v8368
      %v8370 = vand.u32 %v8369, 4294901760
      %8371 = vmatpush1.msra.mxu0 %v8370
      %8372 = vmatprep.subr.mxu0 0.0
      %v8373 = vand.u32 %v7885, 4294901760
      %v8374 = vsub.f32 %v7885, %v8373
      %v8375 = vand.u32 %v8374, 4294901760
      %8376 = vmatpush1.msra.mxu0 %v8375
      %8377 = vmatprep.subr.mxu0 0.0
      %v8378 = vand.u32 %v7886, 4294901760
      %v8379 = vsub.f32 %v7886, %v8378
      %v8380 = vand.u32 %v8379, 4294901760
      %8381 = vmatpush1.msra.mxu0 %v8380
      %8382 = vmatprep.subr.mxu0 0.0
      %v8383 = vand.u32 %v7887, 4294901760
      %v8384 = vsub.f32 %v7887, %v8383
      %v8385 = vand.u32 %v8384, 4294901760
      %8386 = vmatpush1.msra.mxu0 %v8385
      %8387 = vmatprep.subr.mxu0 0.0
      %v8388 = vand.u32 %v7888, 4294901760
      %v8389 = vsub.f32 %v7888, %v8388
      %v8390 = vand.u32 %v8389, 4294901760
      %8391 = vmatpush1.msra.mxu0 %v8390
      %8392 = vmatprep.subr.mxu0 0.0
      %v8393 = vand.u32 %v7889, 4294901760
      %v8394 = vsub.f32 %v7889, %v8393
      %v8395 = vand.u32 %v8394, 4294901760
      %8396 = vmatpush1.msra.mxu0 %v8395
      %8397 = vmatprep.subr.mxu0 0.0
      %v8398 = vand.u32 %v7890, 4294901760
      %v8399 = vsub.f32 %v7890, %v8398
      %v8400 = vand.u32 %v8399, 4294901760
      %8401 = vmatpush1.msra.mxu0 %v8400
      %8402 = vmatprep.subr.mxu0 0.0
      %v8403 = vand.u32 %v7891, 4294901760
      %v8404 = vsub.f32 %v7891, %v8403
      %v8405 = vand.u32 %v8404, 4294901760
      %8406 = vmatpush1.msra.mxu0 %v8405
      %8407 = vmatprep.subr.mxu0 0.0
      %8408 = vmatpush1.msra.mxu0 0.0
      %8409 = vmatprep.subr.mxu0 0.0
      %8410 = vmatpush1.msra.mxu0 0.0
      %8411 = vmatprep.subr.mxu0 0.0
      %8412 = vmatpush1.msra.mxu0 0.0
      %8413 = vmatprep.subr.mxu0 0.0
      %8414 = vmatpush1.msra.mxu0 0.0
      %8415 = vmatprep.subr.mxu0 0.0
      %8416 = vmatpush1.msra.mxu0 0.0
      %8417 = vmatprep.subr.mxu0 0.0
      %8418 = vmatpush1.msra.mxu0 0.0
      %8419 = vmatprep.subr.mxu0 0.0
      %8420 = vmatpush1.msra.mxu0 0.0
      %8421 = vmatprep.subr.mxu0 0.0
      %8422 = vmatpush1.msra.mxu0 0.0
      %8423 = vmatprep.subr.mxu0 0.0
      %8424 = vmatpush1.msra.mxu0 0.0
      %8425 = vmatprep.subr.mxu0 0.0
      %8426 = vmatpush1.msra.mxu0 0.0
      %8427 = vmatprep.subr.mxu0 0.0
      %8428 = vmatpush1.msra.mxu0 0.0
      %8429 = vmatprep.subr.mxu0 0.0
      %8430 = vmatpush1.msra.mxu0 0.0
      %8431 = vmatprep.subr.mxu0 0.0
      %8432 = vmatpush1.msra.mxu0 0.0
      %8433 = vmatprep.subr.mxu0 0.0
      %8434 = vmatpush1.msra.mxu0 0.0
      %8435 = vmatprep.subr.mxu0 0.0
      %8436 = vmatpush1.msra.mxu0 0.0
      %8437 = vmatprep.subr.mxu0 0.0
      %8438 = vmatpush1.msra.mxu0 0.0
      %8439 = vmatprep.mubr.f32.mxu0 0.0
      %v8440 = vand.u32 %v7217, 4294901760
      %8441 = vmatmul.mubr.f32.gmra.mrb[0].mxu0 %v8440
      %v8442 = vpop.f32.mrb[0].mxu0
      %v8443 = vadd.f32 %v8324, %v8442
      %v8444 = vpop.f32.mrb[0].mxu0
      %8445 = vdwg.mxu0
      %8446 = vmatprep.subr.mxu0 0.0
      %v8447 = vand.u32 %v7876, 4294901760
      %8448 = vmatpush1.msra.mxu0 %v8447
      %8449 = vmatprep.subr.mxu0 0.0
      %v8450 = vand.u32 %v7877, 4294901760
      %8451 = vmatpush1.msra.mxu0 %v8450
      %8452 = vmatprep.subr.mxu0 0.0
      %v8453 = vand.u32 %v7878, 4294901760
      %8454 = vmatpush1.msra.mxu0 %v8453
      %8455 = vmatprep.subr.mxu0 0.0
      %v8456 = vand.u32 %v7879, 4294901760
      %8457 = vmatpush1.msra.mxu0 %v8456
      %8458 = vmatprep.subr.mxu0 0.0
      %v8459 = vand.u32 %v7880, 4294901760
      %8460 = vmatpush1.msra.mxu0 %v8459
      %8461 = vmatprep.subr.mxu0 0.0
      %v8462 = vand.u32 %v7881, 4294901760
      %8463 = vmatpush1.msra.mxu0 %v8462
      %8464 = vmatprep.subr.mxu0 0.0
      %v8465 = vand.u32 %v7882, 4294901760
      %8466 = vmatpush1.msra.mxu0 %v8465
      %8467 = vmatprep.subr.mxu0 0.0
      %v8468 = vand.u32 %v7883, 4294901760
      %8469 = vmatpush1.msra.mxu0 %v8468
      %8470 = vmatprep.subr.mxu0 0.0
      %v8471 = vand.u32 %v7884, 4294901760
      %8472 = vmatpush1.msra.mxu0 %v8471
      %8473 = vmatprep.subr.mxu0 0.0
      %v8474 = vand.u32 %v7885, 4294901760
      %8475 = vmatpush1.msra.mxu0 %v8474
      %8476 = vmatprep.subr.mxu0 0.0
      %v8477 = vand.u32 %v7886, 4294901760
      %8478 = vmatpush1.msra.mxu0 %v8477
      %8479 = vmatprep.subr.mxu0 0.0
      %v8480 = vand.u32 %v7887, 4294901760
      %8481 = vmatpush1.msra.mxu0 %v8480
      %8482 = vmatprep.subr.mxu0 0.0
      %v8483 = vand.u32 %v7888, 4294901760
      %8484 = vmatpush1.msra.mxu0 %v8483
      %8485 = vmatprep.subr.mxu0 0.0
      %v8486 = vand.u32 %v7889, 4294901760
      %8487 = vmatpush1.msra.mxu0 %v8486
      %8488 = vmatprep.subr.mxu0 0.0
      %v8489 = vand.u32 %v7890, 4294901760
      %8490 = vmatpush1.msra.mxu0 %v8489
      %8491 = vmatprep.subr.mxu0 0.0
      %v8492 = vand.u32 %v7891, 4294901760
      %8493 = vmatpush1.msra.mxu0 %v8492
      %8494 = vmatprep.subr.mxu0 0.0
      %8495 = vmatpush1.msra.mxu0 0.0
      %8496 = vmatprep.subr.mxu0 0.0
      %8497 = vmatpush1.msra.mxu0 0.0
      %8498 = vmatprep.subr.mxu0 0.0
      %8499 = vmatpush1.msra.mxu0 0.0
      %8500 = vmatprep.subr.mxu0 0.0
      %8501 = vmatpush1.msra.mxu0 0.0
      %8502 = vmatprep.subr.mxu0 0.0
      %8503 = vmatpush1.msra.mxu0 0.0
      %8504 = vmatprep.subr.mxu0 0.0
      %8505 = vmatpush1.msra.mxu0 0.0
      %8506 = vmatprep.subr.mxu0 0.0
      %8507 = vmatpush1.msra.mxu0 0.0
      %8508 = vmatprep.subr.mxu0 0.0
      %8509 = vmatpush1.msra.mxu0 0.0
      %8510 = vmatprep.subr.mxu0 0.0
      %8511 = vmatpush1.msra.mxu0 0.0
      %8512 = vmatprep.subr.mxu0 0.0
      %8513 = vmatpush1.msra.mxu0 0.0
      %8514 = vmatprep.subr.mxu0 0.0
      %8515 = vmatpush1.msra.mxu0 0.0
      %8516 = vmatprep.subr.mxu0 0.0
      %8517 = vmatpush1.msra.mxu0 0.0
      %8518 = vmatprep.subr.mxu0 0.0
      %8519 = vmatpush1.msra.mxu0 0.0
      %8520 = vmatprep.subr.mxu0 0.0
      %8521 = vmatpush1.msra.mxu0 0.0
      %8522 = vmatprep.subr.mxu0 0.0
      %8523 = vmatpush1.msra.mxu0 0.0
      %8524 = vmatprep.subr.mxu0 0.0
      %8525 = vmatpush1.msra.mxu0 0.0
      %8526 = vmatprep.mubr.f32.mxu0 0.0
      %v8527 = vand.u32 %v7217, 4294901760
      %8528 = vmatmul.mubr.f32.gmra.mrb[0].mxu0 %v8527
      %v8529 = vpop.f32.mrb[0].mxu0
      %v8530 = vadd.f32 %v8443, %v8529
      %v8531 = vpop.f32.mrb[0].mxu0
      %8532 = vdwg.mxu0
      %v8533 = vmax.f32 %v7872, %v8530
      %8534 = vst.msk [vmem:[%s346] sm:$0xff] %vm880, %v8533
      %s8535 = smul.u32 2, %s21
      %p8536 = scmp.lt.s32.totalorder %s8535, 3
      %s8537 = scalar_select %p8536, %s8535, 3
      %s8538 = smul.addr %s8537, 8
      %s8539 = scalar_lea.vmem %s8, %s8538
      %p8540 = scmp.lt.s32.totalorder %s21, 1
      %s8541 = scalar_select %p8540, %s21, 1
      %s8542 = smul.addr %s8541, 8
      %s8543 = scalar_lea.vmem %s9, %s8542
      // Predicated region
      $region53: #{encoder_block.1} parent=51 // pred_check
        %p8544 = pneg %p212
      $region54: #{encoder_block.1} parent=51 // pred_check_branch
        %8546 = sbr.rel (%p8544) target = $region56
      $region55: #{encoder_block.1} parent=51 // pred_region
        %s8547 = smul.u32 2, %s21
      $region56: #{encoder_block.1} parent=51 // pred_fallthru
        _
      // Predicated region
      $region57: #{encoder_block.1} parent=51 // pred_check
        %p8548 = pneg %p238
      $region58: #{encoder_block.1} parent=51 // pred_check_branch
        %8550 = sbr.rel (%p8548) target = $region60
      $region59: #{encoder_block.1} parent=51 // pred_region
        _
      $region60: #{encoder_block.1} parent=51 // pred_fallthru
        _
    $region52: #{encoder_block.1} parent=5 // pred_fallthru
      _
    %p8551 = scmp.le.s32.totalorder 2, %s16
    // Predicated region
    $region61: #{encoder_block.1} parent=5 // pred_check
      %p8552 = pneg %p8551
    $region62: #{encoder_block.1} parent=5 // pred_check_branch
      %8554 = sbr.rel (%p8552) target = $region64
    $region63: #{encoder_block.1} parent=5 // pred_region
      %s8555 = ssub.s32 %s16, 2
      // Predicated region
      $region65: #{encoder_block.1} parent=63 // pred_check
        %p8556 = pneg %p218
      $region66: #{encoder_block.1} parent=63 // pred_check_branch
        %8558 = sbr.rel (%p8556) target = $region68
      $region67: #{encoder_block.1} parent=63 // pred_region
        %s8559 = smul.u32 2, %s22
        %p8560 = scmp.lt.s32.totalorder %s8559, 3
        %s8561 = scalar_select %p8560, %s8559, 3
        %s8562 = smul.addr %s8561, 8
        %s8563 = scalar_lea.vmem %s8, %s8562
      $region68: #{encoder_block.1} parent=63 // pred_fallthru
        _
      // Predicated region
      $region69: #{encoder_block.1} parent=63 // pred_check
        %p8564 = pneg %p244
      $region70: #{encoder_block.1} parent=63 // pred_check_branch
        %8566 = sbr.rel (%p8564) target = $region72
      $region71: #{encoder_block.1} parent=63 // pred_region
        %p8567 = scmp.lt.s32.totalorder %s22, 1
        %s8568 = scalar_select %p8567, %s22, 1
        %s8569 = smul.addr %s8568, 8
        %s8570 = scalar_lea.vmem %s9, %s8569
      $region72: #{encoder_block.1} parent=63 // pred_fallthru
        _
    $region64: #{encoder_block.1} parent=5 // pred_fallthru
      _
  $region6: #{encoder_block.1} parent=0 // loop_footer
    %s20 = sadd.s32 1, %s16
  $region7: #{encoder_block.1} parent=0 // loop_footer_branch
    %15 = sbr.rel target = $region3
  $region8: #{encoder_block.1} parent=0 // loop_exit
    _

</llo_original>
